<compile_context>
chip_gen: v7x
topology: tpu7x:2x2x1
jax: 0.10.0
libtpu: 0.0.40
codegen_flags: <defaults>
</compile_context>

<pallas_src>
import functools

import numpy as np
import jax
import jax.numpy as jnp
from jax import lax
from jax.experimental import pallas as pl
from jax.experimental.pallas import tpu as pltpu

EPS = 1e-5      # torch.nn.InstanceNorm2d default eps (affine=False, biased var)
_LPAD = 128     # zero guard band (lanes) on each side of the padded-flat rows


def _make_dense_block_kernel(H, W, C0, growth, num_layers):
    """Build the fused dense-block kernel (one sample per grid step)."""
    Hp, Wp = H + 2, W + 2
    P = Hp * Wp                       # padded-flat spatial length (lane dim)
    inv_hw = 1.0 / float(H * W)
    C_total = C0 + num_layers * growth

    def kernel(x_ref, mask_ref, *rest):
        # rest = (*w_refs, o_ref, feat_ref)
        w_refs = rest[:num_layers]
        o_ref, feat_ref = rest[num_layers:]
        fdt = feat_ref.dtype
        Pe = feat_ref.shape[1]

        mask = mask_ref[...]                       # (1, P) f32, 1 on interior pixels

        # ---- zero ONLY the guard bands; interior is fully rewritten each step ----
        feat_ref[:, 0:_LPAD] = jnp.zeros((C_total, _LPAD), fdt)
        feat_ref[:, _LPAD + P:Pe] = jnp.zeros((C_total, Pe - _LPAD - P), fdt)

        # ---- input channels: bf16 copy into the feature stack, exact f32
        #      passthrough of the interior rows to the output (dense concat) ----
        feat_ref[0:C0, _LPAD:_LPAD + P] = x_ref[0].astype(fdt)
        for h in range(H):
            s = (h + 1) * Wp + 1
            o_ref[0, 0:C0, h * W:(h + 1) * W] = x_ref[0, 0:C0, s:s + W]

        cin = C0
        for layer in range(num_layers):
            coff = C0 + layer * growth
            w_ref = w_refs[layer]                  # (9, growth, cin) bf16

            # ---- 9 per-tap MXU matmuls, accumulated in f32 (no im2col slab) ----
            acc = None
            for t in range(9):
                dh, dw = t // 3, t % 3
                src = _LPAD + (dh - 1) * Wp + (dw - 1)   # lane-shifted tap read
                tap = feat_ref[0:cin, src:src + P]       # (cin, P) bf16
                part = jnp.dot(w_ref[t], tap, preferred_element_type=jnp.float32)
                acc = part if acc is None else acc + part

            # ---- InstanceNorm2d (biased var, one masked pass) + ReLU, in f32 ----
            am = acc * mask
            mean = jnp.sum(am, axis=1, keepdims=True) * inv_hw
            var = jnp.maximum(
                jnp.sum(am * am, axis=1, keepdims=True) * inv_hw - mean * mean, 0.0)
            y = jnp.maximum((acc - mean) * lax.rsqrt(var + EPS), 0.0) * mask

            # bf16 writeback into the padded feature stack (pad ring stays zero
            # thanks to * mask); f32 interior rows straight to the output slab.
            feat_ref[coff:coff + growth, _LPAD:_LPAD + P] = y.astype(fdt)
            for h in range(H):
                s = (h + 1) * Wp + 1
                o_ref[0, coff:coff + growth, h * W:(h + 1) * W] = y[:, s:s + W]
            cin += growth

    return kernel


@functools.partial(jax.jit, static_argnames=("matmul_dtype",))
def dense_skip_block_forward(x_nchw, weights_oihw, matmul_dtype=jnp.bfloat16):
    """DenseSkipBlock forward.  x: (N, C, H, W) f32; weights: tuple of OIHW conv
    weights (growth, C + i*growth, 3, 3).  Returns (N, C + L*growth, H, W)."""
    N, C0, H, W = x_nchw.shape
    growth = weights_oihw[0].shape[0]
    num_layers = len(weights_oihw)
    Hp, Wp = H + 2, W + 2
    P = Hp * Wp
    Pe = P + 2 * _LPAD
    HW = H * W
    C_total = C0 + num_layers * growth

    # Pad spatially ONCE and flatten padded spatial into the lane dim (NCHW already
    # puts channels on the sublane-major axis of this layout; no transposes).
    xp = jnp.pad(x_nchw.astype(jnp.float32),
                 ((0, 0), (0, 0), (1, 1), (1, 1))).reshape(N, C0, P)

    # Interior mask over the padded-flat domain (built once, outside the kernel).
    mask = jnp.zeros((Hp, Wp), jnp.float32).at[1:1 + H, 1:1 + W].set(1.0)
    mask = mask.reshape(1, P)

    # OIHW -> (9, Cout, Cin): tap index t = dh*3 + dw, matching the in-kernel taps.
    w_taps = tuple(
        jnp.transpose(w, (2, 3, 0, 1)).reshape(9, w.shape[0], w.shape[1])
        .astype(matmul_dtype)
        for w in weights_oihw)

    kernel = _make_dense_block_kernel(H, W, C0, growth, num_layers)

    in_specs = [
        pl.BlockSpec((1, C0, P), lambda n: (n, 0, 0)),    # padded-flat input
        pl.BlockSpec((1, P), lambda n: (0, 0)),           # interior mask
    ] + [pl.BlockSpec(w.shape, lambda n: (0, 0, 0)) for w in w_taps]

    out_flat = pl.pallas_call(
        kernel,
        out_shape=jax.ShapeDtypeStruct((N, C_total, HW), jnp.float32),
        grid_spec=pltpu.PrefetchScalarGridSpec(
            num_scalar_prefetch=0,
            grid=(N,),
            in_specs=in_specs,
            out_specs=pl.BlockSpec((1, C_total, HW), lambda n: (n, 0, 0)),
            scratch_shapes=[
                pltpu.VMEM((C_total, Pe), matmul_dtype),   # bf16 feature stack
            ]),
        compiler_params=pltpu.CompilerParams(
            dimension_semantics=("parallel",),             # v7x: 2 TCs split batch
            vmem_limit_bytes=32 * 1024 * 1024),
    )(xp, mask, *w_taps)

    # Contiguous (N, C, H*W) -> (N, C, H, W): free metadata reshape (no crop pass).
    return out_flat.reshape(N, C_total, H, W)


def _dense_skip_block_reference(x, weights_oihw):
    """Pure-JAX f32 reference matching the PyTorch DenseSkipBlock exactly."""
    feats = [x]
    for w in weights_oihw:
        inp = jnp.concatenate(feats, axis=1)
        conv = lax.conv_general_dilated(
            inp, w, window_strides=(1, 1), padding=((1, 1), (1, 1)),
            dimension_numbers=("NCHW", "OIHW", "NCHW"),
            precision=lax.Precision.HIGHEST)
        mean = jnp.mean(conv, axis=(2, 3), keepdims=True)
        var = jnp.mean(jnp.square(conv - mean), axis=(2, 3), keepdims=True)
        feats.append(jnp.maximum((conv - mean) * lax.rsqrt(var + EPS), 0.0))
    return jnp.concatenate(feats, axis=1)


if __name__ == "__main__":
    # Shapes mirror DenseSkipBlock(out_channels=64, growth_rate=16, num_layers=3)
    # as instantiated inside Decoder/UpsampleBlock, at a small 16x16 spatial size.
    N, C0, H, W = 2, 64, 16, 16
    growth, num_layers = 16, 3

    key = jax.random.PRNGKey(0)
    kx, kw = jax.random.split(key)
    x = jax.random.normal(kx, (N, C0, H, W), jnp.float32)

    weights = []
    for i in range(num_layers):
        cin = C0 + i * growth
        kw, sub = jax.random.split(kw)
        weights.append(
            jax.random.normal(sub, (growth, cin, 3, 3), jnp.float32)
            / np.sqrt(9.0 * cin))
    weights = tuple(weights)

    out = dense_skip_block_forward(x, weights)           # bf16 matmuls, f32 accum
    out = jax.block_until_ready(out)

    assert out.shape == (N, C0 + num_layers * growth, H, W), out.shape
    assert bool(jnp.all(jnp.isfinite(out)))

    # Validate against the f32 reference (tolerance covers the bf16 MXU cast and
    # the one-pass variance).
    ref = _dense_skip_block_reference(x, weights)
    np.testing.assert_allclose(np.asarray(out), np.asarray(ref),
                               rtol=5e-2, atol=5e-2)

    print("KERNEL_OK")
</pallas_src>

<mosaic_0001>
module attributes {stable_mosaic.version = 11 : i64} {
  func.func @kernel(%arg0: i32, %arg1: memref<1x64x324xf32, #tpu.memory_space<vmem>>, %arg2: memref<1x324xf32, #tpu.memory_space<vmem>>, %arg3: memref<9x16x64xbf16, #tpu.memory_space<vmem>>, %arg4: memref<9x16x80xbf16, #tpu.memory_space<vmem>>, %arg5: memref<9x16x96xbf16, #tpu.memory_space<vmem>>, %arg6: memref<1x112x256xf32, #tpu.memory_space<vmem>>, %arg7: memref<112x580xbf16, #tpu.memory_space<vmem>>) attributes {dimension_semantics = [#tpu.dimension_semantics<parallel>], iteration_bounds = array<i64: 2>, scalar_prefetch = 0 : i64, scratch_operands = 1 : i64, tpu.core_type = #tpu.core_type<tc>, window_params = [{transform_indices = @transform_0, window_bounds = array<i64: 1, 64, 324>}, {pipeline_mode = #tpu.pipeline_mode<synchronous>, transform_indices = @transform_1, window_bounds = array<i64: 1, 324>}, {pipeline_mode = #tpu.pipeline_mode<synchronous>, transform_indices = @transform_2, window_bounds = array<i64: 9, 16, 64>}, {pipeline_mode = #tpu.pipeline_mode<synchronous>, transform_indices = @transform_3, window_bounds = array<i64: 9, 16, 80>}, {pipeline_mode = #tpu.pipeline_mode<synchronous>, transform_indices = @transform_4, window_bounds = array<i64: 9, 16, 96>}, {transform_indices = @transform_5, window_bounds = array<i64: 1, 112, 256>}]} {
    %c0 = arith.constant 0 : index
    %c0_0 = arith.constant 0 : index
    %0 = vector.load %arg2[%c0, %c0_0] : memref<1x324xf32, #tpu.memory_space<vmem>>, vector<1x324xf32>
    %cst = arith.constant 0.000000e+00 : bf16
    %1 = vector.broadcast %cst : bf16 to vector<112x128xbf16>
    %c0_1 = arith.constant 0 : index
    %c0_2 = arith.constant 0 : index
    %2 = vector.load %arg7[%c0_1, %c0_2] : memref<112x580xbf16, #tpu.memory_space<vmem>>, vector<112x128xbf16>
    tpu.vector_store %arg7[%c0_1, %c0_2], %1 {strides = array<i32>} : memref<112x580xbf16, #tpu.memory_space<vmem>>, vector<112x128xbf16>,
    %cst_3 = arith.constant 0.000000e+00 : bf16
    %3 = vector.broadcast %cst_3 : bf16 to vector<112x128xbf16>
    %c0_4 = arith.constant 0 : index
    %c452 = arith.constant 452 : index
    %4 = vector.load %arg7[%c0_4, %c452] : memref<112x580xbf16, #tpu.memory_space<vmem>>, vector<112x128xbf16>
    tpu.vector_store %arg7[%c0_4, %c452], %3 {strides = array<i32>} : memref<112x580xbf16, #tpu.memory_space<vmem>>, vector<112x128xbf16>,
    %c0_5 = arith.constant 0 : index
    %c0_6 = arith.constant 0 : index
    %c0_7 = arith.constant 0 : index
    %5 = vector.load %arg1[%c0_5, %c0_6, %c0_7] : memref<1x64x324xf32, #tpu.memory_space<vmem>>, vector<1x64x324xf32>
    %6 = vector.shape_cast %5 : vector<1x64x324xf32> to vector<64x324xf32>
    %7 = arith.truncf %6 : vector<64x324xf32> to vector<64x324xbf16>
    %c0_8 = arith.constant 0 : index
    %c128 = arith.constant 128 : index
    %8 = vector.load %arg7[%c0_8, %c128] : memref<112x580xbf16, #tpu.memory_space<vmem>>, vector<64x324xbf16>
    tpu.vector_store %arg7[%c0_8, %c128], %7 {strides = array<i32>} : memref<112x580xbf16, #tpu.memory_space<vmem>>, vector<64x324xbf16>,
    %c0_9 = arith.constant 0 : index
    %c0_10 = arith.constant 0 : index
    %c19 = arith.constant 19 : index
    %9 = vector.load %arg1[%c0_9, %c0_10, %c19] : memref<1x64x324xf32, #tpu.memory_space<vmem>>, vector<1x64x16xf32>
    %10 = vector.shape_cast %9 : vector<1x64x16xf32> to vector<64x16xf32>
    %c0_11 = arith.constant 0 : index
    %c0_12 = arith.constant 0 : index
    %c0_13 = arith.constant 0 : index
    %11 = vector.load %arg6[%c0_11, %c0_12, %c0_13] : memref<1x112x256xf32, #tpu.memory_space<vmem>>, vector<1x64x16xf32>
    %12 = vector.shape_cast %11 : vector<1x64x16xf32> to vector<64x16xf32>
    %13 = vector.shape_cast %10 : vector<64x16xf32> to vector<1x64x16xf32>
    tpu.vector_store %arg6[%c0_11, %c0_12, %c0_13], %13 {strides = array<i32>} : memref<1x112x256xf32, #tpu.memory_space<vmem>>, vector<1x64x16xf32>,
    %c0_14 = arith.constant 0 : index
    %c0_15 = arith.constant 0 : index
    %c37 = arith.constant 37 : index
    %14 = vector.load %arg1[%c0_14, %c0_15, %c37] : memref<1x64x324xf32, #tpu.memory_space<vmem>>, vector<1x64x16xf32>
    %15 = vector.shape_cast %14 : vector<1x64x16xf32> to vector<64x16xf32>
    %c0_16 = arith.constant 0 : index
    %c0_17 = arith.constant 0 : index
    %c16 = arith.constant 16 : index
    %16 = vector.load %arg6[%c0_16, %c0_17, %c16] : memref<1x112x256xf32, #tpu.memory_space<vmem>>, vector<1x64x16xf32>
    %17 = vector.shape_cast %16 : vector<1x64x16xf32> to vector<64x16xf32>
    %18 = vector.shape_cast %15 : vector<64x16xf32> to vector<1x64x16xf32>
    tpu.vector_store %arg6[%c0_16, %c0_17, %c16], %18 {strides = array<i32>} : memref<1x112x256xf32, #tpu.memory_space<vmem>>, vector<1x64x16xf32>,
    %c0_18 = arith.constant 0 : index
    %c0_19 = arith.constant 0 : index
    %c55 = arith.constant 55 : index
    %19 = vector.load %arg1[%c0_18, %c0_19, %c55] : memref<1x64x324xf32, #tpu.memory_space<vmem>>, vector<1x64x16xf32>
    %20 = vector.shape_cast %19 : vector<1x64x16xf32> to vector<64x16xf32>
    %c0_20 = arith.constant 0 : index
    %c0_21 = arith.constant 0 : index
    %c32 = arith.constant 32 : index
    %21 = vector.load %arg6[%c0_20, %c0_21, %c32] : memref<1x112x256xf32, #tpu.memory_space<vmem>>, vector<1x64x16xf32>
    %22 = vector.shape_cast %21 : vector<1x64x16xf32> to vector<64x16xf32>
    %23 = vector.shape_cast %20 : vector<64x16xf32> to vector<1x64x16xf32>
    tpu.vector_store %arg6[%c0_20, %c0_21, %c32], %23 {strides = array<i32>} : memref<1x112x256xf32, #tpu.memory_space<vmem>>, vector<1x64x16xf32>,
    %c0_22 = arith.constant 0 : index
    %c0_23 = arith.constant 0 : index
    %c73 = arith.constant 73 : index
    %24 = vector.load %arg1[%c0_22, %c0_23, %c73] : memref<1x64x324xf32, #tpu.memory_space<vmem>>, vector<1x64x16xf32>
    %25 = vector.shape_cast %24 : vector<1x64x16xf32> to vector<64x16xf32>
    %c0_24 = arith.constant 0 : index
    %c0_25 = arith.constant 0 : index
    %c48 = arith.constant 48 : index
    %26 = vector.load %arg6[%c0_24, %c0_25, %c48] : memref<1x112x256xf32, #tpu.memory_space<vmem>>, vector<1x64x16xf32>
    %27 = vector.shape_cast %26 : vector<1x64x16xf32> to vector<64x16xf32>
    %28 = vector.shape_cast %25 : vector<64x16xf32> to vector<1x64x16xf32>
    tpu.vector_store %arg6[%c0_24, %c0_25, %c48], %28 {strides = array<i32>} : memref<1x112x256xf32, #tpu.memory_space<vmem>>, vector<1x64x16xf32>,
    %c0_26 = arith.constant 0 : index
    %c0_27 = arith.constant 0 : index
    %c91 = arith.constant 91 : index
    %29 = vector.load %arg1[%c0_26, %c0_27, %c91] : memref<1x64x324xf32, #tpu.memory_space<vmem>>, vector<1x64x16xf32>
    %30 = vector.shape_cast %29 : vector<1x64x16xf32> to vector<64x16xf32>
    %c0_28 = arith.constant 0 : index
    %c0_29 = arith.constant 0 : index
    %c64 = arith.constant 64 : index
    %31 = vector.load %arg6[%c0_28, %c0_29, %c64] : memref<1x112x256xf32, #tpu.memory_space<vmem>>, vector<1x64x16xf32>
    %32 = vector.shape_cast %31 : vector<1x64x16xf32> to vector<64x16xf32>
    %33 = vector.shape_cast %30 : vector<64x16xf32> to vector<1x64x16xf32>
    tpu.vector_store %arg6[%c0_28, %c0_29, %c64], %33 {strides = array<i32>} : memref<1x112x256xf32, #tpu.memory_space<vmem>>, vector<1x64x16xf32>,
    %c0_30 = arith.constant 0 : index
    %c0_31 = arith.constant 0 : index
    %c109 = arith.constant 109 : index
    %34 = vector.load %arg1[%c0_30, %c0_31, %c109] : memref<1x64x324xf32, #tpu.memory_space<vmem>>, vector<1x64x16xf32>
    %35 = vector.shape_cast %34 : vector<1x64x16xf32> to vector<64x16xf32>
    %c0_32 = arith.constant 0 : index
    %c0_33 = arith.constant 0 : index
    %c80 = arith.constant 80 : index
    %36 = vector.load %arg6[%c0_32, %c0_33, %c80] : memref<1x112x256xf32, #tpu.memory_space<vmem>>, vector<1x64x16xf32>
    %37 = vector.shape_cast %36 : vector<1x64x16xf32> to vector<64x16xf32>
    %38 = vector.shape_cast %35 : vector<64x16xf32> to vector<1x64x16xf32>
    tpu.vector_store %arg6[%c0_32, %c0_33, %c80], %38 {strides = array<i32>} : memref<1x112x256xf32, #tpu.memory_space<vmem>>, vector<1x64x16xf32>,
    %c0_34 = arith.constant 0 : index
    %c0_35 = arith.constant 0 : index
    %c127 = arith.constant 127 : index
    %39 = vector.load %arg1[%c0_34, %c0_35, %c127] : memref<1x64x324xf32, #tpu.memory_space<vmem>>, vector<1x64x16xf32>
    %40 = vector.shape_cast %39 : vector<1x64x16xf32> to vector<64x16xf32>
    %c0_36 = arith.constant 0 : index
    %c0_37 = arith.constant 0 : index
    %c96 = arith.constant 96 : index
    %41 = vector.load %arg6[%c0_36, %c0_37, %c96] : memref<1x112x256xf32, #tpu.memory_space<vmem>>, vector<1x64x16xf32>
    %42 = vector.shape_cast %41 : vector<1x64x16xf32> to vector<64x16xf32>
    %43 = vector.shape_cast %40 : vector<64x16xf32> to vector<1x64x16xf32>
    tpu.vector_store %arg6[%c0_36, %c0_37, %c96], %43 {strides = array<i32>} : memref<1x112x256xf32, #tpu.memory_space<vmem>>, vector<1x64x16xf32>,
    %c0_38 = arith.constant 0 : index
    %c0_39 = arith.constant 0 : index
    %c145 = arith.constant 145 : index
    %44 = vector.load %arg1[%c0_38, %c0_39, %c145] : memref<1x64x324xf32, #tpu.memory_space<vmem>>, vector<1x64x16xf32>
    %45 = vector.shape_cast %44 : vector<1x64x16xf32> to vector<64x16xf32>
    %c0_40 = arith.constant 0 : index
    %c0_41 = arith.constant 0 : index
    %c112 = arith.constant 112 : index
    %46 = vector.load %arg6[%c0_40, %c0_41, %c112] : memref<1x112x256xf32, #tpu.memory_space<vmem>>, vector<1x64x16xf32>
    %47 = vector.shape_cast %46 : vector<1x64x16xf32> to vector<64x16xf32>
    %48 = vector.shape_cast %45 : vector<64x16xf32> to vector<1x64x16xf32>
    tpu.vector_store %arg6[%c0_40, %c0_41, %c112], %48 {strides = array<i32>} : memref<1x112x256xf32, #tpu.memory_space<vmem>>, vector<1x64x16xf32>,
    %c0_42 = arith.constant 0 : index
    %c0_43 = arith.constant 0 : index
    %c163 = arith.constant 163 : index
    %49 = vector.load %arg1[%c0_42, %c0_43, %c163] : memref<1x64x324xf32, #tpu.memory_space<vmem>>, vector<1x64x16xf32>
    %50 = vector.shape_cast %49 : vector<1x64x16xf32> to vector<64x16xf32>
    %c0_44 = arith.constant 0 : index
    %c0_45 = arith.constant 0 : index
    %c128_46 = arith.constant 128 : index
    %51 = vector.load %arg6[%c0_44, %c0_45, %c128_46] : memref<1x112x256xf32, #tpu.memory_space<vmem>>, vector<1x64x16xf32>
    %52 = vector.shape_cast %51 : vector<1x64x16xf32> to vector<64x16xf32>
    %53 = vector.shape_cast %50 : vector<64x16xf32> to vector<1x64x16xf32>
    tpu.vector_store %arg6[%c0_44, %c0_45, %c128_46], %53 {strides = array<i32>} : memref<1x112x256xf32, #tpu.memory_space<vmem>>, vector<1x64x16xf32>,
    %c0_47 = arith.constant 0 : index
    %c0_48 = arith.constant 0 : index
    %c181 = arith.constant 181 : index
    %54 = vector.load %arg1[%c0_47, %c0_48, %c181] : memref<1x64x324xf32, #tpu.memory_space<vmem>>, vector<1x64x16xf32>
    %55 = vector.shape_cast %54 : vector<1x64x16xf32> to vector<64x16xf32>
    %c0_49 = arith.constant 0 : index
    %c0_50 = arith.constant 0 : index
    %c144 = arith.constant 144 : index
    %56 = vector.load %arg6[%c0_49, %c0_50, %c144] : memref<1x112x256xf32, #tpu.memory_space<vmem>>, vector<1x64x16xf32>
    %57 = vector.shape_cast %56 : vector<1x64x16xf32> to vector<64x16xf32>
    %58 = vector.shape_cast %55 : vector<64x16xf32> to vector<1x64x16xf32>
    tpu.vector_store %arg6[%c0_49, %c0_50, %c144], %58 {strides = array<i32>} : memref<1x112x256xf32, #tpu.memory_space<vmem>>, vector<1x64x16xf32>,
    %c0_51 = arith.constant 0 : index
    %c0_52 = arith.constant 0 : index
    %c199 = arith.constant 199 : index
    %59 = vector.load %arg1[%c0_51, %c0_52, %c199] : memref<1x64x324xf32, #tpu.memory_space<vmem>>, vector<1x64x16xf32>
    %60 = vector.shape_cast %59 : vector<1x64x16xf32> to vector<64x16xf32>
    %c0_53 = arith.constant 0 : index
    %c0_54 = arith.constant 0 : index
    %c160 = arith.constant 160 : index
    %61 = vector.load %arg6[%c0_53, %c0_54, %c160] : memref<1x112x256xf32, #tpu.memory_space<vmem>>, vector<1x64x16xf32>
    %62 = vector.shape_cast %61 : vector<1x64x16xf32> to vector<64x16xf32>
    %63 = vector.shape_cast %60 : vector<64x16xf32> to vector<1x64x16xf32>
    tpu.vector_store %arg6[%c0_53, %c0_54, %c160], %63 {strides = array<i32>} : memref<1x112x256xf32, #tpu.memory_space<vmem>>, vector<1x64x16xf32>,
    %c0_55 = arith.constant 0 : index
    %c0_56 = arith.constant 0 : index
    %c217 = arith.constant 217 : index
    %64 = vector.load %arg1[%c0_55, %c0_56, %c217] : memref<1x64x324xf32, #tpu.memory_space<vmem>>, vector<1x64x16xf32>
    %65 = vector.shape_cast %64 : vector<1x64x16xf32> to vector<64x16xf32>
    %c0_57 = arith.constant 0 : index
    %c0_58 = arith.constant 0 : index
    %c176 = arith.constant 176 : index
    %66 = vector.load %arg6[%c0_57, %c0_58, %c176] : memref<1x112x256xf32, #tpu.memory_space<vmem>>, vector<1x64x16xf32>
    %67 = vector.shape_cast %66 : vector<1x64x16xf32> to vector<64x16xf32>
    %68 = vector.shape_cast %65 : vector<64x16xf32> to vector<1x64x16xf32>
    tpu.vector_store %arg6[%c0_57, %c0_58, %c176], %68 {strides = array<i32>} : memref<1x112x256xf32, #tpu.memory_space<vmem>>, vector<1x64x16xf32>,
    %c0_59 = arith.constant 0 : index
    %c0_60 = arith.constant 0 : index
    %c235 = arith.constant 235 : index
    %69 = vector.load %arg1[%c0_59, %c0_60, %c235] : memref<1x64x324xf32, #tpu.memory_space<vmem>>, vector<1x64x16xf32>
    %70 = vector.shape_cast %69 : vector<1x64x16xf32> to vector<64x16xf32>
    %c0_61 = arith.constant 0 : index
    %c0_62 = arith.constant 0 : index
    %c192 = arith.constant 192 : index
    %71 = vector.load %arg6[%c0_61, %c0_62, %c192] : memref<1x112x256xf32, #tpu.memory_space<vmem>>, vector<1x64x16xf32>
    %72 = vector.shape_cast %71 : vector<1x64x16xf32> to vector<64x16xf32>
    %73 = vector.shape_cast %70 : vector<64x16xf32> to vector<1x64x16xf32>
    tpu.vector_store %arg6[%c0_61, %c0_62, %c192], %73 {strides = array<i32>} : memref<1x112x256xf32, #tpu.memory_space<vmem>>, vector<1x64x16xf32>,
    %c0_63 = arith.constant 0 : index
    %c0_64 = arith.constant 0 : index
    %c253 = arith.constant 253 : index
    %74 = vector.load %arg1[%c0_63, %c0_64, %c253] : memref<1x64x324xf32, #tpu.memory_space<vmem>>, vector<1x64x16xf32>
    %75 = vector.shape_cast %74 : vector<1x64x16xf32> to vector<64x16xf32>
    %c0_65 = arith.constant 0 : index
    %c0_66 = arith.constant 0 : index
    %c208 = arith.constant 208 : index
    %76 = vector.load %arg6[%c0_65, %c0_66, %c208] : memref<1x112x256xf32, #tpu.memory_space<vmem>>, vector<1x64x16xf32>
    %77 = vector.shape_cast %76 : vector<1x64x16xf32> to vector<64x16xf32>
    %78 = vector.shape_cast %75 : vector<64x16xf32> to vector<1x64x16xf32>
    tpu.vector_store %arg6[%c0_65, %c0_66, %c208], %78 {strides = array<i32>} : memref<1x112x256xf32, #tpu.memory_space<vmem>>, vector<1x64x16xf32>,
    %c0_67 = arith.constant 0 : index
    %c0_68 = arith.constant 0 : index
    %c271 = arith.constant 271 : index
    %79 = vector.load %arg1[%c0_67, %c0_68, %c271] : memref<1x64x324xf32, #tpu.memory_space<vmem>>, vector<1x64x16xf32>
    %80 = vector.shape_cast %79 : vector<1x64x16xf32> to vector<64x16xf32>
    %c0_69 = arith.constant 0 : index
    %c0_70 = arith.constant 0 : index
    %c224 = arith.constant 224 : index
    %81 = vector.load %arg6[%c0_69, %c0_70, %c224] : memref<1x112x256xf32, #tpu.memory_space<vmem>>, vector<1x64x16xf32>
    %82 = vector.shape_cast %81 : vector<1x64x16xf32> to vector<64x16xf32>
    %83 = vector.shape_cast %80 : vector<64x16xf32> to vector<1x64x16xf32>
    tpu.vector_store %arg6[%c0_69, %c0_70, %c224], %83 {strides = array<i32>} : memref<1x112x256xf32, #tpu.memory_space<vmem>>, vector<1x64x16xf32>,
    %c0_71 = arith.constant 0 : index
    %c0_72 = arith.constant 0 : index
    %c289 = arith.constant 289 : index
    %84 = vector.load %arg1[%c0_71, %c0_72, %c289] : memref<1x64x324xf32, #tpu.memory_space<vmem>>, vector<1x64x16xf32>
    %85 = vector.shape_cast %84 : vector<1x64x16xf32> to vector<64x16xf32>
    %c0_73 = arith.constant 0 : index
    %c0_74 = arith.constant 0 : index
    %c240 = arith.constant 240 : index
    %86 = vector.load %arg6[%c0_73, %c0_74, %c240] : memref<1x112x256xf32, #tpu.memory_space<vmem>>, vector<1x64x16xf32>
    %87 = vector.shape_cast %86 : vector<1x64x16xf32> to vector<64x16xf32>
    %88 = vector.shape_cast %85 : vector<64x16xf32> to vector<1x64x16xf32>
    tpu.vector_store %arg6[%c0_73, %c0_74, %c240], %88 {strides = array<i32>} : memref<1x112x256xf32, #tpu.memory_space<vmem>>, vector<1x64x16xf32>,
    %c0_75 = arith.constant 0 : index
    %c109_76 = arith.constant 109 : index
    %89 = vector.load %arg7[%c0_75, %c109_76] : memref<112x580xbf16, #tpu.memory_space<vmem>>, vector<64x324xbf16>
    %c0_77 = arith.constant 0 : index
    %c0_78 = arith.constant 0 : index
    %c0_79 = arith.constant 0 : index
    %90 = vector.load %arg3[%c0_77, %c0_78, %c0_79] : memref<9x16x64xbf16, #tpu.memory_space<vmem>>, vector<1x16x64xbf16>
    %91 = vector.shape_cast %90 : vector<1x16x64xbf16> to vector<16x64xbf16>
    %cst_80 = arith.constant dense<0.000000e+00> : vector<16x324xf32>
    %92 = tpu.matmul %91, %89, %cst_80 {dimension_numbers = #tpu.dot_dimension_numbers<[1], [0], [0], [1], [0, 0, 1, 1], [], []>} : vector<16x64xbf16>, vector<64x324xbf16>, vector<16x324xf32> -> vector<16x324xf32>
    %c0_81 = arith.constant 0 : index
    %c110 = arith.constant 110 : index
    %93 = vector.load %arg7[%c0_81, %c110] : memref<112x580xbf16, #tpu.memory_space<vmem>>, vector<64x324xbf16>
    %c1 = arith.constant 1 : index
    %c0_82 = arith.constant 0 : index
    %c0_83 = arith.constant 0 : index
    %94 = vector.load %arg3[%c1, %c0_82, %c0_83] : memref<9x16x64xbf16, #tpu.memory_space<vmem>>, vector<1x16x64xbf16>
    %95 = vector.shape_cast %94 : vector<1x16x64xbf16> to vector<16x64xbf16>
    %cst_84 = arith.constant dense<0.000000e+00> : vector<16x324xf32>
    %96 = tpu.matmul %95, %93, %cst_84 {dimension_numbers = #tpu.dot_dimension_numbers<[1], [0], [0], [1], [0, 0, 1, 1], [], []>} : vector<16x64xbf16>, vector<64x324xbf16>, vector<16x324xf32> -> vector<16x324xf32>
    %97 = arith.addf %92, %96 : vector<16x324xf32>
    %c0_85 = arith.constant 0 : index
    %c111 = arith.constant 111 : index
    %98 = vector.load %arg7[%c0_85, %c111] : memref<112x580xbf16, #tpu.memory_space<vmem>>, vector<64x324xbf16>
    %c2 = arith.constant 2 : index
    %c0_86 = arith.constant 0 : index
    %c0_87 = arith.constant 0 : index
    %99 = vector.load %arg3[%c2, %c0_86, %c0_87] : memref<9x16x64xbf16, #tpu.memory_space<vmem>>, vector<1x16x64xbf16>
    %100 = vector.shape_cast %99 : vector<1x16x64xbf16> to vector<16x64xbf16>
    %cst_88 = arith.constant dense<0.000000e+00> : vector<16x324xf32>
    %101 = tpu.matmul %100, %98, %cst_88 {dimension_numbers = #tpu.dot_dimension_numbers<[1], [0], [0], [1], [0, 0, 1, 1], [], []>} : vector<16x64xbf16>, vector<64x324xbf16>, vector<16x324xf32> -> vector<16x324xf32>
    %102 = arith.addf %97, %101 : vector<16x324xf32>
    %c0_89 = arith.constant 0 : index
    %c127_90 = arith.constant 127 : index
    %103 = vector.load %arg7[%c0_89, %c127_90] : memref<112x580xbf16, #tpu.memory_space<vmem>>, vector<64x324xbf16>
    %c3 = arith.constant 3 : index
    %c0_91 = arith.constant 0 : index
    %c0_92 = arith.constant 0 : index
    %104 = vector.load %arg3[%c3, %c0_91, %c0_92] : memref<9x16x64xbf16, #tpu.memory_space<vmem>>, vector<1x16x64xbf16>
    %105 = vector.shape_cast %104 : vector<1x16x64xbf16> to vector<16x64xbf16>
    %cst_93 = arith.constant dense<0.000000e+00> : vector<16x324xf32>
    %106 = tpu.matmul %105, %103, %cst_93 {dimension_numbers = #tpu.dot_dimension_numbers<[1], [0], [0], [1], [0, 0, 1, 1], [], []>} : vector<16x64xbf16>, vector<64x324xbf16>, vector<16x324xf32> -> vector<16x324xf32>
    %107 = arith.addf %102, %106 : vector<16x324xf32>
    %c0_94 = arith.constant 0 : index
    %c128_95 = arith.constant 128 : index
    %108 = vector.load %arg7[%c0_94, %c128_95] : memref<112x580xbf16, #tpu.memory_space<vmem>>, vector<64x324xbf16>
    %c4 = arith.constant 4 : index
    %c0_96 = arith.constant 0 : index
    %c0_97 = arith.constant 0 : index
    %109 = vector.load %arg3[%c4, %c0_96, %c0_97] : memref<9x16x64xbf16, #tpu.memory_space<vmem>>, vector<1x16x64xbf16>
    %110 = vector.shape_cast %109 : vector<1x16x64xbf16> to vector<16x64xbf16>
    %cst_98 = arith.constant dense<0.000000e+00> : vector<16x324xf32>
    %111 = tpu.matmul %110, %108, %cst_98 {dimension_numbers = #tpu.dot_dimension_numbers<[1], [0], [0], [1], [0, 0, 1, 1], [], []>} : vector<16x64xbf16>, vector<64x324xbf16>, vector<16x324xf32> -> vector<16x324xf32>
    %112 = arith.addf %107, %111 : vector<16x324xf32>
    %c0_99 = arith.constant 0 : index
    %c129 = arith.constant 129 : index
    %113 = vector.load %arg7[%c0_99, %c129] : memref<112x580xbf16, #tpu.memory_space<vmem>>, vector<64x324xbf16>
    %c5 = arith.constant 5 : index
    %c0_100 = arith.constant 0 : index
    %c0_101 = arith.constant 0 : index
    %114 = vector.load %arg3[%c5, %c0_100, %c0_101] : memref<9x16x64xbf16, #tpu.memory_space<vmem>>, vector<1x16x64xbf16>
    %115 = vector.shape_cast %114 : vector<1x16x64xbf16> to vector<16x64xbf16>
    %cst_102 = arith.constant dense<0.000000e+00> : vector<16x324xf32>
    %116 = tpu.matmul %115, %113, %cst_102 {dimension_numbers = #tpu.dot_dimension_numbers<[1], [0], [0], [1], [0, 0, 1, 1], [], []>} : vector<16x64xbf16>, vector<64x324xbf16>, vector<16x324xf32> -> vector<16x324xf32>
    %117 = arith.addf %112, %116 : vector<16x324xf32>
    %c0_103 = arith.constant 0 : index
    %c145_104 = arith.constant 145 : index
    %118 = vector.load %arg7[%c0_103, %c145_104] : memref<112x580xbf16, #tpu.memory_space<vmem>>, vector<64x324xbf16>
    %c6 = arith.constant 6 : index
    %c0_105 = arith.constant 0 : index
    %c0_106 = arith.constant 0 : index
    %119 = vector.load %arg3[%c6, %c0_105, %c0_106] : memref<9x16x64xbf16, #tpu.memory_space<vmem>>, vector<1x16x64xbf16>
    %120 = vector.shape_cast %119 : vector<1x16x64xbf16> to vector<16x64xbf16>
    %cst_107 = arith.constant dense<0.000000e+00> : vector<16x324xf32>
    %121 = tpu.matmul %120, %118, %cst_107 {dimension_numbers = #tpu.dot_dimension_numbers<[1], [0], [0], [1], [0, 0, 1, 1], [], []>} : vector<16x64xbf16>, vector<64x324xbf16>, vector<16x324xf32> -> vector<16x324xf32>
    %122 = arith.addf %117, %121 : vector<16x324xf32>
    %c0_108 = arith.constant 0 : index
    %c146 = arith.constant 146 : index
    %123 = vector.load %arg7[%c0_108, %c146] : memref<112x580xbf16, #tpu.memory_space<vmem>>, vector<64x324xbf16>
    %c7 = arith.constant 7 : index
    %c0_109 = arith.constant 0 : index
    %c0_110 = arith.constant 0 : index
    %124 = vector.load %arg3[%c7, %c0_109, %c0_110] : memref<9x16x64xbf16, #tpu.memory_space<vmem>>, vector<1x16x64xbf16>
    %125 = vector.shape_cast %124 : vector<1x16x64xbf16> to vector<16x64xbf16>
    %cst_111 = arith.constant dense<0.000000e+00> : vector<16x324xf32>
    %126 = tpu.matmul %125, %123, %cst_111 {dimension_numbers = #tpu.dot_dimension_numbers<[1], [0], [0], [1], [0, 0, 1, 1], [], []>} : vector<16x64xbf16>, vector<64x324xbf16>, vector<16x324xf32> -> vector<16x324xf32>
    %127 = arith.addf %122, %126 : vector<16x324xf32>
    %c0_112 = arith.constant 0 : index
    %c147 = arith.constant 147 : index
    %128 = vector.load %arg7[%c0_112, %c147] : memref<112x580xbf16, #tpu.memory_space<vmem>>, vector<64x324xbf16>
    %c8 = arith.constant 8 : index
    %c0_113 = arith.constant 0 : index
    %c0_114 = arith.constant 0 : index
    %129 = vector.load %arg3[%c8, %c0_113, %c0_114] : memref<9x16x64xbf16, #tpu.memory_space<vmem>>, vector<1x16x64xbf16>
    %130 = vector.shape_cast %129 : vector<1x16x64xbf16> to vector<16x64xbf16>
    %cst_115 = arith.constant dense<0.000000e+00> : vector<16x324xf32>
    %131 = tpu.matmul %130, %128, %cst_115 {dimension_numbers = #tpu.dot_dimension_numbers<[1], [0], [0], [1], [0, 0, 1, 1], [], []>} : vector<16x64xbf16>, vector<64x324xbf16>, vector<16x324xf32> -> vector<16x324xf32>
    %132 = arith.addf %127, %131 : vector<16x324xf32>
    %133 = vector.broadcast %0 : vector<1x324xf32> to vector<16x324xf32>
    %134 = arith.mulf %132, %133 : vector<16x324xf32>
    %cst_116 = arith.constant dense<0.000000e+00> : vector<16xf32>
    %135 = vector.multi_reduction <add>, %134, %cst_116 [1] : vector<16x324xf32> to vector<16xf32>
    %136 = vector.shape_cast %135 : vector<16xf32> to vector<16x1xf32>
    %cst_117 = arith.constant 3.906250e-03 : f32
    %137 = vector.broadcast %cst_117 : f32 to vector<16x1xf32>
    %138 = arith.mulf %136, %137 : vector<16x1xf32>
    %139 = arith.mulf %134, %134 : vector<16x324xf32>
    %cst_118 = arith.constant dense<0.000000e+00> : vector<16xf32>
    %140 = vector.multi_reduction <add>, %139, %cst_118 [1] : vector<16x324xf32> to vector<16xf32>
    %141 = vector.shape_cast %140 : vector<16xf32> to vector<16x1xf32>
    %cst_119 = arith.constant 3.906250e-03 : f32
    %142 = vector.broadcast %cst_119 : f32 to vector<16x1xf32>
    %143 = arith.mulf %141, %142 : vector<16x1xf32>
    %144 = arith.mulf %138, %138 : vector<16x1xf32>
    %145 = arith.subf %143, %144 : vector<16x1xf32>
    %cst_120 = arith.constant 0.000000e+00 : f32
    %146 = vector.broadcast %cst_120 : f32 to vector<16x1xf32>
    %147 = arith.maximumf %145, %146 : vector<16x1xf32>
    %148 = vector.broadcast %138 : vector<16x1xf32> to vector<16x324xf32>
    %149 = arith.subf %132, %148 : vector<16x324xf32>
    %cst_121 = arith.constant 9.99999974E-6 : f32
    %150 = vector.broadcast %cst_121 : f32 to vector<16x1xf32>
    %151 = arith.addf %147, %150 : vector<16x1xf32>
    %152 = math.rsqrt %151 : vector<16x1xf32>
    %153 = vector.broadcast %152 : vector<16x1xf32> to vector<16x324xf32>
    %154 = arith.mulf %149, %153 : vector<16x324xf32>
    %cst_122 = arith.constant 0.000000e+00 : f32
    %155 = vector.broadcast %cst_122 : f32 to vector<16x324xf32>
    %156 = arith.maximumf %154, %155 : vector<16x324xf32>
    %157 = vector.broadcast %0 : vector<1x324xf32> to vector<16x324xf32>
    %158 = arith.mulf %156, %157 : vector<16x324xf32>
    %159 = arith.truncf %158 : vector<16x324xf32> to vector<16x324xbf16>
    %c64_123 = arith.constant 64 : index
    %c128_124 = arith.constant 128 : index
    %160 = vector.load %arg7[%c64_123, %c128_124] : memref<112x580xbf16, #tpu.memory_space<vmem>>, vector<16x324xbf16>
    tpu.vector_store %arg7[%c64_123, %c128_124], %159 {strides = array<i32>} : memref<112x580xbf16, #tpu.memory_space<vmem>>, vector<16x324xbf16>,
    %161 = vector.extract_strided_slice %158 {offsets = [0, 19], sizes = [16, 16], strides = [1, 1]} : vector<16x324xf32> to vector<16x16xf32>
    %c0_125 = arith.constant 0 : index
    %c64_126 = arith.constant 64 : index
    %c0_127 = arith.constant 0 : index
    %162 = vector.load %arg6[%c0_125, %c64_126, %c0_127] : memref<1x112x256xf32, #tpu.memory_space<vmem>>, vector<1x16x16xf32>
    %163 = vector.shape_cast %162 : vector<1x16x16xf32> to vector<16x16xf32>
    %164 = vector.shape_cast %161 : vector<16x16xf32> to vector<1x16x16xf32>
    tpu.vector_store %arg6[%c0_125, %c64_126, %c0_127], %164 {strides = array<i32>} : memref<1x112x256xf32, #tpu.memory_space<vmem>>, vector<1x16x16xf32>,
    %165 = vector.extract_strided_slice %158 {offsets = [0, 37], sizes = [16, 16], strides = [1, 1]} : vector<16x324xf32> to vector<16x16xf32>
    %c0_128 = arith.constant 0 : index
    %c64_129 = arith.constant 64 : index
    %c16_130 = arith.constant 16 : index
    %166 = vector.load %arg6[%c0_128, %c64_129, %c16_130] : memref<1x112x256xf32, #tpu.memory_space<vmem>>, vector<1x16x16xf32>
    %167 = vector.shape_cast %166 : vector<1x16x16xf32> to vector<16x16xf32>
    %168 = vector.shape_cast %165 : vector<16x16xf32> to vector<1x16x16xf32>
    tpu.vector_store %arg6[%c0_128, %c64_129, %c16_130], %168 {strides = array<i32>} : memref<1x112x256xf32, #tpu.memory_space<vmem>>, vector<1x16x16xf32>,
    %169 = vector.extract_strided_slice %158 {offsets = [0, 55], sizes = [16, 16], strides = [1, 1]} : vector<16x324xf32> to vector<16x16xf32>
    %c0_131 = arith.constant 0 : index
    %c64_132 = arith.constant 64 : index
    %c32_133 = arith.constant 32 : index
    %170 = vector.load %arg6[%c0_131, %c64_132, %c32_133] : memref<1x112x256xf32, #tpu.memory_space<vmem>>, vector<1x16x16xf32>
    %171 = vector.shape_cast %170 : vector<1x16x16xf32> to vector<16x16xf32>
    %172 = vector.shape_cast %169 : vector<16x16xf32> to vector<1x16x16xf32>
    tpu.vector_store %arg6[%c0_131, %c64_132, %c32_133], %172 {strides = array<i32>} : memref<1x112x256xf32, #tpu.memory_space<vmem>>, vector<1x16x16xf32>,
    %173 = vector.extract_strided_slice %158 {offsets = [0, 73], sizes = [16, 16], strides = [1, 1]} : vector<16x324xf32> to vector<16x16xf32>
    %c0_134 = arith.constant 0 : index
    %c64_135 = arith.constant 64 : index
    %c48_136 = arith.constant 48 : index
    %174 = vector.load %arg6[%c0_134, %c64_135, %c48_136] : memref<1x112x256xf32, #tpu.memory_space<vmem>>, vector<1x16x16xf32>
    %175 = vector.shape_cast %174 : vector<1x16x16xf32> to vector<16x16xf32>
    %176 = vector.shape_cast %173 : vector<16x16xf32> to vector<1x16x16xf32>
    tpu.vector_store %arg6[%c0_134, %c64_135, %c48_136], %176 {strides = array<i32>} : memref<1x112x256xf32, #tpu.memory_space<vmem>>, vector<1x16x16xf32>,
    %177 = vector.extract_strided_slice %158 {offsets = [0, 91], sizes = [16, 16], strides = [1, 1]} : vector<16x324xf32> to vector<16x16xf32>
    %c0_137 = arith.constant 0 : index
    %c64_138 = arith.constant 64 : index
    %c64_139 = arith.constant 64 : index
    %178 = vector.load %arg6[%c0_137, %c64_138, %c64_139] : memref<1x112x256xf32, #tpu.memory_space<vmem>>, vector<1x16x16xf32>
    %179 = vector.shape_cast %178 : vector<1x16x16xf32> to vector<16x16xf32>
    %180 = vector.shape_cast %177 : vector<16x16xf32> to vector<1x16x16xf32>
    tpu.vector_store %arg6[%c0_137, %c64_138, %c64_139], %180 {strides = array<i32>} : memref<1x112x256xf32, #tpu.memory_space<vmem>>, vector<1x16x16xf32>,
    %181 = vector.extract_strided_slice %158 {offsets = [0, 109], sizes = [16, 16], strides = [1, 1]} : vector<16x324xf32> to vector<16x16xf32>
    %c0_140 = arith.constant 0 : index
    %c64_141 = arith.constant 64 : index
    %c80_142 = arith.constant 80 : index
    %182 = vector.load %arg6[%c0_140, %c64_141, %c80_142] : memref<1x112x256xf32, #tpu.memory_space<vmem>>, vector<1x16x16xf32>
    %183 = vector.shape_cast %182 : vector<1x16x16xf32> to vector<16x16xf32>
    %184 = vector.shape_cast %181 : vector<16x16xf32> to vector<1x16x16xf32>
    tpu.vector_store %arg6[%c0_140, %c64_141, %c80_142], %184 {strides = array<i32>} : memref<1x112x256xf32, #tpu.memory_space<vmem>>, vector<1x16x16xf32>,
    %185 = vector.extract_strided_slice %158 {offsets = [0, 127], sizes = [16, 16], strides = [1, 1]} : vector<16x324xf32> to vector<16x16xf32>
    %c0_143 = arith.constant 0 : index
    %c64_144 = arith.constant 64 : index
    %c96_145 = arith.constant 96 : index
    %186 = vector.load %arg6[%c0_143, %c64_144, %c96_145] : memref<1x112x256xf32, #tpu.memory_space<vmem>>, vector<1x16x16xf32>
    %187 = vector.shape_cast %186 : vector<1x16x16xf32> to vector<16x16xf32>
    %188 = vector.shape_cast %185 : vector<16x16xf32> to vector<1x16x16xf32>
    tpu.vector_store %arg6[%c0_143, %c64_144, %c96_145], %188 {strides = array<i32>} : memref<1x112x256xf32, #tpu.memory_space<vmem>>, vector<1x16x16xf32>,
    %189 = vector.extract_strided_slice %158 {offsets = [0, 145], sizes = [16, 16], strides = [1, 1]} : vector<16x324xf32> to vector<16x16xf32>
    %c0_146 = arith.constant 0 : index
    %c64_147 = arith.constant 64 : index
    %c112_148 = arith.constant 112 : index
    %190 = vector.load %arg6[%c0_146, %c64_147, %c112_148] : memref<1x112x256xf32, #tpu.memory_space<vmem>>, vector<1x16x16xf32>
    %191 = vector.shape_cast %190 : vector<1x16x16xf32> to vector<16x16xf32>
    %192 = vector.shape_cast %189 : vector<16x16xf32> to vector<1x16x16xf32>
    tpu.vector_store %arg6[%c0_146, %c64_147, %c112_148], %192 {strides = array<i32>} : memref<1x112x256xf32, #tpu.memory_space<vmem>>, vector<1x16x16xf32>,
    %193 = vector.extract_strided_slice %158 {offsets = [0, 163], sizes = [16, 16], strides = [1, 1]} : vector<16x324xf32> to vector<16x16xf32>
    %c0_149 = arith.constant 0 : index
    %c64_150 = arith.constant 64 : index
    %c128_151 = arith.constant 128 : index
    %194 = vector.load %arg6[%c0_149, %c64_150, %c128_151] : memref<1x112x256xf32, #tpu.memory_space<vmem>>, vector<1x16x16xf32>
    %195 = vector.shape_cast %194 : vector<1x16x16xf32> to vector<16x16xf32>
    %196 = vector.shape_cast %193 : vector<16x16xf32> to vector<1x16x16xf32>
    tpu.vector_store %arg6[%c0_149, %c64_150, %c128_151], %196 {strides = array<i32>} : memref<1x112x256xf32, #tpu.memory_space<vmem>>, vector<1x16x16xf32>,
    %197 = vector.extract_strided_slice %158 {offsets = [0, 181], sizes = [16, 16], strides = [1, 1]} : vector<16x324xf32> to vector<16x16xf32>
    %c0_152 = arith.constant 0 : index
    %c64_153 = arith.constant 64 : index
    %c144_154 = arith.constant 144 : index
    %198 = vector.load %arg6[%c0_152, %c64_153, %c144_154] : memref<1x112x256xf32, #tpu.memory_space<vmem>>, vector<1x16x16xf32>
    %199 = vector.shape_cast %198 : vector<1x16x16xf32> to vector<16x16xf32>
    %200 = vector.shape_cast %197 : vector<16x16xf32> to vector<1x16x16xf32>
    tpu.vector_store %arg6[%c0_152, %c64_153, %c144_154], %200 {strides = array<i32>} : memref<1x112x256xf32, #tpu.memory_space<vmem>>, vector<1x16x16xf32>,
    %201 = vector.extract_strided_slice %158 {offsets = [0, 199], sizes = [16, 16], strides = [1, 1]} : vector<16x324xf32> to vector<16x16xf32>
    %c0_155 = arith.constant 0 : index
    %c64_156 = arith.constant 64 : index
    %c160_157 = arith.constant 160 : index
    %202 = vector.load %arg6[%c0_155, %c64_156, %c160_157] : memref<1x112x256xf32, #tpu.memory_space<vmem>>, vector<1x16x16xf32>
    %203 = vector.shape_cast %202 : vector<1x16x16xf32> to vector<16x16xf32>
    %204 = vector.shape_cast %201 : vector<16x16xf32> to vector<1x16x16xf32>
    tpu.vector_store %arg6[%c0_155, %c64_156, %c160_157], %204 {strides = array<i32>} : memref<1x112x256xf32, #tpu.memory_space<vmem>>, vector<1x16x16xf32>,
    %205 = vector.extract_strided_slice %158 {offsets = [0, 217], sizes = [16, 16], strides = [1, 1]} : vector<16x324xf32> to vector<16x16xf32>
    %c0_158 = arith.constant 0 : index
    %c64_159 = arith.constant 64 : index
    %c176_160 = arith.constant 176 : index
    %206 = vector.load %arg6[%c0_158, %c64_159, %c176_160] : memref<1x112x256xf32, #tpu.memory_space<vmem>>, vector<1x16x16xf32>
    %207 = vector.shape_cast %206 : vector<1x16x16xf32> to vector<16x16xf32>
    %208 = vector.shape_cast %205 : vector<16x16xf32> to vector<1x16x16xf32>
    tpu.vector_store %arg6[%c0_158, %c64_159, %c176_160], %208 {strides = array<i32>} : memref<1x112x256xf32, #tpu.memory_space<vmem>>, vector<1x16x16xf32>,
    %209 = vector.extract_strided_slice %158 {offsets = [0, 235], sizes = [16, 16], strides = [1, 1]} : vector<16x324xf32> to vector<16x16xf32>
    %c0_161 = arith.constant 0 : index
    %c64_162 = arith.constant 64 : index
    %c192_163 = arith.constant 192 : index
    %210 = vector.load %arg6[%c0_161, %c64_162, %c192_163] : memref<1x112x256xf32, #tpu.memory_space<vmem>>, vector<1x16x16xf32>
    %211 = vector.shape_cast %210 : vector<1x16x16xf32> to vector<16x16xf32>
    %212 = vector.shape_cast %209 : vector<16x16xf32> to vector<1x16x16xf32>
    tpu.vector_store %arg6[%c0_161, %c64_162, %c192_163], %212 {strides = array<i32>} : memref<1x112x256xf32, #tpu.memory_space<vmem>>, vector<1x16x16xf32>,
    %213 = vector.extract_strided_slice %158 {offsets = [0, 253], sizes = [16, 16], strides = [1, 1]} : vector<16x324xf32> to vector<16x16xf32>
    %c0_164 = arith.constant 0 : index
    %c64_165 = arith.constant 64 : index
    %c208_166 = arith.constant 208 : index
    %214 = vector.load %arg6[%c0_164, %c64_165, %c208_166] : memref<1x112x256xf32, #tpu.memory_space<vmem>>, vector<1x16x16xf32>
    %215 = vector.shape_cast %214 : vector<1x16x16xf32> to vector<16x16xf32>
    %216 = vector.shape_cast %213 : vector<16x16xf32> to vector<1x16x16xf32>
    tpu.vector_store %arg6[%c0_164, %c64_165, %c208_166], %216 {strides = array<i32>} : memref<1x112x256xf32, #tpu.memory_space<vmem>>, vector<1x16x16xf32>,
    %217 = vector.extract_strided_slice %158 {offsets = [0, 271], sizes = [16, 16], strides = [1, 1]} : vector<16x324xf32> to vector<16x16xf32>
    %c0_167 = arith.constant 0 : index
    %c64_168 = arith.constant 64 : index
    %c224_169 = arith.constant 224 : index
    %218 = vector.load %arg6[%c0_167, %c64_168, %c224_169] : memref<1x112x256xf32, #tpu.memory_space<vmem>>, vector<1x16x16xf32>
    %219 = vector.shape_cast %218 : vector<1x16x16xf32> to vector<16x16xf32>
    %220 = vector.shape_cast %217 : vector<16x16xf32> to vector<1x16x16xf32>
    tpu.vector_store %arg6[%c0_167, %c64_168, %c224_169], %220 {strides = array<i32>} : memref<1x112x256xf32, #tpu.memory_space<vmem>>, vector<1x16x16xf32>,
    %221 = vector.extract_strided_slice %158 {offsets = [0, 289], sizes = [16, 16], strides = [1, 1]} : vector<16x324xf32> to vector<16x16xf32>
    %c0_170 = arith.constant 0 : index
    %c64_171 = arith.constant 64 : index
    %c240_172 = arith.constant 240 : index
    %222 = vector.load %arg6[%c0_170, %c64_171, %c240_172] : memref<1x112x256xf32, #tpu.memory_space<vmem>>, vector<1x16x16xf32>
    %223 = vector.shape_cast %222 : vector<1x16x16xf32> to vector<16x16xf32>
    %224 = vector.shape_cast %221 : vector<16x16xf32> to vector<1x16x16xf32>
    tpu.vector_store %arg6[%c0_170, %c64_171, %c240_172], %224 {strides = array<i32>} : memref<1x112x256xf32, #tpu.memory_space<vmem>>, vector<1x16x16xf32>,
    %c0_173 = arith.constant 0 : index
    %c109_174 = arith.constant 109 : index
    %225 = vector.load %arg7[%c0_173, %c109_174] : memref<112x580xbf16, #tpu.memory_space<vmem>>, vector<80x324xbf16>
    %c0_175 = arith.constant 0 : index
    %c0_176 = arith.constant 0 : index
    %c0_177 = arith.constant 0 : index
    %226 = vector.load %arg4[%c0_175, %c0_176, %c0_177] : memref<9x16x80xbf16, #tpu.memory_space<vmem>>, vector<1x16x80xbf16>
    %227 = vector.shape_cast %226 : vector<1x16x80xbf16> to vector<16x80xbf16>
    %cst_178 = arith.constant dense<0.000000e+00> : vector<16x324xf32>
    %228 = tpu.matmul %227, %225, %cst_178 {dimension_numbers = #tpu.dot_dimension_numbers<[1], [0], [0], [1], [0, 0, 1, 1], [], []>} : vector<16x80xbf16>, vector<80x324xbf16>, vector<16x324xf32> -> vector<16x324xf32>
    %c0_179 = arith.constant 0 : index
    %c110_180 = arith.constant 110 : index
    %229 = vector.load %arg7[%c0_179, %c110_180] : memref<112x580xbf16, #tpu.memory_space<vmem>>, vector<80x324xbf16>
    %c1_181 = arith.constant 1 : index
    %c0_182 = arith.constant 0 : index
    %c0_183 = arith.constant 0 : index
    %230 = vector.load %arg4[%c1_181, %c0_182, %c0_183] : memref<9x16x80xbf16, #tpu.memory_space<vmem>>, vector<1x16x80xbf16>
    %231 = vector.shape_cast %230 : vector<1x16x80xbf16> to vector<16x80xbf16>
    %cst_184 = arith.constant dense<0.000000e+00> : vector<16x324xf32>
    %232 = tpu.matmul %231, %229, %cst_184 {dimension_numbers = #tpu.dot_dimension_numbers<[1], [0], [0], [1], [0, 0, 1, 1], [], []>} : vector<16x80xbf16>, vector<80x324xbf16>, vector<16x324xf32> -> vector<16x324xf32>
    %233 = arith.addf %228, %232 : vector<16x324xf32>
    %c0_185 = arith.constant 0 : index
    %c111_186 = arith.constant 111 : index
    %234 = vector.load %arg7[%c0_185, %c111_186] : memref<112x580xbf16, #tpu.memory_space<vmem>>, vector<80x324xbf16>
    %c2_187 = arith.constant 2 : index
    %c0_188 = arith.constant 0 : index
    %c0_189 = arith.constant 0 : index
    %235 = vector.load %arg4[%c2_187, %c0_188, %c0_189] : memref<9x16x80xbf16, #tpu.memory_space<vmem>>, vector<1x16x80xbf16>
    %236 = vector.shape_cast %235 : vector<1x16x80xbf16> to vector<16x80xbf16>
    %cst_190 = arith.constant dense<0.000000e+00> : vector<16x324xf32>
    %237 = tpu.matmul %236, %234, %cst_190 {dimension_numbers = #tpu.dot_dimension_numbers<[1], [0], [0], [1], [0, 0, 1, 1], [], []>} : vector<16x80xbf16>, vector<80x324xbf16>, vector<16x324xf32> -> vector<16x324xf32>
    %238 = arith.addf %233, %237 : vector<16x324xf32>
    %c0_191 = arith.constant 0 : index
    %c127_192 = arith.constant 127 : index
    %239 = vector.load %arg7[%c0_191, %c127_192] : memref<112x580xbf16, #tpu.memory_space<vmem>>, vector<80x324xbf16>
    %c3_193 = arith.constant 3 : index
    %c0_194 = arith.constant 0 : index
    %c0_195 = arith.constant 0 : index
    %240 = vector.load %arg4[%c3_193, %c0_194, %c0_195] : memref<9x16x80xbf16, #tpu.memory_space<vmem>>, vector<1x16x80xbf16>
    %241 = vector.shape_cast %240 : vector<1x16x80xbf16> to vector<16x80xbf16>
    %cst_196 = arith.constant dense<0.000000e+00> : vector<16x324xf32>
    %242 = tpu.matmul %241, %239, %cst_196 {dimension_numbers = #tpu.dot_dimension_numbers<[1], [0], [0], [1], [0, 0, 1, 1], [], []>} : vector<16x80xbf16>, vector<80x324xbf16>, vector<16x324xf32> -> vector<16x324xf32>
    %243 = arith.addf %238, %242 : vector<16x324xf32>
    %c0_197 = arith.constant 0 : index
    %c128_198 = arith.constant 128 : index
    %244 = vector.load %arg7[%c0_197, %c128_198] : memref<112x580xbf16, #tpu.memory_space<vmem>>, vector<80x324xbf16>
    %c4_199 = arith.constant 4 : index
    %c0_200 = arith.constant 0 : index
    %c0_201 = arith.constant 0 : index
    %245 = vector.load %arg4[%c4_199, %c0_200, %c0_201] : memref<9x16x80xbf16, #tpu.memory_space<vmem>>, vector<1x16x80xbf16>
    %246 = vector.shape_cast %245 : vector<1x16x80xbf16> to vector<16x80xbf16>
    %cst_202 = arith.constant dense<0.000000e+00> : vector<16x324xf32>
    %247 = tpu.matmul %246, %244, %cst_202 {dimension_numbers = #tpu.dot_dimension_numbers<[1], [0], [0], [1], [0, 0, 1, 1], [], []>} : vector<16x80xbf16>, vector<80x324xbf16>, vector<16x324xf32> -> vector<16x324xf32>
    %248 = arith.addf %243, %247 : vector<16x324xf32>
    %c0_203 = arith.constant 0 : index
    %c129_204 = arith.constant 129 : index
    %249 = vector.load %arg7[%c0_203, %c129_204] : memref<112x580xbf16, #tpu.memory_space<vmem>>, vector<80x324xbf16>
    %c5_205 = arith.constant 5 : index
    %c0_206 = arith.constant 0 : index
    %c0_207 = arith.constant 0 : index
    %250 = vector.load %arg4[%c5_205, %c0_206, %c0_207] : memref<9x16x80xbf16, #tpu.memory_space<vmem>>, vector<1x16x80xbf16>
    %251 = vector.shape_cast %250 : vector<1x16x80xbf16> to vector<16x80xbf16>
    %cst_208 = arith.constant dense<0.000000e+00> : vector<16x324xf32>
    %252 = tpu.matmul %251, %249, %cst_208 {dimension_numbers = #tpu.dot_dimension_numbers<[1], [0], [0], [1], [0, 0, 1, 1], [], []>} : vector<16x80xbf16>, vector<80x324xbf16>, vector<16x324xf32> -> vector<16x324xf32>
    %253 = arith.addf %248, %252 : vector<16x324xf32>
    %c0_209 = arith.constant 0 : index
    %c145_210 = arith.constant 145 : index
    %254 = vector.load %arg7[%c0_209, %c145_210] : memref<112x580xbf16, #tpu.memory_space<vmem>>, vector<80x324xbf16>
    %c6_211 = arith.constant 6 : index
    %c0_212 = arith.constant 0 : index
    %c0_213 = arith.constant 0 : index
    %255 = vector.load %arg4[%c6_211, %c0_212, %c0_213] : memref<9x16x80xbf16, #tpu.memory_space<vmem>>, vector<1x16x80xbf16>
    %256 = vector.shape_cast %255 : vector<1x16x80xbf16> to vector<16x80xbf16>
    %cst_214 = arith.constant dense<0.000000e+00> : vector<16x324xf32>
    %257 = tpu.matmul %256, %254, %cst_214 {dimension_numbers = #tpu.dot_dimension_numbers<[1], [0], [0], [1], [0, 0, 1, 1], [], []>} : vector<16x80xbf16>, vector<80x324xbf16>, vector<16x324xf32> -> vector<16x324xf32>
    %258 = arith.addf %253, %257 : vector<16x324xf32>
    %c0_215 = arith.constant 0 : index
    %c146_216 = arith.constant 146 : index
    %259 = vector.load %arg7[%c0_215, %c146_216] : memref<112x580xbf16, #tpu.memory_space<vmem>>, vector<80x324xbf16>
    %c7_217 = arith.constant 7 : index
    %c0_218 = arith.constant 0 : index
    %c0_219 = arith.constant 0 : index
    %260 = vector.load %arg4[%c7_217, %c0_218, %c0_219] : memref<9x16x80xbf16, #tpu.memory_space<vmem>>, vector<1x16x80xbf16>
    %261 = vector.shape_cast %260 : vector<1x16x80xbf16> to vector<16x80xbf16>
    %cst_220 = arith.constant dense<0.000000e+00> : vector<16x324xf32>
    %262 = tpu.matmul %261, %259, %cst_220 {dimension_numbers = #tpu.dot_dimension_numbers<[1], [0], [0], [1], [0, 0, 1, 1], [], []>} : vector<16x80xbf16>, vector<80x324xbf16>, vector<16x324xf32> -> vector<16x324xf32>
    %263 = arith.addf %258, %262 : vector<16x324xf32>
    %c0_221 = arith.constant 0 : index
    %c147_222 = arith.constant 147 : index
    %264 = vector.load %arg7[%c0_221, %c147_222] : memref<112x580xbf16, #tpu.memory_space<vmem>>, vector<80x324xbf16>
    %c8_223 = arith.constant 8 : index
    %c0_224 = arith.constant 0 : index
    %c0_225 = arith.constant 0 : index
    %265 = vector.load %arg4[%c8_223, %c0_224, %c0_225] : memref<9x16x80xbf16, #tpu.memory_space<vmem>>, vector<1x16x80xbf16>
    %266 = vector.shape_cast %265 : vector<1x16x80xbf16> to vector<16x80xbf16>
    %cst_226 = arith.constant dense<0.000000e+00> : vector<16x324xf32>
    %267 = tpu.matmul %266, %264, %cst_226 {dimension_numbers = #tpu.dot_dimension_numbers<[1], [0], [0], [1], [0, 0, 1, 1], [], []>} : vector<16x80xbf16>, vector<80x324xbf16>, vector<16x324xf32> -> vector<16x324xf32>
    %268 = arith.addf %263, %267 : vector<16x324xf32>
    %269 = vector.broadcast %0 : vector<1x324xf32> to vector<16x324xf32>
    %270 = arith.mulf %268, %269 : vector<16x324xf32>
    %cst_227 = arith.constant dense<0.000000e+00> : vector<16xf32>
    %271 = vector.multi_reduction <add>, %270, %cst_227 [1] : vector<16x324xf32> to vector<16xf32>
    %272 = vector.shape_cast %271 : vector<16xf32> to vector<16x1xf32>
    %cst_228 = arith.constant 3.906250e-03 : f32
    %273 = vector.broadcast %cst_228 : f32 to vector<16x1xf32>
    %274 = arith.mulf %272, %273 : vector<16x1xf32>
    %275 = arith.mulf %270, %270 : vector<16x324xf32>
    %cst_229 = arith.constant dense<0.000000e+00> : vector<16xf32>
    %276 = vector.multi_reduction <add>, %275, %cst_229 [1] : vector<16x324xf32> to vector<16xf32>
    %277 = vector.shape_cast %276 : vector<16xf32> to vector<16x1xf32>
    %cst_230 = arith.constant 3.906250e-03 : f32
    %278 = vector.broadcast %cst_230 : f32 to vector<16x1xf32>
    %279 = arith.mulf %277, %278 : vector<16x1xf32>
    %280 = arith.mulf %274, %274 : vector<16x1xf32>
    %281 = arith.subf %279, %280 : vector<16x1xf32>
    %cst_231 = arith.constant 0.000000e+00 : f32
    %282 = vector.broadcast %cst_231 : f32 to vector<16x1xf32>
    %283 = arith.maximumf %281, %282 : vector<16x1xf32>
    %284 = vector.broadcast %274 : vector<16x1xf32> to vector<16x324xf32>
    %285 = arith.subf %268, %284 : vector<16x324xf32>
    %cst_232 = arith.constant 9.99999974E-6 : f32
    %286 = vector.broadcast %cst_232 : f32 to vector<16x1xf32>
    %287 = arith.addf %283, %286 : vector<16x1xf32>
    %288 = math.rsqrt %287 : vector<16x1xf32>
    %289 = vector.broadcast %288 : vector<16x1xf32> to vector<16x324xf32>
    %290 = arith.mulf %285, %289 : vector<16x324xf32>
    %cst_233 = arith.constant 0.000000e+00 : f32
    %291 = vector.broadcast %cst_233 : f32 to vector<16x324xf32>
    %292 = arith.maximumf %290, %291 : vector<16x324xf32>
    %293 = vector.broadcast %0 : vector<1x324xf32> to vector<16x324xf32>
    %294 = arith.mulf %292, %293 : vector<16x324xf32>
    %295 = arith.truncf %294 : vector<16x324xf32> to vector<16x324xbf16>
    %c80_234 = arith.constant 80 : index
    %c128_235 = arith.constant 128 : index
    %296 = vector.load %arg7[%c80_234, %c128_235] : memref<112x580xbf16, #tpu.memory_space<vmem>>, vector<16x324xbf16>
    tpu.vector_store %arg7[%c80_234, %c128_235], %295 {strides = array<i32>} : memref<112x580xbf16, #tpu.memory_space<vmem>>, vector<16x324xbf16>,
    %297 = vector.extract_strided_slice %294 {offsets = [0, 19], sizes = [16, 16], strides = [1, 1]} : vector<16x324xf32> to vector<16x16xf32>
    %c0_236 = arith.constant 0 : index
    %c80_237 = arith.constant 80 : index
    %c0_238 = arith.constant 0 : index
    %298 = vector.load %arg6[%c0_236, %c80_237, %c0_238] : memref<1x112x256xf32, #tpu.memory_space<vmem>>, vector<1x16x16xf32>
    %299 = vector.shape_cast %298 : vector<1x16x16xf32> to vector<16x16xf32>
    %300 = vector.shape_cast %297 : vector<16x16xf32> to vector<1x16x16xf32>
    tpu.vector_store %arg6[%c0_236, %c80_237, %c0_238], %300 {strides = array<i32>} : memref<1x112x256xf32, #tpu.memory_space<vmem>>, vector<1x16x16xf32>,
    %301 = vector.extract_strided_slice %294 {offsets = [0, 37], sizes = [16, 16], strides = [1, 1]} : vector<16x324xf32> to vector<16x16xf32>
    %c0_239 = arith.constant 0 : index
    %c80_240 = arith.constant 80 : index
    %c16_241 = arith.constant 16 : index
    %302 = vector.load %arg6[%c0_239, %c80_240, %c16_241] : memref<1x112x256xf32, #tpu.memory_space<vmem>>, vector<1x16x16xf32>
    %303 = vector.shape_cast %302 : vector<1x16x16xf32> to vector<16x16xf32>
    %304 = vector.shape_cast %301 : vector<16x16xf32> to vector<1x16x16xf32>
    tpu.vector_store %arg6[%c0_239, %c80_240, %c16_241], %304 {strides = array<i32>} : memref<1x112x256xf32, #tpu.memory_space<vmem>>, vector<1x16x16xf32>,
    %305 = vector.extract_strided_slice %294 {offsets = [0, 55], sizes = [16, 16], strides = [1, 1]} : vector<16x324xf32> to vector<16x16xf32>
    %c0_242 = arith.constant 0 : index
    %c80_243 = arith.constant 80 : index
    %c32_244 = arith.constant 32 : index
    %306 = vector.load %arg6[%c0_242, %c80_243, %c32_244] : memref<1x112x256xf32, #tpu.memory_space<vmem>>, vector<1x16x16xf32>
    %307 = vector.shape_cast %306 : vector<1x16x16xf32> to vector<16x16xf32>
    %308 = vector.shape_cast %305 : vector<16x16xf32> to vector<1x16x16xf32>
    tpu.vector_store %arg6[%c0_242, %c80_243, %c32_244], %308 {strides = array<i32>} : memref<1x112x256xf32, #tpu.memory_space<vmem>>, vector<1x16x16xf32>,
    %309 = vector.extract_strided_slice %294 {offsets = [0, 73], sizes = [16, 16], strides = [1, 1]} : vector<16x324xf32> to vector<16x16xf32>
    %c0_245 = arith.constant 0 : index
    %c80_246 = arith.constant 80 : index
    %c48_247 = arith.constant 48 : index
    %310 = vector.load %arg6[%c0_245, %c80_246, %c48_247] : memref<1x112x256xf32, #tpu.memory_space<vmem>>, vector<1x16x16xf32>
    %311 = vector.shape_cast %310 : vector<1x16x16xf32> to vector<16x16xf32>
    %312 = vector.shape_cast %309 : vector<16x16xf32> to vector<1x16x16xf32>
    tpu.vector_store %arg6[%c0_245, %c80_246, %c48_247], %312 {strides = array<i32>} : memref<1x112x256xf32, #tpu.memory_space<vmem>>, vector<1x16x16xf32>,
    %313 = vector.extract_strided_slice %294 {offsets = [0, 91], sizes = [16, 16], strides = [1, 1]} : vector<16x324xf32> to vector<16x16xf32>
    %c0_248 = arith.constant 0 : index
    %c80_249 = arith.constant 80 : index
    %c64_250 = arith.constant 64 : index
    %314 = vector.load %arg6[%c0_248, %c80_249, %c64_250] : memref<1x112x256xf32, #tpu.memory_space<vmem>>, vector<1x16x16xf32>
    %315 = vector.shape_cast %314 : vector<1x16x16xf32> to vector<16x16xf32>
    %316 = vector.shape_cast %313 : vector<16x16xf32> to vector<1x16x16xf32>
    tpu.vector_store %arg6[%c0_248, %c80_249, %c64_250], %316 {strides = array<i32>} : memref<1x112x256xf32, #tpu.memory_space<vmem>>, vector<1x16x16xf32>,
    %317 = vector.extract_strided_slice %294 {offsets = [0, 109], sizes = [16, 16], strides = [1, 1]} : vector<16x324xf32> to vector<16x16xf32>
    %c0_251 = arith.constant 0 : index
    %c80_252 = arith.constant 80 : index
    %c80_253 = arith.constant 80 : index
    %318 = vector.load %arg6[%c0_251, %c80_252, %c80_253] : memref<1x112x256xf32, #tpu.memory_space<vmem>>, vector<1x16x16xf32>
    %319 = vector.shape_cast %318 : vector<1x16x16xf32> to vector<16x16xf32>
    %320 = vector.shape_cast %317 : vector<16x16xf32> to vector<1x16x16xf32>
    tpu.vector_store %arg6[%c0_251, %c80_252, %c80_253], %320 {strides = array<i32>} : memref<1x112x256xf32, #tpu.memory_space<vmem>>, vector<1x16x16xf32>,
    %321 = vector.extract_strided_slice %294 {offsets = [0, 127], sizes = [16, 16], strides = [1, 1]} : vector<16x324xf32> to vector<16x16xf32>
    %c0_254 = arith.constant 0 : index
    %c80_255 = arith.constant 80 : index
    %c96_256 = arith.constant 96 : index
    %322 = vector.load %arg6[%c0_254, %c80_255, %c96_256] : memref<1x112x256xf32, #tpu.memory_space<vmem>>, vector<1x16x16xf32>
    %323 = vector.shape_cast %322 : vector<1x16x16xf32> to vector<16x16xf32>
    %324 = vector.shape_cast %321 : vector<16x16xf32> to vector<1x16x16xf32>
    tpu.vector_store %arg6[%c0_254, %c80_255, %c96_256], %324 {strides = array<i32>} : memref<1x112x256xf32, #tpu.memory_space<vmem>>, vector<1x16x16xf32>,
    %325 = vector.extract_strided_slice %294 {offsets = [0, 145], sizes = [16, 16], strides = [1, 1]} : vector<16x324xf32> to vector<16x16xf32>
    %c0_257 = arith.constant 0 : index
    %c80_258 = arith.constant 80 : index
    %c112_259 = arith.constant 112 : index
    %326 = vector.load %arg6[%c0_257, %c80_258, %c112_259] : memref<1x112x256xf32, #tpu.memory_space<vmem>>, vector<1x16x16xf32>
    %327 = vector.shape_cast %326 : vector<1x16x16xf32> to vector<16x16xf32>
    %328 = vector.shape_cast %325 : vector<16x16xf32> to vector<1x16x16xf32>
    tpu.vector_store %arg6[%c0_257, %c80_258, %c112_259], %328 {strides = array<i32>} : memref<1x112x256xf32, #tpu.memory_space<vmem>>, vector<1x16x16xf32>,
    %329 = vector.extract_strided_slice %294 {offsets = [0, 163], sizes = [16, 16], strides = [1, 1]} : vector<16x324xf32> to vector<16x16xf32>
    %c0_260 = arith.constant 0 : index
    %c80_261 = arith.constant 80 : index
    %c128_262 = arith.constant 128 : index
    %330 = vector.load %arg6[%c0_260, %c80_261, %c128_262] : memref<1x112x256xf32, #tpu.memory_space<vmem>>, vector<1x16x16xf32>
    %331 = vector.shape_cast %330 : vector<1x16x16xf32> to vector<16x16xf32>
    %332 = vector.shape_cast %329 : vector<16x16xf32> to vector<1x16x16xf32>
    tpu.vector_store %arg6[%c0_260, %c80_261, %c128_262], %332 {strides = array<i32>} : memref<1x112x256xf32, #tpu.memory_space<vmem>>, vector<1x16x16xf32>,
    %333 = vector.extract_strided_slice %294 {offsets = [0, 181], sizes = [16, 16], strides = [1, 1]} : vector<16x324xf32> to vector<16x16xf32>
    %c0_263 = arith.constant 0 : index
    %c80_264 = arith.constant 80 : index
    %c144_265 = arith.constant 144 : index
    %334 = vector.load %arg6[%c0_263, %c80_264, %c144_265] : memref<1x112x256xf32, #tpu.memory_space<vmem>>, vector<1x16x16xf32>
    %335 = vector.shape_cast %334 : vector<1x16x16xf32> to vector<16x16xf32>
    %336 = vector.shape_cast %333 : vector<16x16xf32> to vector<1x16x16xf32>
    tpu.vector_store %arg6[%c0_263, %c80_264, %c144_265], %336 {strides = array<i32>} : memref<1x112x256xf32, #tpu.memory_space<vmem>>, vector<1x16x16xf32>,
    %337 = vector.extract_strided_slice %294 {offsets = [0, 199], sizes = [16, 16], strides = [1, 1]} : vector<16x324xf32> to vector<16x16xf32>
    %c0_266 = arith.constant 0 : index
    %c80_267 = arith.constant 80 : index
    %c160_268 = arith.constant 160 : index
    %338 = vector.load %arg6[%c0_266, %c80_267, %c160_268] : memref<1x112x256xf32, #tpu.memory_space<vmem>>, vector<1x16x16xf32>
    %339 = vector.shape_cast %338 : vector<1x16x16xf32> to vector<16x16xf32>
    %340 = vector.shape_cast %337 : vector<16x16xf32> to vector<1x16x16xf32>
    tpu.vector_store %arg6[%c0_266, %c80_267, %c160_268], %340 {strides = array<i32>} : memref<1x112x256xf32, #tpu.memory_space<vmem>>, vector<1x16x16xf32>,
    %341 = vector.extract_strided_slice %294 {offsets = [0, 217], sizes = [16, 16], strides = [1, 1]} : vector<16x324xf32> to vector<16x16xf32>
    %c0_269 = arith.constant 0 : index
    %c80_270 = arith.constant 80 : index
    %c176_271 = arith.constant 176 : index
    %342 = vector.load %arg6[%c0_269, %c80_270, %c176_271] : memref<1x112x256xf32, #tpu.memory_space<vmem>>, vector<1x16x16xf32>
    %343 = vector.shape_cast %342 : vector<1x16x16xf32> to vector<16x16xf32>
    %344 = vector.shape_cast %341 : vector<16x16xf32> to vector<1x16x16xf32>
    tpu.vector_store %arg6[%c0_269, %c80_270, %c176_271], %344 {strides = array<i32>} : memref<1x112x256xf32, #tpu.memory_space<vmem>>, vector<1x16x16xf32>,
    %345 = vector.extract_strided_slice %294 {offsets = [0, 235], sizes = [16, 16], strides = [1, 1]} : vector<16x324xf32> to vector<16x16xf32>
    %c0_272 = arith.constant 0 : index
    %c80_273 = arith.constant 80 : index
    %c192_274 = arith.constant 192 : index
    %346 = vector.load %arg6[%c0_272, %c80_273, %c192_274] : memref<1x112x256xf32, #tpu.memory_space<vmem>>, vector<1x16x16xf32>
    %347 = vector.shape_cast %346 : vector<1x16x16xf32> to vector<16x16xf32>
    %348 = vector.shape_cast %345 : vector<16x16xf32> to vector<1x16x16xf32>
    tpu.vector_store %arg6[%c0_272, %c80_273, %c192_274], %348 {strides = array<i32>} : memref<1x112x256xf32, #tpu.memory_space<vmem>>, vector<1x16x16xf32>,
    %349 = vector.extract_strided_slice %294 {offsets = [0, 253], sizes = [16, 16], strides = [1, 1]} : vector<16x324xf32> to vector<16x16xf32>
    %c0_275 = arith.constant 0 : index
    %c80_276 = arith.constant 80 : index
    %c208_277 = arith.constant 208 : index
    %350 = vector.load %arg6[%c0_275, %c80_276, %c208_277] : memref<1x112x256xf32, #tpu.memory_space<vmem>>, vector<1x16x16xf32>
    %351 = vector.shape_cast %350 : vector<1x16x16xf32> to vector<16x16xf32>
    %352 = vector.shape_cast %349 : vector<16x16xf32> to vector<1x16x16xf32>
    tpu.vector_store %arg6[%c0_275, %c80_276, %c208_277], %352 {strides = array<i32>} : memref<1x112x256xf32, #tpu.memory_space<vmem>>, vector<1x16x16xf32>,
    %353 = vector.extract_strided_slice %294 {offsets = [0, 271], sizes = [16, 16], strides = [1, 1]} : vector<16x324xf32> to vector<16x16xf32>
    %c0_278 = arith.constant 0 : index
    %c80_279 = arith.constant 80 : index
    %c224_280 = arith.constant 224 : index
    %354 = vector.load %arg6[%c0_278, %c80_279, %c224_280] : memref<1x112x256xf32, #tpu.memory_space<vmem>>, vector<1x16x16xf32>
    %355 = vector.shape_cast %354 : vector<1x16x16xf32> to vector<16x16xf32>
    %356 = vector.shape_cast %353 : vector<16x16xf32> to vector<1x16x16xf32>
    tpu.vector_store %arg6[%c0_278, %c80_279, %c224_280], %356 {strides = array<i32>} : memref<1x112x256xf32, #tpu.memory_space<vmem>>, vector<1x16x16xf32>,
    %357 = vector.extract_strided_slice %294 {offsets = [0, 289], sizes = [16, 16], strides = [1, 1]} : vector<16x324xf32> to vector<16x16xf32>
    %c0_281 = arith.constant 0 : index
    %c80_282 = arith.constant 80 : index
    %c240_283 = arith.constant 240 : index
    %358 = vector.load %arg6[%c0_281, %c80_282, %c240_283] : memref<1x112x256xf32, #tpu.memory_space<vmem>>, vector<1x16x16xf32>
    %359 = vector.shape_cast %358 : vector<1x16x16xf32> to vector<16x16xf32>
    %360 = vector.shape_cast %357 : vector<16x16xf32> to vector<1x16x16xf32>
    tpu.vector_store %arg6[%c0_281, %c80_282, %c240_283], %360 {strides = array<i32>} : memref<1x112x256xf32, #tpu.memory_space<vmem>>, vector<1x16x16xf32>,
    %c0_284 = arith.constant 0 : index
    %c109_285 = arith.constant 109 : index
    %361 = vector.load %arg7[%c0_284, %c109_285] : memref<112x580xbf16, #tpu.memory_space<vmem>>, vector<96x324xbf16>
    %c0_286 = arith.constant 0 : index
    %c0_287 = arith.constant 0 : index
    %c0_288 = arith.constant 0 : index
    %362 = vector.load %arg5[%c0_286, %c0_287, %c0_288] : memref<9x16x96xbf16, #tpu.memory_space<vmem>>, vector<1x16x96xbf16>
    %363 = vector.shape_cast %362 : vector<1x16x96xbf16> to vector<16x96xbf16>
    %cst_289 = arith.constant dense<0.000000e+00> : vector<16x324xf32>
    %364 = tpu.matmul %363, %361, %cst_289 {dimension_numbers = #tpu.dot_dimension_numbers<[1], [0], [0], [1], [0, 0, 1, 1], [], []>} : vector<16x96xbf16>, vector<96x324xbf16>, vector<16x324xf32> -> vector<16x324xf32>
    %c0_290 = arith.constant 0 : index
    %c110_291 = arith.constant 110 : index
    %365 = vector.load %arg7[%c0_290, %c110_291] : memref<112x580xbf16, #tpu.memory_space<vmem>>, vector<96x324xbf16>
    %c1_292 = arith.constant 1 : index
    %c0_293 = arith.constant 0 : index
    %c0_294 = arith.constant 0 : index
    %366 = vector.load %arg5[%c1_292, %c0_293, %c0_294] : memref<9x16x96xbf16, #tpu.memory_space<vmem>>, vector<1x16x96xbf16>
    %367 = vector.shape_cast %366 : vector<1x16x96xbf16> to vector<16x96xbf16>
    %cst_295 = arith.constant dense<0.000000e+00> : vector<16x324xf32>
    %368 = tpu.matmul %367, %365, %cst_295 {dimension_numbers = #tpu.dot_dimension_numbers<[1], [0], [0], [1], [0, 0, 1, 1], [], []>} : vector<16x96xbf16>, vector<96x324xbf16>, vector<16x324xf32> -> vector<16x324xf32>
    %369 = arith.addf %364, %368 : vector<16x324xf32>
    %c0_296 = arith.constant 0 : index
    %c111_297 = arith.constant 111 : index
    %370 = vector.load %arg7[%c0_296, %c111_297] : memref<112x580xbf16, #tpu.memory_space<vmem>>, vector<96x324xbf16>
    %c2_298 = arith.constant 2 : index
    %c0_299 = arith.constant 0 : index
    %c0_300 = arith.constant 0 : index
    %371 = vector.load %arg5[%c2_298, %c0_299, %c0_300] : memref<9x16x96xbf16, #tpu.memory_space<vmem>>, vector<1x16x96xbf16>
    %372 = vector.shape_cast %371 : vector<1x16x96xbf16> to vector<16x96xbf16>
    %cst_301 = arith.constant dense<0.000000e+00> : vector<16x324xf32>
    %373 = tpu.matmul %372, %370, %cst_301 {dimension_numbers = #tpu.dot_dimension_numbers<[1], [0], [0], [1], [0, 0, 1, 1], [], []>} : vector<16x96xbf16>, vector<96x324xbf16>, vector<16x324xf32> -> vector<16x324xf32>
    %374 = arith.addf %369, %373 : vector<16x324xf32>
    %c0_302 = arith.constant 0 : index
    %c127_303 = arith.constant 127 : index
    %375 = vector.load %arg7[%c0_302, %c127_303] : memref<112x580xbf16, #tpu.memory_space<vmem>>, vector<96x324xbf16>
    %c3_304 = arith.constant 3 : index
    %c0_305 = arith.constant 0 : index
    %c0_306 = arith.constant 0 : index
    %376 = vector.load %arg5[%c3_304, %c0_305, %c0_306] : memref<9x16x96xbf16, #tpu.memory_space<vmem>>, vector<1x16x96xbf16>
    %377 = vector.shape_cast %376 : vector<1x16x96xbf16> to vector<16x96xbf16>
    %cst_307 = arith.constant dense<0.000000e+00> : vector<16x324xf32>
    %378 = tpu.matmul %377, %375, %cst_307 {dimension_numbers = #tpu.dot_dimension_numbers<[1], [0], [0], [1], [0, 0, 1, 1], [], []>} : vector<16x96xbf16>, vector<96x324xbf16>, vector<16x324xf32> -> vector<16x324xf32>
    %379 = arith.addf %374, %378 : vector<16x324xf32>
    %c0_308 = arith.constant 0 : index
    %c128_309 = arith.constant 128 : index
    %380 = vector.load %arg7[%c0_308, %c128_309] : memref<112x580xbf16, #tpu.memory_space<vmem>>, vector<96x324xbf16>
    %c4_310 = arith.constant 4 : index
    %c0_311 = arith.constant 0 : index
    %c0_312 = arith.constant 0 : index
    %381 = vector.load %arg5[%c4_310, %c0_311, %c0_312] : memref<9x16x96xbf16, #tpu.memory_space<vmem>>, vector<1x16x96xbf16>
    %382 = vector.shape_cast %381 : vector<1x16x96xbf16> to vector<16x96xbf16>
    %cst_313 = arith.constant dense<0.000000e+00> : vector<16x324xf32>
    %383 = tpu.matmul %382, %380, %cst_313 {dimension_numbers = #tpu.dot_dimension_numbers<[1], [0], [0], [1], [0, 0, 1, 1], [], []>} : vector<16x96xbf16>, vector<96x324xbf16>, vector<16x324xf32> -> vector<16x324xf32>
    %384 = arith.addf %379, %383 : vector<16x324xf32>
    %c0_314 = arith.constant 0 : index
    %c129_315 = arith.constant 129 : index
    %385 = vector.load %arg7[%c0_314, %c129_315] : memref<112x580xbf16, #tpu.memory_space<vmem>>, vector<96x324xbf16>
    %c5_316 = arith.constant 5 : index
    %c0_317 = arith.constant 0 : index
    %c0_318 = arith.constant 0 : index
    %386 = vector.load %arg5[%c5_316, %c0_317, %c0_318] : memref<9x16x96xbf16, #tpu.memory_space<vmem>>, vector<1x16x96xbf16>
    %387 = vector.shape_cast %386 : vector<1x16x96xbf16> to vector<16x96xbf16>
    %cst_319 = arith.constant dense<0.000000e+00> : vector<16x324xf32>
    %388 = tpu.matmul %387, %385, %cst_319 {dimension_numbers = #tpu.dot_dimension_numbers<[1], [0], [0], [1], [0, 0, 1, 1], [], []>} : vector<16x96xbf16>, vector<96x324xbf16>, vector<16x324xf32> -> vector<16x324xf32>
    %389 = arith.addf %384, %388 : vector<16x324xf32>
    %c0_320 = arith.constant 0 : index
    %c145_321 = arith.constant 145 : index
    %390 = vector.load %arg7[%c0_320, %c145_321] : memref<112x580xbf16, #tpu.memory_space<vmem>>, vector<96x324xbf16>
    %c6_322 = arith.constant 6 : index
    %c0_323 = arith.constant 0 : index
    %c0_324 = arith.constant 0 : index
    %391 = vector.load %arg5[%c6_322, %c0_323, %c0_324] : memref<9x16x96xbf16, #tpu.memory_space<vmem>>, vector<1x16x96xbf16>
    %392 = vector.shape_cast %391 : vector<1x16x96xbf16> to vector<16x96xbf16>
    %cst_325 = arith.constant dense<0.000000e+00> : vector<16x324xf32>
    %393 = tpu.matmul %392, %390, %cst_325 {dimension_numbers = #tpu.dot_dimension_numbers<[1], [0], [0], [1], [0, 0, 1, 1], [], []>} : vector<16x96xbf16>, vector<96x324xbf16>, vector<16x324xf32> -> vector<16x324xf32>
    %394 = arith.addf %389, %393 : vector<16x324xf32>
    %c0_326 = arith.constant 0 : index
    %c146_327 = arith.constant 146 : index
    %395 = vector.load %arg7[%c0_326, %c146_327] : memref<112x580xbf16, #tpu.memory_space<vmem>>, vector<96x324xbf16>
    %c7_328 = arith.constant 7 : index
    %c0_329 = arith.constant 0 : index
    %c0_330 = arith.constant 0 : index
    %396 = vector.load %arg5[%c7_328, %c0_329, %c0_330] : memref<9x16x96xbf16, #tpu.memory_space<vmem>>, vector<1x16x96xbf16>
    %397 = vector.shape_cast %396 : vector<1x16x96xbf16> to vector<16x96xbf16>
    %cst_331 = arith.constant dense<0.000000e+00> : vector<16x324xf32>
    %398 = tpu.matmul %397, %395, %cst_331 {dimension_numbers = #tpu.dot_dimension_numbers<[1], [0], [0], [1], [0, 0, 1, 1], [], []>} : vector<16x96xbf16>, vector<96x324xbf16>, vector<16x324xf32> -> vector<16x324xf32>
    %399 = arith.addf %394, %398 : vector<16x324xf32>
    %c0_332 = arith.constant 0 : index
    %c147_333 = arith.constant 147 : index
    %400 = vector.load %arg7[%c0_332, %c147_333] : memref<112x580xbf16, #tpu.memory_space<vmem>>, vector<96x324xbf16>
    %c8_334 = arith.constant 8 : index
    %c0_335 = arith.constant 0 : index
    %c0_336 = arith.constant 0 : index
    %401 = vector.load %arg5[%c8_334, %c0_335, %c0_336] : memref<9x16x96xbf16, #tpu.memory_space<vmem>>, vector<1x16x96xbf16>
    %402 = vector.shape_cast %401 : vector<1x16x96xbf16> to vector<16x96xbf16>
    %cst_337 = arith.constant dense<0.000000e+00> : vector<16x324xf32>
    %403 = tpu.matmul %402, %400, %cst_337 {dimension_numbers = #tpu.dot_dimension_numbers<[1], [0], [0], [1], [0, 0, 1, 1], [], []>} : vector<16x96xbf16>, vector<96x324xbf16>, vector<16x324xf32> -> vector<16x324xf32>
    %404 = arith.addf %399, %403 : vector<16x324xf32>
    %405 = vector.broadcast %0 : vector<1x324xf32> to vector<16x324xf32>
    %406 = arith.mulf %404, %405 : vector<16x324xf32>
    %cst_338 = arith.constant dense<0.000000e+00> : vector<16xf32>
    %407 = vector.multi_reduction <add>, %406, %cst_338 [1] : vector<16x324xf32> to vector<16xf32>
    %408 = vector.shape_cast %407 : vector<16xf32> to vector<16x1xf32>
    %cst_339 = arith.constant 3.906250e-03 : f32
    %409 = vector.broadcast %cst_339 : f32 to vector<16x1xf32>
    %410 = arith.mulf %408, %409 : vector<16x1xf32>
    %411 = arith.mulf %406, %406 : vector<16x324xf32>
    %cst_340 = arith.constant dense<0.000000e+00> : vector<16xf32>
    %412 = vector.multi_reduction <add>, %411, %cst_340 [1] : vector<16x324xf32> to vector<16xf32>
    %413 = vector.shape_cast %412 : vector<16xf32> to vector<16x1xf32>
    %cst_341 = arith.constant 3.906250e-03 : f32
    %414 = vector.broadcast %cst_341 : f32 to vector<16x1xf32>
    %415 = arith.mulf %413, %414 : vector<16x1xf32>
    %416 = arith.mulf %410, %410 : vector<16x1xf32>
    %417 = arith.subf %415, %416 : vector<16x1xf32>
    %cst_342 = arith.constant 0.000000e+00 : f32
    %418 = vector.broadcast %cst_342 : f32 to vector<16x1xf32>
    %419 = arith.maximumf %417, %418 : vector<16x1xf32>
    %420 = vector.broadcast %410 : vector<16x1xf32> to vector<16x324xf32>
    %421 = arith.subf %404, %420 : vector<16x324xf32>
    %cst_343 = arith.constant 9.99999974E-6 : f32
    %422 = vector.broadcast %cst_343 : f32 to vector<16x1xf32>
    %423 = arith.addf %419, %422 : vector<16x1xf32>
    %424 = math.rsqrt %423 : vector<16x1xf32>
    %425 = vector.broadcast %424 : vector<16x1xf32> to vector<16x324xf32>
    %426 = arith.mulf %421, %425 : vector<16x324xf32>
    %cst_344 = arith.constant 0.000000e+00 : f32
    %427 = vector.broadcast %cst_344 : f32 to vector<16x324xf32>
    %428 = arith.maximumf %426, %427 : vector<16x324xf32>
    %429 = vector.broadcast %0 : vector<1x324xf32> to vector<16x324xf32>
    %430 = arith.mulf %428, %429 : vector<16x324xf32>
    %431 = arith.truncf %430 : vector<16x324xf32> to vector<16x324xbf16>
    %c96_345 = arith.constant 96 : index
    %c128_346 = arith.constant 128 : index
    %432 = vector.load %arg7[%c96_345, %c128_346] : memref<112x580xbf16, #tpu.memory_space<vmem>>, vector<16x324xbf16>
    tpu.vector_store %arg7[%c96_345, %c128_346], %431 {strides = array<i32>} : memref<112x580xbf16, #tpu.memory_space<vmem>>, vector<16x324xbf16>,
    %433 = vector.extract_strided_slice %430 {offsets = [0, 19], sizes = [16, 16], strides = [1, 1]} : vector<16x324xf32> to vector<16x16xf32>
    %c0_347 = arith.constant 0 : index
    %c96_348 = arith.constant 96 : index
    %c0_349 = arith.constant 0 : index
    %434 = vector.load %arg6[%c0_347, %c96_348, %c0_349] : memref<1x112x256xf32, #tpu.memory_space<vmem>>, vector<1x16x16xf32>
    %435 = vector.shape_cast %434 : vector<1x16x16xf32> to vector<16x16xf32>
    %436 = vector.shape_cast %433 : vector<16x16xf32> to vector<1x16x16xf32>
    tpu.vector_store %arg6[%c0_347, %c96_348, %c0_349], %436 {strides = array<i32>} : memref<1x112x256xf32, #tpu.memory_space<vmem>>, vector<1x16x16xf32>,
    %437 = vector.extract_strided_slice %430 {offsets = [0, 37], sizes = [16, 16], strides = [1, 1]} : vector<16x324xf32> to vector<16x16xf32>
    %c0_350 = arith.constant 0 : index
    %c96_351 = arith.constant 96 : index
    %c16_352 = arith.constant 16 : index
    %438 = vector.load %arg6[%c0_350, %c96_351, %c16_352] : memref<1x112x256xf32, #tpu.memory_space<vmem>>, vector<1x16x16xf32>
    %439 = vector.shape_cast %438 : vector<1x16x16xf32> to vector<16x16xf32>
    %440 = vector.shape_cast %437 : vector<16x16xf32> to vector<1x16x16xf32>
    tpu.vector_store %arg6[%c0_350, %c96_351, %c16_352], %440 {strides = array<i32>} : memref<1x112x256xf32, #tpu.memory_space<vmem>>, vector<1x16x16xf32>,
    %441 = vector.extract_strided_slice %430 {offsets = [0, 55], sizes = [16, 16], strides = [1, 1]} : vector<16x324xf32> to vector<16x16xf32>
    %c0_353 = arith.constant 0 : index
    %c96_354 = arith.constant 96 : index
    %c32_355 = arith.constant 32 : index
    %442 = vector.load %arg6[%c0_353, %c96_354, %c32_355] : memref<1x112x256xf32, #tpu.memory_space<vmem>>, vector<1x16x16xf32>
    %443 = vector.shape_cast %442 : vector<1x16x16xf32> to vector<16x16xf32>
    %444 = vector.shape_cast %441 : vector<16x16xf32> to vector<1x16x16xf32>
    tpu.vector_store %arg6[%c0_353, %c96_354, %c32_355], %444 {strides = array<i32>} : memref<1x112x256xf32, #tpu.memory_space<vmem>>, vector<1x16x16xf32>,
    %445 = vector.extract_strided_slice %430 {offsets = [0, 73], sizes = [16, 16], strides = [1, 1]} : vector<16x324xf32> to vector<16x16xf32>
    %c0_356 = arith.constant 0 : index
    %c96_357 = arith.constant 96 : index
    %c48_358 = arith.constant 48 : index
    %446 = vector.load %arg6[%c0_356, %c96_357, %c48_358] : memref<1x112x256xf32, #tpu.memory_space<vmem>>, vector<1x16x16xf32>
    %447 = vector.shape_cast %446 : vector<1x16x16xf32> to vector<16x16xf32>
    %448 = vector.shape_cast %445 : vector<16x16xf32> to vector<1x16x16xf32>
    tpu.vector_store %arg6[%c0_356, %c96_357, %c48_358], %448 {strides = array<i32>} : memref<1x112x256xf32, #tpu.memory_space<vmem>>, vector<1x16x16xf32>,
    %449 = vector.extract_strided_slice %430 {offsets = [0, 91], sizes = [16, 16], strides = [1, 1]} : vector<16x324xf32> to vector<16x16xf32>
    %c0_359 = arith.constant 0 : index
    %c96_360 = arith.constant 96 : index
    %c64_361 = arith.constant 64 : index
    %450 = vector.load %arg6[%c0_359, %c96_360, %c64_361] : memref<1x112x256xf32, #tpu.memory_space<vmem>>, vector<1x16x16xf32>
    %451 = vector.shape_cast %450 : vector<1x16x16xf32> to vector<16x16xf32>
    %452 = vector.shape_cast %449 : vector<16x16xf32> to vector<1x16x16xf32>
    tpu.vector_store %arg6[%c0_359, %c96_360, %c64_361], %452 {strides = array<i32>} : memref<1x112x256xf32, #tpu.memory_space<vmem>>, vector<1x16x16xf32>,
    %453 = vector.extract_strided_slice %430 {offsets = [0, 109], sizes = [16, 16], strides = [1, 1]} : vector<16x324xf32> to vector<16x16xf32>
    %c0_362 = arith.constant 0 : index
    %c96_363 = arith.constant 96 : index
    %c80_364 = arith.constant 80 : index
    %454 = vector.load %arg6[%c0_362, %c96_363, %c80_364] : memref<1x112x256xf32, #tpu.memory_space<vmem>>, vector<1x16x16xf32>
    %455 = vector.shape_cast %454 : vector<1x16x16xf32> to vector<16x16xf32>
    %456 = vector.shape_cast %453 : vector<16x16xf32> to vector<1x16x16xf32>
    tpu.vector_store %arg6[%c0_362, %c96_363, %c80_364], %456 {strides = array<i32>} : memref<1x112x256xf32, #tpu.memory_space<vmem>>, vector<1x16x16xf32>,
    %457 = vector.extract_strided_slice %430 {offsets = [0, 127], sizes = [16, 16], strides = [1, 1]} : vector<16x324xf32> to vector<16x16xf32>
    %c0_365 = arith.constant 0 : index
    %c96_366 = arith.constant 96 : index
    %c96_367 = arith.constant 96 : index
    %458 = vector.load %arg6[%c0_365, %c96_366, %c96_367] : memref<1x112x256xf32, #tpu.memory_space<vmem>>, vector<1x16x16xf32>
    %459 = vector.shape_cast %458 : vector<1x16x16xf32> to vector<16x16xf32>
    %460 = vector.shape_cast %457 : vector<16x16xf32> to vector<1x16x16xf32>
    tpu.vector_store %arg6[%c0_365, %c96_366, %c96_367], %460 {strides = array<i32>} : memref<1x112x256xf32, #tpu.memory_space<vmem>>, vector<1x16x16xf32>,
    %461 = vector.extract_strided_slice %430 {offsets = [0, 145], sizes = [16, 16], strides = [1, 1]} : vector<16x324xf32> to vector<16x16xf32>
    %c0_368 = arith.constant 0 : index
    %c96_369 = arith.constant 96 : index
    %c112_370 = arith.constant 112 : index
    %462 = vector.load %arg6[%c0_368, %c96_369, %c112_370] : memref<1x112x256xf32, #tpu.memory_space<vmem>>, vector<1x16x16xf32>
    %463 = vector.shape_cast %462 : vector<1x16x16xf32> to vector<16x16xf32>
    %464 = vector.shape_cast %461 : vector<16x16xf32> to vector<1x16x16xf32>
    tpu.vector_store %arg6[%c0_368, %c96_369, %c112_370], %464 {strides = array<i32>} : memref<1x112x256xf32, #tpu.memory_space<vmem>>, vector<1x16x16xf32>,
    %465 = vector.extract_strided_slice %430 {offsets = [0, 163], sizes = [16, 16], strides = [1, 1]} : vector<16x324xf32> to vector<16x16xf32>
    %c0_371 = arith.constant 0 : index
    %c96_372 = arith.constant 96 : index
    %c128_373 = arith.constant 128 : index
    %466 = vector.load %arg6[%c0_371, %c96_372, %c128_373] : memref<1x112x256xf32, #tpu.memory_space<vmem>>, vector<1x16x16xf32>
    %467 = vector.shape_cast %466 : vector<1x16x16xf32> to vector<16x16xf32>
    %468 = vector.shape_cast %465 : vector<16x16xf32> to vector<1x16x16xf32>
    tpu.vector_store %arg6[%c0_371, %c96_372, %c128_373], %468 {strides = array<i32>} : memref<1x112x256xf32, #tpu.memory_space<vmem>>, vector<1x16x16xf32>,
    %469 = vector.extract_strided_slice %430 {offsets = [0, 181], sizes = [16, 16], strides = [1, 1]} : vector<16x324xf32> to vector<16x16xf32>
    %c0_374 = arith.constant 0 : index
    %c96_375 = arith.constant 96 : index
    %c144_376 = arith.constant 144 : index
    %470 = vector.load %arg6[%c0_374, %c96_375, %c144_376] : memref<1x112x256xf32, #tpu.memory_space<vmem>>, vector<1x16x16xf32>
    %471 = vector.shape_cast %470 : vector<1x16x16xf32> to vector<16x16xf32>
    %472 = vector.shape_cast %469 : vector<16x16xf32> to vector<1x16x16xf32>
    tpu.vector_store %arg6[%c0_374, %c96_375, %c144_376], %472 {strides = array<i32>} : memref<1x112x256xf32, #tpu.memory_space<vmem>>, vector<1x16x16xf32>,
    %473 = vector.extract_strided_slice %430 {offsets = [0, 199], sizes = [16, 16], strides = [1, 1]} : vector<16x324xf32> to vector<16x16xf32>
    %c0_377 = arith.constant 0 : index
    %c96_378 = arith.constant 96 : index
    %c160_379 = arith.constant 160 : index
    %474 = vector.load %arg6[%c0_377, %c96_378, %c160_379] : memref<1x112x256xf32, #tpu.memory_space<vmem>>, vector<1x16x16xf32>
    %475 = vector.shape_cast %474 : vector<1x16x16xf32> to vector<16x16xf32>
    %476 = vector.shape_cast %473 : vector<16x16xf32> to vector<1x16x16xf32>
    tpu.vector_store %arg6[%c0_377, %c96_378, %c160_379], %476 {strides = array<i32>} : memref<1x112x256xf32, #tpu.memory_space<vmem>>, vector<1x16x16xf32>,
    %477 = vector.extract_strided_slice %430 {offsets = [0, 217], sizes = [16, 16], strides = [1, 1]} : vector<16x324xf32> to vector<16x16xf32>
    %c0_380 = arith.constant 0 : index
    %c96_381 = arith.constant 96 : index
    %c176_382 = arith.constant 176 : index
    %478 = vector.load %arg6[%c0_380, %c96_381, %c176_382] : memref<1x112x256xf32, #tpu.memory_space<vmem>>, vector<1x16x16xf32>
    %479 = vector.shape_cast %478 : vector<1x16x16xf32> to vector<16x16xf32>
    %480 = vector.shape_cast %477 : vector<16x16xf32> to vector<1x16x16xf32>
    tpu.vector_store %arg6[%c0_380, %c96_381, %c176_382], %480 {strides = array<i32>} : memref<1x112x256xf32, #tpu.memory_space<vmem>>, vector<1x16x16xf32>,
    %481 = vector.extract_strided_slice %430 {offsets = [0, 235], sizes = [16, 16], strides = [1, 1]} : vector<16x324xf32> to vector<16x16xf32>
    %c0_383 = arith.constant 0 : index
    %c96_384 = arith.constant 96 : index
    %c192_385 = arith.constant 192 : index
    %482 = vector.load %arg6[%c0_383, %c96_384, %c192_385] : memref<1x112x256xf32, #tpu.memory_space<vmem>>, vector<1x16x16xf32>
    %483 = vector.shape_cast %482 : vector<1x16x16xf32> to vector<16x16xf32>
    %484 = vector.shape_cast %481 : vector<16x16xf32> to vector<1x16x16xf32>
    tpu.vector_store %arg6[%c0_383, %c96_384, %c192_385], %484 {strides = array<i32>} : memref<1x112x256xf32, #tpu.memory_space<vmem>>, vector<1x16x16xf32>,
    %485 = vector.extract_strided_slice %430 {offsets = [0, 253], sizes = [16, 16], strides = [1, 1]} : vector<16x324xf32> to vector<16x16xf32>
    %c0_386 = arith.constant 0 : index
    %c96_387 = arith.constant 96 : index
    %c208_388 = arith.constant 208 : index
    %486 = vector.load %arg6[%c0_386, %c96_387, %c208_388] : memref<1x112x256xf32, #tpu.memory_space<vmem>>, vector<1x16x16xf32>
    %487 = vector.shape_cast %486 : vector<1x16x16xf32> to vector<16x16xf32>
    %488 = vector.shape_cast %485 : vector<16x16xf32> to vector<1x16x16xf32>
    tpu.vector_store %arg6[%c0_386, %c96_387, %c208_388], %488 {strides = array<i32>} : memref<1x112x256xf32, #tpu.memory_space<vmem>>, vector<1x16x16xf32>,
    %489 = vector.extract_strided_slice %430 {offsets = [0, 271], sizes = [16, 16], strides = [1, 1]} : vector<16x324xf32> to vector<16x16xf32>
    %c0_389 = arith.constant 0 : index
    %c96_390 = arith.constant 96 : index
    %c224_391 = arith.constant 224 : index
    %490 = vector.load %arg6[%c0_389, %c96_390, %c224_391] : memref<1x112x256xf32, #tpu.memory_space<vmem>>, vector<1x16x16xf32>
    %491 = vector.shape_cast %490 : vector<1x16x16xf32> to vector<16x16xf32>
    %492 = vector.shape_cast %489 : vector<16x16xf32> to vector<1x16x16xf32>
    tpu.vector_store %arg6[%c0_389, %c96_390, %c224_391], %492 {strides = array<i32>} : memref<1x112x256xf32, #tpu.memory_space<vmem>>, vector<1x16x16xf32>,
    %493 = vector.extract_strided_slice %430 {offsets = [0, 289], sizes = [16, 16], strides = [1, 1]} : vector<16x324xf32> to vector<16x16xf32>
    %c0_392 = arith.constant 0 : index
    %c96_393 = arith.constant 96 : index
    %c240_394 = arith.constant 240 : index
    %494 = vector.load %arg6[%c0_392, %c96_393, %c240_394] : memref<1x112x256xf32, #tpu.memory_space<vmem>>, vector<1x16x16xf32>
    %495 = vector.shape_cast %494 : vector<1x16x16xf32> to vector<16x16xf32>
    %496 = vector.shape_cast %493 : vector<16x16xf32> to vector<1x16x16xf32>
    tpu.vector_store %arg6[%c0_392, %c96_393, %c240_394], %496 {strides = array<i32>} : memref<1x112x256xf32, #tpu.memory_space<vmem>>, vector<1x16x16xf32>,
    return
  }
  func.func @transform_0(%arg0: i32) -> (i32, i32, i32) {
    %c0_i32 = arith.constant 0 : i32
    %c0_i32_0 = arith.constant 0 : i32
    %c0_i32_1 = arith.constant 0 : i32
    return %arg0, %c0_i32, %c0_i32_0 : i32, i32, i32
  }
  func.func @transform_1(%arg0: i32) -> (i32, i32) {
    %c0_i32 = arith.constant 0 : i32
    %c0_i32_0 = arith.constant 0 : i32
    %c0_i32_1 = arith.constant 0 : i32
    return %c0_i32, %c0_i32_0 : i32, i32
  }
  func.func @transform_2(%arg0: i32) -> (i32, i32, i32) {
    %c0_i32 = arith.constant 0 : i32
    %c0_i32_0 = arith.constant 0 : i32
    %c0_i32_1 = arith.constant 0 : i32
    %c0_i32_2 = arith.constant 0 : i32
    return %c0_i32, %c0_i32_0, %c0_i32_1 : i32, i32, i32
  }
  func.func @transform_3(%arg0: i32) -> (i32, i32, i32) {
    %c0_i32 = arith.constant 0 : i32
    %c0_i32_0 = arith.constant 0 : i32
    %c0_i32_1 = arith.constant 0 : i32
    %c0_i32_2 = arith.constant 0 : i32
    return %c0_i32, %c0_i32_0, %c0_i32_1 : i32, i32, i32
  }
  func.func @transform_4(%arg0: i32) -> (i32, i32, i32) {
    %c0_i32 = arith.constant 0 : i32
    %c0_i32_0 = arith.constant 0 : i32
    %c0_i32_1 = arith.constant 0 : i32
    %c0_i32_2 = arith.constant 0 : i32
    return %c0_i32, %c0_i32_0, %c0_i32_1 : i32, i32, i32
  }
  func.func @transform_5(%arg0: i32) -> (i32, i32, i32) {
    %c0_i32 = arith.constant 0 : i32
    %c0_i32_0 = arith.constant 0 : i32
    %c0_i32_1 = arith.constant 0 : i32
    return %arg0, %c0_i32, %c0_i32_0 : i32, i32, i32
  }
}

</mosaic_0001>

<llo_original>
// kernel: dense_skip_block_forward.1
$region0: #{dense_skip_block_forward.1}
  #allocation0 [shape = 'u32[]', space=smem, size = 0x4, offset = 0x4, fixed_abs, tag = 'smem constant byte address 0x4 - core index']
  #allocation1 [shape = 'u32[144,128]{1,0:T(1,128)}', space=vmem, size = 0x12000, scoped, tag = 'internal scratch']
  #allocation2 [shape = 'bf16[112,580]{1,0:T(16,128)(2,1)}', space=vmem, size = 0x23000, scoped, tag = 'scratch operand']
  %s0 = inlined_call_operand.vmem [shape: f32[2,64,324], index: 0, kind: input, shape index: {}]
  %s1 = inlined_call_operand.vmem [shape: f32[1,324], index: 1, kind: input, shape index: {}]
  %s2 = inlined_call_operand.vmem [shape: bf16[9,16,64], index: 2, kind: input, shape index: {}]
  %s3 = inlined_call_operand.vmem [shape: bf16[9,16,80], index: 3, kind: input, shape index: {}]
  %s4 = inlined_call_operand.vmem [shape: bf16[9,16,96], index: 4, kind: input, shape index: {}]
  %s5 = inlined_call_operand.vmem [shape: f32[2,112,256], index: 5, kind: output, shape index: {}]
  %s6 = sld [smem:[#allocation0]]
  $region53: #{dense_skip_block_forward.1} parent=0
    _
  %s8 = ssub.s32 1, %s6
  %s9 = scalar_select 0, %s8, %s6
  loop: start=0, step=1, limit=4
  $region2: #{dense_skip_block_forward.1} parent=0 // loop_pre_header
    _
  $region3: #{dense_skip_block_forward.1} parent=0 // loop_header
    %s11 = sphi 0, %s15
    %p12 = scmp.ge.s32.totalorder %s11, 4
    %s21 = sphi 0, %s23
    %s24 = sphi 0, %s21
    %s25 = sphi 0, %s24
    %s41 = sphi 0, %s25
    %s45 = sphi 0, %s45
    %s47 = sphi 0, %s45
    %s48 = sphi 0, %s47
    %s62 = sphi 0, %s48
    %s66 = sphi 0, %s66
    %s68 = sphi 0, %s66
    %s69 = sphi 0, %s68
    %s83 = sphi 0, %s69
    %s87 = sphi 0, %s87
    %s89 = sphi 0, %s87
    %s90 = sphi 0, %s89
    %s104 = sphi 0, %s90
    %s108 = sphi 0, %s108
    %s110 = sphi 0, %s108
    %s111 = sphi 0, %s110
    %s125 = sphi 0, %s111
    %s131 = sphi 0, %s133
    %s134 = sphi 0, %s131
    %s135 = sphi 0, %s134
    %s151 = sphi 0, %s135
  $region4: #{dense_skip_block_forward.1} parent=0 // loop_header_branch
    %14 = sbr.rel (%p12) target = $region8
  $region5: #{dense_skip_block_forward.1} parent=0 // loop_body
    %s16 = ssub.s32 %s11, 1
    %s17 = ssub.s32 %s11, 2
    %s18 = sadd.s32 %s11, 1
    %s19 = ssub.s32 %s11, %s18
    %p20 = scmp.eq.s32.totalorder %s19, 0
    %s22 = sadd.s32 %s21, 1
    %s23 = scalar_select %p20, %s21, %s22
    %p26 = pneg %p20
    %p27 = scmp.eq.s32.totalorder %s11, 1
    %p28 = por %p26, %p27
    %p29 = scmp.ne.s32.totalorder %s21, %s24
    %p30 = scmp.eq.s32.totalorder %s11, 0
    %p31 = por %p29, %p30
    %p32 = scmp.ne.s32.totalorder %s21, %s24
    %p33 = scmp.eq.s32.totalorder %s16, 1
    %p34 = por %p32, %p33
    %p35 = scmp.ne.s32.totalorder %s24, %s25
    %p36 = scmp.eq.s32.totalorder %s16, 0
    %p37 = por %p35, %p36
    %p38 = scmp.ne.s32.totalorder %s24, %s25
    %p39 = scmp.eq.s32.totalorder %s17, 1
    %p40 = por %p38, %p39
    %p42 = scmp.ne.s32.totalorder %s25, %s41
    %p43 = scmp.eq.s32.totalorder %s17, 0
    %p44 = por %p42, %p43
    %s46 = sadd.s32 %s45, 1
    %p49 = scmp.eq.s32.totalorder %s11, 1
    %p50 = scmp.ne.s32.totalorder %s45, %s47
    %p51 = scmp.eq.s32.totalorder %s11, 0
    %p52 = por %p50, %p51
    %p53 = scmp.ne.s32.totalorder %s45, %s47
    %p54 = scmp.eq.s32.totalorder %s16, 1
    %p55 = por %p53, %p54
    %p56 = scmp.ne.s32.totalorder %s47, %s48
    %p57 = scmp.eq.s32.totalorder %s16, 0
    %p58 = por %p56, %p57
    %p59 = scmp.ne.s32.totalorder %s47, %s48
    %p60 = scmp.eq.s32.totalorder %s17, 1
    %p61 = por %p59, %p60
    %p63 = scmp.ne.s32.totalorder %s48, %s62
    %p64 = scmp.eq.s32.totalorder %s17, 0
    %p65 = por %p63, %p64
    %s67 = sadd.s32 %s66, 1
    %p70 = scmp.eq.s32.totalorder %s11, 1
    %p71 = scmp.ne.s32.totalorder %s66, %s68
    %p72 = scmp.eq.s32.totalorder %s11, 0
    %p73 = por %p71, %p72
    %p74 = scmp.ne.s32.totalorder %s66, %s68
    %p75 = scmp.eq.s32.totalorder %s16, 1
    %p76 = por %p74, %p75
    %p77 = scmp.ne.s32.totalorder %s68, %s69
    %p78 = scmp.eq.s32.totalorder %s16, 0
    %p79 = por %p77, %p78
    %p80 = scmp.ne.s32.totalorder %s68, %s69
    %p81 = scmp.eq.s32.totalorder %s17, 1
    %p82 = por %p80, %p81
    %p84 = scmp.ne.s32.totalorder %s69, %s83
    %p85 = scmp.eq.s32.totalorder %s17, 0
    %p86 = por %p84, %p85
    %s88 = sadd.s32 %s87, 1
    %p91 = scmp.eq.s32.totalorder %s11, 1
    %p92 = scmp.ne.s32.totalorder %s87, %s89
    %p93 = scmp.eq.s32.totalorder %s11, 0
    %p94 = por %p92, %p93
    %p95 = scmp.ne.s32.totalorder %s87, %s89
    %p96 = scmp.eq.s32.totalorder %s16, 1
    %p97 = por %p95, %p96
    %p98 = scmp.ne.s32.totalorder %s89, %s90
    %p99 = scmp.eq.s32.totalorder %s16, 0
    %p100 = por %p98, %p99
    %p101 = scmp.ne.s32.totalorder %s89, %s90
    %p102 = scmp.eq.s32.totalorder %s17, 1
    %p103 = por %p101, %p102
    %p105 = scmp.ne.s32.totalorder %s90, %s104
    %p106 = scmp.eq.s32.totalorder %s17, 0
    %p107 = por %p105, %p106
    %s109 = sadd.s32 %s108, 1
    %p112 = scmp.eq.s32.totalorder %s11, 1
    %p113 = scmp.ne.s32.totalorder %s108, %s110
    %p114 = scmp.eq.s32.totalorder %s11, 0
    %p115 = por %p113, %p114
    %p116 = scmp.ne.s32.totalorder %s108, %s110
    %p117 = scmp.eq.s32.totalorder %s16, 1
    %p118 = por %p116, %p117
    %p119 = scmp.ne.s32.totalorder %s110, %s111
    %p120 = scmp.eq.s32.totalorder %s16, 0
    %p121 = por %p119, %p120
    %p122 = scmp.ne.s32.totalorder %s110, %s111
    %p123 = scmp.eq.s32.totalorder %s17, 1
    %p124 = por %p122, %p123
    %p126 = scmp.ne.s32.totalorder %s111, %s125
    %p127 = scmp.eq.s32.totalorder %s17, 0
    %p128 = por %p126, %p127
    %s129 = ssub.s32 %s11, %s18
    %p130 = scmp.eq.s32.totalorder %s129, 0
    %s132 = sadd.s32 %s131, 1
    %s133 = scalar_select %p130, %s131, %s132
    %p136 = pneg %p130
    %p137 = scmp.eq.s32.totalorder %s11, 1
    %p138 = por %p136, %p137
    %p139 = scmp.ne.s32.totalorder %s131, %s134
    %p140 = scmp.eq.s32.totalorder %s11, 0
    %p141 = por %p139, %p140
    %p142 = scmp.ne.s32.totalorder %s131, %s134
    %p143 = scmp.eq.s32.totalorder %s16, 1
    %p144 = por %p142, %p143
    %p145 = scmp.ne.s32.totalorder %s134, %s135
    %p146 = scmp.eq.s32.totalorder %s16, 0
    %p147 = por %p145, %p146
    %p148 = scmp.ne.s32.totalorder %s134, %s135
    %p149 = scmp.eq.s32.totalorder %s17, 1
    %p150 = por %p148, %p149
    %p152 = scmp.ne.s32.totalorder %s135, %s151
    %p153 = scmp.eq.s32.totalorder %s17, 0
    %p154 = por %p152, %p153
    %p155 = scmp.le.s32.totalorder 1, %s11
    %p156 = scmp.lt.s32.totalorder %s11, 3
    %p157 = pnand %p155, %p156
    %p158 = pneg %p157
    // Predicated region
    $region9: #{dense_skip_block_forward.1} parent=5 // pred_check
      _
    $region10: #{dense_skip_block_forward.1} parent=5 // pred_check_branch
      %160 = sbr.rel (%p157) target = $region12
    $region11: #{dense_skip_block_forward.1} parent=5 // pred_region
      %s161 = ssub.s32 %s11, 1
      // Predicated region
      $region13: #{dense_skip_block_forward.1} parent=11 // pred_check
        %p162 = pneg %p58
      $region14: #{dense_skip_block_forward.1} parent=11 // pred_check_branch
        %164 = sbr.rel (%p162) target = $region16
      $region15: #{dense_skip_block_forward.1} parent=11 // pred_region
        _
      $region16: #{dense_skip_block_forward.1} parent=11 // pred_fallthru
        _
      // Predicated region
      $region17: #{dense_skip_block_forward.1} parent=11 // pred_check
        %p165 = pneg %p79
      $region18: #{dense_skip_block_forward.1} parent=11 // pred_check_branch
        %167 = sbr.rel (%p165) target = $region20
      $region19: #{dense_skip_block_forward.1} parent=11 // pred_region
        _
      $region20: #{dense_skip_block_forward.1} parent=11 // pred_fallthru
        _
      // Predicated region
      $region21: #{dense_skip_block_forward.1} parent=11 // pred_check
        %p168 = pneg %p100
      $region22: #{dense_skip_block_forward.1} parent=11 // pred_check_branch
        %170 = sbr.rel (%p168) target = $region24
      $region23: #{dense_skip_block_forward.1} parent=11 // pred_region
        _
      $region24: #{dense_skip_block_forward.1} parent=11 // pred_fallthru
        _
      // Predicated region
      $region25: #{dense_skip_block_forward.1} parent=11 // pred_check
        %p171 = pneg %p121
      $region26: #{dense_skip_block_forward.1} parent=11 // pred_check_branch
        %173 = sbr.rel (%p171) target = $region28
      $region27: #{dense_skip_block_forward.1} parent=11 // pred_region
        _
      $region28: #{dense_skip_block_forward.1} parent=11 // pred_fallthru
        _
    $region12: #{dense_skip_block_forward.1} parent=5 // pred_fallthru
      _
    %p174 = scmp.lt.s32.totalorder %s11, 2
    // Predicated region
    $region29: #{dense_skip_block_forward.1} parent=5 // pred_check
      %p175 = pneg %p174
    $region30: #{dense_skip_block_forward.1} parent=5 // pred_check_branch
      %177 = sbr.rel (%p175) target = $region32
    $region31: #{dense_skip_block_forward.1} parent=5 // pred_region
      // Predicated region
      $region33: #{dense_skip_block_forward.1} parent=31 // pred_check
        %p178 = pneg %p31
      $region34: #{dense_skip_block_forward.1} parent=31 // pred_check_branch
        %180 = sbr.rel (%p178) target = $region36
      $region35: #{dense_skip_block_forward.1} parent=31 // pred_region
        %p181 = scmp.lt.s32.totalorder %s11, 1
        %s182 = scalar_select %p181, %s11, 1
        %s183 = smul.addr %s182, 24
        %s184 = smul.addr %s183, 8
        %s185 = scalar_lea.vmem %s0, %s184
      $region36: #{dense_skip_block_forward.1} parent=31 // pred_fallthru
        _
    $region32: #{dense_skip_block_forward.1} parent=5 // pred_fallthru
      _
    %p186 = scmp.le.s32.totalorder 1, %s11
    %p187 = scmp.lt.s32.totalorder %s11, 3
    %p188 = pnand %p186, %p187
    %p189 = pneg %p188
    // Predicated region
    $region37: #{dense_skip_block_forward.1} parent=5 // pred_check
      _
    $region38: #{dense_skip_block_forward.1} parent=5 // pred_check_branch
      %191 = sbr.rel (%p188) target = $region40
    $region39: #{dense_skip_block_forward.1} parent=5 // pred_region
      %s192 = ssub.s32 %s11, 1
      %p193 = scmp.lt.s32.totalorder %s16, 1
      %s194 = scalar_select %p193, %s16, 1
      %s195 = smul.addr %s194, 24
      %s196 = smul.addr %s195, 8
      %s197 = scalar_lea.vmem %s0, %s196
      %p198 = pneg %p37
      %p199 = pneg %p34
      %p200 = pneg %p58
      %p201 = pneg %p55
      %p202 = pneg %p79
      %p203 = pneg %p76
      %p204 = pneg %p100
      %p205 = pneg %p97
      %p206 = pneg %p121
      %p207 = pneg %p118
      %p208 = pneg %p147
      %p209 = pneg %p144
      %p210 = scmp.lt.s32.totalorder %s16, 1
      %s211 = scalar_select %p210, %s16, 1
      %s212 = smul.addr %s211, 28
      %s213 = smul.addr %s212, 8
      %s214 = scalar_lea.vmem %s5, %s213
      %p215 = scmp.lt.s32.totalorder %s16, 1
      %s216 = scalar_select %p215, %s16, 1
      %s217 = smul.addr %s216, 24
      %s218 = smul.addr %s217, 8
      %s219 = scalar_lea.vmem %s0, %s218
      %p220 = scmp.lt.s32.totalorder %s16, 1
      %s221 = scalar_select %p220, %s16, 1
      %s222 = smul.addr %s221, 28
      %s223 = smul.addr %s222, 8
      %s224 = scalar_lea.vmem %s5, %s223
      %v226 = vld [vmem:[%s1] sm:$0x7]
      %227 = vst [vmem:[#allocation2] sm:$0xff] 0
      %228 = vst [vmem:[#allocation2 + $0x28] sm:$0xff] 0
      %229 = vst [vmem:[#allocation2 + $0x50] sm:$0xff] 0
      %230 = vst [vmem:[#allocation2 + $0x78] sm:$0xff] 0
      %231 = vst [vmem:[#allocation2 + $0xa0] sm:$0xff] 0
      %232 = vst [vmem:[#allocation2 + $0xc8] sm:$0xff] 0
      %233 = vst [vmem:[#allocation2 + $0xf0] sm:$0xff] 0
      %vm234 = vcmask 1048096
      %235 = vst.msk [vmem:[#allocation2 + $0x18] sm:$0xff] %vm234, 0
      %vm236 = vcmask 556032
      %237 = vst.msk [vmem:[#allocation2 + $0x20] sm:$0xff] %vm236, 0
      %238 = vst.msk [vmem:[#allocation2 + $0x40] sm:$0xff] %vm234, 0
      %239 = vst.msk [vmem:[#allocation2 + $0x48] sm:$0xff] %vm236, 0
      %240 = vst.msk [vmem:[#allocation2 + $0x68] sm:$0xff] %vm234, 0
      %241 = vst.msk [vmem:[#allocation2 + $0x70] sm:$0xff] %vm236, 0
      %242 = vst.msk [vmem:[#allocation2 + $0x90] sm:$0xff] %vm234, 0
      %243 = vst.msk [vmem:[#allocation2 + $0x98] sm:$0xff] %vm236, 0
      %244 = vst.msk [vmem:[#allocation2 + $0xb8] sm:$0xff] %vm234, 0
      %245 = vst.msk [vmem:[#allocation2 + $0xc0] sm:$0xff] %vm236, 0
      %246 = vst.msk [vmem:[#allocation2 + $0xe0] sm:$0xff] %vm234, 0
      %247 = vst.msk [vmem:[#allocation2 + $0xe8] sm:$0xff] %vm236, 0
      %248 = vst.msk [vmem:[#allocation2 + $0x108] sm:$0xff] %vm234, 0
      %249 = vst.msk [vmem:[#allocation2 + $0x110] sm:$0xff] %vm236, 0
      %v250 = vld [vmem:[%s219] sm:$0xff]
      %v251 = vld [vmem:[%s219 + $0x8] sm:$0xff]
      %v252 = vld [vmem:[%s219 + $0x10] sm:$0xff]
      %v253 = vld [vmem:[%s219 + $0x18] sm:$0xff]
      %v254 = vld [vmem:[%s219 + $0x20] sm:$0xff]
      %v255 = vld [vmem:[%s219 + $0x28] sm:$0xff]
      %v256 = vld [vmem:[%s219 + $0x30] sm:$0xff]
      %v257 = vld [vmem:[%s219 + $0x38] sm:$0xff]
      %v258 = vld [vmem:[%s219 + $0x40] sm:$0xff]
      %v259 = vld [vmem:[%s219 + $0x48] sm:$0xff]
      %v260 = vld [vmem:[%s219 + $0x50] sm:$0xff]
      %v261 = vld [vmem:[%s219 + $0x58] sm:$0xff]
      %v262 = vld [vmem:[%s219 + $0x60] sm:$0xff]
      %v263 = vld [vmem:[%s219 + $0x68] sm:$0xff]
      %v264 = vld [vmem:[%s219 + $0x70] sm:$0xff]
      %v265 = vld [vmem:[%s219 + $0x78] sm:$0xff]
      %v266 = vld [vmem:[%s219 + $0x80] sm:$0xff]
      %v267 = vld [vmem:[%s219 + $0x88] sm:$0xff]
      %v268 = vld [vmem:[%s219 + $0x90] sm:$0xff]
      %v269 = vld [vmem:[%s219 + $0x98] sm:$0xff]
      %v270 = vld [vmem:[%s219 + $0xa0] sm:$0xff]
      %v271 = vld [vmem:[%s219 + $0xa8] sm:$0xff]
      %v272 = vld [vmem:[%s219 + $0xb0] sm:$0xff]
      %v273 = vld [vmem:[%s219 + $0xb8] sm:$0xff]
      %v274 = vpack.c.bf16 %v253, %v250
      %v275 = vpack.c.bf16 %v254, %v251
      %v276 = vpack.c.bf16 %v255, %v252
      %v277 = vpack.c.bf16 %v259, %v256
      %v278 = vpack.c.bf16 %v260, %v257
      %v279 = vpack.c.bf16 %v261, %v258
      %v280 = vpack.c.bf16 %v265, %v262
      %v281 = vpack.c.bf16 %v266, %v263
      %v282 = vpack.c.bf16 %v267, %v264
      %v283 = vpack.c.bf16 %v271, %v268
      %v284 = vpack.c.bf16 %v272, %v269
      %v285 = vpack.c.bf16 %v273, %v270
      %286 = vst [vmem:[#allocation2 + $0x8] sm:$0xff] %v274
      %287 = vst [vmem:[#allocation2 + $0x10] sm:$0xff] %v275
      %288 = vst.msk [vmem:[#allocation2 + $0x18] sm:$0xff] %vm236, %v276
      %289 = vst [vmem:[#allocation2 + $0x30] sm:$0xff] %v277
      %290 = vst [vmem:[#allocation2 + $0x38] sm:$0xff] %v278
      %291 = vst.msk [vmem:[#allocation2 + $0x40] sm:$0xff] %vm236, %v279
      %292 = vst [vmem:[#allocation2 + $0x58] sm:$0xff] %v280
      %293 = vst [vmem:[#allocation2 + $0x60] sm:$0xff] %v281
      %294 = vst.msk [vmem:[#allocation2 + $0x68] sm:$0xff] %vm236, %v282
      %295 = vst [vmem:[#allocation2 + $0x80] sm:$0xff] %v283
      %296 = vst [vmem:[#allocation2 + $0x88] sm:$0xff] %v284
      %297 = vst.msk [vmem:[#allocation2 + $0x90] sm:$0xff] %vm236, %v285
      %v298 = vld [vmem:[%s219] sm:$0xff]
      %v299 = vld [vmem:[%s219 + $0x18] sm:$0xff]
      %v300 = vld [vmem:[%s219 + $0x30] sm:$0xff]
      %v301 = vld [vmem:[%s219 + $0x48] sm:$0xff]
      %v302 = vld [vmem:[%s219 + $0x60] sm:$0xff]
      %v303 = vld [vmem:[%s219 + $0x78] sm:$0xff]
      %v304 = vld [vmem:[%s219 + $0x90] sm:$0xff]
      %v305 = vld [vmem:[%s219 + $0xa8] sm:$0xff]
      %314 = vrot.lane.b32.xlu0 %v298, 109
      %v315 = vpop.permute.xlu0 %314
      %316 = vrot.lane.b32.xlu0 %v299, 109
      %v317 = vpop.permute.xlu0 %316
      %318 = vrot.lane.b32.xlu0 %v300, 109
      %v319 = vpop.permute.xlu0 %318
      %320 = vrot.lane.b32.xlu0 %v301, 109
      %v321 = vpop.permute.xlu0 %320
      %322 = vrot.lane.b32.xlu0 %v302, 109
      %v323 = vpop.permute.xlu0 %322
      %324 = vrot.lane.b32.xlu0 %v303, 109
      %v325 = vpop.permute.xlu0 %324
      %326 = vrot.lane.b32.xlu0 %v304, 109
      %v327 = vpop.permute.xlu0 %326
      %328 = vrot.lane.b32.xlu0 %v305, 109
      %v329 = vpop.permute.xlu0 %328
      %vm338 = vcmask 130048
      %339 = vst.msk [vmem:[%s224] sm:$0xff] %vm338, %v315
      %340 = vst.msk [vmem:[%s224 + $0x10] sm:$0xff] %vm338, %v317
      %341 = vst.msk [vmem:[%s224 + $0x20] sm:$0xff] %vm338, %v319
      %342 = vst.msk [vmem:[%s224 + $0x30] sm:$0xff] %vm338, %v321
      %343 = vst.msk [vmem:[%s224 + $0x40] sm:$0xff] %vm338, %v323
      %344 = vst.msk [vmem:[%s224 + $0x50] sm:$0xff] %vm338, %v325
      %345 = vst.msk [vmem:[%s224 + $0x60] sm:$0xff] %vm338, %v327
      %346 = vst.msk [vmem:[%s224 + $0x70] sm:$0xff] %vm338, %v329
      %v347 = vld [vmem:[%s219] sm:$0xff]
      %v348 = vld [vmem:[%s219 + $0x18] sm:$0xff]
      %v349 = vld [vmem:[%s219 + $0x30] sm:$0xff]
      %v350 = vld [vmem:[%s219 + $0x48] sm:$0xff]
      %v351 = vld [vmem:[%s219 + $0x60] sm:$0xff]
      %v352 = vld [vmem:[%s219 + $0x78] sm:$0xff]
      %v353 = vld [vmem:[%s219 + $0x90] sm:$0xff]
      %v354 = vld [vmem:[%s219 + $0xa8] sm:$0xff]
      %363 = vrot.lane.b32.xlu0 %v347, 107
      %v364 = vpop.permute.xlu0 %363
      %365 = vrot.lane.b32.xlu0 %v348, 107
      %v366 = vpop.permute.xlu0 %365
      %367 = vrot.lane.b32.xlu0 %v349, 107
      %v368 = vpop.permute.xlu0 %367
      %369 = vrot.lane.b32.xlu0 %v350, 107
      %v370 = vpop.permute.xlu0 %369
      %371 = vrot.lane.b32.xlu0 %v351, 107
      %v372 = vpop.permute.xlu0 %371
      %373 = vrot.lane.b32.xlu0 %v352, 107
      %v374 = vpop.permute.xlu0 %373
      %375 = vrot.lane.b32.xlu0 %v353, 107
      %v376 = vpop.permute.xlu0 %375
      %377 = vrot.lane.b32.xlu0 %v354, 107
      %v378 = vpop.permute.xlu0 %377
      %vm387 = vcmask 261248
      %388 = vst.msk [vmem:[%s224] sm:$0xff] %vm387, %v364
      %389 = vst.msk [vmem:[%s224 + $0x10] sm:$0xff] %vm387, %v366
      %390 = vst.msk [vmem:[%s224 + $0x20] sm:$0xff] %vm387, %v368
      %391 = vst.msk [vmem:[%s224 + $0x30] sm:$0xff] %vm387, %v370
      %392 = vst.msk [vmem:[%s224 + $0x40] sm:$0xff] %vm387, %v372
      %393 = vst.msk [vmem:[%s224 + $0x50] sm:$0xff] %vm387, %v374
      %394 = vst.msk [vmem:[%s224 + $0x60] sm:$0xff] %vm387, %v376
      %395 = vst.msk [vmem:[%s224 + $0x70] sm:$0xff] %vm387, %v378
      %v396 = vld [vmem:[%s219] sm:$0xff]
      %v397 = vld [vmem:[%s219 + $0x18] sm:$0xff]
      %v398 = vld [vmem:[%s219 + $0x30] sm:$0xff]
      %v399 = vld [vmem:[%s219 + $0x48] sm:$0xff]
      %v400 = vld [vmem:[%s219 + $0x60] sm:$0xff]
      %v401 = vld [vmem:[%s219 + $0x78] sm:$0xff]
      %v402 = vld [vmem:[%s219 + $0x90] sm:$0xff]
      %v403 = vld [vmem:[%s219 + $0xa8] sm:$0xff]
      %412 = vrot.lane.b32.xlu0 %v396, 105
      %v413 = vpop.permute.xlu0 %412
      %414 = vrot.lane.b32.xlu0 %v397, 105
      %v415 = vpop.permute.xlu0 %414
      %416 = vrot.lane.b32.xlu0 %v398, 105
      %v417 = vpop.permute.xlu0 %416
      %418 = vrot.lane.b32.xlu0 %v399, 105
      %v419 = vpop.permute.xlu0 %418
      %420 = vrot.lane.b32.xlu0 %v400, 105
      %v421 = vpop.permute.xlu0 %420
      %422 = vrot.lane.b32.xlu0 %v401, 105
      %v423 = vpop.permute.xlu0 %422
      %424 = vrot.lane.b32.xlu0 %v402, 105
      %v425 = vpop.permute.xlu0 %424
      %426 = vrot.lane.b32.xlu0 %v403, 105
      %v427 = vpop.permute.xlu0 %426
      %vm436 = vcmask 392448
      %437 = vst.msk [vmem:[%s224] sm:$0xff] %vm436, %v413
      %438 = vst.msk [vmem:[%s224 + $0x10] sm:$0xff] %vm436, %v415
      %439 = vst.msk [vmem:[%s224 + $0x20] sm:$0xff] %vm436, %v417
      %440 = vst.msk [vmem:[%s224 + $0x30] sm:$0xff] %vm436, %v419
      %441 = vst.msk [vmem:[%s224 + $0x40] sm:$0xff] %vm436, %v421
      %442 = vst.msk [vmem:[%s224 + $0x50] sm:$0xff] %vm436, %v423
      %443 = vst.msk [vmem:[%s224 + $0x60] sm:$0xff] %vm436, %v425
      %444 = vst.msk [vmem:[%s224 + $0x70] sm:$0xff] %vm436, %v427
      %v445 = vld [vmem:[%s219] sm:$0xff]
      %v446 = vld [vmem:[%s219 + $0x18] sm:$0xff]
      %v447 = vld [vmem:[%s219 + $0x30] sm:$0xff]
      %v448 = vld [vmem:[%s219 + $0x48] sm:$0xff]
      %v449 = vld [vmem:[%s219 + $0x60] sm:$0xff]
      %v450 = vld [vmem:[%s219 + $0x78] sm:$0xff]
      %v451 = vld [vmem:[%s219 + $0x90] sm:$0xff]
      %v452 = vld [vmem:[%s219 + $0xa8] sm:$0xff]
      %461 = vrot.lane.b32.xlu0 %v445, 103
      %v462 = vpop.permute.xlu0 %461
      %463 = vrot.lane.b32.xlu0 %v446, 103
      %v464 = vpop.permute.xlu0 %463
      %465 = vrot.lane.b32.xlu0 %v447, 103
      %v466 = vpop.permute.xlu0 %465
      %467 = vrot.lane.b32.xlu0 %v448, 103
      %v468 = vpop.permute.xlu0 %467
      %469 = vrot.lane.b32.xlu0 %v449, 103
      %v470 = vpop.permute.xlu0 %469
      %471 = vrot.lane.b32.xlu0 %v450, 103
      %v472 = vpop.permute.xlu0 %471
      %473 = vrot.lane.b32.xlu0 %v451, 103
      %v474 = vpop.permute.xlu0 %473
      %475 = vrot.lane.b32.xlu0 %v452, 103
      %v476 = vpop.permute.xlu0 %475
      %vm485 = vcmask 523648
      %486 = vst.msk [vmem:[%s224] sm:$0xff] %vm485, %v462
      %487 = vst.msk [vmem:[%s224 + $0x10] sm:$0xff] %vm485, %v464
      %488 = vst.msk [vmem:[%s224 + $0x20] sm:$0xff] %vm485, %v466
      %489 = vst.msk [vmem:[%s224 + $0x30] sm:$0xff] %vm485, %v468
      %490 = vst.msk [vmem:[%s224 + $0x40] sm:$0xff] %vm485, %v470
      %491 = vst.msk [vmem:[%s224 + $0x50] sm:$0xff] %vm485, %v472
      %492 = vst.msk [vmem:[%s224 + $0x60] sm:$0xff] %vm485, %v474
      %493 = vst.msk [vmem:[%s224 + $0x70] sm:$0xff] %vm485, %v476
      %v494 = vld [vmem:[%s219] sm:$0xff]
      %v495 = vld [vmem:[%s219 + $0x18] sm:$0xff]
      %v496 = vld [vmem:[%s219 + $0x30] sm:$0xff]
      %v497 = vld [vmem:[%s219 + $0x48] sm:$0xff]
      %v498 = vld [vmem:[%s219 + $0x60] sm:$0xff]
      %v499 = vld [vmem:[%s219 + $0x78] sm:$0xff]
      %v500 = vld [vmem:[%s219 + $0x90] sm:$0xff]
      %v501 = vld [vmem:[%s219 + $0xa8] sm:$0xff]
      %510 = vrot.lane.b32.xlu0 %v494, 101
      %v511 = vpop.permute.xlu0 %510
      %512 = vrot.lane.b32.xlu0 %v495, 101
      %v513 = vpop.permute.xlu0 %512
      %514 = vrot.lane.b32.xlu0 %v496, 101
      %v515 = vpop.permute.xlu0 %514
      %516 = vrot.lane.b32.xlu0 %v497, 101
      %v517 = vpop.permute.xlu0 %516
      %518 = vrot.lane.b32.xlu0 %v498, 101
      %v519 = vpop.permute.xlu0 %518
      %520 = vrot.lane.b32.xlu0 %v499, 101
      %v521 = vpop.permute.xlu0 %520
      %522 = vrot.lane.b32.xlu0 %v500, 101
      %v523 = vpop.permute.xlu0 %522
      %524 = vrot.lane.b32.xlu0 %v501, 101
      %v525 = vpop.permute.xlu0 %524
      %vm534 = vcmask 654848
      %535 = vst.msk [vmem:[%s224] sm:$0xff] %vm534, %v511
      %536 = vst.msk [vmem:[%s224 + $0x10] sm:$0xff] %vm534, %v513
      %537 = vst.msk [vmem:[%s224 + $0x20] sm:$0xff] %vm534, %v515
      %538 = vst.msk [vmem:[%s224 + $0x30] sm:$0xff] %vm534, %v517
      %539 = vst.msk [vmem:[%s224 + $0x40] sm:$0xff] %vm534, %v519
      %540 = vst.msk [vmem:[%s224 + $0x50] sm:$0xff] %vm534, %v521
      %541 = vst.msk [vmem:[%s224 + $0x60] sm:$0xff] %vm534, %v523
      %542 = vst.msk [vmem:[%s224 + $0x70] sm:$0xff] %vm534, %v525
      %v543 = vld [vmem:[%s219] sm:$0xff]
      %v544 = vld [vmem:[%s219 + $0x18] sm:$0xff]
      %v545 = vld [vmem:[%s219 + $0x30] sm:$0xff]
      %v546 = vld [vmem:[%s219 + $0x48] sm:$0xff]
      %v547 = vld [vmem:[%s219 + $0x60] sm:$0xff]
      %v548 = vld [vmem:[%s219 + $0x78] sm:$0xff]
      %v549 = vld [vmem:[%s219 + $0x90] sm:$0xff]
      %v550 = vld [vmem:[%s219 + $0xa8] sm:$0xff]
      %559 = vrot.lane.b32.xlu0 %v543, 99
      %v560 = vpop.permute.xlu0 %559
      %561 = vrot.lane.b32.xlu0 %v544, 99
      %v562 = vpop.permute.xlu0 %561
      %563 = vrot.lane.b32.xlu0 %v545, 99
      %v564 = vpop.permute.xlu0 %563
      %565 = vrot.lane.b32.xlu0 %v546, 99
      %v566 = vpop.permute.xlu0 %565
      %567 = vrot.lane.b32.xlu0 %v547, 99
      %v568 = vpop.permute.xlu0 %567
      %569 = vrot.lane.b32.xlu0 %v548, 99
      %v570 = vpop.permute.xlu0 %569
      %571 = vrot.lane.b32.xlu0 %v549, 99
      %v572 = vpop.permute.xlu0 %571
      %573 = vrot.lane.b32.xlu0 %v550, 99
      %v574 = vpop.permute.xlu0 %573
      %vm583 = vcmask 786048
      %584 = vst.msk [vmem:[%s224] sm:$0xff] %vm583, %v560
      %585 = vst.msk [vmem:[%s224 + $0x10] sm:$0xff] %vm583, %v562
      %586 = vst.msk [vmem:[%s224 + $0x20] sm:$0xff] %vm583, %v564
      %587 = vst.msk [vmem:[%s224 + $0x30] sm:$0xff] %vm583, %v566
      %588 = vst.msk [vmem:[%s224 + $0x40] sm:$0xff] %vm583, %v568
      %589 = vst.msk [vmem:[%s224 + $0x50] sm:$0xff] %vm583, %v570
      %590 = vst.msk [vmem:[%s224 + $0x60] sm:$0xff] %vm583, %v572
      %591 = vst.msk [vmem:[%s224 + $0x70] sm:$0xff] %vm583, %v574
      %v592 = vld [vmem:[%s219] sm:$0xff]
      %v593 = vld [vmem:[%s219 + $0x8] sm:$0xff]
      %v594 = vld [vmem:[%s219 + $0x18] sm:$0xff]
      %v595 = vld [vmem:[%s219 + $0x20] sm:$0xff]
      %v596 = vld [vmem:[%s219 + $0x30] sm:$0xff]
      %v597 = vld [vmem:[%s219 + $0x38] sm:$0xff]
      %v598 = vld [vmem:[%s219 + $0x48] sm:$0xff]
      %v599 = vld [vmem:[%s219 + $0x50] sm:$0xff]
      %v600 = vld [vmem:[%s219 + $0x60] sm:$0xff]
      %v601 = vld [vmem:[%s219 + $0x68] sm:$0xff]
      %v602 = vld [vmem:[%s219 + $0x78] sm:$0xff]
      %v603 = vld [vmem:[%s219 + $0x80] sm:$0xff]
      %v604 = vld [vmem:[%s219 + $0x90] sm:$0xff]
      %v605 = vld [vmem:[%s219 + $0x98] sm:$0xff]
      %v606 = vld [vmem:[%s219 + $0xa8] sm:$0xff]
      %v607 = vld [vmem:[%s219 + $0xb0] sm:$0xff]
      %624 = vrot.lane.b32.xlu0 %v592, 97
      %v625 = vpop.permute.xlu0 %624
      %626 = vrot.lane.b32.xlu0 %v593, 97
      %v627 = vpop.permute.xlu0 %626
      %628 = vrot.lane.b32.xlu0 %v594, 97
      %v629 = vpop.permute.xlu0 %628
      %630 = vrot.lane.b32.xlu0 %v595, 97
      %v631 = vpop.permute.xlu0 %630
      %632 = vrot.lane.b32.xlu0 %v596, 97
      %v633 = vpop.permute.xlu0 %632
      %634 = vrot.lane.b32.xlu0 %v597, 97
      %v635 = vpop.permute.xlu0 %634
      %636 = vrot.lane.b32.xlu0 %v598, 97
      %v637 = vpop.permute.xlu0 %636
      %638 = vrot.lane.b32.xlu0 %v599, 97
      %v639 = vpop.permute.xlu0 %638
      %640 = vrot.lane.b32.xlu0 %v600, 97
      %v641 = vpop.permute.xlu0 %640
      %642 = vrot.lane.b32.xlu0 %v601, 97
      %v643 = vpop.permute.xlu0 %642
      %644 = vrot.lane.b32.xlu0 %v602, 97
      %v645 = vpop.permute.xlu0 %644
      %646 = vrot.lane.b32.xlu0 %v603, 97
      %v647 = vpop.permute.xlu0 %646
      %648 = vrot.lane.b32.xlu0 %v604, 97
      %v649 = vpop.permute.xlu0 %648
      %650 = vrot.lane.b32.xlu0 %v605, 97
      %v651 = vpop.permute.xlu0 %650
      %652 = vrot.lane.b32.xlu0 %v606, 97
      %v653 = vpop.permute.xlu0 %652
      %654 = vrot.lane.b32.xlu0 %v607, 97
      %v655 = vpop.permute.xlu0 %654
      %vm656 = vcmask 793600
      %v657 = vsel %vm656, %v625, %v627
      %v658 = vsel %vm656, %v629, %v631
      %v659 = vsel %vm656, %v633, %v635
      %v660 = vsel %vm656, %v637, %v639
      %v661 = vsel %vm656, %v641, %v643
      %v662 = vsel %vm656, %v645, %v647
      %v663 = vsel %vm656, %v649, %v651
      %v664 = vsel %vm656, %v653, %v655
      %vm673 = vcmask 917248
      %674 = vst.msk [vmem:[%s224] sm:$0xff] %vm673, %v657
      %675 = vst.msk [vmem:[%s224 + $0x10] sm:$0xff] %vm673, %v658
      %676 = vst.msk [vmem:[%s224 + $0x20] sm:$0xff] %vm673, %v659
      %677 = vst.msk [vmem:[%s224 + $0x30] sm:$0xff] %vm673, %v660
      %678 = vst.msk [vmem:[%s224 + $0x40] sm:$0xff] %vm673, %v661
      %679 = vst.msk [vmem:[%s224 + $0x50] sm:$0xff] %vm673, %v662
      %680 = vst.msk [vmem:[%s224 + $0x60] sm:$0xff] %vm673, %v663
      %681 = vst.msk [vmem:[%s224 + $0x70] sm:$0xff] %vm673, %v664
      %v682 = vld [vmem:[%s219 + $0x8] sm:$0xff]
      %v683 = vld [vmem:[%s219 + $0x20] sm:$0xff]
      %v684 = vld [vmem:[%s219 + $0x38] sm:$0xff]
      %v685 = vld [vmem:[%s219 + $0x50] sm:$0xff]
      %v686 = vld [vmem:[%s219 + $0x68] sm:$0xff]
      %v687 = vld [vmem:[%s219 + $0x80] sm:$0xff]
      %v688 = vld [vmem:[%s219 + $0x98] sm:$0xff]
      %v689 = vld [vmem:[%s219 + $0xb0] sm:$0xff]
      %698 = vrot.lane.b32.xlu0 %v682, 95
      %v699 = vpop.permute.xlu0 %698
      %700 = vrot.lane.b32.xlu0 %v683, 95
      %v701 = vpop.permute.xlu0 %700
      %702 = vrot.lane.b32.xlu0 %v684, 95
      %v703 = vpop.permute.xlu0 %702
      %704 = vrot.lane.b32.xlu0 %v685, 95
      %v705 = vpop.permute.xlu0 %704
      %706 = vrot.lane.b32.xlu0 %v686, 95
      %v707 = vpop.permute.xlu0 %706
      %708 = vrot.lane.b32.xlu0 %v687, 95
      %v709 = vpop.permute.xlu0 %708
      %710 = vrot.lane.b32.xlu0 %v688, 95
      %v711 = vpop.permute.xlu0 %710
      %712 = vrot.lane.b32.xlu0 %v689, 95
      %v713 = vpop.permute.xlu0 %712
      %vm722 = vcmask 1048448
      %723 = vst.msk [vmem:[%s224] sm:$0xff] %vm722, %v699
      %724 = vst.msk [vmem:[%s224 + $0x10] sm:$0xff] %vm722, %v701
      %725 = vst.msk [vmem:[%s224 + $0x20] sm:$0xff] %vm722, %v703
      %726 = vst.msk [vmem:[%s224 + $0x30] sm:$0xff] %vm722, %v705
      %727 = vst.msk [vmem:[%s224 + $0x40] sm:$0xff] %vm722, %v707
      %728 = vst.msk [vmem:[%s224 + $0x50] sm:$0xff] %vm722, %v709
      %729 = vst.msk [vmem:[%s224 + $0x60] sm:$0xff] %vm722, %v711
      %730 = vst.msk [vmem:[%s224 + $0x70] sm:$0xff] %vm722, %v713
      %v731 = vld [vmem:[%s219 + $0x8] sm:$0xff]
      %v732 = vld [vmem:[%s219 + $0x20] sm:$0xff]
      %v733 = vld [vmem:[%s219 + $0x38] sm:$0xff]
      %v734 = vld [vmem:[%s219 + $0x50] sm:$0xff]
      %v735 = vld [vmem:[%s219 + $0x68] sm:$0xff]
      %v736 = vld [vmem:[%s219 + $0x80] sm:$0xff]
      %v737 = vld [vmem:[%s219 + $0x98] sm:$0xff]
      %v738 = vld [vmem:[%s219 + $0xb0] sm:$0xff]
      %747 = vrot.lane.b32.xlu0 %v731, 93
      %v748 = vpop.permute.xlu0 %747
      %749 = vrot.lane.b32.xlu0 %v732, 93
      %v750 = vpop.permute.xlu0 %749
      %751 = vrot.lane.b32.xlu0 %v733, 93
      %v752 = vpop.permute.xlu0 %751
      %753 = vrot.lane.b32.xlu0 %v734, 93
      %v754 = vpop.permute.xlu0 %753
      %755 = vrot.lane.b32.xlu0 %v735, 93
      %v756 = vpop.permute.xlu0 %755
      %757 = vrot.lane.b32.xlu0 %v736, 93
      %v758 = vpop.permute.xlu0 %757
      %759 = vrot.lane.b32.xlu0 %v737, 93
      %v760 = vpop.permute.xlu0 %759
      %761 = vrot.lane.b32.xlu0 %v738, 93
      %v762 = vpop.permute.xlu0 %761
      %771 = vst.msk [vmem:[%s224 + $0x8] sm:$0xff] %vm338, %v748
      %772 = vst.msk [vmem:[%s224 + $0x18] sm:$0xff] %vm338, %v750
      %773 = vst.msk [vmem:[%s224 + $0x28] sm:$0xff] %vm338, %v752
      %774 = vst.msk [vmem:[%s224 + $0x38] sm:$0xff] %vm338, %v754
      %775 = vst.msk [vmem:[%s224 + $0x48] sm:$0xff] %vm338, %v756
      %776 = vst.msk [vmem:[%s224 + $0x58] sm:$0xff] %vm338, %v758
      %777 = vst.msk [vmem:[%s224 + $0x68] sm:$0xff] %vm338, %v760
      %778 = vst.msk [vmem:[%s224 + $0x78] sm:$0xff] %vm338, %v762
      %v779 = vld [vmem:[%s219 + $0x8] sm:$0xff]
      %v780 = vld [vmem:[%s219 + $0x20] sm:$0xff]
      %v781 = vld [vmem:[%s219 + $0x38] sm:$0xff]
      %v782 = vld [vmem:[%s219 + $0x50] sm:$0xff]
      %v783 = vld [vmem:[%s219 + $0x68] sm:$0xff]
      %v784 = vld [vmem:[%s219 + $0x80] sm:$0xff]
      %v785 = vld [vmem:[%s219 + $0x98] sm:$0xff]
      %v786 = vld [vmem:[%s219 + $0xb0] sm:$0xff]
      %795 = vrot.lane.b32.xlu0 %v779, 91
      %v796 = vpop.permute.xlu0 %795
      %797 = vrot.lane.b32.xlu0 %v780, 91
      %v798 = vpop.permute.xlu0 %797
      %799 = vrot.lane.b32.xlu0 %v781, 91
      %v800 = vpop.permute.xlu0 %799
      %801 = vrot.lane.b32.xlu0 %v782, 91
      %v802 = vpop.permute.xlu0 %801
      %803 = vrot.lane.b32.xlu0 %v783, 91
      %v804 = vpop.permute.xlu0 %803
      %805 = vrot.lane.b32.xlu0 %v784, 91
      %v806 = vpop.permute.xlu0 %805
      %807 = vrot.lane.b32.xlu0 %v785, 91
      %v808 = vpop.permute.xlu0 %807
      %809 = vrot.lane.b32.xlu0 %v786, 91
      %v810 = vpop.permute.xlu0 %809
      %819 = vst.msk [vmem:[%s224 + $0x8] sm:$0xff] %vm387, %v796
      %820 = vst.msk [vmem:[%s224 + $0x18] sm:$0xff] %vm387, %v798
      %821 = vst.msk [vmem:[%s224 + $0x28] sm:$0xff] %vm387, %v800
      %822 = vst.msk [vmem:[%s224 + $0x38] sm:$0xff] %vm387, %v802
      %823 = vst.msk [vmem:[%s224 + $0x48] sm:$0xff] %vm387, %v804
      %824 = vst.msk [vmem:[%s224 + $0x58] sm:$0xff] %vm387, %v806
      %825 = vst.msk [vmem:[%s224 + $0x68] sm:$0xff] %vm387, %v808
      %826 = vst.msk [vmem:[%s224 + $0x78] sm:$0xff] %vm387, %v810
      %v827 = vld [vmem:[%s219 + $0x8] sm:$0xff]
      %v828 = vld [vmem:[%s219 + $0x20] sm:$0xff]
      %v829 = vld [vmem:[%s219 + $0x38] sm:$0xff]
      %v830 = vld [vmem:[%s219 + $0x50] sm:$0xff]
      %v831 = vld [vmem:[%s219 + $0x68] sm:$0xff]
      %v832 = vld [vmem:[%s219 + $0x80] sm:$0xff]
      %v833 = vld [vmem:[%s219 + $0x98] sm:$0xff]
      %v834 = vld [vmem:[%s219 + $0xb0] sm:$0xff]
      %843 = vrot.lane.b32.xlu0 %v827, 89
      %v844 = vpop.permute.xlu0 %843
      %845 = vrot.lane.b32.xlu0 %v828, 89
      %v846 = vpop.permute.xlu0 %845
      %847 = vrot.lane.b32.xlu0 %v829, 89
      %v848 = vpop.permute.xlu0 %847
      %849 = vrot.lane.b32.xlu0 %v830, 89
      %v850 = vpop.permute.xlu0 %849
      %851 = vrot.lane.b32.xlu0 %v831, 89
      %v852 = vpop.permute.xlu0 %851
      %853 = vrot.lane.b32.xlu0 %v832, 89
      %v854 = vpop.permute.xlu0 %853
      %855 = vrot.lane.b32.xlu0 %v833, 89
      %v856 = vpop.permute.xlu0 %855
      %857 = vrot.lane.b32.xlu0 %v834, 89
      %v858 = vpop.permute.xlu0 %857
      %867 = vst.msk [vmem:[%s224 + $0x8] sm:$0xff] %vm436, %v844
      %868 = vst.msk [vmem:[%s224 + $0x18] sm:$0xff] %vm436, %v846
      %869 = vst.msk [vmem:[%s224 + $0x28] sm:$0xff] %vm436, %v848
      %870 = vst.msk [vmem:[%s224 + $0x38] sm:$0xff] %vm436, %v850
      %871 = vst.msk [vmem:[%s224 + $0x48] sm:$0xff] %vm436, %v852
      %872 = vst.msk [vmem:[%s224 + $0x58] sm:$0xff] %vm436, %v854
      %873 = vst.msk [vmem:[%s224 + $0x68] sm:$0xff] %vm436, %v856
      %874 = vst.msk [vmem:[%s224 + $0x78] sm:$0xff] %vm436, %v858
      %v875 = vld [vmem:[%s219 + $0x8] sm:$0xff]
      %v876 = vld [vmem:[%s219 + $0x20] sm:$0xff]
      %v877 = vld [vmem:[%s219 + $0x38] sm:$0xff]
      %v878 = vld [vmem:[%s219 + $0x50] sm:$0xff]
      %v879 = vld [vmem:[%s219 + $0x68] sm:$0xff]
      %v880 = vld [vmem:[%s219 + $0x80] sm:$0xff]
      %v881 = vld [vmem:[%s219 + $0x98] sm:$0xff]
      %v882 = vld [vmem:[%s219 + $0xb0] sm:$0xff]
      %891 = vrot.lane.b32.xlu0 %v875, 87
      %v892 = vpop.permute.xlu0 %891
      %893 = vrot.lane.b32.xlu0 %v876, 87
      %v894 = vpop.permute.xlu0 %893
      %895 = vrot.lane.b32.xlu0 %v877, 87
      %v896 = vpop.permute.xlu0 %895
      %897 = vrot.lane.b32.xlu0 %v878, 87
      %v898 = vpop.permute.xlu0 %897
      %899 = vrot.lane.b32.xlu0 %v879, 87
      %v900 = vpop.permute.xlu0 %899
      %901 = vrot.lane.b32.xlu0 %v880, 87
      %v902 = vpop.permute.xlu0 %901
      %903 = vrot.lane.b32.xlu0 %v881, 87
      %v904 = vpop.permute.xlu0 %903
      %905 = vrot.lane.b32.xlu0 %v882, 87
      %v906 = vpop.permute.xlu0 %905
      %915 = vst.msk [vmem:[%s224 + $0x8] sm:$0xff] %vm485, %v892
      %916 = vst.msk [vmem:[%s224 + $0x18] sm:$0xff] %vm485, %v894
      %917 = vst.msk [vmem:[%s224 + $0x28] sm:$0xff] %vm485, %v896
      %918 = vst.msk [vmem:[%s224 + $0x38] sm:$0xff] %vm485, %v898
      %919 = vst.msk [vmem:[%s224 + $0x48] sm:$0xff] %vm485, %v900
      %920 = vst.msk [vmem:[%s224 + $0x58] sm:$0xff] %vm485, %v902
      %921 = vst.msk [vmem:[%s224 + $0x68] sm:$0xff] %vm485, %v904
      %922 = vst.msk [vmem:[%s224 + $0x78] sm:$0xff] %vm485, %v906
      %v923 = vld [vmem:[%s219 + $0x8] sm:$0xff]
      %v924 = vld [vmem:[%s219 + $0x20] sm:$0xff]
      %v925 = vld [vmem:[%s219 + $0x38] sm:$0xff]
      %v926 = vld [vmem:[%s219 + $0x50] sm:$0xff]
      %v927 = vld [vmem:[%s219 + $0x68] sm:$0xff]
      %v928 = vld [vmem:[%s219 + $0x80] sm:$0xff]
      %v929 = vld [vmem:[%s219 + $0x98] sm:$0xff]
      %v930 = vld [vmem:[%s219 + $0xb0] sm:$0xff]
      %939 = vrot.lane.b32.xlu0 %v923, 85
      %v940 = vpop.permute.xlu0 %939
      %941 = vrot.lane.b32.xlu0 %v924, 85
      %v942 = vpop.permute.xlu0 %941
      %943 = vrot.lane.b32.xlu0 %v925, 85
      %v944 = vpop.permute.xlu0 %943
      %945 = vrot.lane.b32.xlu0 %v926, 85
      %v946 = vpop.permute.xlu0 %945
      %947 = vrot.lane.b32.xlu0 %v927, 85
      %v948 = vpop.permute.xlu0 %947
      %949 = vrot.lane.b32.xlu0 %v928, 85
      %v950 = vpop.permute.xlu0 %949
      %951 = vrot.lane.b32.xlu0 %v929, 85
      %v952 = vpop.permute.xlu0 %951
      %953 = vrot.lane.b32.xlu0 %v930, 85
      %v954 = vpop.permute.xlu0 %953
      %963 = vst.msk [vmem:[%s224 + $0x8] sm:$0xff] %vm534, %v940
      %964 = vst.msk [vmem:[%s224 + $0x18] sm:$0xff] %vm534, %v942
      %965 = vst.msk [vmem:[%s224 + $0x28] sm:$0xff] %vm534, %v944
      %966 = vst.msk [vmem:[%s224 + $0x38] sm:$0xff] %vm534, %v946
      %967 = vst.msk [vmem:[%s224 + $0x48] sm:$0xff] %vm534, %v948
      %968 = vst.msk [vmem:[%s224 + $0x58] sm:$0xff] %vm534, %v950
      %969 = vst.msk [vmem:[%s224 + $0x68] sm:$0xff] %vm534, %v952
      %970 = vst.msk [vmem:[%s224 + $0x78] sm:$0xff] %vm534, %v954
      %v971 = vld [vmem:[%s219 + $0x8] sm:$0xff]
      %v972 = vld [vmem:[%s219 + $0x10] sm:$0xff]
      %v973 = vld [vmem:[%s219 + $0x20] sm:$0xff]
      %v974 = vld [vmem:[%s219 + $0x28] sm:$0xff]
      %v975 = vld [vmem:[%s219 + $0x38] sm:$0xff]
      %v976 = vld [vmem:[%s219 + $0x40] sm:$0xff]
      %v977 = vld [vmem:[%s219 + $0x50] sm:$0xff]
      %v978 = vld [vmem:[%s219 + $0x58] sm:$0xff]
      %v979 = vld [vmem:[%s219 + $0x68] sm:$0xff]
      %v980 = vld [vmem:[%s219 + $0x70] sm:$0xff]
      %v981 = vld [vmem:[%s219 + $0x80] sm:$0xff]
      %v982 = vld [vmem:[%s219 + $0x88] sm:$0xff]
      %v983 = vld [vmem:[%s219 + $0x98] sm:$0xff]
      %v984 = vld [vmem:[%s219 + $0xa0] sm:$0xff]
      %v985 = vld [vmem:[%s219 + $0xb0] sm:$0xff]
      %v986 = vld [vmem:[%s219 + $0xb8] sm:$0xff]
      %1003 = vrot.lane.b32.xlu0 %v971, 83
      %v1004 = vpop.permute.xlu0 %1003
      %1005 = vrot.lane.b32.xlu0 %v972, 83
      %v1006 = vpop.permute.xlu0 %1005
      %1007 = vrot.lane.b32.xlu0 %v973, 83
      %v1008 = vpop.permute.xlu0 %1007
      %1009 = vrot.lane.b32.xlu0 %v974, 83
      %v1010 = vpop.permute.xlu0 %1009
      %1011 = vrot.lane.b32.xlu0 %v975, 83
      %v1012 = vpop.permute.xlu0 %1011
      %1013 = vrot.lane.b32.xlu0 %v976, 83
      %v1014 = vpop.permute.xlu0 %1013
      %1015 = vrot.lane.b32.xlu0 %v977, 83
      %v1016 = vpop.permute.xlu0 %1015
      %1017 = vrot.lane.b32.xlu0 %v978, 83
      %v1018 = vpop.permute.xlu0 %1017
      %1019 = vrot.lane.b32.xlu0 %v979, 83
      %v1020 = vpop.permute.xlu0 %1019
      %1021 = vrot.lane.b32.xlu0 %v980, 83
      %v1022 = vpop.permute.xlu0 %1021
      %1023 = vrot.lane.b32.xlu0 %v981, 83
      %v1024 = vpop.permute.xlu0 %1023
      %1025 = vrot.lane.b32.xlu0 %v982, 83
      %v1026 = vpop.permute.xlu0 %1025
      %1027 = vrot.lane.b32.xlu0 %v983, 83
      %v1028 = vpop.permute.xlu0 %1027
      %1029 = vrot.lane.b32.xlu0 %v984, 83
      %v1030 = vpop.permute.xlu0 %1029
      %1031 = vrot.lane.b32.xlu0 %v985, 83
      %v1032 = vpop.permute.xlu0 %1031
      %1033 = vrot.lane.b32.xlu0 %v986, 83
      %v1034 = vpop.permute.xlu0 %1033
      %vm1035 = vcmask 678912
      %v1036 = vsel %vm1035, %v1004, %v1006
      %v1037 = vsel %vm1035, %v1008, %v1010
      %v1038 = vsel %vm1035, %v1012, %v1014
      %v1039 = vsel %vm1035, %v1016, %v1018
      %v1040 = vsel %vm1035, %v1020, %v1022
      %v1041 = vsel %vm1035, %v1024, %v1026
      %v1042 = vsel %vm1035, %v1028, %v1030
      %v1043 = vsel %vm1035, %v1032, %v1034
      %1052 = vst.msk [vmem:[%s224 + $0x8] sm:$0xff] %vm583, %v1036
      %1053 = vst.msk [vmem:[%s224 + $0x18] sm:$0xff] %vm583, %v1037
      %1054 = vst.msk [vmem:[%s224 + $0x28] sm:$0xff] %vm583, %v1038
      %1055 = vst.msk [vmem:[%s224 + $0x38] sm:$0xff] %vm583, %v1039
      %1056 = vst.msk [vmem:[%s224 + $0x48] sm:$0xff] %vm583, %v1040
      %1057 = vst.msk [vmem:[%s224 + $0x58] sm:$0xff] %vm583, %v1041
      %1058 = vst.msk [vmem:[%s224 + $0x68] sm:$0xff] %vm583, %v1042
      %1059 = vst.msk [vmem:[%s224 + $0x78] sm:$0xff] %vm583, %v1043
      %v1060 = vld [vmem:[%s219 + $0x10] sm:$0xff]
      %v1061 = vld [vmem:[%s219 + $0x28] sm:$0xff]
      %v1062 = vld [vmem:[%s219 + $0x40] sm:$0xff]
      %v1063 = vld [vmem:[%s219 + $0x58] sm:$0xff]
      %v1064 = vld [vmem:[%s219 + $0x70] sm:$0xff]
      %v1065 = vld [vmem:[%s219 + $0x88] sm:$0xff]
      %v1066 = vld [vmem:[%s219 + $0xa0] sm:$0xff]
      %v1067 = vld [vmem:[%s219 + $0xb8] sm:$0xff]
      %1076 = vrot.lane.b32.xlu0 %v1060, 81
      %v1077 = vpop.permute.xlu0 %1076
      %1078 = vrot.lane.b32.xlu0 %v1061, 81
      %v1079 = vpop.permute.xlu0 %1078
      %1080 = vrot.lane.b32.xlu0 %v1062, 81
      %v1081 = vpop.permute.xlu0 %1080
      %1082 = vrot.lane.b32.xlu0 %v1063, 81
      %v1083 = vpop.permute.xlu0 %1082
      %1084 = vrot.lane.b32.xlu0 %v1064, 81
      %v1085 = vpop.permute.xlu0 %1084
      %1086 = vrot.lane.b32.xlu0 %v1065, 81
      %v1087 = vpop.permute.xlu0 %1086
      %1088 = vrot.lane.b32.xlu0 %v1066, 81
      %v1089 = vpop.permute.xlu0 %1088
      %1090 = vrot.lane.b32.xlu0 %v1067, 81
      %v1091 = vpop.permute.xlu0 %1090
      %1100 = vst.msk [vmem:[%s224 + $0x8] sm:$0xff] %vm673, %v1077
      %1101 = vst.msk [vmem:[%s224 + $0x18] sm:$0xff] %vm673, %v1079
      %1102 = vst.msk [vmem:[%s224 + $0x28] sm:$0xff] %vm673, %v1081
      %1103 = vst.msk [vmem:[%s224 + $0x38] sm:$0xff] %vm673, %v1083
      %1104 = vst.msk [vmem:[%s224 + $0x48] sm:$0xff] %vm673, %v1085
      %1105 = vst.msk [vmem:[%s224 + $0x58] sm:$0xff] %vm673, %v1087
      %1106 = vst.msk [vmem:[%s224 + $0x68] sm:$0xff] %vm673, %v1089
      %1107 = vst.msk [vmem:[%s224 + $0x78] sm:$0xff] %vm673, %v1091
      %v1108 = vld [vmem:[%s219 + $0x10] sm:$0xff]
      %v1109 = vld [vmem:[%s219 + $0x28] sm:$0xff]
      %v1110 = vld [vmem:[%s219 + $0x40] sm:$0xff]
      %v1111 = vld [vmem:[%s219 + $0x58] sm:$0xff]
      %v1112 = vld [vmem:[%s219 + $0x70] sm:$0xff]
      %v1113 = vld [vmem:[%s219 + $0x88] sm:$0xff]
      %v1114 = vld [vmem:[%s219 + $0xa0] sm:$0xff]
      %v1115 = vld [vmem:[%s219 + $0xb8] sm:$0xff]
      %1124 = vrot.lane.b32.xlu0 %v1108, 79
      %v1125 = vpop.permute.xlu0 %1124
      %1126 = vrot.lane.b32.xlu0 %v1109, 79
      %v1127 = vpop.permute.xlu0 %1126
      %1128 = vrot.lane.b32.xlu0 %v1110, 79
      %v1129 = vpop.permute.xlu0 %1128
      %1130 = vrot.lane.b32.xlu0 %v1111, 79
      %v1131 = vpop.permute.xlu0 %1130
      %1132 = vrot.lane.b32.xlu0 %v1112, 79
      %v1133 = vpop.permute.xlu0 %1132
      %1134 = vrot.lane.b32.xlu0 %v1113, 79
      %v1135 = vpop.permute.xlu0 %1134
      %1136 = vrot.lane.b32.xlu0 %v1114, 79
      %v1137 = vpop.permute.xlu0 %1136
      %1138 = vrot.lane.b32.xlu0 %v1115, 79
      %v1139 = vpop.permute.xlu0 %1138
      %1148 = vst.msk [vmem:[%s224 + $0x8] sm:$0xff] %vm722, %v1125
      %1149 = vst.msk [vmem:[%s224 + $0x18] sm:$0xff] %vm722, %v1127
      %1150 = vst.msk [vmem:[%s224 + $0x28] sm:$0xff] %vm722, %v1129
      %1151 = vst.msk [vmem:[%s224 + $0x38] sm:$0xff] %vm722, %v1131
      %1152 = vst.msk [vmem:[%s224 + $0x48] sm:$0xff] %vm722, %v1133
      %1153 = vst.msk [vmem:[%s224 + $0x58] sm:$0xff] %vm722, %v1135
      %1154 = vst.msk [vmem:[%s224 + $0x68] sm:$0xff] %vm722, %v1137
      %1155 = vst.msk [vmem:[%s224 + $0x78] sm:$0xff] %vm722, %v1139
      %v1156 = vld [vmem:[#allocation2] sm:$0xff]
      %v1157 = vld [vmem:[#allocation2 + $0x8] sm:$0xff]
      %v1158 = vld [vmem:[#allocation2 + $0x10] sm:$0xff]
      %v1159 = vld [vmem:[#allocation2 + $0x18] sm:$0xff]
      %v1160 = vld [vmem:[#allocation2 + $0x28] sm:$0xff]
      %v1161 = vld [vmem:[#allocation2 + $0x30] sm:$0xff]
      %v1162 = vld [vmem:[#allocation2 + $0x38] sm:$0xff]
      %v1163 = vld [vmem:[#allocation2 + $0x40] sm:$0xff]
      %v1164 = vld [vmem:[#allocation2 + $0x50] sm:$0xff]
      %v1165 = vld [vmem:[#allocation2 + $0x58] sm:$0xff]
      %v1166 = vld [vmem:[#allocation2 + $0x60] sm:$0xff]
      %v1167 = vld [vmem:[#allocation2 + $0x68] sm:$0xff]
      %v1168 = vld [vmem:[#allocation2 + $0x78] sm:$0xff]
      %v1169 = vld [vmem:[#allocation2 + $0x80] sm:$0xff]
      %v1170 = vld [vmem:[#allocation2 + $0x88] sm:$0xff]
      %v1171 = vld [vmem:[#allocation2 + $0x90] sm:$0xff]
      %v1172 = vld [vmem:[%s2] sm:$0xf]
      %v1173 = vld [vmem:[%s2 + $0x4] sm:$0xf]
      %s1174 = scalar_lea.vmem %s2, 8
      %v1175 = vld [vmem:[%s1174] sm:$0xf]
      %v1176 = vld [vmem:[%s1174 + $0x4] sm:$0xf]
      %v1179 = vunpack.c.l.b16 %v1175
      %v1180 = vunpack.c.l.b16 %v1176
      %v1181 = vpack.c.b16 %v1180, %v1179
      %1198 = vrot.lane.b32.xlu0 %v1156, 18
      %v1199 = vpop.permute.xlu0 %1198
      %1200 = vrot.lane.b32.xlu0 %v1157, 18
      %v1201 = vpop.permute.xlu0 %1200
      %1202 = vrot.lane.b32.xlu0 %v1158, 18
      %v1203 = vpop.permute.xlu0 %1202
      %1204 = vrot.lane.b32.xlu0 %v1159, 18
      %v1205 = vpop.permute.xlu0 %1204
      %1206 = vrot.lane.b32.xlu0 %v1160, 18
      %v1207 = vpop.permute.xlu0 %1206
      %1208 = vrot.lane.b32.xlu0 %v1161, 18
      %v1209 = vpop.permute.xlu0 %1208
      %1210 = vrot.lane.b32.xlu0 %v1162, 18
      %v1211 = vpop.permute.xlu0 %1210
      %1212 = vrot.lane.b32.xlu0 %v1163, 18
      %v1213 = vpop.permute.xlu0 %1212
      %1214 = vrot.lane.b32.xlu0 %v1164, 18
      %v1215 = vpop.permute.xlu0 %1214
      %1216 = vrot.lane.b32.xlu0 %v1165, 18
      %v1217 = vpop.permute.xlu0 %1216
      %1218 = vrot.lane.b32.xlu0 %v1166, 18
      %v1219 = vpop.permute.xlu0 %1218
      %1220 = vrot.lane.b32.xlu0 %v1167, 18
      %v1221 = vpop.permute.xlu0 %1220
      %1222 = vrot.lane.b32.xlu0 %v1168, 18
      %v1223 = vpop.permute.xlu0 %1222
      %1224 = vrot.lane.b32.xlu0 %v1169, 18
      %v1225 = vpop.permute.xlu0 %1224
      %1226 = vrot.lane.b32.xlu0 %v1170, 18
      %v1227 = vpop.permute.xlu0 %1226
      %1228 = vrot.lane.b32.xlu0 %v1171, 18
      %v1229 = vpop.permute.xlu0 %1228
      %vm1230 = vcmask 146432
      %v1231 = vsel %vm1230, %v1199, %v1201
      %v1232 = vsel %vm1230, %v1201, %v1203
      %v1233 = vsel %vm1230, %v1203, %v1205
      %v1234 = vsel %vm1230, %v1207, %v1209
      %v1235 = vsel %vm1230, %v1209, %v1211
      %v1236 = vsel %vm1230, %v1211, %v1213
      %v1237 = vsel %vm1230, %v1215, %v1217
      %v1238 = vsel %vm1230, %v1217, %v1219
      %v1239 = vsel %vm1230, %v1219, %v1221
      %v1240 = vsel %vm1230, %v1223, %v1225
      %v1241 = vsel %vm1230, %v1225, %v1227
      %v1242 = vsel %vm1230, %v1227, %v1229
      %vm1255 = vcmask 523264
      %v1257 = vsel %vm1255, %v1181, 0
      %1259 = vmatprep.subr.bf16.mxu0 %v1232
      %1260 = vmatpush1.bf16.msra.mxu0 %v1231
      %1261 = vmatprep.subr.bf16.mxu0 %v1235
      %1262 = vmatpush1.bf16.msra.mxu0 %v1234
      %1263 = vmatprep.subr.bf16.mxu0 %v1238
      %1264 = vmatpush1.bf16.msra.mxu0 %v1237
      %1265 = vmatprep.subr.bf16.mxu0 %v1241
      %1266 = vmatpush1.bf16.msra.mxu0 %v1240
      %1267 = vmatprep.subr.bf16.mxu0 0
      %1268 = vmatpush1.bf16.msra.mxu0 0
      %1269 = vmatprep.subr.bf16.mxu0 0
      %1270 = vmatpush1.bf16.msra.mxu0 0
      %1271 = vmatprep.subr.bf16.mxu0 0
      %1272 = vmatpush1.bf16.msra.mxu0 0
      %1273 = vmatprep.subr.bf16.mxu0 0
      %1274 = vmatpush1.bf16.msra.mxu0 0
      %1275 = vmatprep.subr.bf16.mxu0 0
      %1276 = vmatpush1.bf16.msra.mxu0 0
      %1277 = vmatprep.subr.bf16.mxu0 0
      %1278 = vmatpush1.bf16.msra.mxu0 0
      %1279 = vmatprep.subr.bf16.mxu0 0
      %1280 = vmatpush1.bf16.msra.mxu0 0
      %1281 = vmatprep.subr.bf16.mxu0 0
      %1282 = vmatpush1.bf16.msra.mxu0 0
      %1283 = vmatprep.subr.bf16.mxu0 0
      %1284 = vmatpush1.bf16.msra.mxu0 0
      %1285 = vmatprep.subr.bf16.mxu0 0
      %1286 = vmatpush1.bf16.msra.mxu0 0
      %1287 = vmatprep.subr.bf16.mxu0 0
      %1288 = vmatpush1.bf16.msra.mxu0 0
      %1289 = vmatprep.subr.bf16.mxu0 0
      %1290 = vmatpush1.bf16.msra.mxu0 0
      %1291 = vmatprep.mubr.bf16.mxu0 0
      %1292 = vmatmul.mubr.bf16.gmra.mrb[0].mxu0 %v1257
      %v1293 = vpop.f32.mrb[0].mxu0
      %v1294 = vadd.f32 0.0, %v1293
      %v1295 = vpop.f32.mrb[0].mxu0
      %v1296 = vadd.f32 0.0, %v1295
      %v1297 = vpop.f32.mrb[0].mxu0
      %v1298 = vadd.f32 0.0, %v1297
      %v1299 = vpop.f32.mrb[0].mxu0
      %v1300 = vadd.f32 0.0, %v1299
      %1301 = vdwg.mxu0
      %1302 = vmatprep.subr.bf16.mxu0 0
      %1303 = vmatpush1.bf16.msra.mxu0 %v1233
      %1304 = vmatprep.subr.bf16.mxu0 0
      %1305 = vmatpush1.bf16.msra.mxu0 %v1236
      %1306 = vmatprep.subr.bf16.mxu0 0
      %1307 = vmatpush1.bf16.msra.mxu0 %v1239
      %1308 = vmatprep.subr.bf16.mxu0 0
      %1309 = vmatpush1.bf16.msra.mxu0 %v1242
      %1310 = vmatprep.subr.bf16.mxu0 0
      %1311 = vmatpush1.bf16.msra.mxu0 0
      %1312 = vmatprep.subr.bf16.mxu0 0
      %1313 = vmatpush1.bf16.msra.mxu0 0
      %1314 = vmatprep.subr.bf16.mxu0 0
      %1315 = vmatpush1.bf16.msra.mxu0 0
      %1316 = vmatprep.subr.bf16.mxu0 0
      %1317 = vmatpush1.bf16.msra.mxu0 0
      %1318 = vmatprep.subr.bf16.mxu0 0
      %1319 = vmatpush1.bf16.msra.mxu0 0
      %1320 = vmatprep.subr.bf16.mxu0 0
      %1321 = vmatpush1.bf16.msra.mxu0 0
      %1322 = vmatprep.subr.bf16.mxu0 0
      %1323 = vmatpush1.bf16.msra.mxu0 0
      %1324 = vmatprep.subr.bf16.mxu0 0
      %1325 = vmatpush1.bf16.msra.mxu0 0
      %1326 = vmatprep.subr.bf16.mxu0 0
      %1327 = vmatpush1.bf16.msra.mxu0 0
      %1328 = vmatprep.subr.bf16.mxu0 0
      %1329 = vmatpush1.bf16.msra.mxu0 0
      %1330 = vmatprep.subr.bf16.mxu0 0
      %1331 = vmatpush1.bf16.msra.mxu0 0
      %1332 = vmatprep.subr.bf16.mxu0 0
      %1333 = vmatpush1.bf16.msra.mxu0 0
      %1334 = vmatprep.mubr.bf16.mxu0 0
      %1335 = vmatmul.mubr.bf16.gmra.mrb[0].mxu0 %v1257
      %v1336 = vpop.f32.mrb[0].mxu0
      %v1337 = vadd.f32 0.0, %v1336
      %v1338 = vpop.f32.mrb[0].mxu0
      %v1339 = vpop.f32.mrb[0].mxu0
      %v1340 = vadd.f32 0.0, %v1339
      %v1341 = vpop.f32.mrb[0].mxu0
      %1342 = vdwg.mxu0
      %v1345 = vunpack.c.l.b16 %v1172
      %v1346 = vunpack.c.l.b16 %v1173
      %v1347 = vpack.c.b16 %v1346, %v1345
      %1348 = vrot.lane.b32.xlu0 %v1156, 19
      %v1349 = vpop.permute.xlu0 %1348
      %1350 = vrot.lane.b32.xlu0 %v1157, 19
      %v1351 = vpop.permute.xlu0 %1350
      %1352 = vrot.lane.b32.xlu0 %v1158, 19
      %v1353 = vpop.permute.xlu0 %1352
      %1354 = vrot.lane.b32.xlu0 %v1159, 19
      %v1355 = vpop.permute.xlu0 %1354
      %1356 = vrot.lane.b32.xlu0 %v1160, 19
      %v1357 = vpop.permute.xlu0 %1356
      %1358 = vrot.lane.b32.xlu0 %v1161, 19
      %v1359 = vpop.permute.xlu0 %1358
      %1360 = vrot.lane.b32.xlu0 %v1162, 19
      %v1361 = vpop.permute.xlu0 %1360
      %1362 = vrot.lane.b32.xlu0 %v1163, 19
      %v1363 = vpop.permute.xlu0 %1362
      %1364 = vrot.lane.b32.xlu0 %v1164, 19
      %v1365 = vpop.permute.xlu0 %1364
      %1366 = vrot.lane.b32.xlu0 %v1165, 19
      %v1367 = vpop.permute.xlu0 %1366
      %1368 = vrot.lane.b32.xlu0 %v1166, 19
      %v1369 = vpop.permute.xlu0 %1368
      %1370 = vrot.lane.b32.xlu0 %v1167, 19
      %v1371 = vpop.permute.xlu0 %1370
      %1372 = vrot.lane.b32.xlu0 %v1168, 19
      %v1373 = vpop.permute.xlu0 %1372
      %1374 = vrot.lane.b32.xlu0 %v1169, 19
      %v1375 = vpop.permute.xlu0 %1374
      %1376 = vrot.lane.b32.xlu0 %v1170, 19
      %v1377 = vpop.permute.xlu0 %1376
      %1378 = vrot.lane.b32.xlu0 %v1171, 19
      %v1379 = vpop.permute.xlu0 %1378
      %vm1380 = vcmask 154624
      %v1381 = vsel %vm1380, %v1349, %v1351
      %v1382 = vsel %vm1380, %v1351, %v1353
      %v1383 = vsel %vm1380, %v1353, %v1355
      %v1384 = vsel %vm1380, %v1357, %v1359
      %v1385 = vsel %vm1380, %v1359, %v1361
      %v1386 = vsel %vm1380, %v1361, %v1363
      %v1387 = vsel %vm1380, %v1365, %v1367
      %v1388 = vsel %vm1380, %v1367, %v1369
      %v1389 = vsel %vm1380, %v1369, %v1371
      %v1390 = vsel %vm1380, %v1373, %v1375
      %v1391 = vsel %vm1380, %v1375, %v1377
      %v1392 = vsel %vm1380, %v1377, %v1379
      %v1406 = vsel %vm1255, %v1347, 0
      %1408 = vmatprep.subr.bf16.mxu0 %v1382
      %1409 = vmatpush1.bf16.msra.mxu0 %v1381
      %1410 = vmatprep.subr.bf16.mxu0 %v1385
      %1411 = vmatpush1.bf16.msra.mxu0 %v1384
      %1412 = vmatprep.subr.bf16.mxu0 %v1388
      %1413 = vmatpush1.bf16.msra.mxu0 %v1387
      %1414 = vmatprep.subr.bf16.mxu0 %v1391
      %1415 = vmatpush1.bf16.msra.mxu0 %v1390
      %1416 = vmatprep.subr.bf16.mxu0 0
      %1417 = vmatpush1.bf16.msra.mxu0 0
      %1418 = vmatprep.subr.bf16.mxu0 0
      %1419 = vmatpush1.bf16.msra.mxu0 0
      %1420 = vmatprep.subr.bf16.mxu0 0
      %1421 = vmatpush1.bf16.msra.mxu0 0
      %1422 = vmatprep.subr.bf16.mxu0 0
      %1423 = vmatpush1.bf16.msra.mxu0 0
      %1424 = vmatprep.subr.bf16.mxu0 0
      %1425 = vmatpush1.bf16.msra.mxu0 0
      %1426 = vmatprep.subr.bf16.mxu0 0
      %1427 = vmatpush1.bf16.msra.mxu0 0
      %1428 = vmatprep.subr.bf16.mxu0 0
      %1429 = vmatpush1.bf16.msra.mxu0 0
      %1430 = vmatprep.subr.bf16.mxu0 0
      %1431 = vmatpush1.bf16.msra.mxu0 0
      %1432 = vmatprep.subr.bf16.mxu0 0
      %1433 = vmatpush1.bf16.msra.mxu0 0
      %1434 = vmatprep.subr.bf16.mxu0 0
      %1435 = vmatpush1.bf16.msra.mxu0 0
      %1436 = vmatprep.subr.bf16.mxu0 0
      %1437 = vmatpush1.bf16.msra.mxu0 0
      %1438 = vmatprep.subr.bf16.mxu0 0
      %1439 = vmatpush1.bf16.msra.mxu0 0
      %1440 = vmatprep.mubr.bf16.mxu0 0
      %1441 = vmatmul.mubr.bf16.gmra.mrb[0].mxu0 %v1406
      %v1442 = vpop.f32.mrb[0].mxu0
      %v1443 = vadd.f32 %v1294, %v1442
      %v1444 = vpop.f32.mrb[0].mxu0
      %v1445 = vadd.f32 %v1296, %v1444
      %v1446 = vpop.f32.mrb[0].mxu0
      %v1447 = vadd.f32 %v1298, %v1446
      %v1448 = vpop.f32.mrb[0].mxu0
      %v1449 = vadd.f32 %v1300, %v1448
      %1450 = vdwg.mxu0
      %1451 = vmatprep.subr.bf16.mxu0 0
      %1452 = vmatpush1.bf16.msra.mxu0 %v1383
      %1453 = vmatprep.subr.bf16.mxu0 0
      %1454 = vmatpush1.bf16.msra.mxu0 %v1386
      %1455 = vmatprep.subr.bf16.mxu0 0
      %1456 = vmatpush1.bf16.msra.mxu0 %v1389
      %1457 = vmatprep.subr.bf16.mxu0 0
      %1458 = vmatpush1.bf16.msra.mxu0 %v1392
      %1459 = vmatprep.subr.bf16.mxu0 0
      %1460 = vmatpush1.bf16.msra.mxu0 0
      %1461 = vmatprep.subr.bf16.mxu0 0
      %1462 = vmatpush1.bf16.msra.mxu0 0
      %1463 = vmatprep.subr.bf16.mxu0 0
      %1464 = vmatpush1.bf16.msra.mxu0 0
      %1465 = vmatprep.subr.bf16.mxu0 0
      %1466 = vmatpush1.bf16.msra.mxu0 0
      %1467 = vmatprep.subr.bf16.mxu0 0
      %1468 = vmatpush1.bf16.msra.mxu0 0
      %1469 = vmatprep.subr.bf16.mxu0 0
      %1470 = vmatpush1.bf16.msra.mxu0 0
      %1471 = vmatprep.subr.bf16.mxu0 0
      %1472 = vmatpush1.bf16.msra.mxu0 0
      %1473 = vmatprep.subr.bf16.mxu0 0
      %1474 = vmatpush1.bf16.msra.mxu0 0
      %1475 = vmatprep.subr.bf16.mxu0 0
      %1476 = vmatpush1.bf16.msra.mxu0 0
      %1477 = vmatprep.subr.bf16.mxu0 0
      %1478 = vmatpush1.bf16.msra.mxu0 0
      %1479 = vmatprep.subr.bf16.mxu0 0
      %1480 = vmatpush1.bf16.msra.mxu0 0
      %1481 = vmatprep.subr.bf16.mxu0 0
      %1482 = vmatpush1.bf16.msra.mxu0 0
      %1483 = vmatprep.mubr.bf16.mxu0 0
      %1484 = vmatmul.mubr.bf16.gmra.mrb[0].mxu0 %v1406
      %v1485 = vpop.f32.mrb[0].mxu0
      %v1486 = vadd.f32 %v1337, %v1485
      %v1487 = vpop.f32.mrb[0].mxu0
      %v1488 = vpop.f32.mrb[0].mxu0
      %v1489 = vadd.f32 %v1340, %v1488
      %v1490 = vpop.f32.mrb[0].mxu0
      %1491 = vdwg.mxu0
      %s1492 = scalar_lea.vmem %s2, 16
      %v1493 = vld [vmem:[%s1492] sm:$0xf]
      %v1494 = vld [vmem:[%s1492 + $0x4] sm:$0xf]
      %v1497 = vunpack.c.l.b16 %v1493
      %v1498 = vunpack.c.l.b16 %v1494
      %v1499 = vpack.c.b16 %v1498, %v1497
      %1500 = vrot.lane.b32.xlu0 %v1156, 17
      %v1501 = vpop.permute.xlu0 %1500
      %1502 = vrot.lane.b32.xlu0 %v1157, 17
      %v1503 = vpop.permute.xlu0 %1502
      %1504 = vrot.lane.b32.xlu0 %v1158, 17
      %v1505 = vpop.permute.xlu0 %1504
      %1506 = vrot.lane.b32.xlu0 %v1159, 17
      %v1507 = vpop.permute.xlu0 %1506
      %1508 = vrot.lane.b32.xlu0 %v1160, 17
      %v1509 = vpop.permute.xlu0 %1508
      %1510 = vrot.lane.b32.xlu0 %v1161, 17
      %v1511 = vpop.permute.xlu0 %1510
      %1512 = vrot.lane.b32.xlu0 %v1162, 17
      %v1513 = vpop.permute.xlu0 %1512
      %1514 = vrot.lane.b32.xlu0 %v1163, 17
      %v1515 = vpop.permute.xlu0 %1514
      %1516 = vrot.lane.b32.xlu0 %v1164, 17
      %v1517 = vpop.permute.xlu0 %1516
      %1518 = vrot.lane.b32.xlu0 %v1165, 17
      %v1519 = vpop.permute.xlu0 %1518
      %1520 = vrot.lane.b32.xlu0 %v1166, 17
      %v1521 = vpop.permute.xlu0 %1520
      %1522 = vrot.lane.b32.xlu0 %v1167, 17
      %v1523 = vpop.permute.xlu0 %1522
      %1524 = vrot.lane.b32.xlu0 %v1168, 17
      %v1525 = vpop.permute.xlu0 %1524
      %1526 = vrot.lane.b32.xlu0 %v1169, 17
      %v1527 = vpop.permute.xlu0 %1526
      %1528 = vrot.lane.b32.xlu0 %v1170, 17
      %v1529 = vpop.permute.xlu0 %1528
      %1530 = vrot.lane.b32.xlu0 %v1171, 17
      %v1531 = vpop.permute.xlu0 %1530
      %vm1532 = vcmask 138240
      %v1533 = vsel %vm1532, %v1501, %v1503
      %v1534 = vsel %vm1532, %v1503, %v1505
      %v1535 = vsel %vm1532, %v1505, %v1507
      %v1536 = vsel %vm1532, %v1509, %v1511
      %v1537 = vsel %vm1532, %v1511, %v1513
      %v1538 = vsel %vm1532, %v1513, %v1515
      %v1539 = vsel %vm1532, %v1517, %v1519
      %v1540 = vsel %vm1532, %v1519, %v1521
      %v1541 = vsel %vm1532, %v1521, %v1523
      %v1542 = vsel %vm1532, %v1525, %v1527
      %v1543 = vsel %vm1532, %v1527, %v1529
      %v1544 = vsel %vm1532, %v1529, %v1531
      %v1558 = vsel %vm1255, %v1499, 0
      %1560 = vmatprep.subr.bf16.mxu0 %v1534
      %1561 = vmatpush1.bf16.msra.mxu0 %v1533
      %1562 = vmatprep.subr.bf16.mxu0 %v1537
      %1563 = vmatpush1.bf16.msra.mxu0 %v1536
      %1564 = vmatprep.subr.bf16.mxu0 %v1540
      %1565 = vmatpush1.bf16.msra.mxu0 %v1539
      %1566 = vmatprep.subr.bf16.mxu0 %v1543
      %1567 = vmatpush1.bf16.msra.mxu0 %v1542
      %1568 = vmatprep.subr.bf16.mxu0 0
      %1569 = vmatpush1.bf16.msra.mxu0 0
      %1570 = vmatprep.subr.bf16.mxu0 0
      %1571 = vmatpush1.bf16.msra.mxu0 0
      %1572 = vmatprep.subr.bf16.mxu0 0
      %1573 = vmatpush1.bf16.msra.mxu0 0
      %1574 = vmatprep.subr.bf16.mxu0 0
      %1575 = vmatpush1.bf16.msra.mxu0 0
      %1576 = vmatprep.subr.bf16.mxu0 0
      %1577 = vmatpush1.bf16.msra.mxu0 0
      %1578 = vmatprep.subr.bf16.mxu0 0
      %1579 = vmatpush1.bf16.msra.mxu0 0
      %1580 = vmatprep.subr.bf16.mxu0 0
      %1581 = vmatpush1.bf16.msra.mxu0 0
      %1582 = vmatprep.subr.bf16.mxu0 0
      %1583 = vmatpush1.bf16.msra.mxu0 0
      %1584 = vmatprep.subr.bf16.mxu0 0
      %1585 = vmatpush1.bf16.msra.mxu0 0
      %1586 = vmatprep.subr.bf16.mxu0 0
      %1587 = vmatpush1.bf16.msra.mxu0 0
      %1588 = vmatprep.subr.bf16.mxu0 0
      %1589 = vmatpush1.bf16.msra.mxu0 0
      %1590 = vmatprep.subr.bf16.mxu0 0
      %1591 = vmatpush1.bf16.msra.mxu0 0
      %1592 = vmatprep.mubr.bf16.mxu0 0
      %1593 = vmatmul.mubr.bf16.gmra.mrb[0].mxu0 %v1558
      %v1594 = vpop.f32.mrb[0].mxu0
      %v1595 = vadd.f32 0.0, %v1594
      %v1596 = vpop.f32.mrb[0].mxu0
      %v1597 = vadd.f32 0.0, %v1596
      %v1598 = vpop.f32.mrb[0].mxu0
      %v1599 = vadd.f32 0.0, %v1598
      %v1600 = vpop.f32.mrb[0].mxu0
      %v1601 = vadd.f32 0.0, %v1600
      %1602 = vdwg.mxu0
      %1603 = vmatprep.subr.bf16.mxu0 0
      %1604 = vmatpush1.bf16.msra.mxu0 %v1535
      %1605 = vmatprep.subr.bf16.mxu0 0
      %1606 = vmatpush1.bf16.msra.mxu0 %v1538
      %1607 = vmatprep.subr.bf16.mxu0 0
      %1608 = vmatpush1.bf16.msra.mxu0 %v1541
      %1609 = vmatprep.subr.bf16.mxu0 0
      %1610 = vmatpush1.bf16.msra.mxu0 %v1544
      %1611 = vmatprep.subr.bf16.mxu0 0
      %1612 = vmatpush1.bf16.msra.mxu0 0
      %1613 = vmatprep.subr.bf16.mxu0 0
      %1614 = vmatpush1.bf16.msra.mxu0 0
      %1615 = vmatprep.subr.bf16.mxu0 0
      %1616 = vmatpush1.bf16.msra.mxu0 0
      %1617 = vmatprep.subr.bf16.mxu0 0
      %1618 = vmatpush1.bf16.msra.mxu0 0
      %1619 = vmatprep.subr.bf16.mxu0 0
      %1620 = vmatpush1.bf16.msra.mxu0 0
      %1621 = vmatprep.subr.bf16.mxu0 0
      %1622 = vmatpush1.bf16.msra.mxu0 0
      %1623 = vmatprep.subr.bf16.mxu0 0
      %1624 = vmatpush1.bf16.msra.mxu0 0
      %1625 = vmatprep.subr.bf16.mxu0 0
      %1626 = vmatpush1.bf16.msra.mxu0 0
      %1627 = vmatprep.subr.bf16.mxu0 0
      %1628 = vmatpush1.bf16.msra.mxu0 0
      %1629 = vmatprep.subr.bf16.mxu0 0
      %1630 = vmatpush1.bf16.msra.mxu0 0
      %1631 = vmatprep.subr.bf16.mxu0 0
      %1632 = vmatpush1.bf16.msra.mxu0 0
      %1633 = vmatprep.subr.bf16.mxu0 0
      %1634 = vmatpush1.bf16.msra.mxu0 0
      %1635 = vmatprep.mubr.bf16.mxu0 0
      %1636 = vmatmul.mubr.bf16.gmra.mrb[0].mxu0 %v1558
      %v1637 = vpop.f32.mrb[0].mxu0
      %v1638 = vadd.f32 0.0, %v1637
      %v1639 = vpop.f32.mrb[0].mxu0
      %v1640 = vpop.f32.mrb[0].mxu0
      %v1641 = vadd.f32 0.0, %v1640
      %v1642 = vpop.f32.mrb[0].mxu0
      %1643 = vdwg.mxu0
      %v1644 = vadd.f32 %v1443, %v1595
      %v1645 = vadd.f32 %v1445, %v1597
      %v1646 = vadd.f32 %v1486, %v1638
      %v1647 = vadd.f32 %v1447, %v1599
      %v1648 = vadd.f32 %v1449, %v1601
      %v1649 = vadd.f32 %v1489, %v1641
      %s1650 = scalar_lea.vmem %s2, 24
      %v1651 = vld [vmem:[%s1650] sm:$0xf]
      %v1652 = vld [vmem:[%s1650 + $0x4] sm:$0xf]
      %v1655 = vunpack.c.l.b16 %v1651
      %v1656 = vunpack.c.l.b16 %v1652
      %v1657 = vpack.c.b16 %v1656, %v1655
      %1658 = vrot.lane.b32.xlu0 %v1156, 1
      %v1659 = vpop.permute.xlu0 %1658
      %1660 = vrot.lane.b32.xlu0 %v1157, 1
      %v1661 = vpop.permute.xlu0 %1660
      %1662 = vrot.lane.b32.xlu0 %v1158, 1
      %v1663 = vpop.permute.xlu0 %1662
      %1664 = vrot.lane.b32.xlu0 %v1159, 1
      %v1665 = vpop.permute.xlu0 %1664
      %1666 = vrot.lane.b32.xlu0 %v1160, 1
      %v1667 = vpop.permute.xlu0 %1666
      %1668 = vrot.lane.b32.xlu0 %v1161, 1
      %v1669 = vpop.permute.xlu0 %1668
      %1670 = vrot.lane.b32.xlu0 %v1162, 1
      %v1671 = vpop.permute.xlu0 %1670
      %1672 = vrot.lane.b32.xlu0 %v1163, 1
      %v1673 = vpop.permute.xlu0 %1672
      %1674 = vrot.lane.b32.xlu0 %v1164, 1
      %v1675 = vpop.permute.xlu0 %1674
      %1676 = vrot.lane.b32.xlu0 %v1165, 1
      %v1677 = vpop.permute.xlu0 %1676
      %1678 = vrot.lane.b32.xlu0 %v1166, 1
      %v1679 = vpop.permute.xlu0 %1678
      %1680 = vrot.lane.b32.xlu0 %v1167, 1
      %v1681 = vpop.permute.xlu0 %1680
      %1682 = vrot.lane.b32.xlu0 %v1168, 1
      %v1683 = vpop.permute.xlu0 %1682
      %1684 = vrot.lane.b32.xlu0 %v1169, 1
      %v1685 = vpop.permute.xlu0 %1684
      %1686 = vrot.lane.b32.xlu0 %v1170, 1
      %v1687 = vpop.permute.xlu0 %1686
      %1688 = vrot.lane.b32.xlu0 %v1171, 1
      %v1689 = vpop.permute.xlu0 %1688
      %vm1690 = vcmask 7168
      %v1691 = vsel %vm1690, %v1659, %v1661
      %v1692 = vsel %vm1690, %v1661, %v1663
      %v1693 = vsel %vm1690, %v1663, %v1665
      %v1694 = vsel %vm1690, %v1667, %v1669
      %v1695 = vsel %vm1690, %v1669, %v1671
      %v1696 = vsel %vm1690, %v1671, %v1673
      %v1697 = vsel %vm1690, %v1675, %v1677
      %v1698 = vsel %vm1690, %v1677, %v1679
      %v1699 = vsel %vm1690, %v1679, %v1681
      %v1700 = vsel %vm1690, %v1683, %v1685
      %v1701 = vsel %vm1690, %v1685, %v1687
      %v1702 = vsel %vm1690, %v1687, %v1689
      %v1716 = vsel %vm1255, %v1657, 0
      %1718 = vmatprep.subr.bf16.mxu0 %v1692
      %1719 = vmatpush1.bf16.msra.mxu0 %v1691
      %1720 = vmatprep.subr.bf16.mxu0 %v1695
      %1721 = vmatpush1.bf16.msra.mxu0 %v1694
      %1722 = vmatprep.subr.bf16.mxu0 %v1698
      %1723 = vmatpush1.bf16.msra.mxu0 %v1697
      %1724 = vmatprep.subr.bf16.mxu0 %v1701
      %1725 = vmatpush1.bf16.msra.mxu0 %v1700
      %1726 = vmatprep.subr.bf16.mxu0 0
      %1727 = vmatpush1.bf16.msra.mxu0 0
      %1728 = vmatprep.subr.bf16.mxu0 0
      %1729 = vmatpush1.bf16.msra.mxu0 0
      %1730 = vmatprep.subr.bf16.mxu0 0
      %1731 = vmatpush1.bf16.msra.mxu0 0
      %1732 = vmatprep.subr.bf16.mxu0 0
      %1733 = vmatpush1.bf16.msra.mxu0 0
      %1734 = vmatprep.subr.bf16.mxu0 0
      %1735 = vmatpush1.bf16.msra.mxu0 0
      %1736 = vmatprep.subr.bf16.mxu0 0
      %1737 = vmatpush1.bf16.msra.mxu0 0
      %1738 = vmatprep.subr.bf16.mxu0 0
      %1739 = vmatpush1.bf16.msra.mxu0 0
      %1740 = vmatprep.subr.bf16.mxu0 0
      %1741 = vmatpush1.bf16.msra.mxu0 0
      %1742 = vmatprep.subr.bf16.mxu0 0
      %1743 = vmatpush1.bf16.msra.mxu0 0
      %1744 = vmatprep.subr.bf16.mxu0 0
      %1745 = vmatpush1.bf16.msra.mxu0 0
      %1746 = vmatprep.subr.bf16.mxu0 0
      %1747 = vmatpush1.bf16.msra.mxu0 0
      %1748 = vmatprep.subr.bf16.mxu0 0
      %1749 = vmatpush1.bf16.msra.mxu0 0
      %1750 = vmatprep.mubr.bf16.mxu0 0
      %1751 = vmatmul.mubr.bf16.gmra.mrb[0].mxu0 %v1716
      %v1752 = vpop.f32.mrb[0].mxu0
      %v1753 = vadd.f32 0.0, %v1752
      %v1754 = vpop.f32.mrb[0].mxu0
      %v1755 = vadd.f32 0.0, %v1754
      %v1756 = vpop.f32.mrb[0].mxu0
      %v1757 = vadd.f32 0.0, %v1756
      %v1758 = vpop.f32.mrb[0].mxu0
      %v1759 = vadd.f32 0.0, %v1758
      %1760 = vdwg.mxu0
      %1761 = vmatprep.subr.bf16.mxu0 0
      %1762 = vmatpush1.bf16.msra.mxu0 %v1693
      %1763 = vmatprep.subr.bf16.mxu0 0
      %1764 = vmatpush1.bf16.msra.mxu0 %v1696
      %1765 = vmatprep.subr.bf16.mxu0 0
      %1766 = vmatpush1.bf16.msra.mxu0 %v1699
      %1767 = vmatprep.subr.bf16.mxu0 0
      %1768 = vmatpush1.bf16.msra.mxu0 %v1702
      %1769 = vmatprep.subr.bf16.mxu0 0
      %1770 = vmatpush1.bf16.msra.mxu0 0
      %1771 = vmatprep.subr.bf16.mxu0 0
      %1772 = vmatpush1.bf16.msra.mxu0 0
      %1773 = vmatprep.subr.bf16.mxu0 0
      %1774 = vmatpush1.bf16.msra.mxu0 0
      %1775 = vmatprep.subr.bf16.mxu0 0
      %1776 = vmatpush1.bf16.msra.mxu0 0
      %1777 = vmatprep.subr.bf16.mxu0 0
      %1778 = vmatpush1.bf16.msra.mxu0 0
      %1779 = vmatprep.subr.bf16.mxu0 0
      %1780 = vmatpush1.bf16.msra.mxu0 0
      %1781 = vmatprep.subr.bf16.mxu0 0
      %1782 = vmatpush1.bf16.msra.mxu0 0
      %1783 = vmatprep.subr.bf16.mxu0 0
      %1784 = vmatpush1.bf16.msra.mxu0 0
      %1785 = vmatprep.subr.bf16.mxu0 0
      %1786 = vmatpush1.bf16.msra.mxu0 0
      %1787 = vmatprep.subr.bf16.mxu0 0
      %1788 = vmatpush1.bf16.msra.mxu0 0
      %1789 = vmatprep.subr.bf16.mxu0 0
      %1790 = vmatpush1.bf16.msra.mxu0 0
      %1791 = vmatprep.subr.bf16.mxu0 0
      %1792 = vmatpush1.bf16.msra.mxu0 0
      %1793 = vmatprep.mubr.bf16.mxu0 0
      %1794 = vmatmul.mubr.bf16.gmra.mrb[0].mxu0 %v1716
      %v1795 = vpop.f32.mrb[0].mxu0
      %v1796 = vadd.f32 0.0, %v1795
      %v1797 = vpop.f32.mrb[0].mxu0
      %v1798 = vpop.f32.mrb[0].mxu0
      %v1799 = vadd.f32 0.0, %v1798
      %v1800 = vpop.f32.mrb[0].mxu0
      %1801 = vdwg.mxu0
      %v1802 = vadd.f32 %v1644, %v1753
      %v1803 = vadd.f32 %v1645, %v1755
      %v1804 = vadd.f32 %v1646, %v1796
      %v1805 = vadd.f32 %v1647, %v1757
      %v1806 = vadd.f32 %v1648, %v1759
      %v1807 = vadd.f32 %v1649, %v1799
      %s1808 = scalar_lea.vmem %s2, 32
      %v1809 = vld [vmem:[%s1808] sm:$0xf]
      %v1810 = vld [vmem:[%s1808 + $0x4] sm:$0xf]
      %v1813 = vunpack.c.l.b16 %v1809
      %v1814 = vunpack.c.l.b16 %v1810
      %v1815 = vpack.c.b16 %v1814, %v1813
      %v1817 = vsel %vm1255, %v1815, 0
      %1819 = vmatprep.subr.bf16.mxu0 %v1158
      %1820 = vmatpush1.bf16.msra.mxu0 %v1157
      %1821 = vmatprep.subr.bf16.mxu0 %v1162
      %1822 = vmatpush1.bf16.msra.mxu0 %v1161
      %1823 = vmatprep.subr.bf16.mxu0 %v1166
      %1824 = vmatpush1.bf16.msra.mxu0 %v1165
      %1825 = vmatprep.subr.bf16.mxu0 %v1170
      %1826 = vmatpush1.bf16.msra.mxu0 %v1169
      %1827 = vmatprep.subr.bf16.mxu0 0
      %1828 = vmatpush1.bf16.msra.mxu0 0
      %1829 = vmatprep.subr.bf16.mxu0 0
      %1830 = vmatpush1.bf16.msra.mxu0 0
      %1831 = vmatprep.subr.bf16.mxu0 0
      %1832 = vmatpush1.bf16.msra.mxu0 0
      %1833 = vmatprep.subr.bf16.mxu0 0
      %1834 = vmatpush1.bf16.msra.mxu0 0
      %1835 = vmatprep.subr.bf16.mxu0 0
      %1836 = vmatpush1.bf16.msra.mxu0 0
      %1837 = vmatprep.subr.bf16.mxu0 0
      %1838 = vmatpush1.bf16.msra.mxu0 0
      %1839 = vmatprep.subr.bf16.mxu0 0
      %1840 = vmatpush1.bf16.msra.mxu0 0
      %1841 = vmatprep.subr.bf16.mxu0 0
      %1842 = vmatpush1.bf16.msra.mxu0 0
      %1843 = vmatprep.subr.bf16.mxu0 0
      %1844 = vmatpush1.bf16.msra.mxu0 0
      %1845 = vmatprep.subr.bf16.mxu0 0
      %1846 = vmatpush1.bf16.msra.mxu0 0
      %1847 = vmatprep.subr.bf16.mxu0 0
      %1848 = vmatpush1.bf16.msra.mxu0 0
      %1849 = vmatprep.subr.bf16.mxu0 0
      %1850 = vmatpush1.bf16.msra.mxu0 0
      %1851 = vmatprep.mubr.bf16.mxu0 0
      %1852 = vmatmul.mubr.bf16.gmra.mrb[0].mxu0 %v1817
      %v1853 = vpop.f32.mrb[0].mxu0
      %v1854 = vadd.f32 0.0, %v1853
      %v1855 = vpop.f32.mrb[0].mxu0
      %v1856 = vadd.f32 0.0, %v1855
      %v1857 = vpop.f32.mrb[0].mxu0
      %v1858 = vadd.f32 0.0, %v1857
      %v1859 = vpop.f32.mrb[0].mxu0
      %v1860 = vadd.f32 0.0, %v1859
      %1861 = vdwg.mxu0
      %1862 = vmatprep.subr.bf16.mxu0 0
      %1863 = vmatpush1.bf16.msra.mxu0 %v1159
      %1864 = vmatprep.subr.bf16.mxu0 0
      %1865 = vmatpush1.bf16.msra.mxu0 %v1163
      %1866 = vmatprep.subr.bf16.mxu0 0
      %1867 = vmatpush1.bf16.msra.mxu0 %v1167
      %1868 = vmatprep.subr.bf16.mxu0 0
      %1869 = vmatpush1.bf16.msra.mxu0 %v1171
      %1870 = vmatprep.subr.bf16.mxu0 0
      %1871 = vmatpush1.bf16.msra.mxu0 0
      %1872 = vmatprep.subr.bf16.mxu0 0
      %1873 = vmatpush1.bf16.msra.mxu0 0
      %1874 = vmatprep.subr.bf16.mxu0 0
      %1875 = vmatpush1.bf16.msra.mxu0 0
      %1876 = vmatprep.subr.bf16.mxu0 0
      %1877 = vmatpush1.bf16.msra.mxu0 0
      %1878 = vmatprep.subr.bf16.mxu0 0
      %1879 = vmatpush1.bf16.msra.mxu0 0
      %1880 = vmatprep.subr.bf16.mxu0 0
      %1881 = vmatpush1.bf16.msra.mxu0 0
      %1882 = vmatprep.subr.bf16.mxu0 0
      %1883 = vmatpush1.bf16.msra.mxu0 0
      %1884 = vmatprep.subr.bf16.mxu0 0
      %1885 = vmatpush1.bf16.msra.mxu0 0
      %1886 = vmatprep.subr.bf16.mxu0 0
      %1887 = vmatpush1.bf16.msra.mxu0 0
      %1888 = vmatprep.subr.bf16.mxu0 0
      %1889 = vmatpush1.bf16.msra.mxu0 0
      %1890 = vmatprep.subr.bf16.mxu0 0
      %1891 = vmatpush1.bf16.msra.mxu0 0
      %1892 = vmatprep.subr.bf16.mxu0 0
      %1893 = vmatpush1.bf16.msra.mxu0 0
      %1894 = vmatprep.mubr.bf16.mxu0 0
      %1895 = vmatmul.mubr.bf16.gmra.mrb[0].mxu0 %v1817
      %v1896 = vpop.f32.mrb[0].mxu0
      %v1897 = vadd.f32 0.0, %v1896
      %v1898 = vpop.f32.mrb[0].mxu0
      %v1899 = vpop.f32.mrb[0].mxu0
      %v1900 = vadd.f32 0.0, %v1899
      %v1901 = vpop.f32.mrb[0].mxu0
      %1902 = vdwg.mxu0
      %v1903 = vadd.f32 %v1802, %v1854
      %v1904 = vadd.f32 %v1803, %v1856
      %v1905 = vadd.f32 %v1804, %v1897
      %v1906 = vadd.f32 %v1805, %v1858
      %v1907 = vadd.f32 %v1806, %v1860
      %v1908 = vadd.f32 %v1807, %v1900
      %s1909 = scalar_lea.vmem %s2, 40
      %v1910 = vld [vmem:[%s1909] sm:$0xf]
      %v1911 = vld [vmem:[%s1909 + $0x4] sm:$0xf]
      %v1914 = vunpack.c.l.b16 %v1910
      %v1915 = vunpack.c.l.b16 %v1911
      %v1916 = vpack.c.b16 %v1915, %v1914
      %1917 = vrot.lane.b32.xlu0 %v1157, 127
      %v1918 = vpop.permute.xlu0 %1917
      %1919 = vrot.lane.b32.xlu0 %v1158, 127
      %v1920 = vpop.permute.xlu0 %1919
      %1921 = vrot.lane.b32.xlu0 %v1159, 127
      %v1922 = vpop.permute.xlu0 %1921
      %1923 = vrot.lane.b32.xlu0 %v1161, 127
      %v1924 = vpop.permute.xlu0 %1923
      %1925 = vrot.lane.b32.xlu0 %v1162, 127
      %v1926 = vpop.permute.xlu0 %1925
      %1927 = vrot.lane.b32.xlu0 %v1163, 127
      %v1928 = vpop.permute.xlu0 %1927
      %1929 = vrot.lane.b32.xlu0 %v1165, 127
      %v1930 = vpop.permute.xlu0 %1929
      %1931 = vrot.lane.b32.xlu0 %v1166, 127
      %v1932 = vpop.permute.xlu0 %1931
      %1933 = vrot.lane.b32.xlu0 %v1167, 127
      %v1934 = vpop.permute.xlu0 %1933
      %1935 = vrot.lane.b32.xlu0 %v1169, 127
      %v1936 = vpop.permute.xlu0 %1935
      %1937 = vrot.lane.b32.xlu0 %v1170, 127
      %v1938 = vpop.permute.xlu0 %1937
      %1939 = vrot.lane.b32.xlu0 %v1171, 127
      %v1940 = vpop.permute.xlu0 %1939
      %vm1941 = vcmask 1039360
      %v1942 = vsel %vm1941, %v1918, %v1920
      %v1943 = vsel %vm1941, %v1920, %v1922
      %v1944 = vsel %vm1941, %v1924, %v1926
      %v1945 = vsel %vm1941, %v1926, %v1928
      %v1946 = vsel %vm1941, %v1930, %v1932
      %v1947 = vsel %vm1941, %v1932, %v1934
      %v1948 = vsel %vm1941, %v1936, %v1938
      %v1949 = vsel %vm1941, %v1938, %v1940
      %v1963 = vsel %vm1255, %v1916, 0
      %1965 = vmatprep.subr.bf16.mxu0 %v1943
      %1966 = vmatpush1.bf16.msra.mxu0 %v1942
      %1967 = vmatprep.subr.bf16.mxu0 %v1945
      %1968 = vmatpush1.bf16.msra.mxu0 %v1944
      %1969 = vmatprep.subr.bf16.mxu0 %v1947
      %1970 = vmatpush1.bf16.msra.mxu0 %v1946
      %1971 = vmatprep.subr.bf16.mxu0 %v1949
      %1972 = vmatpush1.bf16.msra.mxu0 %v1948
      %1973 = vmatprep.subr.bf16.mxu0 0
      %1974 = vmatpush1.bf16.msra.mxu0 0
      %1975 = vmatprep.subr.bf16.mxu0 0
      %1976 = vmatpush1.bf16.msra.mxu0 0
      %1977 = vmatprep.subr.bf16.mxu0 0
      %1978 = vmatpush1.bf16.msra.mxu0 0
      %1979 = vmatprep.subr.bf16.mxu0 0
      %1980 = vmatpush1.bf16.msra.mxu0 0
      %1981 = vmatprep.subr.bf16.mxu0 0
      %1982 = vmatpush1.bf16.msra.mxu0 0
      %1983 = vmatprep.subr.bf16.mxu0 0
      %1984 = vmatpush1.bf16.msra.mxu0 0
      %1985 = vmatprep.subr.bf16.mxu0 0
      %1986 = vmatpush1.bf16.msra.mxu0 0
      %1987 = vmatprep.subr.bf16.mxu0 0
      %1988 = vmatpush1.bf16.msra.mxu0 0
      %1989 = vmatprep.subr.bf16.mxu0 0
      %1990 = vmatpush1.bf16.msra.mxu0 0
      %1991 = vmatprep.subr.bf16.mxu0 0
      %1992 = vmatpush1.bf16.msra.mxu0 0
      %1993 = vmatprep.subr.bf16.mxu0 0
      %1994 = vmatpush1.bf16.msra.mxu0 0
      %1995 = vmatprep.subr.bf16.mxu0 0
      %1996 = vmatpush1.bf16.msra.mxu0 0
      %1997 = vmatprep.mubr.bf16.mxu0 0
      %1998 = vmatmul.mubr.bf16.gmra.mrb[0].mxu0 %v1963
      %v1999 = vpop.f32.mrb[0].mxu0
      %v2000 = vadd.f32 0.0, %v1999
      %v2001 = vpop.f32.mrb[0].mxu0
      %v2002 = vadd.f32 0.0, %v2001
      %v2003 = vpop.f32.mrb[0].mxu0
      %v2004 = vadd.f32 0.0, %v2003
      %v2005 = vpop.f32.mrb[0].mxu0
      %v2006 = vadd.f32 0.0, %v2005
      %2007 = vdwg.mxu0
      %2008 = vmatprep.subr.bf16.mxu0 0
      %2009 = vmatpush1.bf16.msra.mxu0 %v1922
      %2010 = vmatprep.subr.bf16.mxu0 0
      %2011 = vmatpush1.bf16.msra.mxu0 %v1928
      %2012 = vmatprep.subr.bf16.mxu0 0
      %2013 = vmatpush1.bf16.msra.mxu0 %v1934
      %2014 = vmatprep.subr.bf16.mxu0 0
      %2015 = vmatpush1.bf16.msra.mxu0 %v1940
      %2016 = vmatprep.subr.bf16.mxu0 0
      %2017 = vmatpush1.bf16.msra.mxu0 0
      %2018 = vmatprep.subr.bf16.mxu0 0
      %2019 = vmatpush1.bf16.msra.mxu0 0
      %2020 = vmatprep.subr.bf16.mxu0 0
      %2021 = vmatpush1.bf16.msra.mxu0 0
      %2022 = vmatprep.subr.bf16.mxu0 0
      %2023 = vmatpush1.bf16.msra.mxu0 0
      %2024 = vmatprep.subr.bf16.mxu0 0
      %2025 = vmatpush1.bf16.msra.mxu0 0
      %2026 = vmatprep.subr.bf16.mxu0 0
      %2027 = vmatpush1.bf16.msra.mxu0 0
      %2028 = vmatprep.subr.bf16.mxu0 0
      %2029 = vmatpush1.bf16.msra.mxu0 0
      %2030 = vmatprep.subr.bf16.mxu0 0
      %2031 = vmatpush1.bf16.msra.mxu0 0
      %2032 = vmatprep.subr.bf16.mxu0 0
      %2033 = vmatpush1.bf16.msra.mxu0 0
      %2034 = vmatprep.subr.bf16.mxu0 0
      %2035 = vmatpush1.bf16.msra.mxu0 0
      %2036 = vmatprep.subr.bf16.mxu0 0
      %2037 = vmatpush1.bf16.msra.mxu0 0
      %2038 = vmatprep.subr.bf16.mxu0 0
      %2039 = vmatpush1.bf16.msra.mxu0 0
      %2040 = vmatprep.mubr.bf16.mxu0 0
      %2041 = vmatmul.mubr.bf16.gmra.mrb[0].mxu0 %v1963
      %v2042 = vpop.f32.mrb[0].mxu0
      %v2043 = vadd.f32 0.0, %v2042
      %v2044 = vpop.f32.mrb[0].mxu0
      %v2045 = vpop.f32.mrb[0].mxu0
      %v2046 = vadd.f32 0.0, %v2045
      %v2047 = vpop.f32.mrb[0].mxu0
      %2048 = vdwg.mxu0
      %v2049 = vadd.f32 %v1903, %v2000
      %v2050 = vadd.f32 %v1904, %v2002
      %v2051 = vadd.f32 %v1905, %v2043
      %v2052 = vadd.f32 %v1906, %v2004
      %v2053 = vadd.f32 %v1907, %v2006
      %v2054 = vadd.f32 %v1908, %v2046
      %s2055 = scalar_lea.vmem %s2, 48
      %v2056 = vld [vmem:[%s2055] sm:$0xf]
      %v2057 = vld [vmem:[%s2055 + $0x4] sm:$0xf]
      %v2060 = vunpack.c.l.b16 %v2056
      %v2061 = vunpack.c.l.b16 %v2057
      %v2062 = vpack.c.b16 %v2061, %v2060
      %2063 = vrot.lane.b32.xlu0 %v1157, 111
      %v2064 = vpop.permute.xlu0 %2063
      %2065 = vrot.lane.b32.xlu0 %v1158, 111
      %v2066 = vpop.permute.xlu0 %2065
      %2067 = vrot.lane.b32.xlu0 %v1159, 111
      %v2068 = vpop.permute.xlu0 %2067
      %2069 = vrot.lane.b32.xlu0 %v1161, 111
      %v2070 = vpop.permute.xlu0 %2069
      %2071 = vrot.lane.b32.xlu0 %v1162, 111
      %v2072 = vpop.permute.xlu0 %2071
      %2073 = vrot.lane.b32.xlu0 %v1163, 111
      %v2074 = vpop.permute.xlu0 %2073
      %2075 = vrot.lane.b32.xlu0 %v1165, 111
      %v2076 = vpop.permute.xlu0 %2075
      %2077 = vrot.lane.b32.xlu0 %v1166, 111
      %v2078 = vpop.permute.xlu0 %2077
      %2079 = vrot.lane.b32.xlu0 %v1167, 111
      %v2080 = vpop.permute.xlu0 %2079
      %2081 = vrot.lane.b32.xlu0 %v1169, 111
      %v2082 = vpop.permute.xlu0 %2081
      %2083 = vrot.lane.b32.xlu0 %v1170, 111
      %v2084 = vpop.permute.xlu0 %2083
      %2085 = vrot.lane.b32.xlu0 %v1171, 111
      %v2086 = vpop.permute.xlu0 %2085
      %vm2087 = vcmask 908288
      %v2088 = vsel %vm2087, %v2064, %v2066
      %v2089 = vsel %vm2087, %v2066, %v2068
      %v2090 = vsel %vm2087, %v2070, %v2072
      %v2091 = vsel %vm2087, %v2072, %v2074
      %v2092 = vsel %vm2087, %v2076, %v2078
      %v2093 = vsel %vm2087, %v2078, %v2080
      %v2094 = vsel %vm2087, %v2082, %v2084
      %v2095 = vsel %vm2087, %v2084, %v2086
      %v2109 = vsel %vm1255, %v2062, 0
      %2111 = vmatprep.subr.bf16.mxu0 %v2089
      %2112 = vmatpush1.bf16.msra.mxu0 %v2088
      %2113 = vmatprep.subr.bf16.mxu0 %v2091
      %2114 = vmatpush1.bf16.msra.mxu0 %v2090
      %2115 = vmatprep.subr.bf16.mxu0 %v2093
      %2116 = vmatpush1.bf16.msra.mxu0 %v2092
      %2117 = vmatprep.subr.bf16.mxu0 %v2095
      %2118 = vmatpush1.bf16.msra.mxu0 %v2094
      %2119 = vmatprep.subr.bf16.mxu0 0
      %2120 = vmatpush1.bf16.msra.mxu0 0
      %2121 = vmatprep.subr.bf16.mxu0 0
      %2122 = vmatpush1.bf16.msra.mxu0 0
      %2123 = vmatprep.subr.bf16.mxu0 0
      %2124 = vmatpush1.bf16.msra.mxu0 0
      %2125 = vmatprep.subr.bf16.mxu0 0
      %2126 = vmatpush1.bf16.msra.mxu0 0
      %2127 = vmatprep.subr.bf16.mxu0 0
      %2128 = vmatpush1.bf16.msra.mxu0 0
      %2129 = vmatprep.subr.bf16.mxu0 0
      %2130 = vmatpush1.bf16.msra.mxu0 0
      %2131 = vmatprep.subr.bf16.mxu0 0
      %2132 = vmatpush1.bf16.msra.mxu0 0
      %2133 = vmatprep.subr.bf16.mxu0 0
      %2134 = vmatpush1.bf16.msra.mxu0 0
      %2135 = vmatprep.subr.bf16.mxu0 0
      %2136 = vmatpush1.bf16.msra.mxu0 0
      %2137 = vmatprep.subr.bf16.mxu0 0
      %2138 = vmatpush1.bf16.msra.mxu0 0
      %2139 = vmatprep.subr.bf16.mxu0 0
      %2140 = vmatpush1.bf16.msra.mxu0 0
      %2141 = vmatprep.subr.bf16.mxu0 0
      %2142 = vmatpush1.bf16.msra.mxu0 0
      %2143 = vmatprep.mubr.bf16.mxu0 0
      %2144 = vmatmul.mubr.bf16.gmra.mrb[0].mxu0 %v2109
      %v2145 = vpop.f32.mrb[0].mxu0
      %v2146 = vadd.f32 0.0, %v2145
      %v2147 = vpop.f32.mrb[0].mxu0
      %v2148 = vadd.f32 0.0, %v2147
      %v2149 = vpop.f32.mrb[0].mxu0
      %v2150 = vadd.f32 0.0, %v2149
      %v2151 = vpop.f32.mrb[0].mxu0
      %v2152 = vadd.f32 0.0, %v2151
      %2153 = vdwg.mxu0
      %2154 = vmatprep.subr.bf16.mxu0 0
      %2155 = vmatpush1.bf16.msra.mxu0 %v2068
      %2156 = vmatprep.subr.bf16.mxu0 0
      %2157 = vmatpush1.bf16.msra.mxu0 %v2074
      %2158 = vmatprep.subr.bf16.mxu0 0
      %2159 = vmatpush1.bf16.msra.mxu0 %v2080
      %2160 = vmatprep.subr.bf16.mxu0 0
      %2161 = vmatpush1.bf16.msra.mxu0 %v2086
      %2162 = vmatprep.subr.bf16.mxu0 0
      %2163 = vmatpush1.bf16.msra.mxu0 0
      %2164 = vmatprep.subr.bf16.mxu0 0
      %2165 = vmatpush1.bf16.msra.mxu0 0
      %2166 = vmatprep.subr.bf16.mxu0 0
      %2167 = vmatpush1.bf16.msra.mxu0 0
      %2168 = vmatprep.subr.bf16.mxu0 0
      %2169 = vmatpush1.bf16.msra.mxu0 0
      %2170 = vmatprep.subr.bf16.mxu0 0
      %2171 = vmatpush1.bf16.msra.mxu0 0
      %2172 = vmatprep.subr.bf16.mxu0 0
      %2173 = vmatpush1.bf16.msra.mxu0 0
      %2174 = vmatprep.subr.bf16.mxu0 0
      %2175 = vmatpush1.bf16.msra.mxu0 0
      %2176 = vmatprep.subr.bf16.mxu0 0
      %2177 = vmatpush1.bf16.msra.mxu0 0
      %2178 = vmatprep.subr.bf16.mxu0 0
      %2179 = vmatpush1.bf16.msra.mxu0 0
      %2180 = vmatprep.subr.bf16.mxu0 0
      %2181 = vmatpush1.bf16.msra.mxu0 0
      %2182 = vmatprep.subr.bf16.mxu0 0
      %2183 = vmatpush1.bf16.msra.mxu0 0
      %2184 = vmatprep.subr.bf16.mxu0 0
      %2185 = vmatpush1.bf16.msra.mxu0 0
      %2186 = vmatprep.mubr.bf16.mxu0 0
      %2187 = vmatmul.mubr.bf16.gmra.mrb[0].mxu0 %v2109
      %v2188 = vpop.f32.mrb[0].mxu0
      %v2189 = vadd.f32 0.0, %v2188
      %v2190 = vpop.f32.mrb[0].mxu0
      %v2191 = vpop.f32.mrb[0].mxu0
      %v2192 = vadd.f32 0.0, %v2191
      %v2193 = vpop.f32.mrb[0].mxu0
      %2194 = vdwg.mxu0
      %v2195 = vadd.f32 %v2049, %v2146
      %v2196 = vadd.f32 %v2050, %v2148
      %v2197 = vadd.f32 %v2051, %v2189
      %v2198 = vadd.f32 %v2052, %v2150
      %v2199 = vadd.f32 %v2053, %v2152
      %v2200 = vadd.f32 %v2054, %v2192
      %s2201 = scalar_lea.vmem %s2, 56
      %v2202 = vld [vmem:[%s2201] sm:$0xf]
      %v2203 = vld [vmem:[%s2201 + $0x4] sm:$0xf]
      %v2206 = vunpack.c.l.b16 %v2202
      %v2207 = vunpack.c.l.b16 %v2203
      %v2208 = vpack.c.b16 %v2207, %v2206
      %2209 = vrot.lane.b32.xlu0 %v1157, 110
      %v2210 = vpop.permute.xlu0 %2209
      %2211 = vrot.lane.b32.xlu0 %v1158, 110
      %v2212 = vpop.permute.xlu0 %2211
      %2213 = vrot.lane.b32.xlu0 %v1159, 110
      %v2214 = vpop.permute.xlu0 %2213
      %2215 = vrot.lane.b32.xlu0 %v1161, 110
      %v2216 = vpop.permute.xlu0 %2215
      %2217 = vrot.lane.b32.xlu0 %v1162, 110
      %v2218 = vpop.permute.xlu0 %2217
      %2219 = vrot.lane.b32.xlu0 %v1163, 110
      %v2220 = vpop.permute.xlu0 %2219
      %2221 = vrot.lane.b32.xlu0 %v1165, 110
      %v2222 = vpop.permute.xlu0 %2221
      %2223 = vrot.lane.b32.xlu0 %v1166, 110
      %v2224 = vpop.permute.xlu0 %2223
      %2225 = vrot.lane.b32.xlu0 %v1167, 110
      %v2226 = vpop.permute.xlu0 %2225
      %2227 = vrot.lane.b32.xlu0 %v1169, 110
      %v2228 = vpop.permute.xlu0 %2227
      %2229 = vrot.lane.b32.xlu0 %v1170, 110
      %v2230 = vpop.permute.xlu0 %2229
      %2231 = vrot.lane.b32.xlu0 %v1171, 110
      %v2232 = vpop.permute.xlu0 %2231
      %vm2233 = vcmask 900096
      %v2234 = vsel %vm2233, %v2210, %v2212
      %v2235 = vsel %vm2233, %v2212, %v2214
      %v2236 = vsel %vm2233, %v2216, %v2218
      %v2237 = vsel %vm2233, %v2218, %v2220
      %v2238 = vsel %vm2233, %v2222, %v2224
      %v2239 = vsel %vm2233, %v2224, %v2226
      %v2240 = vsel %vm2233, %v2228, %v2230
      %v2241 = vsel %vm2233, %v2230, %v2232
      %v2255 = vsel %vm1255, %v2208, 0
      %2257 = vmatprep.subr.bf16.mxu0 %v2235
      %2258 = vmatpush1.bf16.msra.mxu0 %v2234
      %2259 = vmatprep.subr.bf16.mxu0 %v2237
      %2260 = vmatpush1.bf16.msra.mxu0 %v2236
      %2261 = vmatprep.subr.bf16.mxu0 %v2239
      %2262 = vmatpush1.bf16.msra.mxu0 %v2238
      %2263 = vmatprep.subr.bf16.mxu0 %v2241
      %2264 = vmatpush1.bf16.msra.mxu0 %v2240
      %2265 = vmatprep.subr.bf16.mxu0 0
      %2266 = vmatpush1.bf16.msra.mxu0 0
      %2267 = vmatprep.subr.bf16.mxu0 0
      %2268 = vmatpush1.bf16.msra.mxu0 0
      %2269 = vmatprep.subr.bf16.mxu0 0
      %2270 = vmatpush1.bf16.msra.mxu0 0
      %2271 = vmatprep.subr.bf16.mxu0 0
      %2272 = vmatpush1.bf16.msra.mxu0 0
      %2273 = vmatprep.subr.bf16.mxu0 0
      %2274 = vmatpush1.bf16.msra.mxu0 0
      %2275 = vmatprep.subr.bf16.mxu0 0
      %2276 = vmatpush1.bf16.msra.mxu0 0
      %2277 = vmatprep.subr.bf16.mxu0 0
      %2278 = vmatpush1.bf16.msra.mxu0 0
      %2279 = vmatprep.subr.bf16.mxu0 0
      %2280 = vmatpush1.bf16.msra.mxu0 0
      %2281 = vmatprep.subr.bf16.mxu0 0
      %2282 = vmatpush1.bf16.msra.mxu0 0
      %2283 = vmatprep.subr.bf16.mxu0 0
      %2284 = vmatpush1.bf16.msra.mxu0 0
      %2285 = vmatprep.subr.bf16.mxu0 0
      %2286 = vmatpush1.bf16.msra.mxu0 0
      %2287 = vmatprep.subr.bf16.mxu0 0
      %2288 = vmatpush1.bf16.msra.mxu0 0
      %2289 = vmatprep.mubr.bf16.mxu0 0
      %2290 = vmatmul.mubr.bf16.gmra.mrb[0].mxu0 %v2255
      %v2291 = vpop.f32.mrb[0].mxu0
      %v2292 = vadd.f32 0.0, %v2291
      %v2293 = vpop.f32.mrb[0].mxu0
      %v2294 = vadd.f32 0.0, %v2293
      %v2295 = vpop.f32.mrb[0].mxu0
      %v2296 = vadd.f32 0.0, %v2295
      %v2297 = vpop.f32.mrb[0].mxu0
      %v2298 = vadd.f32 0.0, %v2297
      %2299 = vdwg.mxu0
      %2300 = vmatprep.subr.bf16.mxu0 0
      %2301 = vmatpush1.bf16.msra.mxu0 %v2214
      %2302 = vmatprep.subr.bf16.mxu0 0
      %2303 = vmatpush1.bf16.msra.mxu0 %v2220
      %2304 = vmatprep.subr.bf16.mxu0 0
      %2305 = vmatpush1.bf16.msra.mxu0 %v2226
      %2306 = vmatprep.subr.bf16.mxu0 0
      %2307 = vmatpush1.bf16.msra.mxu0 %v2232
      %2308 = vmatprep.subr.bf16.mxu0 0
      %2309 = vmatpush1.bf16.msra.mxu0 0
      %2310 = vmatprep.subr.bf16.mxu0 0
      %2311 = vmatpush1.bf16.msra.mxu0 0
      %2312 = vmatprep.subr.bf16.mxu0 0
      %2313 = vmatpush1.bf16.msra.mxu0 0
      %2314 = vmatprep.subr.bf16.mxu0 0
      %2315 = vmatpush1.bf16.msra.mxu0 0
      %2316 = vmatprep.subr.bf16.mxu0 0
      %2317 = vmatpush1.bf16.msra.mxu0 0
      %2318 = vmatprep.subr.bf16.mxu0 0
      %2319 = vmatpush1.bf16.msra.mxu0 0
      %2320 = vmatprep.subr.bf16.mxu0 0
      %2321 = vmatpush1.bf16.msra.mxu0 0
      %2322 = vmatprep.subr.bf16.mxu0 0
      %2323 = vmatpush1.bf16.msra.mxu0 0
      %2324 = vmatprep.subr.bf16.mxu0 0
      %2325 = vmatpush1.bf16.msra.mxu0 0
      %2326 = vmatprep.subr.bf16.mxu0 0
      %2327 = vmatpush1.bf16.msra.mxu0 0
      %2328 = vmatprep.subr.bf16.mxu0 0
      %2329 = vmatpush1.bf16.msra.mxu0 0
      %2330 = vmatprep.subr.bf16.mxu0 0
      %2331 = vmatpush1.bf16.msra.mxu0 0
      %2332 = vmatprep.mubr.bf16.mxu0 0
      %2333 = vmatmul.mubr.bf16.gmra.mrb[0].mxu0 %v2255
      %v2334 = vpop.f32.mrb[0].mxu0
      %v2335 = vadd.f32 0.0, %v2334
      %v2336 = vpop.f32.mrb[0].mxu0
      %v2337 = vpop.f32.mrb[0].mxu0
      %v2338 = vadd.f32 0.0, %v2337
      %v2339 = vpop.f32.mrb[0].mxu0
      %2340 = vdwg.mxu0
      %v2341 = vadd.f32 %v2195, %v2292
      %v2342 = vadd.f32 %v2196, %v2294
      %v2343 = vadd.f32 %v2197, %v2335
      %v2344 = vadd.f32 %v2198, %v2296
      %v2345 = vadd.f32 %v2199, %v2298
      %v2346 = vadd.f32 %v2200, %v2338
      %s2347 = scalar_lea.vmem %s2, 64
      %v2348 = vld [vmem:[%s2347] sm:$0xf]
      %v2349 = vld [vmem:[%s2347 + $0x4] sm:$0xf]
      %v2352 = vunpack.c.l.b16 %v2348
      %v2353 = vunpack.c.l.b16 %v2349
      %v2354 = vpack.c.b16 %v2353, %v2352
      %2355 = vrot.lane.b32.xlu0 %v1157, 109
      %v2356 = vpop.permute.xlu0 %2355
      %2357 = vrot.lane.b32.xlu0 %v1158, 109
      %v2358 = vpop.permute.xlu0 %2357
      %2359 = vrot.lane.b32.xlu0 %v1159, 109
      %v2360 = vpop.permute.xlu0 %2359
      %2361 = vrot.lane.b32.xlu0 %v1161, 109
      %v2362 = vpop.permute.xlu0 %2361
      %2363 = vrot.lane.b32.xlu0 %v1162, 109
      %v2364 = vpop.permute.xlu0 %2363
      %2365 = vrot.lane.b32.xlu0 %v1163, 109
      %v2366 = vpop.permute.xlu0 %2365
      %2367 = vrot.lane.b32.xlu0 %v1165, 109
      %v2368 = vpop.permute.xlu0 %2367
      %2369 = vrot.lane.b32.xlu0 %v1166, 109
      %v2370 = vpop.permute.xlu0 %2369
      %2371 = vrot.lane.b32.xlu0 %v1167, 109
      %v2372 = vpop.permute.xlu0 %2371
      %2373 = vrot.lane.b32.xlu0 %v1169, 109
      %v2374 = vpop.permute.xlu0 %2373
      %2375 = vrot.lane.b32.xlu0 %v1170, 109
      %v2376 = vpop.permute.xlu0 %2375
      %2377 = vrot.lane.b32.xlu0 %v1171, 109
      %v2378 = vpop.permute.xlu0 %2377
      %vm2379 = vcmask 891904
      %v2380 = vsel %vm2379, %v2356, %v2358
      %v2381 = vsel %vm2379, %v2358, %v2360
      %v2382 = vsel %vm2379, %v2362, %v2364
      %v2383 = vsel %vm2379, %v2364, %v2366
      %v2384 = vsel %vm2379, %v2368, %v2370
      %v2385 = vsel %vm2379, %v2370, %v2372
      %v2386 = vsel %vm2379, %v2374, %v2376
      %v2387 = vsel %vm2379, %v2376, %v2378
      %v2401 = vsel %vm1255, %v2354, 0
      %2403 = vmatprep.subr.bf16.mxu0 %v2381
      %2404 = vmatpush1.bf16.msra.mxu0 %v2380
      %2405 = vmatprep.subr.bf16.mxu0 %v2383
      %2406 = vmatpush1.bf16.msra.mxu0 %v2382
      %2407 = vmatprep.subr.bf16.mxu0 %v2385
      %2408 = vmatpush1.bf16.msra.mxu0 %v2384
      %2409 = vmatprep.subr.bf16.mxu0 %v2387
      %2410 = vmatpush1.bf16.msra.mxu0 %v2386
      %2411 = vmatprep.subr.bf16.mxu0 0
      %2412 = vmatpush1.bf16.msra.mxu0 0
      %2413 = vmatprep.subr.bf16.mxu0 0
      %2414 = vmatpush1.bf16.msra.mxu0 0
      %2415 = vmatprep.subr.bf16.mxu0 0
      %2416 = vmatpush1.bf16.msra.mxu0 0
      %2417 = vmatprep.subr.bf16.mxu0 0
      %2418 = vmatpush1.bf16.msra.mxu0 0
      %2419 = vmatprep.subr.bf16.mxu0 0
      %2420 = vmatpush1.bf16.msra.mxu0 0
      %2421 = vmatprep.subr.bf16.mxu0 0
      %2422 = vmatpush1.bf16.msra.mxu0 0
      %2423 = vmatprep.subr.bf16.mxu0 0
      %2424 = vmatpush1.bf16.msra.mxu0 0
      %2425 = vmatprep.subr.bf16.mxu0 0
      %2426 = vmatpush1.bf16.msra.mxu0 0
      %2427 = vmatprep.subr.bf16.mxu0 0
      %2428 = vmatpush1.bf16.msra.mxu0 0
      %2429 = vmatprep.subr.bf16.mxu0 0
      %2430 = vmatpush1.bf16.msra.mxu0 0
      %2431 = vmatprep.subr.bf16.mxu0 0
      %2432 = vmatpush1.bf16.msra.mxu0 0
      %2433 = vmatprep.subr.bf16.mxu0 0
      %2434 = vmatpush1.bf16.msra.mxu0 0
      %2435 = vmatprep.mubr.bf16.mxu0 0
      %2436 = vmatmul.mubr.bf16.gmra.mrb[0].mxu0 %v2401
      %v2437 = vpop.f32.mrb[0].mxu0
      %v2438 = vadd.f32 0.0, %v2437
      %v2439 = vpop.f32.mrb[0].mxu0
      %v2440 = vadd.f32 0.0, %v2439
      %v2441 = vpop.f32.mrb[0].mxu0
      %v2442 = vadd.f32 0.0, %v2441
      %v2443 = vpop.f32.mrb[0].mxu0
      %v2444 = vadd.f32 0.0, %v2443
      %2445 = vdwg.mxu0
      %2446 = vmatprep.subr.bf16.mxu0 0
      %2447 = vmatpush1.bf16.msra.mxu0 %v2360
      %2448 = vmatprep.subr.bf16.mxu0 0
      %2449 = vmatpush1.bf16.msra.mxu0 %v2366
      %2450 = vmatprep.subr.bf16.mxu0 0
      %2451 = vmatpush1.bf16.msra.mxu0 %v2372
      %2452 = vmatprep.subr.bf16.mxu0 0
      %2453 = vmatpush1.bf16.msra.mxu0 %v2378
      %2454 = vmatprep.subr.bf16.mxu0 0
      %2455 = vmatpush1.bf16.msra.mxu0 0
      %2456 = vmatprep.subr.bf16.mxu0 0
      %2457 = vmatpush1.bf16.msra.mxu0 0
      %2458 = vmatprep.subr.bf16.mxu0 0
      %2459 = vmatpush1.bf16.msra.mxu0 0
      %2460 = vmatprep.subr.bf16.mxu0 0
      %2461 = vmatpush1.bf16.msra.mxu0 0
      %2462 = vmatprep.subr.bf16.mxu0 0
      %2463 = vmatpush1.bf16.msra.mxu0 0
      %2464 = vmatprep.subr.bf16.mxu0 0
      %2465 = vmatpush1.bf16.msra.mxu0 0
      %2466 = vmatprep.subr.bf16.mxu0 0
      %2467 = vmatpush1.bf16.msra.mxu0 0
      %2468 = vmatprep.subr.bf16.mxu0 0
      %2469 = vmatpush1.bf16.msra.mxu0 0
      %2470 = vmatprep.subr.bf16.mxu0 0
      %2471 = vmatpush1.bf16.msra.mxu0 0
      %2472 = vmatprep.subr.bf16.mxu0 0
      %2473 = vmatpush1.bf16.msra.mxu0 0
      %2474 = vmatprep.subr.bf16.mxu0 0
      %2475 = vmatpush1.bf16.msra.mxu0 0
      %2476 = vmatprep.subr.bf16.mxu0 0
      %2477 = vmatpush1.bf16.msra.mxu0 0
      %2478 = vmatprep.mubr.bf16.mxu0 0
      %2479 = vmatmul.mubr.bf16.gmra.mrb[0].mxu0 %v2401
      %v2480 = vpop.f32.mrb[0].mxu0
      %v2481 = vadd.f32 0.0, %v2480
      %v2482 = vpop.f32.mrb[0].mxu0
      %v2483 = vpop.f32.mrb[0].mxu0
      %v2484 = vadd.f32 0.0, %v2483
      %v2485 = vpop.f32.mrb[0].mxu0
      %2486 = vdwg.mxu0
      %v2487 = vadd.f32 %v2341, %v2438
      %v2488 = vadd.f32 %v2342, %v2440
      %v2489 = vadd.f32 %v2343, %v2481
      %v2490 = vadd.f32 %v2344, %v2442
      %v2491 = vadd.f32 %v2345, %v2444
      %v2492 = vadd.f32 %v2346, %v2484
      %v2494 = vlaneseq
      %v2495 = vshrl.u32 %v2494, 7
      %v2496 = vsub.s32 0, %v2495
      %v2497 = vrot.slane %v226, %v2496
      %v2498 = vlaneseq
      %v2499 = vshrl.u32 %v2498, 7
      %v2500 = vsub.s32 1, %v2499
      %v2501 = vrot.slane %v226, %v2500
      %v2502 = vlaneseq
      %v2503 = vshrl.u32 %v2502, 7
      %v2504 = vsub.s32 2, %v2503
      %v2505 = vrot.slane %v226, %v2504
      %v2509 = vmul.f32 %v2487, %v2497
      %v2510 = vmul.f32 %v2488, %v2501
      %v2511 = vmul.f32 %v2489, %v2505
      %v2512 = vmul.f32 %v2490, %v2497
      %v2513 = vmul.f32 %v2491, %v2501
      %v2514 = vmul.f32 %v2492, %v2505
      %v2515 = vadd.f32 %v2509, %v2510
      %v2516 = vsel %vm236, %v2511, 0.0
      %v2517 = vadd.f32 %v2515, %v2516
      %2518 = vadd.xlane.f32.xlu0 %v2517
      %v2519 = vpop.xlane.xlu0 %2518
      %v2520 = vadd.f32 %v2512, %v2513
      %v2521 = vsel %vm236, %v2514, 0.0
      %v2522 = vadd.f32 %v2520, %v2521
      %2523 = vadd.xlane.f32.xlu0 %v2522
      %v2524 = vpop.xlane.xlu0 %2523
      %v2525 = vmul.f32 %v2519, 0.00390625
      %v2526 = vmul.f32 %v2524, 0.00390625
      %v2527 = vmul.f32 %v2509, %v2509
      %v2528 = vmul.f32 %v2510, %v2510
      %v2529 = vmul.f32 %v2511, %v2511
      %v2530 = vmul.f32 %v2512, %v2512
      %v2531 = vmul.f32 %v2513, %v2513
      %v2532 = vmul.f32 %v2514, %v2514
      %v2533 = vadd.f32 %v2527, %v2528
      %v2534 = vsel %vm236, %v2529, 0.0
      %v2535 = vadd.f32 %v2533, %v2534
      %2536 = vadd.xlane.f32.xlu0 %v2535
      %v2537 = vpop.xlane.xlu0 %2536
      %v2538 = vadd.f32 %v2530, %v2531
      %v2539 = vsel %vm236, %v2532, 0.0
      %v2540 = vadd.f32 %v2538, %v2539
      %2541 = vadd.xlane.f32.xlu0 %v2540
      %v2542 = vpop.xlane.xlu0 %2541
      %v2543 = vmul.f32 %v2537, 0.00390625
      %v2544 = vmul.f32 %v2542, 0.00390625
      %v2545 = vmul.f32 %v2525, %v2525
      %v2546 = vmul.f32 %v2526, %v2526
      %v2547 = vsub.f32 %v2543, %v2545
      %v2548 = vsub.f32 %v2544, %v2546
      %v2549 = vmax.f32 %v2547, 0.0
      %v2550 = vmax.f32 %v2548, 0.0
      %v2551 = vsub.f32 %v2487, %v2525
      %v2552 = vsub.f32 %v2488, %v2525
      %v2553 = vsub.f32 %v2489, %v2525
      %v2554 = vsub.f32 %v2490, %v2526
      %v2555 = vsub.f32 %v2491, %v2526
      %v2556 = vsub.f32 %v2492, %v2526
      %v2557 = vadd.f32 %v2549, 1e-05
      %v2558 = vadd.f32 %v2550, 1e-05
      %v2559 = vrsqrt.pop %v2557
      %v2560 = vrsqrt.pop %v2558
      %v2561 = vmul.f32 %v2551, %v2559
      %v2562 = vmul.f32 %v2552, %v2559
      %v2563 = vmul.f32 %v2553, %v2559
      %v2564 = vmul.f32 %v2554, %v2560
      %v2565 = vmul.f32 %v2555, %v2560
      %v2566 = vmul.f32 %v2556, %v2560
      %v2567 = vmax.f32 %v2561, 0.0
      %v2568 = vmax.f32 %v2562, 0.0
      %v2569 = vmax.f32 %v2563, 0.0
      %v2570 = vmax.f32 %v2564, 0.0
      %v2571 = vmax.f32 %v2565, 0.0
      %v2572 = vmax.f32 %v2566, 0.0
      %v2573 = vmul.f32 %v2567, %v2497
      %v2574 = vmul.f32 %v2568, %v2501
      %v2575 = vmul.f32 %v2569, %v2505
      %v2576 = vmul.f32 %v2570, %v2497
      %v2577 = vmul.f32 %v2571, %v2501
      %v2578 = vmul.f32 %v2572, %v2505
      %v2579 = vpack.c.bf16 %v2576, %v2573
      %v2580 = vpack.c.bf16 %v2577, %v2574
      %v2581 = vpack.c.bf16 %v2578, %v2575
      %2582 = vst [vmem:[#allocation2 + $0xa8] sm:$0xff] %v2579
      %2583 = vst [vmem:[#allocation2 + $0xb0] sm:$0xff] %v2580
      %2584 = vst.msk [vmem:[#allocation2 + $0xb8] sm:$0xff] %vm236, %v2581
      %2587 = vrot.lane.b32.xlu0 %v2573, 109
      %v2588 = vpop.permute.xlu0 %2587
      %2589 = vrot.lane.b32.xlu0 %v2576, 109
      %v2590 = vpop.permute.xlu0 %2589
      %2593 = vst.msk [vmem:[%s224 + $0x80] sm:$0xff] %vm338, %v2588
      %2594 = vst.msk [vmem:[%s224 + $0x90] sm:$0xff] %vm338, %v2590
      %2595 = vrot.lane.b32.xlu0 %v2573, 107
      %v2596 = vpop.permute.xlu0 %2595
      %2597 = vrot.lane.b32.xlu0 %v2576, 107
      %v2598 = vpop.permute.xlu0 %2597
      %2601 = vst.msk [vmem:[%s224 + $0x80] sm:$0xff] %vm387, %v2596
      %2602 = vst.msk [vmem:[%s224 + $0x90] sm:$0xff] %vm387, %v2598
      %2603 = vrot.lane.b32.xlu0 %v2573, 105
      %v2604 = vpop.permute.xlu0 %2603
      %2605 = vrot.lane.b32.xlu0 %v2576, 105
      %v2606 = vpop.permute.xlu0 %2605
      %2609 = vst.msk [vmem:[%s224 + $0x80] sm:$0xff] %vm436, %v2604
      %2610 = vst.msk [vmem:[%s224 + $0x90] sm:$0xff] %vm436, %v2606
      %2611 = vrot.lane.b32.xlu0 %v2573, 103
      %v2612 = vpop.permute.xlu0 %2611
      %2613 = vrot.lane.b32.xlu0 %v2576, 103
      %v2614 = vpop.permute.xlu0 %2613
      %2617 = vst.msk [vmem:[%s224 + $0x80] sm:$0xff] %vm485, %v2612
      %2618 = vst.msk [vmem:[%s224 + $0x90] sm:$0xff] %vm485, %v2614
      %2619 = vrot.lane.b32.xlu0 %v2573, 101
      %v2620 = vpop.permute.xlu0 %2619
      %2621 = vrot.lane.b32.xlu0 %v2576, 101
      %v2622 = vpop.permute.xlu0 %2621
      %2625 = vst.msk [vmem:[%s224 + $0x80] sm:$0xff] %vm534, %v2620
      %2626 = vst.msk [vmem:[%s224 + $0x90] sm:$0xff] %vm534, %v2622
      %2627 = vrot.lane.b32.xlu0 %v2573, 99
      %v2628 = vpop.permute.xlu0 %2627
      %2629 = vrot.lane.b32.xlu0 %v2576, 99
      %v2630 = vpop.permute.xlu0 %2629
      %2633 = vst.msk [vmem:[%s224 + $0x80] sm:$0xff] %vm583, %v2628
      %2634 = vst.msk [vmem:[%s224 + $0x90] sm:$0xff] %vm583, %v2630
      %2637 = vrot.lane.b32.xlu0 %v2573, 97
      %v2638 = vpop.permute.xlu0 %2637
      %2639 = vrot.lane.b32.xlu0 %v2574, 97
      %v2640 = vpop.permute.xlu0 %2639
      %2641 = vrot.lane.b32.xlu0 %v2576, 97
      %v2642 = vpop.permute.xlu0 %2641
      %2643 = vrot.lane.b32.xlu0 %v2577, 97
      %v2644 = vpop.permute.xlu0 %2643
      %v2645 = vsel %vm656, %v2638, %v2640
      %v2646 = vsel %vm656, %v2642, %v2644
      %2649 = vst.msk [vmem:[%s224 + $0x80] sm:$0xff] %vm673, %v2645
      %2650 = vst.msk [vmem:[%s224 + $0x90] sm:$0xff] %vm673, %v2646
      %2651 = vrot.lane.b32.xlu0 %v2574, 95
      %v2652 = vpop.permute.xlu0 %2651
      %2653 = vrot.lane.b32.xlu0 %v2577, 95
      %v2654 = vpop.permute.xlu0 %2653
      %2657 = vst.msk [vmem:[%s224 + $0x80] sm:$0xff] %vm722, %v2652
      %2658 = vst.msk [vmem:[%s224 + $0x90] sm:$0xff] %vm722, %v2654
      %2659 = vrot.lane.b32.xlu0 %v2574, 93
      %v2660 = vpop.permute.xlu0 %2659
      %2661 = vrot.lane.b32.xlu0 %v2577, 93
      %v2662 = vpop.permute.xlu0 %2661
      %2665 = vst.msk [vmem:[%s224 + $0x88] sm:$0xff] %vm338, %v2660
      %2666 = vst.msk [vmem:[%s224 + $0x98] sm:$0xff] %vm338, %v2662
      %2667 = vrot.lane.b32.xlu0 %v2574, 91
      %v2668 = vpop.permute.xlu0 %2667
      %2669 = vrot.lane.b32.xlu0 %v2577, 91
      %v2670 = vpop.permute.xlu0 %2669
      %2673 = vst.msk [vmem:[%s224 + $0x88] sm:$0xff] %vm387, %v2668
      %2674 = vst.msk [vmem:[%s224 + $0x98] sm:$0xff] %vm387, %v2670
      %2675 = vrot.lane.b32.xlu0 %v2574, 89
      %v2676 = vpop.permute.xlu0 %2675
      %2677 = vrot.lane.b32.xlu0 %v2577, 89
      %v2678 = vpop.permute.xlu0 %2677
      %2681 = vst.msk [vmem:[%s224 + $0x88] sm:$0xff] %vm436, %v2676
      %2682 = vst.msk [vmem:[%s224 + $0x98] sm:$0xff] %vm436, %v2678
      %2683 = vrot.lane.b32.xlu0 %v2574, 87
      %v2684 = vpop.permute.xlu0 %2683
      %2685 = vrot.lane.b32.xlu0 %v2577, 87
      %v2686 = vpop.permute.xlu0 %2685
      %2689 = vst.msk [vmem:[%s224 + $0x88] sm:$0xff] %vm485, %v2684
      %2690 = vst.msk [vmem:[%s224 + $0x98] sm:$0xff] %vm485, %v2686
      %2691 = vrot.lane.b32.xlu0 %v2574, 85
      %v2692 = vpop.permute.xlu0 %2691
      %2693 = vrot.lane.b32.xlu0 %v2577, 85
      %v2694 = vpop.permute.xlu0 %2693
      %2697 = vst.msk [vmem:[%s224 + $0x88] sm:$0xff] %vm534, %v2692
      %2698 = vst.msk [vmem:[%s224 + $0x98] sm:$0xff] %vm534, %v2694
      %2701 = vrot.lane.b32.xlu0 %v2574, 83
      %v2702 = vpop.permute.xlu0 %2701
      %2703 = vrot.lane.b32.xlu0 %v2575, 83
      %v2704 = vpop.permute.xlu0 %2703
      %2705 = vrot.lane.b32.xlu0 %v2577, 83
      %v2706 = vpop.permute.xlu0 %2705
      %2707 = vrot.lane.b32.xlu0 %v2578, 83
      %v2708 = vpop.permute.xlu0 %2707
      %v2709 = vsel %vm1035, %v2702, %v2704
      %v2710 = vsel %vm1035, %v2706, %v2708
      %2713 = vst.msk [vmem:[%s224 + $0x88] sm:$0xff] %vm583, %v2709
      %2714 = vst.msk [vmem:[%s224 + $0x98] sm:$0xff] %vm583, %v2710
      %2715 = vrot.lane.b32.xlu0 %v2575, 81
      %v2716 = vpop.permute.xlu0 %2715
      %2717 = vrot.lane.b32.xlu0 %v2578, 81
      %v2718 = vpop.permute.xlu0 %2717
      %2721 = vst.msk [vmem:[%s224 + $0x88] sm:$0xff] %vm673, %v2716
      %2722 = vst.msk [vmem:[%s224 + $0x98] sm:$0xff] %vm673, %v2718
      %2723 = vrot.lane.b32.xlu0 %v2575, 79
      %v2724 = vpop.permute.xlu0 %2723
      %2725 = vrot.lane.b32.xlu0 %v2578, 79
      %v2726 = vpop.permute.xlu0 %2725
      %2729 = vst.msk [vmem:[%s224 + $0x88] sm:$0xff] %vm722, %v2724
      %2730 = vst.msk [vmem:[%s224 + $0x98] sm:$0xff] %vm722, %v2726
      %v2731 = vld [vmem:[#allocation2] sm:$0xff]
      %v2732 = vld [vmem:[#allocation2 + $0x8] sm:$0xff]
      %v2733 = vld [vmem:[#allocation2 + $0x10] sm:$0xff]
      %v2734 = vld [vmem:[#allocation2 + $0x18] sm:$0xff]
      %v2735 = vld [vmem:[#allocation2 + $0x28] sm:$0xff]
      %v2736 = vld [vmem:[#allocation2 + $0x30] sm:$0xff]
      %v2737 = vld [vmem:[#allocation2 + $0x38] sm:$0xff]
      %v2738 = vld [vmem:[#allocation2 + $0x40] sm:$0xff]
      %v2739 = vld [vmem:[#allocation2 + $0x50] sm:$0xff]
      %v2740 = vld [vmem:[#allocation2 + $0x58] sm:$0xff]
      %v2741 = vld [vmem:[#allocation2 + $0x60] sm:$0xff]
      %v2742 = vld [vmem:[#allocation2 + $0x68] sm:$0xff]
      %v2743 = vld [vmem:[#allocation2 + $0x78] sm:$0xff]
      %v2744 = vld [vmem:[#allocation2 + $0x80] sm:$0xff]
      %v2745 = vld [vmem:[#allocation2 + $0x88] sm:$0xff]
      %v2746 = vld [vmem:[#allocation2 + $0x90] sm:$0xff]
      %v2747 = vld [vmem:[#allocation2 + $0xa0] sm:$0xff]
      %v2748 = vld [vmem:[#allocation2 + $0xa8] sm:$0xff]
      %v2749 = vld [vmem:[#allocation2 + $0xb0] sm:$0xff]
      %v2750 = vld [vmem:[#allocation2 + $0xb8] sm:$0xff]
      %v2751 = vld [vmem:[%s3] sm:$0xf]
      %v2752 = vld [vmem:[%s3 + $0x4] sm:$0xf]
      %s2753 = scalar_lea.vmem %s3, 8
      %v2754 = vld [vmem:[%s2753] sm:$0xf]
      %v2755 = vld [vmem:[%s2753 + $0x4] sm:$0xf]
      %v2758 = vunpack.c.l.b16 %v2754
      %v2759 = vunpack.c.l.b16 %v2755
      %v2760 = vpack.c.b16 %v2759, %v2758
      %2781 = vrot.lane.b32.xlu0 %v2731, 18
      %v2782 = vpop.permute.xlu0 %2781
      %2783 = vrot.lane.b32.xlu0 %v2732, 18
      %v2784 = vpop.permute.xlu0 %2783
      %2785 = vrot.lane.b32.xlu0 %v2733, 18
      %v2786 = vpop.permute.xlu0 %2785
      %2787 = vrot.lane.b32.xlu0 %v2734, 18
      %v2788 = vpop.permute.xlu0 %2787
      %2789 = vrot.lane.b32.xlu0 %v2735, 18
      %v2790 = vpop.permute.xlu0 %2789
      %2791 = vrot.lane.b32.xlu0 %v2736, 18
      %v2792 = vpop.permute.xlu0 %2791
      %2793 = vrot.lane.b32.xlu0 %v2737, 18
      %v2794 = vpop.permute.xlu0 %2793
      %2795 = vrot.lane.b32.xlu0 %v2738, 18
      %v2796 = vpop.permute.xlu0 %2795
      %2797 = vrot.lane.b32.xlu0 %v2739, 18
      %v2798 = vpop.permute.xlu0 %2797
      %2799 = vrot.lane.b32.xlu0 %v2740, 18
      %v2800 = vpop.permute.xlu0 %2799
      %2801 = vrot.lane.b32.xlu0 %v2741, 18
      %v2802 = vpop.permute.xlu0 %2801
      %2803 = vrot.lane.b32.xlu0 %v2742, 18
      %v2804 = vpop.permute.xlu0 %2803
      %2805 = vrot.lane.b32.xlu0 %v2743, 18
      %v2806 = vpop.permute.xlu0 %2805
      %2807 = vrot.lane.b32.xlu0 %v2744, 18
      %v2808 = vpop.permute.xlu0 %2807
      %2809 = vrot.lane.b32.xlu0 %v2745, 18
      %v2810 = vpop.permute.xlu0 %2809
      %2811 = vrot.lane.b32.xlu0 %v2746, 18
      %v2812 = vpop.permute.xlu0 %2811
      %2813 = vrot.lane.b32.xlu0 %v2747, 18
      %v2814 = vpop.permute.xlu0 %2813
      %2815 = vrot.lane.b32.xlu0 %v2748, 18
      %v2816 = vpop.permute.xlu0 %2815
      %2817 = vrot.lane.b32.xlu0 %v2749, 18
      %v2818 = vpop.permute.xlu0 %2817
      %2819 = vrot.lane.b32.xlu0 %v2750, 18
      %v2820 = vpop.permute.xlu0 %2819
      %v2821 = vsel %vm1230, %v2782, %v2784
      %v2822 = vsel %vm1230, %v2784, %v2786
      %v2823 = vsel %vm1230, %v2786, %v2788
      %v2824 = vsel %vm1230, %v2790, %v2792
      %v2825 = vsel %vm1230, %v2792, %v2794
      %v2826 = vsel %vm1230, %v2794, %v2796
      %v2827 = vsel %vm1230, %v2798, %v2800
      %v2828 = vsel %vm1230, %v2800, %v2802
      %v2829 = vsel %vm1230, %v2802, %v2804
      %v2830 = vsel %vm1230, %v2806, %v2808
      %v2831 = vsel %vm1230, %v2808, %v2810
      %v2832 = vsel %vm1230, %v2810, %v2812
      %v2833 = vsel %vm1230, %v2814, %v2816
      %v2834 = vsel %vm1230, %v2816, %v2818
      %v2835 = vsel %vm1230, %v2818, %v2820
      %vm2851 = vcmask 654336
      %v2853 = vsel %vm2851, %v2760, 0
      %2855 = vmatprep.subr.bf16.mxu0 %v2822
      %2856 = vmatpush1.bf16.msra.mxu0 %v2821
      %2857 = vmatprep.subr.bf16.mxu0 %v2825
      %2858 = vmatpush1.bf16.msra.mxu0 %v2824
      %2859 = vmatprep.subr.bf16.mxu0 %v2828
      %2860 = vmatpush1.bf16.msra.mxu0 %v2827
      %2861 = vmatprep.subr.bf16.mxu0 %v2831
      %2862 = vmatpush1.bf16.msra.mxu0 %v2830
      %2863 = vmatprep.subr.bf16.mxu0 %v2834
      %2864 = vmatpush1.bf16.msra.mxu0 %v2833
      %2865 = vmatprep.subr.bf16.mxu0 0
      %2866 = vmatpush1.bf16.msra.mxu0 0
      %2867 = vmatprep.subr.bf16.mxu0 0
      %2868 = vmatpush1.bf16.msra.mxu0 0
      %2869 = vmatprep.subr.bf16.mxu0 0
      %2870 = vmatpush1.bf16.msra.mxu0 0
      %2871 = vmatprep.subr.bf16.mxu0 0
      %2872 = vmatpush1.bf16.msra.mxu0 0
      %2873 = vmatprep.subr.bf16.mxu0 0
      %2874 = vmatpush1.bf16.msra.mxu0 0
      %2875 = vmatprep.subr.bf16.mxu0 0
      %2876 = vmatpush1.bf16.msra.mxu0 0
      %2877 = vmatprep.subr.bf16.mxu0 0
      %2878 = vmatpush1.bf16.msra.mxu0 0
      %2879 = vmatprep.subr.bf16.mxu0 0
      %2880 = vmatpush1.bf16.msra.mxu0 0
      %2881 = vmatprep.subr.bf16.mxu0 0
      %2882 = vmatpush1.bf16.msra.mxu0 0
      %2883 = vmatprep.subr.bf16.mxu0 0
      %2884 = vmatpush1.bf16.msra.mxu0 0
      %2885 = vmatprep.subr.bf16.mxu0 0
      %2886 = vmatpush1.bf16.msra.mxu0 0
      %2887 = vmatprep.mubr.bf16.mxu0 0
      %2888 = vmatmul.mubr.bf16.gmra.mrb[0].mxu0 %v2853
      %v2889 = vpop.f32.mrb[0].mxu0
      %v2890 = vadd.f32 0.0, %v2889
      %v2891 = vpop.f32.mrb[0].mxu0
      %v2892 = vadd.f32 0.0, %v2891
      %v2893 = vpop.f32.mrb[0].mxu0
      %v2894 = vadd.f32 0.0, %v2893
      %v2895 = vpop.f32.mrb[0].mxu0
      %v2896 = vadd.f32 0.0, %v2895
      %2897 = vdwg.mxu0
      %2898 = vmatprep.subr.bf16.mxu0 0
      %2899 = vmatpush1.bf16.msra.mxu0 %v2823
      %2900 = vmatprep.subr.bf16.mxu0 0
      %2901 = vmatpush1.bf16.msra.mxu0 %v2826
      %2902 = vmatprep.subr.bf16.mxu0 0
      %2903 = vmatpush1.bf16.msra.mxu0 %v2829
      %2904 = vmatprep.subr.bf16.mxu0 0
      %2905 = vmatpush1.bf16.msra.mxu0 %v2832
      %2906 = vmatprep.subr.bf16.mxu0 0
      %2907 = vmatpush1.bf16.msra.mxu0 %v2835
      %2908 = vmatprep.subr.bf16.mxu0 0
      %2909 = vmatpush1.bf16.msra.mxu0 0
      %2910 = vmatprep.subr.bf16.mxu0 0
      %2911 = vmatpush1.bf16.msra.mxu0 0
      %2912 = vmatprep.subr.bf16.mxu0 0
      %2913 = vmatpush1.bf16.msra.mxu0 0
      %2914 = vmatprep.subr.bf16.mxu0 0
      %2915 = vmatpush1.bf16.msra.mxu0 0
      %2916 = vmatprep.subr.bf16.mxu0 0
      %2917 = vmatpush1.bf16.msra.mxu0 0
      %2918 = vmatprep.subr.bf16.mxu0 0
      %2919 = vmatpush1.bf16.msra.mxu0 0
      %2920 = vmatprep.subr.bf16.mxu0 0
      %2921 = vmatpush1.bf16.msra.mxu0 0
      %2922 = vmatprep.subr.bf16.mxu0 0
      %2923 = vmatpush1.bf16.msra.mxu0 0
      %2924 = vmatprep.subr.bf16.mxu0 0
      %2925 = vmatpush1.bf16.msra.mxu0 0
      %2926 = vmatprep.subr.bf16.mxu0 0
      %2927 = vmatpush1.bf16.msra.mxu0 0
      %2928 = vmatprep.subr.bf16.mxu0 0
      %2929 = vmatpush1.bf16.msra.mxu0 0
      %2930 = vmatprep.mubr.bf16.mxu0 0
      %2931 = vmatmul.mubr.bf16.gmra.mrb[0].mxu0 %v2853
      %v2932 = vpop.f32.mrb[0].mxu0
      %v2933 = vadd.f32 0.0, %v2932
      %v2934 = vpop.f32.mrb[0].mxu0
      %v2935 = vpop.f32.mrb[0].mxu0
      %v2936 = vadd.f32 0.0, %v2935
      %v2937 = vpop.f32.mrb[0].mxu0
      %2938 = vdwg.mxu0
      %v2941 = vunpack.c.l.b16 %v2751
      %v2942 = vunpack.c.l.b16 %v2752
      %v2943 = vpack.c.b16 %v2942, %v2941
      %2944 = vrot.lane.b32.xlu0 %v2731, 19
      %v2945 = vpop.permute.xlu0 %2944
      %2946 = vrot.lane.b32.xlu0 %v2732, 19
      %v2947 = vpop.permute.xlu0 %2946
      %2948 = vrot.lane.b32.xlu0 %v2733, 19
      %v2949 = vpop.permute.xlu0 %2948
      %2950 = vrot.lane.b32.xlu0 %v2734, 19
      %v2951 = vpop.permute.xlu0 %2950
      %2952 = vrot.lane.b32.xlu0 %v2735, 19
      %v2953 = vpop.permute.xlu0 %2952
      %2954 = vrot.lane.b32.xlu0 %v2736, 19
      %v2955 = vpop.permute.xlu0 %2954
      %2956 = vrot.lane.b32.xlu0 %v2737, 19
      %v2957 = vpop.permute.xlu0 %2956
      %2958 = vrot.lane.b32.xlu0 %v2738, 19
      %v2959 = vpop.permute.xlu0 %2958
      %2960 = vrot.lane.b32.xlu0 %v2739, 19
      %v2961 = vpop.permute.xlu0 %2960
      %2962 = vrot.lane.b32.xlu0 %v2740, 19
      %v2963 = vpop.permute.xlu0 %2962
      %2964 = vrot.lane.b32.xlu0 %v2741, 19
      %v2965 = vpop.permute.xlu0 %2964
      %2966 = vrot.lane.b32.xlu0 %v2742, 19
      %v2967 = vpop.permute.xlu0 %2966
      %2968 = vrot.lane.b32.xlu0 %v2743, 19
      %v2969 = vpop.permute.xlu0 %2968
      %2970 = vrot.lane.b32.xlu0 %v2744, 19
      %v2971 = vpop.permute.xlu0 %2970
      %2972 = vrot.lane.b32.xlu0 %v2745, 19
      %v2973 = vpop.permute.xlu0 %2972
      %2974 = vrot.lane.b32.xlu0 %v2746, 19
      %v2975 = vpop.permute.xlu0 %2974
      %2976 = vrot.lane.b32.xlu0 %v2747, 19
      %v2977 = vpop.permute.xlu0 %2976
      %2978 = vrot.lane.b32.xlu0 %v2748, 19
      %v2979 = vpop.permute.xlu0 %2978
      %2980 = vrot.lane.b32.xlu0 %v2749, 19
      %v2981 = vpop.permute.xlu0 %2980
      %2982 = vrot.lane.b32.xlu0 %v2750, 19
      %v2983 = vpop.permute.xlu0 %2982
      %v2984 = vsel %vm1380, %v2945, %v2947
      %v2985 = vsel %vm1380, %v2947, %v2949
      %v2986 = vsel %vm1380, %v2949, %v2951
      %v2987 = vsel %vm1380, %v2953, %v2955
      %v2988 = vsel %vm1380, %v2955, %v2957
      %v2989 = vsel %vm1380, %v2957, %v2959
      %v2990 = vsel %vm1380, %v2961, %v2963
      %v2991 = vsel %vm1380, %v2963, %v2965
      %v2992 = vsel %vm1380, %v2965, %v2967
      %v2993 = vsel %vm1380, %v2969, %v2971
      %v2994 = vsel %vm1380, %v2971, %v2973
      %v2995 = vsel %vm1380, %v2973, %v2975
      %v2996 = vsel %vm1380, %v2977, %v2979
      %v2997 = vsel %vm1380, %v2979, %v2981
      %v2998 = vsel %vm1380, %v2981, %v2983
      %v3015 = vsel %vm2851, %v2943, 0
      %3017 = vmatprep.subr.bf16.mxu0 %v2985
      %3018 = vmatpush1.bf16.msra.mxu0 %v2984
      %3019 = vmatprep.subr.bf16.mxu0 %v2988
      %3020 = vmatpush1.bf16.msra.mxu0 %v2987
      %3021 = vmatprep.subr.bf16.mxu0 %v2991
      %3022 = vmatpush1.bf16.msra.mxu0 %v2990
      %3023 = vmatprep.subr.bf16.mxu0 %v2994
      %3024 = vmatpush1.bf16.msra.mxu0 %v2993
      %3025 = vmatprep.subr.bf16.mxu0 %v2997
      %3026 = vmatpush1.bf16.msra.mxu0 %v2996
      %3027 = vmatprep.subr.bf16.mxu0 0
      %3028 = vmatpush1.bf16.msra.mxu0 0
      %3029 = vmatprep.subr.bf16.mxu0 0
      %3030 = vmatpush1.bf16.msra.mxu0 0
      %3031 = vmatprep.subr.bf16.mxu0 0
      %3032 = vmatpush1.bf16.msra.mxu0 0
      %3033 = vmatprep.subr.bf16.mxu0 0
      %3034 = vmatpush1.bf16.msra.mxu0 0
      %3035 = vmatprep.subr.bf16.mxu0 0
      %3036 = vmatpush1.bf16.msra.mxu0 0
      %3037 = vmatprep.subr.bf16.mxu0 0
      %3038 = vmatpush1.bf16.msra.mxu0 0
      %3039 = vmatprep.subr.bf16.mxu0 0
      %3040 = vmatpush1.bf16.msra.mxu0 0
      %3041 = vmatprep.subr.bf16.mxu0 0
      %3042 = vmatpush1.bf16.msra.mxu0 0
      %3043 = vmatprep.subr.bf16.mxu0 0
      %3044 = vmatpush1.bf16.msra.mxu0 0
      %3045 = vmatprep.subr.bf16.mxu0 0
      %3046 = vmatpush1.bf16.msra.mxu0 0
      %3047 = vmatprep.subr.bf16.mxu0 0
      %3048 = vmatpush1.bf16.msra.mxu0 0
      %3049 = vmatprep.mubr.bf16.mxu0 0
      %3050 = vmatmul.mubr.bf16.gmra.mrb[0].mxu0 %v3015
      %v3051 = vpop.f32.mrb[0].mxu0
      %v3052 = vadd.f32 %v2890, %v3051
      %v3053 = vpop.f32.mrb[0].mxu0
      %v3054 = vadd.f32 %v2892, %v3053
      %v3055 = vpop.f32.mrb[0].mxu0
      %v3056 = vadd.f32 %v2894, %v3055
      %v3057 = vpop.f32.mrb[0].mxu0
      %v3058 = vadd.f32 %v2896, %v3057
      %3059 = vdwg.mxu0
      %3060 = vmatprep.subr.bf16.mxu0 0
      %3061 = vmatpush1.bf16.msra.mxu0 %v2986
      %3062 = vmatprep.subr.bf16.mxu0 0
      %3063 = vmatpush1.bf16.msra.mxu0 %v2989
      %3064 = vmatprep.subr.bf16.mxu0 0
      %3065 = vmatpush1.bf16.msra.mxu0 %v2992
      %3066 = vmatprep.subr.bf16.mxu0 0
      %3067 = vmatpush1.bf16.msra.mxu0 %v2995
      %3068 = vmatprep.subr.bf16.mxu0 0
      %3069 = vmatpush1.bf16.msra.mxu0 %v2998
      %3070 = vmatprep.subr.bf16.mxu0 0
      %3071 = vmatpush1.bf16.msra.mxu0 0
      %3072 = vmatprep.subr.bf16.mxu0 0
      %3073 = vmatpush1.bf16.msra.mxu0 0
      %3074 = vmatprep.subr.bf16.mxu0 0
      %3075 = vmatpush1.bf16.msra.mxu0 0
      %3076 = vmatprep.subr.bf16.mxu0 0
      %3077 = vmatpush1.bf16.msra.mxu0 0
      %3078 = vmatprep.subr.bf16.mxu0 0
      %3079 = vmatpush1.bf16.msra.mxu0 0
      %3080 = vmatprep.subr.bf16.mxu0 0
      %3081 = vmatpush1.bf16.msra.mxu0 0
      %3082 = vmatprep.subr.bf16.mxu0 0
      %3083 = vmatpush1.bf16.msra.mxu0 0
      %3084 = vmatprep.subr.bf16.mxu0 0
      %3085 = vmatpush1.bf16.msra.mxu0 0
      %3086 = vmatprep.subr.bf16.mxu0 0
      %3087 = vmatpush1.bf16.msra.mxu0 0
      %3088 = vmatprep.subr.bf16.mxu0 0
      %3089 = vmatpush1.bf16.msra.mxu0 0
      %3090 = vmatprep.subr.bf16.mxu0 0
      %3091 = vmatpush1.bf16.msra.mxu0 0
      %3092 = vmatprep.mubr.bf16.mxu0 0
      %3093 = vmatmul.mubr.bf16.gmra.mrb[0].mxu0 %v3015
      %v3094 = vpop.f32.mrb[0].mxu0
      %v3095 = vadd.f32 %v2933, %v3094
      %v3096 = vpop.f32.mrb[0].mxu0
      %v3097 = vpop.f32.mrb[0].mxu0
      %v3098 = vadd.f32 %v2936, %v3097
      %v3099 = vpop.f32.mrb[0].mxu0
      %3100 = vdwg.mxu0
      %s3101 = scalar_lea.vmem %s3, 16
      %v3102 = vld [vmem:[%s3101] sm:$0xf]
      %v3103 = vld [vmem:[%s3101 + $0x4] sm:$0xf]
      %v3106 = vunpack.c.l.b16 %v3102
      %v3107 = vunpack.c.l.b16 %v3103
      %v3108 = vpack.c.b16 %v3107, %v3106
      %3109 = vrot.lane.b32.xlu0 %v2731, 17
      %v3110 = vpop.permute.xlu0 %3109
      %3111 = vrot.lane.b32.xlu0 %v2732, 17
      %v3112 = vpop.permute.xlu0 %3111
      %3113 = vrot.lane.b32.xlu0 %v2733, 17
      %v3114 = vpop.permute.xlu0 %3113
      %3115 = vrot.lane.b32.xlu0 %v2734, 17
      %v3116 = vpop.permute.xlu0 %3115
      %3117 = vrot.lane.b32.xlu0 %v2735, 17
      %v3118 = vpop.permute.xlu0 %3117
      %3119 = vrot.lane.b32.xlu0 %v2736, 17
      %v3120 = vpop.permute.xlu0 %3119
      %3121 = vrot.lane.b32.xlu0 %v2737, 17
      %v3122 = vpop.permute.xlu0 %3121
      %3123 = vrot.lane.b32.xlu0 %v2738, 17
      %v3124 = vpop.permute.xlu0 %3123
      %3125 = vrot.lane.b32.xlu0 %v2739, 17
      %v3126 = vpop.permute.xlu0 %3125
      %3127 = vrot.lane.b32.xlu0 %v2740, 17
      %v3128 = vpop.permute.xlu0 %3127
      %3129 = vrot.lane.b32.xlu0 %v2741, 17
      %v3130 = vpop.permute.xlu0 %3129
      %3131 = vrot.lane.b32.xlu0 %v2742, 17
      %v3132 = vpop.permute.xlu0 %3131
      %3133 = vrot.lane.b32.xlu0 %v2743, 17
      %v3134 = vpop.permute.xlu0 %3133
      %3135 = vrot.lane.b32.xlu0 %v2744, 17
      %v3136 = vpop.permute.xlu0 %3135
      %3137 = vrot.lane.b32.xlu0 %v2745, 17
      %v3138 = vpop.permute.xlu0 %3137
      %3139 = vrot.lane.b32.xlu0 %v2746, 17
      %v3140 = vpop.permute.xlu0 %3139
      %3141 = vrot.lane.b32.xlu0 %v2747, 17
      %v3142 = vpop.permute.xlu0 %3141
      %3143 = vrot.lane.b32.xlu0 %v2748, 17
      %v3144 = vpop.permute.xlu0 %3143
      %3145 = vrot.lane.b32.xlu0 %v2749, 17
      %v3146 = vpop.permute.xlu0 %3145
      %3147 = vrot.lane.b32.xlu0 %v2750, 17
      %v3148 = vpop.permute.xlu0 %3147
      %v3149 = vsel %vm1532, %v3110, %v3112
      %v3150 = vsel %vm1532, %v3112, %v3114
      %v3151 = vsel %vm1532, %v3114, %v3116
      %v3152 = vsel %vm1532, %v3118, %v3120
      %v3153 = vsel %vm1532, %v3120, %v3122
      %v3154 = vsel %vm1532, %v3122, %v3124
      %v3155 = vsel %vm1532, %v3126, %v3128
      %v3156 = vsel %vm1532, %v3128, %v3130
      %v3157 = vsel %vm1532, %v3130, %v3132
      %v3158 = vsel %vm1532, %v3134, %v3136
      %v3159 = vsel %vm1532, %v3136, %v3138
      %v3160 = vsel %vm1532, %v3138, %v3140
      %v3161 = vsel %vm1532, %v3142, %v3144
      %v3162 = vsel %vm1532, %v3144, %v3146
      %v3163 = vsel %vm1532, %v3146, %v3148
      %v3180 = vsel %vm2851, %v3108, 0
      %3182 = vmatprep.subr.bf16.mxu0 %v3150
      %3183 = vmatpush1.bf16.msra.mxu0 %v3149
      %3184 = vmatprep.subr.bf16.mxu0 %v3153
      %3185 = vmatpush1.bf16.msra.mxu0 %v3152
      %3186 = vmatprep.subr.bf16.mxu0 %v3156
      %3187 = vmatpush1.bf16.msra.mxu0 %v3155
      %3188 = vmatprep.subr.bf16.mxu0 %v3159
      %3189 = vmatpush1.bf16.msra.mxu0 %v3158
      %3190 = vmatprep.subr.bf16.mxu0 %v3162
      %3191 = vmatpush1.bf16.msra.mxu0 %v3161
      %3192 = vmatprep.subr.bf16.mxu0 0
      %3193 = vmatpush1.bf16.msra.mxu0 0
      %3194 = vmatprep.subr.bf16.mxu0 0
      %3195 = vmatpush1.bf16.msra.mxu0 0
      %3196 = vmatprep.subr.bf16.mxu0 0
      %3197 = vmatpush1.bf16.msra.mxu0 0
      %3198 = vmatprep.subr.bf16.mxu0 0
      %3199 = vmatpush1.bf16.msra.mxu0 0
      %3200 = vmatprep.subr.bf16.mxu0 0
      %3201 = vmatpush1.bf16.msra.mxu0 0
      %3202 = vmatprep.subr.bf16.mxu0 0
      %3203 = vmatpush1.bf16.msra.mxu0 0
      %3204 = vmatprep.subr.bf16.mxu0 0
      %3205 = vmatpush1.bf16.msra.mxu0 0
      %3206 = vmatprep.subr.bf16.mxu0 0
      %3207 = vmatpush1.bf16.msra.mxu0 0
      %3208 = vmatprep.subr.bf16.mxu0 0
      %3209 = vmatpush1.bf16.msra.mxu0 0
      %3210 = vmatprep.subr.bf16.mxu0 0
      %3211 = vmatpush1.bf16.msra.mxu0 0
      %3212 = vmatprep.subr.bf16.mxu0 0
      %3213 = vmatpush1.bf16.msra.mxu0 0
      %3214 = vmatprep.mubr.bf16.mxu0 0
      %3215 = vmatmul.mubr.bf16.gmra.mrb[0].mxu0 %v3180
      %v3216 = vpop.f32.mrb[0].mxu0
      %v3217 = vadd.f32 0.0, %v3216
      %v3218 = vpop.f32.mrb[0].mxu0
      %v3219 = vadd.f32 0.0, %v3218
      %v3220 = vpop.f32.mrb[0].mxu0
      %v3221 = vadd.f32 0.0, %v3220
      %v3222 = vpop.f32.mrb[0].mxu0
      %v3223 = vadd.f32 0.0, %v3222
      %3224 = vdwg.mxu0
      %3225 = vmatprep.subr.bf16.mxu0 0
      %3226 = vmatpush1.bf16.msra.mxu0 %v3151
      %3227 = vmatprep.subr.bf16.mxu0 0
      %3228 = vmatpush1.bf16.msra.mxu0 %v3154
      %3229 = vmatprep.subr.bf16.mxu0 0
      %3230 = vmatpush1.bf16.msra.mxu0 %v3157
      %3231 = vmatprep.subr.bf16.mxu0 0
      %3232 = vmatpush1.bf16.msra.mxu0 %v3160
      %3233 = vmatprep.subr.bf16.mxu0 0
      %3234 = vmatpush1.bf16.msra.mxu0 %v3163
      %3235 = vmatprep.subr.bf16.mxu0 0
      %3236 = vmatpush1.bf16.msra.mxu0 0
      %3237 = vmatprep.subr.bf16.mxu0 0
      %3238 = vmatpush1.bf16.msra.mxu0 0
      %3239 = vmatprep.subr.bf16.mxu0 0
      %3240 = vmatpush1.bf16.msra.mxu0 0
      %3241 = vmatprep.subr.bf16.mxu0 0
      %3242 = vmatpush1.bf16.msra.mxu0 0
      %3243 = vmatprep.subr.bf16.mxu0 0
      %3244 = vmatpush1.bf16.msra.mxu0 0
      %3245 = vmatprep.subr.bf16.mxu0 0
      %3246 = vmatpush1.bf16.msra.mxu0 0
      %3247 = vmatprep.subr.bf16.mxu0 0
      %3248 = vmatpush1.bf16.msra.mxu0 0
      %3249 = vmatprep.subr.bf16.mxu0 0
      %3250 = vmatpush1.bf16.msra.mxu0 0
      %3251 = vmatprep.subr.bf16.mxu0 0
      %3252 = vmatpush1.bf16.msra.mxu0 0
      %3253 = vmatprep.subr.bf16.mxu0 0
      %3254 = vmatpush1.bf16.msra.mxu0 0
      %3255 = vmatprep.subr.bf16.mxu0 0
      %3256 = vmatpush1.bf16.msra.mxu0 0
      %3257 = vmatprep.mubr.bf16.mxu0 0
      %3258 = vmatmul.mubr.bf16.gmra.mrb[0].mxu0 %v3180
      %v3259 = vpop.f32.mrb[0].mxu0
      %v3260 = vadd.f32 0.0, %v3259
      %v3261 = vpop.f32.mrb[0].mxu0
      %v3262 = vpop.f32.mrb[0].mxu0
      %v3263 = vadd.f32 0.0, %v3262
      %v3264 = vpop.f32.mrb[0].mxu0
      %3265 = vdwg.mxu0
      %v3266 = vadd.f32 %v3052, %v3217
      %v3267 = vadd.f32 %v3054, %v3219
      %v3268 = vadd.f32 %v3095, %v3260
      %v3269 = vadd.f32 %v3056, %v3221
      %v3270 = vadd.f32 %v3058, %v3223
      %v3271 = vadd.f32 %v3098, %v3263
      %s3272 = scalar_lea.vmem %s3, 24
      %v3273 = vld [vmem:[%s3272] sm:$0xf]
      %v3274 = vld [vmem:[%s3272 + $0x4] sm:$0xf]
      %v3277 = vunpack.c.l.b16 %v3273
      %v3278 = vunpack.c.l.b16 %v3274
      %v3279 = vpack.c.b16 %v3278, %v3277
      %3280 = vrot.lane.b32.xlu0 %v2731, 1
      %v3281 = vpop.permute.xlu0 %3280
      %3282 = vrot.lane.b32.xlu0 %v2732, 1
      %v3283 = vpop.permute.xlu0 %3282
      %3284 = vrot.lane.b32.xlu0 %v2733, 1
      %v3285 = vpop.permute.xlu0 %3284
      %3286 = vrot.lane.b32.xlu0 %v2734, 1
      %v3287 = vpop.permute.xlu0 %3286
      %3288 = vrot.lane.b32.xlu0 %v2735, 1
      %v3289 = vpop.permute.xlu0 %3288
      %3290 = vrot.lane.b32.xlu0 %v2736, 1
      %v3291 = vpop.permute.xlu0 %3290
      %3292 = vrot.lane.b32.xlu0 %v2737, 1
      %v3293 = vpop.permute.xlu0 %3292
      %3294 = vrot.lane.b32.xlu0 %v2738, 1
      %v3295 = vpop.permute.xlu0 %3294
      %3296 = vrot.lane.b32.xlu0 %v2739, 1
      %v3297 = vpop.permute.xlu0 %3296
      %3298 = vrot.lane.b32.xlu0 %v2740, 1
      %v3299 = vpop.permute.xlu0 %3298
      %3300 = vrot.lane.b32.xlu0 %v2741, 1
      %v3301 = vpop.permute.xlu0 %3300
      %3302 = vrot.lane.b32.xlu0 %v2742, 1
      %v3303 = vpop.permute.xlu0 %3302
      %3304 = vrot.lane.b32.xlu0 %v2743, 1
      %v3305 = vpop.permute.xlu0 %3304
      %3306 = vrot.lane.b32.xlu0 %v2744, 1
      %v3307 = vpop.permute.xlu0 %3306
      %3308 = vrot.lane.b32.xlu0 %v2745, 1
      %v3309 = vpop.permute.xlu0 %3308
      %3310 = vrot.lane.b32.xlu0 %v2746, 1
      %v3311 = vpop.permute.xlu0 %3310
      %3312 = vrot.lane.b32.xlu0 %v2747, 1
      %v3313 = vpop.permute.xlu0 %3312
      %3314 = vrot.lane.b32.xlu0 %v2748, 1
      %v3315 = vpop.permute.xlu0 %3314
      %3316 = vrot.lane.b32.xlu0 %v2749, 1
      %v3317 = vpop.permute.xlu0 %3316
      %3318 = vrot.lane.b32.xlu0 %v2750, 1
      %v3319 = vpop.permute.xlu0 %3318
      %v3320 = vsel %vm1690, %v3281, %v3283
      %v3321 = vsel %vm1690, %v3283, %v3285
      %v3322 = vsel %vm1690, %v3285, %v3287
      %v3323 = vsel %vm1690, %v3289, %v3291
      %v3324 = vsel %vm1690, %v3291, %v3293
      %v3325 = vsel %vm1690, %v3293, %v3295
      %v3326 = vsel %vm1690, %v3297, %v3299
      %v3327 = vsel %vm1690, %v3299, %v3301
      %v3328 = vsel %vm1690, %v3301, %v3303
      %v3329 = vsel %vm1690, %v3305, %v3307
      %v3330 = vsel %vm1690, %v3307, %v3309
      %v3331 = vsel %vm1690, %v3309, %v3311
      %v3332 = vsel %vm1690, %v3313, %v3315
      %v3333 = vsel %vm1690, %v3315, %v3317
      %v3334 = vsel %vm1690, %v3317, %v3319
      %v3351 = vsel %vm2851, %v3279, 0
      %3353 = vmatprep.subr.bf16.mxu0 %v3321
      %3354 = vmatpush1.bf16.msra.mxu0 %v3320
      %3355 = vmatprep.subr.bf16.mxu0 %v3324
      %3356 = vmatpush1.bf16.msra.mxu0 %v3323
      %3357 = vmatprep.subr.bf16.mxu0 %v3327
      %3358 = vmatpush1.bf16.msra.mxu0 %v3326
      %3359 = vmatprep.subr.bf16.mxu0 %v3330
      %3360 = vmatpush1.bf16.msra.mxu0 %v3329
      %3361 = vmatprep.subr.bf16.mxu0 %v3333
      %3362 = vmatpush1.bf16.msra.mxu0 %v3332
      %3363 = vmatprep.subr.bf16.mxu0 0
      %3364 = vmatpush1.bf16.msra.mxu0 0
      %3365 = vmatprep.subr.bf16.mxu0 0
      %3366 = vmatpush1.bf16.msra.mxu0 0
      %3367 = vmatprep.subr.bf16.mxu0 0
      %3368 = vmatpush1.bf16.msra.mxu0 0
      %3369 = vmatprep.subr.bf16.mxu0 0
      %3370 = vmatpush1.bf16.msra.mxu0 0
      %3371 = vmatprep.subr.bf16.mxu0 0
      %3372 = vmatpush1.bf16.msra.mxu0 0
      %3373 = vmatprep.subr.bf16.mxu0 0
      %3374 = vmatpush1.bf16.msra.mxu0 0
      %3375 = vmatprep.subr.bf16.mxu0 0
      %3376 = vmatpush1.bf16.msra.mxu0 0
      %3377 = vmatprep.subr.bf16.mxu0 0
      %3378 = vmatpush1.bf16.msra.mxu0 0
      %3379 = vmatprep.subr.bf16.mxu0 0
      %3380 = vmatpush1.bf16.msra.mxu0 0
      %3381 = vmatprep.subr.bf16.mxu0 0
      %3382 = vmatpush1.bf16.msra.mxu0 0
      %3383 = vmatprep.subr.bf16.mxu0 0
      %3384 = vmatpush1.bf16.msra.mxu0 0
      %3385 = vmatprep.mubr.bf16.mxu0 0
      %3386 = vmatmul.mubr.bf16.gmra.mrb[0].mxu0 %v3351
      %v3387 = vpop.f32.mrb[0].mxu0
      %v3388 = vadd.f32 0.0, %v3387
      %v3389 = vpop.f32.mrb[0].mxu0
      %v3390 = vadd.f32 0.0, %v3389
      %v3391 = vpop.f32.mrb[0].mxu0
      %v3392 = vadd.f32 0.0, %v3391
      %v3393 = vpop.f32.mrb[0].mxu0
      %v3394 = vadd.f32 0.0, %v3393
      %3395 = vdwg.mxu0
      %3396 = vmatprep.subr.bf16.mxu0 0
      %3397 = vmatpush1.bf16.msra.mxu0 %v3322
      %3398 = vmatprep.subr.bf16.mxu0 0
      %3399 = vmatpush1.bf16.msra.mxu0 %v3325
      %3400 = vmatprep.subr.bf16.mxu0 0
      %3401 = vmatpush1.bf16.msra.mxu0 %v3328
      %3402 = vmatprep.subr.bf16.mxu0 0
      %3403 = vmatpush1.bf16.msra.mxu0 %v3331
      %3404 = vmatprep.subr.bf16.mxu0 0
      %3405 = vmatpush1.bf16.msra.mxu0 %v3334
      %3406 = vmatprep.subr.bf16.mxu0 0
      %3407 = vmatpush1.bf16.msra.mxu0 0
      %3408 = vmatprep.subr.bf16.mxu0 0
      %3409 = vmatpush1.bf16.msra.mxu0 0
      %3410 = vmatprep.subr.bf16.mxu0 0
      %3411 = vmatpush1.bf16.msra.mxu0 0
      %3412 = vmatprep.subr.bf16.mxu0 0
      %3413 = vmatpush1.bf16.msra.mxu0 0
      %3414 = vmatprep.subr.bf16.mxu0 0
      %3415 = vmatpush1.bf16.msra.mxu0 0
      %3416 = vmatprep.subr.bf16.mxu0 0
      %3417 = vmatpush1.bf16.msra.mxu0 0
      %3418 = vmatprep.subr.bf16.mxu0 0
      %3419 = vmatpush1.bf16.msra.mxu0 0
      %3420 = vmatprep.subr.bf16.mxu0 0
      %3421 = vmatpush1.bf16.msra.mxu0 0
      %3422 = vmatprep.subr.bf16.mxu0 0
      %3423 = vmatpush1.bf16.msra.mxu0 0
      %3424 = vmatprep.subr.bf16.mxu0 0
      %3425 = vmatpush1.bf16.msra.mxu0 0
      %3426 = vmatprep.subr.bf16.mxu0 0
      %3427 = vmatpush1.bf16.msra.mxu0 0
      %3428 = vmatprep.mubr.bf16.mxu0 0
      %3429 = vmatmul.mubr.bf16.gmra.mrb[0].mxu0 %v3351
      %v3430 = vpop.f32.mrb[0].mxu0
      %v3431 = vadd.f32 0.0, %v3430
      %v3432 = vpop.f32.mrb[0].mxu0
      %v3433 = vpop.f32.mrb[0].mxu0
      %v3434 = vadd.f32 0.0, %v3433
      %v3435 = vpop.f32.mrb[0].mxu0
      %3436 = vdwg.mxu0
      %v3437 = vadd.f32 %v3266, %v3388
      %v3438 = vadd.f32 %v3267, %v3390
      %v3439 = vadd.f32 %v3268, %v3431
      %v3440 = vadd.f32 %v3269, %v3392
      %v3441 = vadd.f32 %v3270, %v3394
      %v3442 = vadd.f32 %v3271, %v3434
      %s3443 = scalar_lea.vmem %s3, 32
      %v3444 = vld [vmem:[%s3443] sm:$0xf]
      %v3445 = vld [vmem:[%s3443 + $0x4] sm:$0xf]
      %v3448 = vunpack.c.l.b16 %v3444
      %v3449 = vunpack.c.l.b16 %v3445
      %v3450 = vpack.c.b16 %v3449, %v3448
      %v3452 = vsel %vm2851, %v3450, 0
      %3454 = vmatprep.subr.bf16.mxu0 %v2733
      %3455 = vmatpush1.bf16.msra.mxu0 %v2732
      %3456 = vmatprep.subr.bf16.mxu0 %v2737
      %3457 = vmatpush1.bf16.msra.mxu0 %v2736
      %3458 = vmatprep.subr.bf16.mxu0 %v2741
      %3459 = vmatpush1.bf16.msra.mxu0 %v2740
      %3460 = vmatprep.subr.bf16.mxu0 %v2745
      %3461 = vmatpush1.bf16.msra.mxu0 %v2744
      %3462 = vmatprep.subr.bf16.mxu0 %v2749
      %3463 = vmatpush1.bf16.msra.mxu0 %v2748
      %3464 = vmatprep.subr.bf16.mxu0 0
      %3465 = vmatpush1.bf16.msra.mxu0 0
      %3466 = vmatprep.subr.bf16.mxu0 0
      %3467 = vmatpush1.bf16.msra.mxu0 0
      %3468 = vmatprep.subr.bf16.mxu0 0
      %3469 = vmatpush1.bf16.msra.mxu0 0
      %3470 = vmatprep.subr.bf16.mxu0 0
      %3471 = vmatpush1.bf16.msra.mxu0 0
      %3472 = vmatprep.subr.bf16.mxu0 0
      %3473 = vmatpush1.bf16.msra.mxu0 0
      %3474 = vmatprep.subr.bf16.mxu0 0
      %3475 = vmatpush1.bf16.msra.mxu0 0
      %3476 = vmatprep.subr.bf16.mxu0 0
      %3477 = vmatpush1.bf16.msra.mxu0 0
      %3478 = vmatprep.subr.bf16.mxu0 0
      %3479 = vmatpush1.bf16.msra.mxu0 0
      %3480 = vmatprep.subr.bf16.mxu0 0
      %3481 = vmatpush1.bf16.msra.mxu0 0
      %3482 = vmatprep.subr.bf16.mxu0 0
      %3483 = vmatpush1.bf16.msra.mxu0 0
      %3484 = vmatprep.subr.bf16.mxu0 0
      %3485 = vmatpush1.bf16.msra.mxu0 0
      %3486 = vmatprep.mubr.bf16.mxu0 0
      %3487 = vmatmul.mubr.bf16.gmra.mrb[0].mxu0 %v3452
      %v3488 = vpop.f32.mrb[0].mxu0
      %v3489 = vadd.f32 0.0, %v3488
      %v3490 = vpop.f32.mrb[0].mxu0
      %v3491 = vadd.f32 0.0, %v3490
      %v3492 = vpop.f32.mrb[0].mxu0
      %v3493 = vadd.f32 0.0, %v3492
      %v3494 = vpop.f32.mrb[0].mxu0
      %v3495 = vadd.f32 0.0, %v3494
      %3496 = vdwg.mxu0
      %3497 = vmatprep.subr.bf16.mxu0 0
      %3498 = vmatpush1.bf16.msra.mxu0 %v2734
      %3499 = vmatprep.subr.bf16.mxu0 0
      %3500 = vmatpush1.bf16.msra.mxu0 %v2738
      %3501 = vmatprep.subr.bf16.mxu0 0
      %3502 = vmatpush1.bf16.msra.mxu0 %v2742
      %3503 = vmatprep.subr.bf16.mxu0 0
      %3504 = vmatpush1.bf16.msra.mxu0 %v2746
      %3505 = vmatprep.subr.bf16.mxu0 0
      %3506 = vmatpush1.bf16.msra.mxu0 %v2750
      %3507 = vmatprep.subr.bf16.mxu0 0
      %3508 = vmatpush1.bf16.msra.mxu0 0
      %3509 = vmatprep.subr.bf16.mxu0 0
      %3510 = vmatpush1.bf16.msra.mxu0 0
      %3511 = vmatprep.subr.bf16.mxu0 0
      %3512 = vmatpush1.bf16.msra.mxu0 0
      %3513 = vmatprep.subr.bf16.mxu0 0
      %3514 = vmatpush1.bf16.msra.mxu0 0
      %3515 = vmatprep.subr.bf16.mxu0 0
      %3516 = vmatpush1.bf16.msra.mxu0 0
      %3517 = vmatprep.subr.bf16.mxu0 0
      %3518 = vmatpush1.bf16.msra.mxu0 0
      %3519 = vmatprep.subr.bf16.mxu0 0
      %3520 = vmatpush1.bf16.msra.mxu0 0
      %3521 = vmatprep.subr.bf16.mxu0 0
      %3522 = vmatpush1.bf16.msra.mxu0 0
      %3523 = vmatprep.subr.bf16.mxu0 0
      %3524 = vmatpush1.bf16.msra.mxu0 0
      %3525 = vmatprep.subr.bf16.mxu0 0
      %3526 = vmatpush1.bf16.msra.mxu0 0
      %3527 = vmatprep.subr.bf16.mxu0 0
      %3528 = vmatpush1.bf16.msra.mxu0 0
      %3529 = vmatprep.mubr.bf16.mxu0 0
      %3530 = vmatmul.mubr.bf16.gmra.mrb[0].mxu0 %v3452
      %v3531 = vpop.f32.mrb[0].mxu0
      %v3532 = vadd.f32 0.0, %v3531
      %v3533 = vpop.f32.mrb[0].mxu0
      %v3534 = vpop.f32.mrb[0].mxu0
      %v3535 = vadd.f32 0.0, %v3534
      %v3536 = vpop.f32.mrb[0].mxu0
      %3537 = vdwg.mxu0
      %v3538 = vadd.f32 %v3437, %v3489
      %v3539 = vadd.f32 %v3438, %v3491
      %v3540 = vadd.f32 %v3439, %v3532
      %v3541 = vadd.f32 %v3440, %v3493
      %v3542 = vadd.f32 %v3441, %v3495
      %v3543 = vadd.f32 %v3442, %v3535
      %s3544 = scalar_lea.vmem %s3, 40
      %v3545 = vld [vmem:[%s3544] sm:$0xf]
      %v3546 = vld [vmem:[%s3544 + $0x4] sm:$0xf]
      %v3549 = vunpack.c.l.b16 %v3545
      %v3550 = vunpack.c.l.b16 %v3546
      %v3551 = vpack.c.b16 %v3550, %v3549
      %3552 = vrot.lane.b32.xlu0 %v2732, 127
      %v3553 = vpop.permute.xlu0 %3552
      %3554 = vrot.lane.b32.xlu0 %v2733, 127
      %v3555 = vpop.permute.xlu0 %3554
      %3556 = vrot.lane.b32.xlu0 %v2734, 127
      %v3557 = vpop.permute.xlu0 %3556
      %3558 = vrot.lane.b32.xlu0 %v2736, 127
      %v3559 = vpop.permute.xlu0 %3558
      %3560 = vrot.lane.b32.xlu0 %v2737, 127
      %v3561 = vpop.permute.xlu0 %3560
      %3562 = vrot.lane.b32.xlu0 %v2738, 127
      %v3563 = vpop.permute.xlu0 %3562
      %3564 = vrot.lane.b32.xlu0 %v2740, 127
      %v3565 = vpop.permute.xlu0 %3564
      %3566 = vrot.lane.b32.xlu0 %v2741, 127
      %v3567 = vpop.permute.xlu0 %3566
      %3568 = vrot.lane.b32.xlu0 %v2742, 127
      %v3569 = vpop.permute.xlu0 %3568
      %3570 = vrot.lane.b32.xlu0 %v2744, 127
      %v3571 = vpop.permute.xlu0 %3570
      %3572 = vrot.lane.b32.xlu0 %v2745, 127
      %v3573 = vpop.permute.xlu0 %3572
      %3574 = vrot.lane.b32.xlu0 %v2746, 127
      %v3575 = vpop.permute.xlu0 %3574
      %3576 = vrot.lane.b32.xlu0 %v2748, 127
      %v3577 = vpop.permute.xlu0 %3576
      %3578 = vrot.lane.b32.xlu0 %v2749, 127
      %v3579 = vpop.permute.xlu0 %3578
      %3580 = vrot.lane.b32.xlu0 %v2750, 127
      %v3581 = vpop.permute.xlu0 %3580
      %v3582 = vsel %vm1941, %v3553, %v3555
      %v3583 = vsel %vm1941, %v3555, %v3557
      %v3584 = vsel %vm1941, %v3559, %v3561
      %v3585 = vsel %vm1941, %v3561, %v3563
      %v3586 = vsel %vm1941, %v3565, %v3567
      %v3587 = vsel %vm1941, %v3567, %v3569
      %v3588 = vsel %vm1941, %v3571, %v3573
      %v3589 = vsel %vm1941, %v3573, %v3575
      %v3590 = vsel %vm1941, %v3577, %v3579
      %v3591 = vsel %vm1941, %v3579, %v3581
      %v3608 = vsel %vm2851, %v3551, 0
      %3610 = vmatprep.subr.bf16.mxu0 %v3583
      %3611 = vmatpush1.bf16.msra.mxu0 %v3582
      %3612 = vmatprep.subr.bf16.mxu0 %v3585
      %3613 = vmatpush1.bf16.msra.mxu0 %v3584
      %3614 = vmatprep.subr.bf16.mxu0 %v3587
      %3615 = vmatpush1.bf16.msra.mxu0 %v3586
      %3616 = vmatprep.subr.bf16.mxu0 %v3589
      %3617 = vmatpush1.bf16.msra.mxu0 %v3588
      %3618 = vmatprep.subr.bf16.mxu0 %v3591
      %3619 = vmatpush1.bf16.msra.mxu0 %v3590
      %3620 = vmatprep.subr.bf16.mxu0 0
      %3621 = vmatpush1.bf16.msra.mxu0 0
      %3622 = vmatprep.subr.bf16.mxu0 0
      %3623 = vmatpush1.bf16.msra.mxu0 0
      %3624 = vmatprep.subr.bf16.mxu0 0
      %3625 = vmatpush1.bf16.msra.mxu0 0
      %3626 = vmatprep.subr.bf16.mxu0 0
      %3627 = vmatpush1.bf16.msra.mxu0 0
      %3628 = vmatprep.subr.bf16.mxu0 0
      %3629 = vmatpush1.bf16.msra.mxu0 0
      %3630 = vmatprep.subr.bf16.mxu0 0
      %3631 = vmatpush1.bf16.msra.mxu0 0
      %3632 = vmatprep.subr.bf16.mxu0 0
      %3633 = vmatpush1.bf16.msra.mxu0 0
      %3634 = vmatprep.subr.bf16.mxu0 0
      %3635 = vmatpush1.bf16.msra.mxu0 0
      %3636 = vmatprep.subr.bf16.mxu0 0
      %3637 = vmatpush1.bf16.msra.mxu0 0
      %3638 = vmatprep.subr.bf16.mxu0 0
      %3639 = vmatpush1.bf16.msra.mxu0 0
      %3640 = vmatprep.subr.bf16.mxu0 0
      %3641 = vmatpush1.bf16.msra.mxu0 0
      %3642 = vmatprep.mubr.bf16.mxu0 0
      %3643 = vmatmul.mubr.bf16.gmra.mrb[0].mxu0 %v3608
      %v3644 = vpop.f32.mrb[0].mxu0
      %v3645 = vadd.f32 0.0, %v3644
      %v3646 = vpop.f32.mrb[0].mxu0
      %v3647 = vadd.f32 0.0, %v3646
      %v3648 = vpop.f32.mrb[0].mxu0
      %v3649 = vadd.f32 0.0, %v3648
      %v3650 = vpop.f32.mrb[0].mxu0
      %v3651 = vadd.f32 0.0, %v3650
      %3652 = vdwg.mxu0
      %3653 = vmatprep.subr.bf16.mxu0 0
      %3654 = vmatpush1.bf16.msra.mxu0 %v3557
      %3655 = vmatprep.subr.bf16.mxu0 0
      %3656 = vmatpush1.bf16.msra.mxu0 %v3563
      %3657 = vmatprep.subr.bf16.mxu0 0
      %3658 = vmatpush1.bf16.msra.mxu0 %v3569
      %3659 = vmatprep.subr.bf16.mxu0 0
      %3660 = vmatpush1.bf16.msra.mxu0 %v3575
      %3661 = vmatprep.subr.bf16.mxu0 0
      %3662 = vmatpush1.bf16.msra.mxu0 %v3581
      %3663 = vmatprep.subr.bf16.mxu0 0
      %3664 = vmatpush1.bf16.msra.mxu0 0
      %3665 = vmatprep.subr.bf16.mxu0 0
      %3666 = vmatpush1.bf16.msra.mxu0 0
      %3667 = vmatprep.subr.bf16.mxu0 0
      %3668 = vmatpush1.bf16.msra.mxu0 0
      %3669 = vmatprep.subr.bf16.mxu0 0
      %3670 = vmatpush1.bf16.msra.mxu0 0
      %3671 = vmatprep.subr.bf16.mxu0 0
      %3672 = vmatpush1.bf16.msra.mxu0 0
      %3673 = vmatprep.subr.bf16.mxu0 0
      %3674 = vmatpush1.bf16.msra.mxu0 0
      %3675 = vmatprep.subr.bf16.mxu0 0
      %3676 = vmatpush1.bf16.msra.mxu0 0
      %3677 = vmatprep.subr.bf16.mxu0 0
      %3678 = vmatpush1.bf16.msra.mxu0 0
      %3679 = vmatprep.subr.bf16.mxu0 0
      %3680 = vmatpush1.bf16.msra.mxu0 0
      %3681 = vmatprep.subr.bf16.mxu0 0
      %3682 = vmatpush1.bf16.msra.mxu0 0
      %3683 = vmatprep.subr.bf16.mxu0 0
      %3684 = vmatpush1.bf16.msra.mxu0 0
      %3685 = vmatprep.mubr.bf16.mxu0 0
      %3686 = vmatmul.mubr.bf16.gmra.mrb[0].mxu0 %v3608
      %v3687 = vpop.f32.mrb[0].mxu0
      %v3688 = vadd.f32 0.0, %v3687
      %v3689 = vpop.f32.mrb[0].mxu0
      %v3690 = vpop.f32.mrb[0].mxu0
      %v3691 = vadd.f32 0.0, %v3690
      %v3692 = vpop.f32.mrb[0].mxu0
      %3693 = vdwg.mxu0
      %v3694 = vadd.f32 %v3538, %v3645
      %v3695 = vadd.f32 %v3539, %v3647
      %v3696 = vadd.f32 %v3540, %v3688
      %v3697 = vadd.f32 %v3541, %v3649
      %v3698 = vadd.f32 %v3542, %v3651
      %v3699 = vadd.f32 %v3543, %v3691
      %s3700 = scalar_lea.vmem %s3, 48
      %v3701 = vld [vmem:[%s3700] sm:$0xf]
      %v3702 = vld [vmem:[%s3700 + $0x4] sm:$0xf]
      %v3705 = vunpack.c.l.b16 %v3701
      %v3706 = vunpack.c.l.b16 %v3702
      %v3707 = vpack.c.b16 %v3706, %v3705
      %3708 = vrot.lane.b32.xlu0 %v2732, 111
      %v3709 = vpop.permute.xlu0 %3708
      %3710 = vrot.lane.b32.xlu0 %v2733, 111
      %v3711 = vpop.permute.xlu0 %3710
      %3712 = vrot.lane.b32.xlu0 %v2734, 111
      %v3713 = vpop.permute.xlu0 %3712
      %3714 = vrot.lane.b32.xlu0 %v2736, 111
      %v3715 = vpop.permute.xlu0 %3714
      %3716 = vrot.lane.b32.xlu0 %v2737, 111
      %v3717 = vpop.permute.xlu0 %3716
      %3718 = vrot.lane.b32.xlu0 %v2738, 111
      %v3719 = vpop.permute.xlu0 %3718
      %3720 = vrot.lane.b32.xlu0 %v2740, 111
      %v3721 = vpop.permute.xlu0 %3720
      %3722 = vrot.lane.b32.xlu0 %v2741, 111
      %v3723 = vpop.permute.xlu0 %3722
      %3724 = vrot.lane.b32.xlu0 %v2742, 111
      %v3725 = vpop.permute.xlu0 %3724
      %3726 = vrot.lane.b32.xlu0 %v2744, 111
      %v3727 = vpop.permute.xlu0 %3726
      %3728 = vrot.lane.b32.xlu0 %v2745, 111
      %v3729 = vpop.permute.xlu0 %3728
      %3730 = vrot.lane.b32.xlu0 %v2746, 111
      %v3731 = vpop.permute.xlu0 %3730
      %3732 = vrot.lane.b32.xlu0 %v2748, 111
      %v3733 = vpop.permute.xlu0 %3732
      %3734 = vrot.lane.b32.xlu0 %v2749, 111
      %v3735 = vpop.permute.xlu0 %3734
      %3736 = vrot.lane.b32.xlu0 %v2750, 111
      %v3737 = vpop.permute.xlu0 %3736
      %v3738 = vsel %vm2087, %v3709, %v3711
      %v3739 = vsel %vm2087, %v3711, %v3713
      %v3740 = vsel %vm2087, %v3715, %v3717
      %v3741 = vsel %vm2087, %v3717, %v3719
      %v3742 = vsel %vm2087, %v3721, %v3723
      %v3743 = vsel %vm2087, %v3723, %v3725
      %v3744 = vsel %vm2087, %v3727, %v3729
      %v3745 = vsel %vm2087, %v3729, %v3731
      %v3746 = vsel %vm2087, %v3733, %v3735
      %v3747 = vsel %vm2087, %v3735, %v3737
      %v3764 = vsel %vm2851, %v3707, 0
      %3766 = vmatprep.subr.bf16.mxu0 %v3739
      %3767 = vmatpush1.bf16.msra.mxu0 %v3738
      %3768 = vmatprep.subr.bf16.mxu0 %v3741
      %3769 = vmatpush1.bf16.msra.mxu0 %v3740
      %3770 = vmatprep.subr.bf16.mxu0 %v3743
      %3771 = vmatpush1.bf16.msra.mxu0 %v3742
      %3772 = vmatprep.subr.bf16.mxu0 %v3745
      %3773 = vmatpush1.bf16.msra.mxu0 %v3744
      %3774 = vmatprep.subr.bf16.mxu0 %v3747
      %3775 = vmatpush1.bf16.msra.mxu0 %v3746
      %3776 = vmatprep.subr.bf16.mxu0 0
      %3777 = vmatpush1.bf16.msra.mxu0 0
      %3778 = vmatprep.subr.bf16.mxu0 0
      %3779 = vmatpush1.bf16.msra.mxu0 0
      %3780 = vmatprep.subr.bf16.mxu0 0
      %3781 = vmatpush1.bf16.msra.mxu0 0
      %3782 = vmatprep.subr.bf16.mxu0 0
      %3783 = vmatpush1.bf16.msra.mxu0 0
      %3784 = vmatprep.subr.bf16.mxu0 0
      %3785 = vmatpush1.bf16.msra.mxu0 0
      %3786 = vmatprep.subr.bf16.mxu0 0
      %3787 = vmatpush1.bf16.msra.mxu0 0
      %3788 = vmatprep.subr.bf16.mxu0 0
      %3789 = vmatpush1.bf16.msra.mxu0 0
      %3790 = vmatprep.subr.bf16.mxu0 0
      %3791 = vmatpush1.bf16.msra.mxu0 0
      %3792 = vmatprep.subr.bf16.mxu0 0
      %3793 = vmatpush1.bf16.msra.mxu0 0
      %3794 = vmatprep.subr.bf16.mxu0 0
      %3795 = vmatpush1.bf16.msra.mxu0 0
      %3796 = vmatprep.subr.bf16.mxu0 0
      %3797 = vmatpush1.bf16.msra.mxu0 0
      %3798 = vmatprep.mubr.bf16.mxu0 0
      %3799 = vmatmul.mubr.bf16.gmra.mrb[0].mxu0 %v3764
      %v3800 = vpop.f32.mrb[0].mxu0
      %v3801 = vadd.f32 0.0, %v3800
      %v3802 = vpop.f32.mrb[0].mxu0
      %v3803 = vadd.f32 0.0, %v3802
      %v3804 = vpop.f32.mrb[0].mxu0
      %v3805 = vadd.f32 0.0, %v3804
      %v3806 = vpop.f32.mrb[0].mxu0
      %v3807 = vadd.f32 0.0, %v3806
      %3808 = vdwg.mxu0
      %3809 = vmatprep.subr.bf16.mxu0 0
      %3810 = vmatpush1.bf16.msra.mxu0 %v3713
      %3811 = vmatprep.subr.bf16.mxu0 0
      %3812 = vmatpush1.bf16.msra.mxu0 %v3719
      %3813 = vmatprep.subr.bf16.mxu0 0
      %3814 = vmatpush1.bf16.msra.mxu0 %v3725
      %3815 = vmatprep.subr.bf16.mxu0 0
      %3816 = vmatpush1.bf16.msra.mxu0 %v3731
      %3817 = vmatprep.subr.bf16.mxu0 0
      %3818 = vmatpush1.bf16.msra.mxu0 %v3737
      %3819 = vmatprep.subr.bf16.mxu0 0
      %3820 = vmatpush1.bf16.msra.mxu0 0
      %3821 = vmatprep.subr.bf16.mxu0 0
      %3822 = vmatpush1.bf16.msra.mxu0 0
      %3823 = vmatprep.subr.bf16.mxu0 0
      %3824 = vmatpush1.bf16.msra.mxu0 0
      %3825 = vmatprep.subr.bf16.mxu0 0
      %3826 = vmatpush1.bf16.msra.mxu0 0
      %3827 = vmatprep.subr.bf16.mxu0 0
      %3828 = vmatpush1.bf16.msra.mxu0 0
      %3829 = vmatprep.subr.bf16.mxu0 0
      %3830 = vmatpush1.bf16.msra.mxu0 0
      %3831 = vmatprep.subr.bf16.mxu0 0
      %3832 = vmatpush1.bf16.msra.mxu0 0
      %3833 = vmatprep.subr.bf16.mxu0 0
      %3834 = vmatpush1.bf16.msra.mxu0 0
      %3835 = vmatprep.subr.bf16.mxu0 0
      %3836 = vmatpush1.bf16.msra.mxu0 0
      %3837 = vmatprep.subr.bf16.mxu0 0
      %3838 = vmatpush1.bf16.msra.mxu0 0
      %3839 = vmatprep.subr.bf16.mxu0 0
      %3840 = vmatpush1.bf16.msra.mxu0 0
      %3841 = vmatprep.mubr.bf16.mxu0 0
      %3842 = vmatmul.mubr.bf16.gmra.mrb[0].mxu0 %v3764
      %v3843 = vpop.f32.mrb[0].mxu0
      %v3844 = vadd.f32 0.0, %v3843
      %v3845 = vpop.f32.mrb[0].mxu0
      %v3846 = vpop.f32.mrb[0].mxu0
      %v3847 = vadd.f32 0.0, %v3846
      %v3848 = vpop.f32.mrb[0].mxu0
      %3849 = vdwg.mxu0
      %v3850 = vadd.f32 %v3694, %v3801
      %v3851 = vadd.f32 %v3695, %v3803
      %v3852 = vadd.f32 %v3696, %v3844
      %v3853 = vadd.f32 %v3697, %v3805
      %v3854 = vadd.f32 %v3698, %v3807
      %v3855 = vadd.f32 %v3699, %v3847
      %s3856 = scalar_lea.vmem %s3, 56
      %v3857 = vld [vmem:[%s3856] sm:$0xf]
      %v3858 = vld [vmem:[%s3856 + $0x4] sm:$0xf]
      %v3861 = vunpack.c.l.b16 %v3857
      %v3862 = vunpack.c.l.b16 %v3858
      %v3863 = vpack.c.b16 %v3862, %v3861
      %3864 = vrot.lane.b32.xlu0 %v2732, 110
      %v3865 = vpop.permute.xlu0 %3864
      %3866 = vrot.lane.b32.xlu0 %v2733, 110
      %v3867 = vpop.permute.xlu0 %3866
      %3868 = vrot.lane.b32.xlu0 %v2734, 110
      %v3869 = vpop.permute.xlu0 %3868
      %3870 = vrot.lane.b32.xlu0 %v2736, 110
      %v3871 = vpop.permute.xlu0 %3870
      %3872 = vrot.lane.b32.xlu0 %v2737, 110
      %v3873 = vpop.permute.xlu0 %3872
      %3874 = vrot.lane.b32.xlu0 %v2738, 110
      %v3875 = vpop.permute.xlu0 %3874
      %3876 = vrot.lane.b32.xlu0 %v2740, 110
      %v3877 = vpop.permute.xlu0 %3876
      %3878 = vrot.lane.b32.xlu0 %v2741, 110
      %v3879 = vpop.permute.xlu0 %3878
      %3880 = vrot.lane.b32.xlu0 %v2742, 110
      %v3881 = vpop.permute.xlu0 %3880
      %3882 = vrot.lane.b32.xlu0 %v2744, 110
      %v3883 = vpop.permute.xlu0 %3882
      %3884 = vrot.lane.b32.xlu0 %v2745, 110
      %v3885 = vpop.permute.xlu0 %3884
      %3886 = vrot.lane.b32.xlu0 %v2746, 110
      %v3887 = vpop.permute.xlu0 %3886
      %3888 = vrot.lane.b32.xlu0 %v2748, 110
      %v3889 = vpop.permute.xlu0 %3888
      %3890 = vrot.lane.b32.xlu0 %v2749, 110
      %v3891 = vpop.permute.xlu0 %3890
      %3892 = vrot.lane.b32.xlu0 %v2750, 110
      %v3893 = vpop.permute.xlu0 %3892
      %v3894 = vsel %vm2233, %v3865, %v3867
      %v3895 = vsel %vm2233, %v3867, %v3869
      %v3896 = vsel %vm2233, %v3871, %v3873
      %v3897 = vsel %vm2233, %v3873, %v3875
      %v3898 = vsel %vm2233, %v3877, %v3879
      %v3899 = vsel %vm2233, %v3879, %v3881
      %v3900 = vsel %vm2233, %v3883, %v3885
      %v3901 = vsel %vm2233, %v3885, %v3887
      %v3902 = vsel %vm2233, %v3889, %v3891
      %v3903 = vsel %vm2233, %v3891, %v3893
      %v3920 = vsel %vm2851, %v3863, 0
      %3922 = vmatprep.subr.bf16.mxu0 %v3895
      %3923 = vmatpush1.bf16.msra.mxu0 %v3894
      %3924 = vmatprep.subr.bf16.mxu0 %v3897
      %3925 = vmatpush1.bf16.msra.mxu0 %v3896
      %3926 = vmatprep.subr.bf16.mxu0 %v3899
      %3927 = vmatpush1.bf16.msra.mxu0 %v3898
      %3928 = vmatprep.subr.bf16.mxu0 %v3901
      %3929 = vmatpush1.bf16.msra.mxu0 %v3900
      %3930 = vmatprep.subr.bf16.mxu0 %v3903
      %3931 = vmatpush1.bf16.msra.mxu0 %v3902
      %3932 = vmatprep.subr.bf16.mxu0 0
      %3933 = vmatpush1.bf16.msra.mxu0 0
      %3934 = vmatprep.subr.bf16.mxu0 0
      %3935 = vmatpush1.bf16.msra.mxu0 0
      %3936 = vmatprep.subr.bf16.mxu0 0
      %3937 = vmatpush1.bf16.msra.mxu0 0
      %3938 = vmatprep.subr.bf16.mxu0 0
      %3939 = vmatpush1.bf16.msra.mxu0 0
      %3940 = vmatprep.subr.bf16.mxu0 0
      %3941 = vmatpush1.bf16.msra.mxu0 0
      %3942 = vmatprep.subr.bf16.mxu0 0
      %3943 = vmatpush1.bf16.msra.mxu0 0
      %3944 = vmatprep.subr.bf16.mxu0 0
      %3945 = vmatpush1.bf16.msra.mxu0 0
      %3946 = vmatprep.subr.bf16.mxu0 0
      %3947 = vmatpush1.bf16.msra.mxu0 0
      %3948 = vmatprep.subr.bf16.mxu0 0
      %3949 = vmatpush1.bf16.msra.mxu0 0
      %3950 = vmatprep.subr.bf16.mxu0 0
      %3951 = vmatpush1.bf16.msra.mxu0 0
      %3952 = vmatprep.subr.bf16.mxu0 0
      %3953 = vmatpush1.bf16.msra.mxu0 0
      %3954 = vmatprep.mubr.bf16.mxu0 0
      %3955 = vmatmul.mubr.bf16.gmra.mrb[0].mxu0 %v3920
      %v3956 = vpop.f32.mrb[0].mxu0
      %v3957 = vadd.f32 0.0, %v3956
      %v3958 = vpop.f32.mrb[0].mxu0
      %v3959 = vadd.f32 0.0, %v3958
      %v3960 = vpop.f32.mrb[0].mxu0
      %v3961 = vadd.f32 0.0, %v3960
      %v3962 = vpop.f32.mrb[0].mxu0
      %v3963 = vadd.f32 0.0, %v3962
      %3964 = vdwg.mxu0
      %3965 = vmatprep.subr.bf16.mxu0 0
      %3966 = vmatpush1.bf16.msra.mxu0 %v3869
      %3967 = vmatprep.subr.bf16.mxu0 0
      %3968 = vmatpush1.bf16.msra.mxu0 %v3875
      %3969 = vmatprep.subr.bf16.mxu0 0
      %3970 = vmatpush1.bf16.msra.mxu0 %v3881
      %3971 = vmatprep.subr.bf16.mxu0 0
      %3972 = vmatpush1.bf16.msra.mxu0 %v3887
      %3973 = vmatprep.subr.bf16.mxu0 0
      %3974 = vmatpush1.bf16.msra.mxu0 %v3893
      %3975 = vmatprep.subr.bf16.mxu0 0
      %3976 = vmatpush1.bf16.msra.mxu0 0
      %3977 = vmatprep.subr.bf16.mxu0 0
      %3978 = vmatpush1.bf16.msra.mxu0 0
      %3979 = vmatprep.subr.bf16.mxu0 0
      %3980 = vmatpush1.bf16.msra.mxu0 0
      %3981 = vmatprep.subr.bf16.mxu0 0
      %3982 = vmatpush1.bf16.msra.mxu0 0
      %3983 = vmatprep.subr.bf16.mxu0 0
      %3984 = vmatpush1.bf16.msra.mxu0 0
      %3985 = vmatprep.subr.bf16.mxu0 0
      %3986 = vmatpush1.bf16.msra.mxu0 0
      %3987 = vmatprep.subr.bf16.mxu0 0
      %3988 = vmatpush1.bf16.msra.mxu0 0
      %3989 = vmatprep.subr.bf16.mxu0 0
      %3990 = vmatpush1.bf16.msra.mxu0 0
      %3991 = vmatprep.subr.bf16.mxu0 0
      %3992 = vmatpush1.bf16.msra.mxu0 0
      %3993 = vmatprep.subr.bf16.mxu0 0
      %3994 = vmatpush1.bf16.msra.mxu0 0
      %3995 = vmatprep.subr.bf16.mxu0 0
      %3996 = vmatpush1.bf16.msra.mxu0 0
      %3997 = vmatprep.mubr.bf16.mxu0 0
      %3998 = vmatmul.mubr.bf16.gmra.mrb[0].mxu0 %v3920
      %v3999 = vpop.f32.mrb[0].mxu0
      %v4000 = vadd.f32 0.0, %v3999
      %v4001 = vpop.f32.mrb[0].mxu0
      %v4002 = vpop.f32.mrb[0].mxu0
      %v4003 = vadd.f32 0.0, %v4002
      %v4004 = vpop.f32.mrb[0].mxu0
      %4005 = vdwg.mxu0
      %v4006 = vadd.f32 %v3850, %v3957
      %v4007 = vadd.f32 %v3851, %v3959
      %v4008 = vadd.f32 %v3852, %v4000
      %v4009 = vadd.f32 %v3853, %v3961
      %v4010 = vadd.f32 %v3854, %v3963
      %v4011 = vadd.f32 %v3855, %v4003
      %s4012 = scalar_lea.vmem %s3, 64
      %v4013 = vld [vmem:[%s4012] sm:$0xf]
      %v4014 = vld [vmem:[%s4012 + $0x4] sm:$0xf]
      %v4017 = vunpack.c.l.b16 %v4013
      %v4018 = vunpack.c.l.b16 %v4014
      %v4019 = vpack.c.b16 %v4018, %v4017
      %4020 = vrot.lane.b32.xlu0 %v2732, 109
      %v4021 = vpop.permute.xlu0 %4020
      %4022 = vrot.lane.b32.xlu0 %v2733, 109
      %v4023 = vpop.permute.xlu0 %4022
      %4024 = vrot.lane.b32.xlu0 %v2734, 109
      %v4025 = vpop.permute.xlu0 %4024
      %4026 = vrot.lane.b32.xlu0 %v2736, 109
      %v4027 = vpop.permute.xlu0 %4026
      %4028 = vrot.lane.b32.xlu0 %v2737, 109
      %v4029 = vpop.permute.xlu0 %4028
      %4030 = vrot.lane.b32.xlu0 %v2738, 109
      %v4031 = vpop.permute.xlu0 %4030
      %4032 = vrot.lane.b32.xlu0 %v2740, 109
      %v4033 = vpop.permute.xlu0 %4032
      %4034 = vrot.lane.b32.xlu0 %v2741, 109
      %v4035 = vpop.permute.xlu0 %4034
      %4036 = vrot.lane.b32.xlu0 %v2742, 109
      %v4037 = vpop.permute.xlu0 %4036
      %4038 = vrot.lane.b32.xlu0 %v2744, 109
      %v4039 = vpop.permute.xlu0 %4038
      %4040 = vrot.lane.b32.xlu0 %v2745, 109
      %v4041 = vpop.permute.xlu0 %4040
      %4042 = vrot.lane.b32.xlu0 %v2746, 109
      %v4043 = vpop.permute.xlu0 %4042
      %4044 = vrot.lane.b32.xlu0 %v2748, 109
      %v4045 = vpop.permute.xlu0 %4044
      %4046 = vrot.lane.b32.xlu0 %v2749, 109
      %v4047 = vpop.permute.xlu0 %4046
      %4048 = vrot.lane.b32.xlu0 %v2750, 109
      %v4049 = vpop.permute.xlu0 %4048
      %v4050 = vsel %vm2379, %v4021, %v4023
      %v4051 = vsel %vm2379, %v4023, %v4025
      %v4052 = vsel %vm2379, %v4027, %v4029
      %v4053 = vsel %vm2379, %v4029, %v4031
      %v4054 = vsel %vm2379, %v4033, %v4035
      %v4055 = vsel %vm2379, %v4035, %v4037
      %v4056 = vsel %vm2379, %v4039, %v4041
      %v4057 = vsel %vm2379, %v4041, %v4043
      %v4058 = vsel %vm2379, %v4045, %v4047
      %v4059 = vsel %vm2379, %v4047, %v4049
      %v4076 = vsel %vm2851, %v4019, 0
      %4078 = vmatprep.subr.bf16.mxu0 %v4051
      %4079 = vmatpush1.bf16.msra.mxu0 %v4050
      %4080 = vmatprep.subr.bf16.mxu0 %v4053
      %4081 = vmatpush1.bf16.msra.mxu0 %v4052
      %4082 = vmatprep.subr.bf16.mxu0 %v4055
      %4083 = vmatpush1.bf16.msra.mxu0 %v4054
      %4084 = vmatprep.subr.bf16.mxu0 %v4057
      %4085 = vmatpush1.bf16.msra.mxu0 %v4056
      %4086 = vmatprep.subr.bf16.mxu0 %v4059
      %4087 = vmatpush1.bf16.msra.mxu0 %v4058
      %4088 = vmatprep.subr.bf16.mxu0 0
      %4089 = vmatpush1.bf16.msra.mxu0 0
      %4090 = vmatprep.subr.bf16.mxu0 0
      %4091 = vmatpush1.bf16.msra.mxu0 0
      %4092 = vmatprep.subr.bf16.mxu0 0
      %4093 = vmatpush1.bf16.msra.mxu0 0
      %4094 = vmatprep.subr.bf16.mxu0 0
      %4095 = vmatpush1.bf16.msra.mxu0 0
      %4096 = vmatprep.subr.bf16.mxu0 0
      %4097 = vmatpush1.bf16.msra.mxu0 0
      %4098 = vmatprep.subr.bf16.mxu0 0
      %4099 = vmatpush1.bf16.msra.mxu0 0
      %4100 = vmatprep.subr.bf16.mxu0 0
      %4101 = vmatpush1.bf16.msra.mxu0 0
      %4102 = vmatprep.subr.bf16.mxu0 0
      %4103 = vmatpush1.bf16.msra.mxu0 0
      %4104 = vmatprep.subr.bf16.mxu0 0
      %4105 = vmatpush1.bf16.msra.mxu0 0
      %4106 = vmatprep.subr.bf16.mxu0 0
      %4107 = vmatpush1.bf16.msra.mxu0 0
      %4108 = vmatprep.subr.bf16.mxu0 0
      %4109 = vmatpush1.bf16.msra.mxu0 0
      %4110 = vmatprep.mubr.bf16.mxu0 0
      %4111 = vmatmul.mubr.bf16.gmra.mrb[0].mxu0 %v4076
      %v4112 = vpop.f32.mrb[0].mxu0
      %v4113 = vadd.f32 0.0, %v4112
      %v4114 = vpop.f32.mrb[0].mxu0
      %v4115 = vadd.f32 0.0, %v4114
      %v4116 = vpop.f32.mrb[0].mxu0
      %v4117 = vadd.f32 0.0, %v4116
      %v4118 = vpop.f32.mrb[0].mxu0
      %v4119 = vadd.f32 0.0, %v4118
      %4120 = vdwg.mxu0
      %4121 = vmatprep.subr.bf16.mxu0 0
      %4122 = vmatpush1.bf16.msra.mxu0 %v4025
      %4123 = vmatprep.subr.bf16.mxu0 0
      %4124 = vmatpush1.bf16.msra.mxu0 %v4031
      %4125 = vmatprep.subr.bf16.mxu0 0
      %4126 = vmatpush1.bf16.msra.mxu0 %v4037
      %4127 = vmatprep.subr.bf16.mxu0 0
      %4128 = vmatpush1.bf16.msra.mxu0 %v4043
      %4129 = vmatprep.subr.bf16.mxu0 0
      %4130 = vmatpush1.bf16.msra.mxu0 %v4049
      %4131 = vmatprep.subr.bf16.mxu0 0
      %4132 = vmatpush1.bf16.msra.mxu0 0
      %4133 = vmatprep.subr.bf16.mxu0 0
      %4134 = vmatpush1.bf16.msra.mxu0 0
      %4135 = vmatprep.subr.bf16.mxu0 0
      %4136 = vmatpush1.bf16.msra.mxu0 0
      %4137 = vmatprep.subr.bf16.mxu0 0
      %4138 = vmatpush1.bf16.msra.mxu0 0
      %4139 = vmatprep.subr.bf16.mxu0 0
      %4140 = vmatpush1.bf16.msra.mxu0 0
      %4141 = vmatprep.subr.bf16.mxu0 0
      %4142 = vmatpush1.bf16.msra.mxu0 0
      %4143 = vmatprep.subr.bf16.mxu0 0
      %4144 = vmatpush1.bf16.msra.mxu0 0
      %4145 = vmatprep.subr.bf16.mxu0 0
      %4146 = vmatpush1.bf16.msra.mxu0 0
      %4147 = vmatprep.subr.bf16.mxu0 0
      %4148 = vmatpush1.bf16.msra.mxu0 0
      %4149 = vmatprep.subr.bf16.mxu0 0
      %4150 = vmatpush1.bf16.msra.mxu0 0
      %4151 = vmatprep.subr.bf16.mxu0 0
      %4152 = vmatpush1.bf16.msra.mxu0 0
      %4153 = vmatprep.mubr.bf16.mxu0 0
      %4154 = vmatmul.mubr.bf16.gmra.mrb[0].mxu0 %v4076
      %v4155 = vpop.f32.mrb[0].mxu0
      %v4156 = vadd.f32 0.0, %v4155
      %v4157 = vpop.f32.mrb[0].mxu0
      %v4158 = vpop.f32.mrb[0].mxu0
      %v4159 = vadd.f32 0.0, %v4158
      %v4160 = vpop.f32.mrb[0].mxu0
      %4161 = vdwg.mxu0
      %v4162 = vadd.f32 %v4006, %v4113
      %v4163 = vadd.f32 %v4007, %v4115
      %v4164 = vadd.f32 %v4008, %v4156
      %v4165 = vadd.f32 %v4009, %v4117
      %v4166 = vadd.f32 %v4010, %v4119
      %v4167 = vadd.f32 %v4011, %v4159
      %v4168 = vmul.f32 %v4162, %v2497
      %v4169 = vmul.f32 %v4163, %v2501
      %v4170 = vmul.f32 %v4164, %v2505
      %v4171 = vmul.f32 %v4165, %v2497
      %v4172 = vmul.f32 %v4166, %v2501
      %v4173 = vmul.f32 %v4167, %v2505
      %v4174 = vadd.f32 %v4168, %v4169
      %v4175 = vsel %vm236, %v4170, 0.0
      %v4176 = vadd.f32 %v4174, %v4175
      %4177 = vadd.xlane.f32.xlu0 %v4176
      %v4178 = vpop.xlane.xlu0 %4177
      %v4179 = vadd.f32 %v4171, %v4172
      %v4180 = vsel %vm236, %v4173, 0.0
      %v4181 = vadd.f32 %v4179, %v4180
      %4182 = vadd.xlane.f32.xlu0 %v4181
      %v4183 = vpop.xlane.xlu0 %4182
      %v4184 = vmul.f32 %v4178, 0.00390625
      %v4185 = vmul.f32 %v4183, 0.00390625
      %v4186 = vmul.f32 %v4168, %v4168
      %v4187 = vmul.f32 %v4169, %v4169
      %v4188 = vmul.f32 %v4170, %v4170
      %v4189 = vmul.f32 %v4171, %v4171
      %v4190 = vmul.f32 %v4172, %v4172
      %v4191 = vmul.f32 %v4173, %v4173
      %v4192 = vadd.f32 %v4186, %v4187
      %v4193 = vsel %vm236, %v4188, 0.0
      %v4194 = vadd.f32 %v4192, %v4193
      %4195 = vadd.xlane.f32.xlu0 %v4194
      %v4196 = vpop.xlane.xlu0 %4195
      %v4197 = vadd.f32 %v4189, %v4190
      %v4198 = vsel %vm236, %v4191, 0.0
      %v4199 = vadd.f32 %v4197, %v4198
      %4200 = vadd.xlane.f32.xlu0 %v4199
      %v4201 = vpop.xlane.xlu0 %4200
      %v4202 = vmul.f32 %v4196, 0.00390625
      %v4203 = vmul.f32 %v4201, 0.00390625
      %v4204 = vmul.f32 %v4184, %v4184
      %v4205 = vmul.f32 %v4185, %v4185
      %v4206 = vsub.f32 %v4202, %v4204
      %v4207 = vsub.f32 %v4203, %v4205
      %v4208 = vmax.f32 %v4206, 0.0
      %v4209 = vmax.f32 %v4207, 0.0
      %v4210 = vsub.f32 %v4162, %v4184
      %v4211 = vsub.f32 %v4163, %v4184
      %v4212 = vsub.f32 %v4164, %v4184
      %v4213 = vsub.f32 %v4165, %v4185
      %v4214 = vsub.f32 %v4166, %v4185
      %v4215 = vsub.f32 %v4167, %v4185
      %v4216 = vadd.f32 %v4208, 1e-05
      %v4217 = vadd.f32 %v4209, 1e-05
      %v4218 = vrsqrt.pop %v4216
      %v4219 = vrsqrt.pop %v4217
      %v4220 = vmul.f32 %v4210, %v4218
      %v4221 = vmul.f32 %v4211, %v4218
      %v4222 = vmul.f32 %v4212, %v4218
      %v4223 = vmul.f32 %v4213, %v4219
      %v4224 = vmul.f32 %v4214, %v4219
      %v4225 = vmul.f32 %v4215, %v4219
      %v4226 = vmax.f32 %v4220, 0.0
      %v4227 = vmax.f32 %v4221, 0.0
      %v4228 = vmax.f32 %v4222, 0.0
      %v4229 = vmax.f32 %v4223, 0.0
      %v4230 = vmax.f32 %v4224, 0.0
      %v4231 = vmax.f32 %v4225, 0.0
      %v4232 = vmul.f32 %v4226, %v2497
      %v4233 = vmul.f32 %v4227, %v2501
      %v4234 = vmul.f32 %v4228, %v2505
      %v4235 = vmul.f32 %v4229, %v2497
      %v4236 = vmul.f32 %v4230, %v2501
      %v4237 = vmul.f32 %v4231, %v2505
      %v4238 = vpack.c.bf16 %v4235, %v4232
      %v4239 = vpack.c.bf16 %v4236, %v4233
      %v4240 = vpack.c.bf16 %v4237, %v4234
      %4241 = vst [vmem:[#allocation2 + $0xd0] sm:$0xff] %v4238
      %4242 = vst [vmem:[#allocation2 + $0xd8] sm:$0xff] %v4239
      %4243 = vst.msk [vmem:[#allocation2 + $0xe0] sm:$0xff] %vm236, %v4240
      %4246 = vrot.lane.b32.xlu0 %v4232, 109
      %v4247 = vpop.permute.xlu0 %4246
      %4248 = vrot.lane.b32.xlu0 %v4235, 109
      %v4249 = vpop.permute.xlu0 %4248
      %4252 = vst.msk [vmem:[%s224 + $0xa0] sm:$0xff] %vm338, %v4247
      %4253 = vst.msk [vmem:[%s224 + $0xb0] sm:$0xff] %vm338, %v4249
      %4254 = vrot.lane.b32.xlu0 %v4232, 107
      %v4255 = vpop.permute.xlu0 %4254
      %4256 = vrot.lane.b32.xlu0 %v4235, 107
      %v4257 = vpop.permute.xlu0 %4256
      %4260 = vst.msk [vmem:[%s224 + $0xa0] sm:$0xff] %vm387, %v4255
      %4261 = vst.msk [vmem:[%s224 + $0xb0] sm:$0xff] %vm387, %v4257
      %4262 = vrot.lane.b32.xlu0 %v4232, 105
      %v4263 = vpop.permute.xlu0 %4262
      %4264 = vrot.lane.b32.xlu0 %v4235, 105
      %v4265 = vpop.permute.xlu0 %4264
      %4268 = vst.msk [vmem:[%s224 + $0xa0] sm:$0xff] %vm436, %v4263
      %4269 = vst.msk [vmem:[%s224 + $0xb0] sm:$0xff] %vm436, %v4265
      %4270 = vrot.lane.b32.xlu0 %v4232, 103
      %v4271 = vpop.permute.xlu0 %4270
      %4272 = vrot.lane.b32.xlu0 %v4235, 103
      %v4273 = vpop.permute.xlu0 %4272
      %4276 = vst.msk [vmem:[%s224 + $0xa0] sm:$0xff] %vm485, %v4271
      %4277 = vst.msk [vmem:[%s224 + $0xb0] sm:$0xff] %vm485, %v4273
      %4278 = vrot.lane.b32.xlu0 %v4232, 101
      %v4279 = vpop.permute.xlu0 %4278
      %4280 = vrot.lane.b32.xlu0 %v4235, 101
      %v4281 = vpop.permute.xlu0 %4280
      %4284 = vst.msk [vmem:[%s224 + $0xa0] sm:$0xff] %vm534, %v4279
      %4285 = vst.msk [vmem:[%s224 + $0xb0] sm:$0xff] %vm534, %v4281
      %4286 = vrot.lane.b32.xlu0 %v4232, 99
      %v4287 = vpop.permute.xlu0 %4286
      %4288 = vrot.lane.b32.xlu0 %v4235, 99
      %v4289 = vpop.permute.xlu0 %4288
      %4292 = vst.msk [vmem:[%s224 + $0xa0] sm:$0xff] %vm583, %v4287
      %4293 = vst.msk [vmem:[%s224 + $0xb0] sm:$0xff] %vm583, %v4289
      %4296 = vrot.lane.b32.xlu0 %v4232, 97
      %v4297 = vpop.permute.xlu0 %4296
      %4298 = vrot.lane.b32.xlu0 %v4233, 97
      %v4299 = vpop.permute.xlu0 %4298
      %4300 = vrot.lane.b32.xlu0 %v4235, 97
      %v4301 = vpop.permute.xlu0 %4300
      %4302 = vrot.lane.b32.xlu0 %v4236, 97
      %v4303 = vpop.permute.xlu0 %4302
      %v4304 = vsel %vm656, %v4297, %v4299
      %v4305 = vsel %vm656, %v4301, %v4303
      %4308 = vst.msk [vmem:[%s224 + $0xa0] sm:$0xff] %vm673, %v4304
      %4309 = vst.msk [vmem:[%s224 + $0xb0] sm:$0xff] %vm673, %v4305
      %4310 = vrot.lane.b32.xlu0 %v4233, 95
      %v4311 = vpop.permute.xlu0 %4310
      %4312 = vrot.lane.b32.xlu0 %v4236, 95
      %v4313 = vpop.permute.xlu0 %4312
      %4316 = vst.msk [vmem:[%s224 + $0xa0] sm:$0xff] %vm722, %v4311
      %4317 = vst.msk [vmem:[%s224 + $0xb0] sm:$0xff] %vm722, %v4313
      %4318 = vrot.lane.b32.xlu0 %v4233, 93
      %v4319 = vpop.permute.xlu0 %4318
      %4320 = vrot.lane.b32.xlu0 %v4236, 93
      %v4321 = vpop.permute.xlu0 %4320
      %4324 = vst.msk [vmem:[%s224 + $0xa8] sm:$0xff] %vm338, %v4319
      %4325 = vst.msk [vmem:[%s224 + $0xb8] sm:$0xff] %vm338, %v4321
      %4326 = vrot.lane.b32.xlu0 %v4233, 91
      %v4327 = vpop.permute.xlu0 %4326
      %4328 = vrot.lane.b32.xlu0 %v4236, 91
      %v4329 = vpop.permute.xlu0 %4328
      %4332 = vst.msk [vmem:[%s224 + $0xa8] sm:$0xff] %vm387, %v4327
      %4333 = vst.msk [vmem:[%s224 + $0xb8] sm:$0xff] %vm387, %v4329
      %4334 = vrot.lane.b32.xlu0 %v4233, 89
      %v4335 = vpop.permute.xlu0 %4334
      %4336 = vrot.lane.b32.xlu0 %v4236, 89
      %v4337 = vpop.permute.xlu0 %4336
      %4340 = vst.msk [vmem:[%s224 + $0xa8] sm:$0xff] %vm436, %v4335
      %4341 = vst.msk [vmem:[%s224 + $0xb8] sm:$0xff] %vm436, %v4337
      %4342 = vrot.lane.b32.xlu0 %v4233, 87
      %v4343 = vpop.permute.xlu0 %4342
      %4344 = vrot.lane.b32.xlu0 %v4236, 87
      %v4345 = vpop.permute.xlu0 %4344
      %4348 = vst.msk [vmem:[%s224 + $0xa8] sm:$0xff] %vm485, %v4343
      %4349 = vst.msk [vmem:[%s224 + $0xb8] sm:$0xff] %vm485, %v4345
      %4350 = vrot.lane.b32.xlu0 %v4233, 85
      %v4351 = vpop.permute.xlu0 %4350
      %4352 = vrot.lane.b32.xlu0 %v4236, 85
      %v4353 = vpop.permute.xlu0 %4352
      %4356 = vst.msk [vmem:[%s224 + $0xa8] sm:$0xff] %vm534, %v4351
      %4357 = vst.msk [vmem:[%s224 + $0xb8] sm:$0xff] %vm534, %v4353
      %4360 = vrot.lane.b32.xlu0 %v4233, 83
      %v4361 = vpop.permute.xlu0 %4360
      %4362 = vrot.lane.b32.xlu0 %v4234, 83
      %v4363 = vpop.permute.xlu0 %4362
      %4364 = vrot.lane.b32.xlu0 %v4236, 83
      %v4365 = vpop.permute.xlu0 %4364
      %4366 = vrot.lane.b32.xlu0 %v4237, 83
      %v4367 = vpop.permute.xlu0 %4366
      %v4368 = vsel %vm1035, %v4361, %v4363
      %v4369 = vsel %vm1035, %v4365, %v4367
      %4372 = vst.msk [vmem:[%s224 + $0xa8] sm:$0xff] %vm583, %v4368
      %4373 = vst.msk [vmem:[%s224 + $0xb8] sm:$0xff] %vm583, %v4369
      %4374 = vrot.lane.b32.xlu0 %v4234, 81
      %v4375 = vpop.permute.xlu0 %4374
      %4376 = vrot.lane.b32.xlu0 %v4237, 81
      %v4377 = vpop.permute.xlu0 %4376
      %4380 = vst.msk [vmem:[%s224 + $0xa8] sm:$0xff] %vm673, %v4375
      %4381 = vst.msk [vmem:[%s224 + $0xb8] sm:$0xff] %vm673, %v4377
      %4382 = vrot.lane.b32.xlu0 %v4234, 79
      %v4383 = vpop.permute.xlu0 %4382
      %4384 = vrot.lane.b32.xlu0 %v4237, 79
      %v4385 = vpop.permute.xlu0 %4384
      %4388 = vst.msk [vmem:[%s224 + $0xa8] sm:$0xff] %vm722, %v4383
      %4389 = vst.msk [vmem:[%s224 + $0xb8] sm:$0xff] %vm722, %v4385
      %v4390 = vld [vmem:[#allocation2] sm:$0xff]
      %v4391 = vld [vmem:[#allocation2 + $0x8] sm:$0xff]
      %v4392 = vld [vmem:[#allocation2 + $0x10] sm:$0xff]
      %v4393 = vld [vmem:[#allocation2 + $0x18] sm:$0xff]
      %v4394 = vld [vmem:[#allocation2 + $0x28] sm:$0xff]
      %v4395 = vld [vmem:[#allocation2 + $0x30] sm:$0xff]
      %v4396 = vld [vmem:[#allocation2 + $0x38] sm:$0xff]
      %v4397 = vld [vmem:[#allocation2 + $0x40] sm:$0xff]
      %v4398 = vld [vmem:[#allocation2 + $0x50] sm:$0xff]
      %v4399 = vld [vmem:[#allocation2 + $0x58] sm:$0xff]
      %v4400 = vld [vmem:[#allocation2 + $0x60] sm:$0xff]
      %v4401 = vld [vmem:[#allocation2 + $0x68] sm:$0xff]
      %v4402 = vld [vmem:[#allocation2 + $0x78] sm:$0xff]
      %v4403 = vld [vmem:[#allocation2 + $0x80] sm:$0xff]
      %v4404 = vld [vmem:[#allocation2 + $0x88] sm:$0xff]
      %v4405 = vld [vmem:[#allocation2 + $0x90] sm:$0xff]
      %v4406 = vld [vmem:[#allocation2 + $0xa0] sm:$0xff]
      %v4407 = vld [vmem:[#allocation2 + $0xa8] sm:$0xff]
      %v4408 = vld [vmem:[#allocation2 + $0xb0] sm:$0xff]
      %v4409 = vld [vmem:[#allocation2 + $0xb8] sm:$0xff]
      %v4410 = vld [vmem:[#allocation2 + $0xc8] sm:$0xff]
      %v4411 = vld [vmem:[#allocation2 + $0xd0] sm:$0xff]
      %v4412 = vld [vmem:[#allocation2 + $0xd8] sm:$0xff]
      %v4413 = vld [vmem:[#allocation2 + $0xe0] sm:$0xff]
      %v4414 = vld [vmem:[%s4] sm:$0xf]
      %v4415 = vld [vmem:[%s4 + $0x4] sm:$0xf]
      %s4416 = scalar_lea.vmem %s4, 8
      %v4417 = vld [vmem:[%s4416] sm:$0xf]
      %v4418 = vld [vmem:[%s4416 + $0x4] sm:$0xf]
      %v4421 = vunpack.c.l.b16 %v4417
      %v4422 = vunpack.c.l.b16 %v4418
      %v4423 = vpack.c.b16 %v4422, %v4421
      %4448 = vrot.lane.b32.xlu0 %v4390, 18
      %v4449 = vpop.permute.xlu0 %4448
      %4450 = vrot.lane.b32.xlu0 %v4391, 18
      %v4451 = vpop.permute.xlu0 %4450
      %4452 = vrot.lane.b32.xlu0 %v4392, 18
      %v4453 = vpop.permute.xlu0 %4452
      %4454 = vrot.lane.b32.xlu0 %v4393, 18
      %v4455 = vpop.permute.xlu0 %4454
      %4456 = vrot.lane.b32.xlu0 %v4394, 18
      %v4457 = vpop.permute.xlu0 %4456
      %4458 = vrot.lane.b32.xlu0 %v4395, 18
      %v4459 = vpop.permute.xlu0 %4458
      %4460 = vrot.lane.b32.xlu0 %v4396, 18
      %v4461 = vpop.permute.xlu0 %4460
      %4462 = vrot.lane.b32.xlu0 %v4397, 18
      %v4463 = vpop.permute.xlu0 %4462
      %4464 = vrot.lane.b32.xlu0 %v4398, 18
      %v4465 = vpop.permute.xlu0 %4464
      %4466 = vrot.lane.b32.xlu0 %v4399, 18
      %v4467 = vpop.permute.xlu0 %4466
      %4468 = vrot.lane.b32.xlu0 %v4400, 18
      %v4469 = vpop.permute.xlu0 %4468
      %4470 = vrot.lane.b32.xlu0 %v4401, 18
      %v4471 = vpop.permute.xlu0 %4470
      %4472 = vrot.lane.b32.xlu0 %v4402, 18
      %v4473 = vpop.permute.xlu0 %4472
      %4474 = vrot.lane.b32.xlu0 %v4403, 18
      %v4475 = vpop.permute.xlu0 %4474
      %4476 = vrot.lane.b32.xlu0 %v4404, 18
      %v4477 = vpop.permute.xlu0 %4476
      %4478 = vrot.lane.b32.xlu0 %v4405, 18
      %v4479 = vpop.permute.xlu0 %4478
      %4480 = vrot.lane.b32.xlu0 %v4406, 18
      %v4481 = vpop.permute.xlu0 %4480
      %4482 = vrot.lane.b32.xlu0 %v4407, 18
      %v4483 = vpop.permute.xlu0 %4482
      %4484 = vrot.lane.b32.xlu0 %v4408, 18
      %v4485 = vpop.permute.xlu0 %4484
      %4486 = vrot.lane.b32.xlu0 %v4409, 18
      %v4487 = vpop.permute.xlu0 %4486
      %4488 = vrot.lane.b32.xlu0 %v4410, 18
      %v4489 = vpop.permute.xlu0 %4488
      %4490 = vrot.lane.b32.xlu0 %v4411, 18
      %v4491 = vpop.permute.xlu0 %4490
      %4492 = vrot.lane.b32.xlu0 %v4412, 18
      %v4493 = vpop.permute.xlu0 %4492
      %4494 = vrot.lane.b32.xlu0 %v4413, 18
      %v4495 = vpop.permute.xlu0 %4494
      %v4496 = vsel %vm1230, %v4449, %v4451
      %v4497 = vsel %vm1230, %v4451, %v4453
      %v4498 = vsel %vm1230, %v4453, %v4455
      %v4499 = vsel %vm1230, %v4457, %v4459
      %v4500 = vsel %vm1230, %v4459, %v4461
      %v4501 = vsel %vm1230, %v4461, %v4463
      %v4502 = vsel %vm1230, %v4465, %v4467
      %v4503 = vsel %vm1230, %v4467, %v4469
      %v4504 = vsel %vm1230, %v4469, %v4471
      %v4505 = vsel %vm1230, %v4473, %v4475
      %v4506 = vsel %vm1230, %v4475, %v4477
      %v4507 = vsel %vm1230, %v4477, %v4479
      %v4508 = vsel %vm1230, %v4481, %v4483
      %v4509 = vsel %vm1230, %v4483, %v4485
      %v4510 = vsel %vm1230, %v4485, %v4487
      %v4511 = vsel %vm1230, %v4489, %v4491
      %v4512 = vsel %vm1230, %v4491, %v4493
      %v4513 = vsel %vm1230, %v4493, %v4495
      %vm4532 = vcmask 785408
      %v4534 = vsel %vm4532, %v4423, 0
      %4536 = vmatprep.subr.bf16.mxu0 %v4497
      %4537 = vmatpush1.bf16.msra.mxu0 %v4496
      %4538 = vmatprep.subr.bf16.mxu0 %v4500
      %4539 = vmatpush1.bf16.msra.mxu0 %v4499
      %4540 = vmatprep.subr.bf16.mxu0 %v4503
      %4541 = vmatpush1.bf16.msra.mxu0 %v4502
      %4542 = vmatprep.subr.bf16.mxu0 %v4506
      %4543 = vmatpush1.bf16.msra.mxu0 %v4505
      %4544 = vmatprep.subr.bf16.mxu0 %v4509
      %4545 = vmatpush1.bf16.msra.mxu0 %v4508
      %4546 = vmatprep.subr.bf16.mxu0 %v4512
      %4547 = vmatpush1.bf16.msra.mxu0 %v4511
      %4548 = vmatprep.subr.bf16.mxu0 0
      %4549 = vmatpush1.bf16.msra.mxu0 0
      %4550 = vmatprep.subr.bf16.mxu0 0
      %4551 = vmatpush1.bf16.msra.mxu0 0
      %4552 = vmatprep.subr.bf16.mxu0 0
      %4553 = vmatpush1.bf16.msra.mxu0 0
      %4554 = vmatprep.subr.bf16.mxu0 0
      %4555 = vmatpush1.bf16.msra.mxu0 0
      %4556 = vmatprep.subr.bf16.mxu0 0
      %4557 = vmatpush1.bf16.msra.mxu0 0
      %4558 = vmatprep.subr.bf16.mxu0 0
      %4559 = vmatpush1.bf16.msra.mxu0 0
      %4560 = vmatprep.subr.bf16.mxu0 0
      %4561 = vmatpush1.bf16.msra.mxu0 0
      %4562 = vmatprep.subr.bf16.mxu0 0
      %4563 = vmatpush1.bf16.msra.mxu0 0
      %4564 = vmatprep.subr.bf16.mxu0 0
      %4565 = vmatpush1.bf16.msra.mxu0 0
      %4566 = vmatprep.subr.bf16.mxu0 0
      %4567 = vmatpush1.bf16.msra.mxu0 0
      %4568 = vmatprep.mubr.bf16.mxu0 0
      %4569 = vmatmul.mubr.bf16.gmra.mrb[0].mxu0 %v4534
      %v4570 = vpop.f32.mrb[0].mxu0
      %v4571 = vadd.f32 0.0, %v4570
      %v4572 = vpop.f32.mrb[0].mxu0
      %v4573 = vadd.f32 0.0, %v4572
      %v4574 = vpop.f32.mrb[0].mxu0
      %v4575 = vadd.f32 0.0, %v4574
      %v4576 = vpop.f32.mrb[0].mxu0
      %v4577 = vadd.f32 0.0, %v4576
      %4578 = vdwg.mxu0
      %4579 = vmatprep.subr.bf16.mxu0 0
      %4580 = vmatpush1.bf16.msra.mxu0 %v4498
      %4581 = vmatprep.subr.bf16.mxu0 0
      %4582 = vmatpush1.bf16.msra.mxu0 %v4501
      %4583 = vmatprep.subr.bf16.mxu0 0
      %4584 = vmatpush1.bf16.msra.mxu0 %v4504
      %4585 = vmatprep.subr.bf16.mxu0 0
      %4586 = vmatpush1.bf16.msra.mxu0 %v4507
      %4587 = vmatprep.subr.bf16.mxu0 0
      %4588 = vmatpush1.bf16.msra.mxu0 %v4510
      %4589 = vmatprep.subr.bf16.mxu0 0
      %4590 = vmatpush1.bf16.msra.mxu0 %v4513
      %4591 = vmatprep.subr.bf16.mxu0 0
      %4592 = vmatpush1.bf16.msra.mxu0 0
      %4593 = vmatprep.subr.bf16.mxu0 0
      %4594 = vmatpush1.bf16.msra.mxu0 0
      %4595 = vmatprep.subr.bf16.mxu0 0
      %4596 = vmatpush1.bf16.msra.mxu0 0
      %4597 = vmatprep.subr.bf16.mxu0 0
      %4598 = vmatpush1.bf16.msra.mxu0 0
      %4599 = vmatprep.subr.bf16.mxu0 0
      %4600 = vmatpush1.bf16.msra.mxu0 0
      %4601 = vmatprep.subr.bf16.mxu0 0
      %4602 = vmatpush1.bf16.msra.mxu0 0
      %4603 = vmatprep.subr.bf16.mxu0 0
      %4604 = vmatpush1.bf16.msra.mxu0 0
      %4605 = vmatprep.subr.bf16.mxu0 0
      %4606 = vmatpush1.bf16.msra.mxu0 0
      %4607 = vmatprep.subr.bf16.mxu0 0
      %4608 = vmatpush1.bf16.msra.mxu0 0
      %4609 = vmatprep.subr.bf16.mxu0 0
      %4610 = vmatpush1.bf16.msra.mxu0 0
      %4611 = vmatprep.mubr.bf16.mxu0 0
      %4612 = vmatmul.mubr.bf16.gmra.mrb[0].mxu0 %v4534
      %v4613 = vpop.f32.mrb[0].mxu0
      %v4614 = vadd.f32 0.0, %v4613
      %v4615 = vpop.f32.mrb[0].mxu0
      %v4616 = vpop.f32.mrb[0].mxu0
      %v4617 = vadd.f32 0.0, %v4616
      %v4618 = vpop.f32.mrb[0].mxu0
      %4619 = vdwg.mxu0
      %v4622 = vunpack.c.l.b16 %v4414
      %v4623 = vunpack.c.l.b16 %v4415
      %v4624 = vpack.c.b16 %v4623, %v4622
      %4625 = vrot.lane.b32.xlu0 %v4390, 19
      %v4626 = vpop.permute.xlu0 %4625
      %4627 = vrot.lane.b32.xlu0 %v4391, 19
      %v4628 = vpop.permute.xlu0 %4627
      %4629 = vrot.lane.b32.xlu0 %v4392, 19
      %v4630 = vpop.permute.xlu0 %4629
      %4631 = vrot.lane.b32.xlu0 %v4393, 19
      %v4632 = vpop.permute.xlu0 %4631
      %4633 = vrot.lane.b32.xlu0 %v4394, 19
      %v4634 = vpop.permute.xlu0 %4633
      %4635 = vrot.lane.b32.xlu0 %v4395, 19
      %v4636 = vpop.permute.xlu0 %4635
      %4637 = vrot.lane.b32.xlu0 %v4396, 19
      %v4638 = vpop.permute.xlu0 %4637
      %4639 = vrot.lane.b32.xlu0 %v4397, 19
      %v4640 = vpop.permute.xlu0 %4639
      %4641 = vrot.lane.b32.xlu0 %v4398, 19
      %v4642 = vpop.permute.xlu0 %4641
      %4643 = vrot.lane.b32.xlu0 %v4399, 19
      %v4644 = vpop.permute.xlu0 %4643
      %4645 = vrot.lane.b32.xlu0 %v4400, 19
      %v4646 = vpop.permute.xlu0 %4645
      %4647 = vrot.lane.b32.xlu0 %v4401, 19
      %v4648 = vpop.permute.xlu0 %4647
      %4649 = vrot.lane.b32.xlu0 %v4402, 19
      %v4650 = vpop.permute.xlu0 %4649
      %4651 = vrot.lane.b32.xlu0 %v4403, 19
      %v4652 = vpop.permute.xlu0 %4651
      %4653 = vrot.lane.b32.xlu0 %v4404, 19
      %v4654 = vpop.permute.xlu0 %4653
      %4655 = vrot.lane.b32.xlu0 %v4405, 19
      %v4656 = vpop.permute.xlu0 %4655
      %4657 = vrot.lane.b32.xlu0 %v4406, 19
      %v4658 = vpop.permute.xlu0 %4657
      %4659 = vrot.lane.b32.xlu0 %v4407, 19
      %v4660 = vpop.permute.xlu0 %4659
      %4661 = vrot.lane.b32.xlu0 %v4408, 19
      %v4662 = vpop.permute.xlu0 %4661
      %4663 = vrot.lane.b32.xlu0 %v4409, 19
      %v4664 = vpop.permute.xlu0 %4663
      %4665 = vrot.lane.b32.xlu0 %v4410, 19
      %v4666 = vpop.permute.xlu0 %4665
      %4667 = vrot.lane.b32.xlu0 %v4411, 19
      %v4668 = vpop.permute.xlu0 %4667
      %4669 = vrot.lane.b32.xlu0 %v4412, 19
      %v4670 = vpop.permute.xlu0 %4669
      %4671 = vrot.lane.b32.xlu0 %v4413, 19
      %v4672 = vpop.permute.xlu0 %4671
      %v4673 = vsel %vm1380, %v4626, %v4628
      %v4674 = vsel %vm1380, %v4628, %v4630
      %v4675 = vsel %vm1380, %v4630, %v4632
      %v4676 = vsel %vm1380, %v4634, %v4636
      %v4677 = vsel %vm1380, %v4636, %v4638
      %v4678 = vsel %vm1380, %v4638, %v4640
      %v4679 = vsel %vm1380, %v4642, %v4644
      %v4680 = vsel %vm1380, %v4644, %v4646
      %v4681 = vsel %vm1380, %v4646, %v4648
      %v4682 = vsel %vm1380, %v4650, %v4652
      %v4683 = vsel %vm1380, %v4652, %v4654
      %v4684 = vsel %vm1380, %v4654, %v4656
      %v4685 = vsel %vm1380, %v4658, %v4660
      %v4686 = vsel %vm1380, %v4660, %v4662
      %v4687 = vsel %vm1380, %v4662, %v4664
      %v4688 = vsel %vm1380, %v4666, %v4668
      %v4689 = vsel %vm1380, %v4668, %v4670
      %v4690 = vsel %vm1380, %v4670, %v4672
      %v4710 = vsel %vm4532, %v4624, 0
      %4712 = vmatprep.subr.bf16.mxu0 %v4674
      %4713 = vmatpush1.bf16.msra.mxu0 %v4673
      %4714 = vmatprep.subr.bf16.mxu0 %v4677
      %4715 = vmatpush1.bf16.msra.mxu0 %v4676
      %4716 = vmatprep.subr.bf16.mxu0 %v4680
      %4717 = vmatpush1.bf16.msra.mxu0 %v4679
      %4718 = vmatprep.subr.bf16.mxu0 %v4683
      %4719 = vmatpush1.bf16.msra.mxu0 %v4682
      %4720 = vmatprep.subr.bf16.mxu0 %v4686
      %4721 = vmatpush1.bf16.msra.mxu0 %v4685
      %4722 = vmatprep.subr.bf16.mxu0 %v4689
      %4723 = vmatpush1.bf16.msra.mxu0 %v4688
      %4724 = vmatprep.subr.bf16.mxu0 0
      %4725 = vmatpush1.bf16.msra.mxu0 0
      %4726 = vmatprep.subr.bf16.mxu0 0
      %4727 = vmatpush1.bf16.msra.mxu0 0
      %4728 = vmatprep.subr.bf16.mxu0 0
      %4729 = vmatpush1.bf16.msra.mxu0 0
      %4730 = vmatprep.subr.bf16.mxu0 0
      %4731 = vmatpush1.bf16.msra.mxu0 0
      %4732 = vmatprep.subr.bf16.mxu0 0
      %4733 = vmatpush1.bf16.msra.mxu0 0
      %4734 = vmatprep.subr.bf16.mxu0 0
      %4735 = vmatpush1.bf16.msra.mxu0 0
      %4736 = vmatprep.subr.bf16.mxu0 0
      %4737 = vmatpush1.bf16.msra.mxu0 0
      %4738 = vmatprep.subr.bf16.mxu0 0
      %4739 = vmatpush1.bf16.msra.mxu0 0
      %4740 = vmatprep.subr.bf16.mxu0 0
      %4741 = vmatpush1.bf16.msra.mxu0 0
      %4742 = vmatprep.subr.bf16.mxu0 0
      %4743 = vmatpush1.bf16.msra.mxu0 0
      %4744 = vmatprep.mubr.bf16.mxu0 0
      %4745 = vmatmul.mubr.bf16.gmra.mrb[0].mxu0 %v4710
      %v4746 = vpop.f32.mrb[0].mxu0
      %v4747 = vadd.f32 %v4571, %v4746
      %v4748 = vpop.f32.mrb[0].mxu0
      %v4749 = vadd.f32 %v4573, %v4748
      %v4750 = vpop.f32.mrb[0].mxu0
      %v4751 = vadd.f32 %v4575, %v4750
      %v4752 = vpop.f32.mrb[0].mxu0
      %v4753 = vadd.f32 %v4577, %v4752
      %4754 = vdwg.mxu0
      %4755 = vmatprep.subr.bf16.mxu0 0
      %4756 = vmatpush1.bf16.msra.mxu0 %v4675
      %4757 = vmatprep.subr.bf16.mxu0 0
      %4758 = vmatpush1.bf16.msra.mxu0 %v4678
      %4759 = vmatprep.subr.bf16.mxu0 0
      %4760 = vmatpush1.bf16.msra.mxu0 %v4681
      %4761 = vmatprep.subr.bf16.mxu0 0
      %4762 = vmatpush1.bf16.msra.mxu0 %v4684
      %4763 = vmatprep.subr.bf16.mxu0 0
      %4764 = vmatpush1.bf16.msra.mxu0 %v4687
      %4765 = vmatprep.subr.bf16.mxu0 0
      %4766 = vmatpush1.bf16.msra.mxu0 %v4690
      %4767 = vmatprep.subr.bf16.mxu0 0
      %4768 = vmatpush1.bf16.msra.mxu0 0
      %4769 = vmatprep.subr.bf16.mxu0 0
      %4770 = vmatpush1.bf16.msra.mxu0 0
      %4771 = vmatprep.subr.bf16.mxu0 0
      %4772 = vmatpush1.bf16.msra.mxu0 0
      %4773 = vmatprep.subr.bf16.mxu0 0
      %4774 = vmatpush1.bf16.msra.mxu0 0
      %4775 = vmatprep.subr.bf16.mxu0 0
      %4776 = vmatpush1.bf16.msra.mxu0 0
      %4777 = vmatprep.subr.bf16.mxu0 0
      %4778 = vmatpush1.bf16.msra.mxu0 0
      %4779 = vmatprep.subr.bf16.mxu0 0
      %4780 = vmatpush1.bf16.msra.mxu0 0
      %4781 = vmatprep.subr.bf16.mxu0 0
      %4782 = vmatpush1.bf16.msra.mxu0 0
      %4783 = vmatprep.subr.bf16.mxu0 0
      %4784 = vmatpush1.bf16.msra.mxu0 0
      %4785 = vmatprep.subr.bf16.mxu0 0
      %4786 = vmatpush1.bf16.msra.mxu0 0
      %4787 = vmatprep.mubr.bf16.mxu0 0
      %4788 = vmatmul.mubr.bf16.gmra.mrb[0].mxu0 %v4710
      %v4789 = vpop.f32.mrb[0].mxu0
      %v4790 = vadd.f32 %v4614, %v4789
      %v4791 = vpop.f32.mrb[0].mxu0
      %v4792 = vpop.f32.mrb[0].mxu0
      %v4793 = vadd.f32 %v4617, %v4792
      %v4794 = vpop.f32.mrb[0].mxu0
      %4795 = vdwg.mxu0
      %s4796 = scalar_lea.vmem %s4, 16
      %v4797 = vld [vmem:[%s4796] sm:$0xf]
      %v4798 = vld [vmem:[%s4796 + $0x4] sm:$0xf]
      %v4801 = vunpack.c.l.b16 %v4797
      %v4802 = vunpack.c.l.b16 %v4798
      %v4803 = vpack.c.b16 %v4802, %v4801
      %4804 = vrot.lane.b32.xlu0 %v4390, 17
      %v4805 = vpop.permute.xlu0 %4804
      %4806 = vrot.lane.b32.xlu0 %v4391, 17
      %v4807 = vpop.permute.xlu0 %4806
      %4808 = vrot.lane.b32.xlu0 %v4392, 17
      %v4809 = vpop.permute.xlu0 %4808
      %4810 = vrot.lane.b32.xlu0 %v4393, 17
      %v4811 = vpop.permute.xlu0 %4810
      %4812 = vrot.lane.b32.xlu0 %v4394, 17
      %v4813 = vpop.permute.xlu0 %4812
      %4814 = vrot.lane.b32.xlu0 %v4395, 17
      %v4815 = vpop.permute.xlu0 %4814
      %4816 = vrot.lane.b32.xlu0 %v4396, 17
      %v4817 = vpop.permute.xlu0 %4816
      %4818 = vrot.lane.b32.xlu0 %v4397, 17
      %v4819 = vpop.permute.xlu0 %4818
      %4820 = vrot.lane.b32.xlu0 %v4398, 17
      %v4821 = vpop.permute.xlu0 %4820
      %4822 = vrot.lane.b32.xlu0 %v4399, 17
      %v4823 = vpop.permute.xlu0 %4822
      %4824 = vrot.lane.b32.xlu0 %v4400, 17
      %v4825 = vpop.permute.xlu0 %4824
      %4826 = vrot.lane.b32.xlu0 %v4401, 17
      %v4827 = vpop.permute.xlu0 %4826
      %4828 = vrot.lane.b32.xlu0 %v4402, 17
      %v4829 = vpop.permute.xlu0 %4828
      %4830 = vrot.lane.b32.xlu0 %v4403, 17
      %v4831 = vpop.permute.xlu0 %4830
      %4832 = vrot.lane.b32.xlu0 %v4404, 17
      %v4833 = vpop.permute.xlu0 %4832
      %4834 = vrot.lane.b32.xlu0 %v4405, 17
      %v4835 = vpop.permute.xlu0 %4834
      %4836 = vrot.lane.b32.xlu0 %v4406, 17
      %v4837 = vpop.permute.xlu0 %4836
      %4838 = vrot.lane.b32.xlu0 %v4407, 17
      %v4839 = vpop.permute.xlu0 %4838
      %4840 = vrot.lane.b32.xlu0 %v4408, 17
      %v4841 = vpop.permute.xlu0 %4840
      %4842 = vrot.lane.b32.xlu0 %v4409, 17
      %v4843 = vpop.permute.xlu0 %4842
      %4844 = vrot.lane.b32.xlu0 %v4410, 17
      %v4845 = vpop.permute.xlu0 %4844
      %4846 = vrot.lane.b32.xlu0 %v4411, 17
      %v4847 = vpop.permute.xlu0 %4846
      %4848 = vrot.lane.b32.xlu0 %v4412, 17
      %v4849 = vpop.permute.xlu0 %4848
      %4850 = vrot.lane.b32.xlu0 %v4413, 17
      %v4851 = vpop.permute.xlu0 %4850
      %v4852 = vsel %vm1532, %v4805, %v4807
      %v4853 = vsel %vm1532, %v4807, %v4809
      %v4854 = vsel %vm1532, %v4809, %v4811
      %v4855 = vsel %vm1532, %v4813, %v4815
      %v4856 = vsel %vm1532, %v4815, %v4817
      %v4857 = vsel %vm1532, %v4817, %v4819
      %v4858 = vsel %vm1532, %v4821, %v4823
      %v4859 = vsel %vm1532, %v4823, %v4825
      %v4860 = vsel %vm1532, %v4825, %v4827
      %v4861 = vsel %vm1532, %v4829, %v4831
      %v4862 = vsel %vm1532, %v4831, %v4833
      %v4863 = vsel %vm1532, %v4833, %v4835
      %v4864 = vsel %vm1532, %v4837, %v4839
      %v4865 = vsel %vm1532, %v4839, %v4841
      %v4866 = vsel %vm1532, %v4841, %v4843
      %v4867 = vsel %vm1532, %v4845, %v4847
      %v4868 = vsel %vm1532, %v4847, %v4849
      %v4869 = vsel %vm1532, %v4849, %v4851
      %v4889 = vsel %vm4532, %v4803, 0
      %4891 = vmatprep.subr.bf16.mxu0 %v4853
      %4892 = vmatpush1.bf16.msra.mxu0 %v4852
      %4893 = vmatprep.subr.bf16.mxu0 %v4856
      %4894 = vmatpush1.bf16.msra.mxu0 %v4855
      %4895 = vmatprep.subr.bf16.mxu0 %v4859
      %4896 = vmatpush1.bf16.msra.mxu0 %v4858
      %4897 = vmatprep.subr.bf16.mxu0 %v4862
      %4898 = vmatpush1.bf16.msra.mxu0 %v4861
      %4899 = vmatprep.subr.bf16.mxu0 %v4865
      %4900 = vmatpush1.bf16.msra.mxu0 %v4864
      %4901 = vmatprep.subr.bf16.mxu0 %v4868
      %4902 = vmatpush1.bf16.msra.mxu0 %v4867
      %4903 = vmatprep.subr.bf16.mxu0 0
      %4904 = vmatpush1.bf16.msra.mxu0 0
      %4905 = vmatprep.subr.bf16.mxu0 0
      %4906 = vmatpush1.bf16.msra.mxu0 0
      %4907 = vmatprep.subr.bf16.mxu0 0
      %4908 = vmatpush1.bf16.msra.mxu0 0
      %4909 = vmatprep.subr.bf16.mxu0 0
      %4910 = vmatpush1.bf16.msra.mxu0 0
      %4911 = vmatprep.subr.bf16.mxu0 0
      %4912 = vmatpush1.bf16.msra.mxu0 0
      %4913 = vmatprep.subr.bf16.mxu0 0
      %4914 = vmatpush1.bf16.msra.mxu0 0
      %4915 = vmatprep.subr.bf16.mxu0 0
      %4916 = vmatpush1.bf16.msra.mxu0 0
      %4917 = vmatprep.subr.bf16.mxu0 0
      %4918 = vmatpush1.bf16.msra.mxu0 0
      %4919 = vmatprep.subr.bf16.mxu0 0
      %4920 = vmatpush1.bf16.msra.mxu0 0
      %4921 = vmatprep.subr.bf16.mxu0 0
      %4922 = vmatpush1.bf16.msra.mxu0 0
      %4923 = vmatprep.mubr.bf16.mxu0 0
      %4924 = vmatmul.mubr.bf16.gmra.mrb[0].mxu0 %v4889
      %v4925 = vpop.f32.mrb[0].mxu0
      %v4926 = vadd.f32 0.0, %v4925
      %v4927 = vpop.f32.mrb[0].mxu0
      %v4928 = vadd.f32 0.0, %v4927
      %v4929 = vpop.f32.mrb[0].mxu0
      %v4930 = vadd.f32 0.0, %v4929
      %v4931 = vpop.f32.mrb[0].mxu0
      %v4932 = vadd.f32 0.0, %v4931
      %4933 = vdwg.mxu0
      %4934 = vmatprep.subr.bf16.mxu0 0
      %4935 = vmatpush1.bf16.msra.mxu0 %v4854
      %4936 = vmatprep.subr.bf16.mxu0 0
      %4937 = vmatpush1.bf16.msra.mxu0 %v4857
      %4938 = vmatprep.subr.bf16.mxu0 0
      %4939 = vmatpush1.bf16.msra.mxu0 %v4860
      %4940 = vmatprep.subr.bf16.mxu0 0
      %4941 = vmatpush1.bf16.msra.mxu0 %v4863
      %4942 = vmatprep.subr.bf16.mxu0 0
      %4943 = vmatpush1.bf16.msra.mxu0 %v4866
      %4944 = vmatprep.subr.bf16.mxu0 0
      %4945 = vmatpush1.bf16.msra.mxu0 %v4869
      %4946 = vmatprep.subr.bf16.mxu0 0
      %4947 = vmatpush1.bf16.msra.mxu0 0
      %4948 = vmatprep.subr.bf16.mxu0 0
      %4949 = vmatpush1.bf16.msra.mxu0 0
      %4950 = vmatprep.subr.bf16.mxu0 0
      %4951 = vmatpush1.bf16.msra.mxu0 0
      %4952 = vmatprep.subr.bf16.mxu0 0
      %4953 = vmatpush1.bf16.msra.mxu0 0
      %4954 = vmatprep.subr.bf16.mxu0 0
      %4955 = vmatpush1.bf16.msra.mxu0 0
      %4956 = vmatprep.subr.bf16.mxu0 0
      %4957 = vmatpush1.bf16.msra.mxu0 0
      %4958 = vmatprep.subr.bf16.mxu0 0
      %4959 = vmatpush1.bf16.msra.mxu0 0
      %4960 = vmatprep.subr.bf16.mxu0 0
      %4961 = vmatpush1.bf16.msra.mxu0 0
      %4962 = vmatprep.subr.bf16.mxu0 0
      %4963 = vmatpush1.bf16.msra.mxu0 0
      %4964 = vmatprep.subr.bf16.mxu0 0
      %4965 = vmatpush1.bf16.msra.mxu0 0
      %4966 = vmatprep.mubr.bf16.mxu0 0
      %4967 = vmatmul.mubr.bf16.gmra.mrb[0].mxu0 %v4889
      %v4968 = vpop.f32.mrb[0].mxu0
      %v4969 = vadd.f32 0.0, %v4968
      %v4970 = vpop.f32.mrb[0].mxu0
      %v4971 = vpop.f32.mrb[0].mxu0
      %v4972 = vadd.f32 0.0, %v4971
      %v4973 = vpop.f32.mrb[0].mxu0
      %4974 = vdwg.mxu0
      %v4975 = vadd.f32 %v4747, %v4926
      %v4976 = vadd.f32 %v4749, %v4928
      %v4977 = vadd.f32 %v4790, %v4969
      %v4978 = vadd.f32 %v4751, %v4930
      %v4979 = vadd.f32 %v4753, %v4932
      %v4980 = vadd.f32 %v4793, %v4972
      %s4981 = scalar_lea.vmem %s4, 24
      %v4982 = vld [vmem:[%s4981] sm:$0xf]
      %v4983 = vld [vmem:[%s4981 + $0x4] sm:$0xf]
      %v4986 = vunpack.c.l.b16 %v4982
      %v4987 = vunpack.c.l.b16 %v4983
      %v4988 = vpack.c.b16 %v4987, %v4986
      %4989 = vrot.lane.b32.xlu0 %v4390, 1
      %v4990 = vpop.permute.xlu0 %4989
      %4991 = vrot.lane.b32.xlu0 %v4391, 1
      %v4992 = vpop.permute.xlu0 %4991
      %4993 = vrot.lane.b32.xlu0 %v4392, 1
      %v4994 = vpop.permute.xlu0 %4993
      %4995 = vrot.lane.b32.xlu0 %v4393, 1
      %v4996 = vpop.permute.xlu0 %4995
      %4997 = vrot.lane.b32.xlu0 %v4394, 1
      %v4998 = vpop.permute.xlu0 %4997
      %4999 = vrot.lane.b32.xlu0 %v4395, 1
      %v5000 = vpop.permute.xlu0 %4999
      %5001 = vrot.lane.b32.xlu0 %v4396, 1
      %v5002 = vpop.permute.xlu0 %5001
      %5003 = vrot.lane.b32.xlu0 %v4397, 1
      %v5004 = vpop.permute.xlu0 %5003
      %5005 = vrot.lane.b32.xlu0 %v4398, 1
      %v5006 = vpop.permute.xlu0 %5005
      %5007 = vrot.lane.b32.xlu0 %v4399, 1
      %v5008 = vpop.permute.xlu0 %5007
      %5009 = vrot.lane.b32.xlu0 %v4400, 1
      %v5010 = vpop.permute.xlu0 %5009
      %5011 = vrot.lane.b32.xlu0 %v4401, 1
      %v5012 = vpop.permute.xlu0 %5011
      %5013 = vrot.lane.b32.xlu0 %v4402, 1
      %v5014 = vpop.permute.xlu0 %5013
      %5015 = vrot.lane.b32.xlu0 %v4403, 1
      %v5016 = vpop.permute.xlu0 %5015
      %5017 = vrot.lane.b32.xlu0 %v4404, 1
      %v5018 = vpop.permute.xlu0 %5017
      %5019 = vrot.lane.b32.xlu0 %v4405, 1
      %v5020 = vpop.permute.xlu0 %5019
      %5021 = vrot.lane.b32.xlu0 %v4406, 1
      %v5022 = vpop.permute.xlu0 %5021
      %5023 = vrot.lane.b32.xlu0 %v4407, 1
      %v5024 = vpop.permute.xlu0 %5023
      %5025 = vrot.lane.b32.xlu0 %v4408, 1
      %v5026 = vpop.permute.xlu0 %5025
      %5027 = vrot.lane.b32.xlu0 %v4409, 1
      %v5028 = vpop.permute.xlu0 %5027
      %5029 = vrot.lane.b32.xlu0 %v4410, 1
      %v5030 = vpop.permute.xlu0 %5029
      %5031 = vrot.lane.b32.xlu0 %v4411, 1
      %v5032 = vpop.permute.xlu0 %5031
      %5033 = vrot.lane.b32.xlu0 %v4412, 1
      %v5034 = vpop.permute.xlu0 %5033
      %5035 = vrot.lane.b32.xlu0 %v4413, 1
      %v5036 = vpop.permute.xlu0 %5035
      %v5037 = vsel %vm1690, %v4990, %v4992
      %v5038 = vsel %vm1690, %v4992, %v4994
      %v5039 = vsel %vm1690, %v4994, %v4996
      %v5040 = vsel %vm1690, %v4998, %v5000
      %v5041 = vsel %vm1690, %v5000, %v5002
      %v5042 = vsel %vm1690, %v5002, %v5004
      %v5043 = vsel %vm1690, %v5006, %v5008
      %v5044 = vsel %vm1690, %v5008, %v5010
      %v5045 = vsel %vm1690, %v5010, %v5012
      %v5046 = vsel %vm1690, %v5014, %v5016
      %v5047 = vsel %vm1690, %v5016, %v5018
      %v5048 = vsel %vm1690, %v5018, %v5020
      %v5049 = vsel %vm1690, %v5022, %v5024
      %v5050 = vsel %vm1690, %v5024, %v5026
      %v5051 = vsel %vm1690, %v5026, %v5028
      %v5052 = vsel %vm1690, %v5030, %v5032
      %v5053 = vsel %vm1690, %v5032, %v5034
      %v5054 = vsel %vm1690, %v5034, %v5036
      %v5074 = vsel %vm4532, %v4988, 0
      %5076 = vmatprep.subr.bf16.mxu0 %v5038
      %5077 = vmatpush1.bf16.msra.mxu0 %v5037
      %5078 = vmatprep.subr.bf16.mxu0 %v5041
      %5079 = vmatpush1.bf16.msra.mxu0 %v5040
      %5080 = vmatprep.subr.bf16.mxu0 %v5044
      %5081 = vmatpush1.bf16.msra.mxu0 %v5043
      %5082 = vmatprep.subr.bf16.mxu0 %v5047
      %5083 = vmatpush1.bf16.msra.mxu0 %v5046
      %5084 = vmatprep.subr.bf16.mxu0 %v5050
      %5085 = vmatpush1.bf16.msra.mxu0 %v5049
      %5086 = vmatprep.subr.bf16.mxu0 %v5053
      %5087 = vmatpush1.bf16.msra.mxu0 %v5052
      %5088 = vmatprep.subr.bf16.mxu0 0
      %5089 = vmatpush1.bf16.msra.mxu0 0
      %5090 = vmatprep.subr.bf16.mxu0 0
      %5091 = vmatpush1.bf16.msra.mxu0 0
      %5092 = vmatprep.subr.bf16.mxu0 0
      %5093 = vmatpush1.bf16.msra.mxu0 0
      %5094 = vmatprep.subr.bf16.mxu0 0
      %5095 = vmatpush1.bf16.msra.mxu0 0
      %5096 = vmatprep.subr.bf16.mxu0 0
      %5097 = vmatpush1.bf16.msra.mxu0 0
      %5098 = vmatprep.subr.bf16.mxu0 0
      %5099 = vmatpush1.bf16.msra.mxu0 0
      %5100 = vmatprep.subr.bf16.mxu0 0
      %5101 = vmatpush1.bf16.msra.mxu0 0
      %5102 = vmatprep.subr.bf16.mxu0 0
      %5103 = vmatpush1.bf16.msra.mxu0 0
      %5104 = vmatprep.subr.bf16.mxu0 0
      %5105 = vmatpush1.bf16.msra.mxu0 0
      %5106 = vmatprep.subr.bf16.mxu0 0
      %5107 = vmatpush1.bf16.msra.mxu0 0
      %5108 = vmatprep.mubr.bf16.mxu0 0
      %5109 = vmatmul.mubr.bf16.gmra.mrb[0].mxu0 %v5074
      %v5110 = vpop.f32.mrb[0].mxu0
      %v5111 = vadd.f32 0.0, %v5110
      %v5112 = vpop.f32.mrb[0].mxu0
      %v5113 = vadd.f32 0.0, %v5112
      %v5114 = vpop.f32.mrb[0].mxu0
      %v5115 = vadd.f32 0.0, %v5114
      %v5116 = vpop.f32.mrb[0].mxu0
      %v5117 = vadd.f32 0.0, %v5116
      %5118 = vdwg.mxu0
      %5119 = vmatprep.subr.bf16.mxu0 0
      %5120 = vmatpush1.bf16.msra.mxu0 %v5039
      %5121 = vmatprep.subr.bf16.mxu0 0
      %5122 = vmatpush1.bf16.msra.mxu0 %v5042
      %5123 = vmatprep.subr.bf16.mxu0 0
      %5124 = vmatpush1.bf16.msra.mxu0 %v5045
      %5125 = vmatprep.subr.bf16.mxu0 0
      %5126 = vmatpush1.bf16.msra.mxu0 %v5048
      %5127 = vmatprep.subr.bf16.mxu0 0
      %5128 = vmatpush1.bf16.msra.mxu0 %v5051
      %5129 = vmatprep.subr.bf16.mxu0 0
      %5130 = vmatpush1.bf16.msra.mxu0 %v5054
      %5131 = vmatprep.subr.bf16.mxu0 0
      %5132 = vmatpush1.bf16.msra.mxu0 0
      %5133 = vmatprep.subr.bf16.mxu0 0
      %5134 = vmatpush1.bf16.msra.mxu0 0
      %5135 = vmatprep.subr.bf16.mxu0 0
      %5136 = vmatpush1.bf16.msra.mxu0 0
      %5137 = vmatprep.subr.bf16.mxu0 0
      %5138 = vmatpush1.bf16.msra.mxu0 0
      %5139 = vmatprep.subr.bf16.mxu0 0
      %5140 = vmatpush1.bf16.msra.mxu0 0
      %5141 = vmatprep.subr.bf16.mxu0 0
      %5142 = vmatpush1.bf16.msra.mxu0 0
      %5143 = vmatprep.subr.bf16.mxu0 0
      %5144 = vmatpush1.bf16.msra.mxu0 0
      %5145 = vmatprep.subr.bf16.mxu0 0
      %5146 = vmatpush1.bf16.msra.mxu0 0
      %5147 = vmatprep.subr.bf16.mxu0 0
      %5148 = vmatpush1.bf16.msra.mxu0 0
      %5149 = vmatprep.subr.bf16.mxu0 0
      %5150 = vmatpush1.bf16.msra.mxu0 0
      %5151 = vmatprep.mubr.bf16.mxu0 0
      %5152 = vmatmul.mubr.bf16.gmra.mrb[0].mxu0 %v5074
      %v5153 = vpop.f32.mrb[0].mxu0
      %v5154 = vadd.f32 0.0, %v5153
      %v5155 = vpop.f32.mrb[0].mxu0
      %v5156 = vpop.f32.mrb[0].mxu0
      %v5157 = vadd.f32 0.0, %v5156
      %v5158 = vpop.f32.mrb[0].mxu0
      %5159 = vdwg.mxu0
      %v5160 = vadd.f32 %v4975, %v5111
      %v5161 = vadd.f32 %v4976, %v5113
      %v5162 = vadd.f32 %v4977, %v5154
      %v5163 = vadd.f32 %v4978, %v5115
      %v5164 = vadd.f32 %v4979, %v5117
      %v5165 = vadd.f32 %v4980, %v5157
      %s5166 = scalar_lea.vmem %s4, 32
      %v5167 = vld [vmem:[%s5166] sm:$0xf]
      %v5168 = vld [vmem:[%s5166 + $0x4] sm:$0xf]
      %v5171 = vunpack.c.l.b16 %v5167
      %v5172 = vunpack.c.l.b16 %v5168
      %v5173 = vpack.c.b16 %v5172, %v5171
      %v5175 = vsel %vm4532, %v5173, 0
      %5177 = vmatprep.subr.bf16.mxu0 %v4392
      %5178 = vmatpush1.bf16.msra.mxu0 %v4391
      %5179 = vmatprep.subr.bf16.mxu0 %v4396
      %5180 = vmatpush1.bf16.msra.mxu0 %v4395
      %5181 = vmatprep.subr.bf16.mxu0 %v4400
      %5182 = vmatpush1.bf16.msra.mxu0 %v4399
      %5183 = vmatprep.subr.bf16.mxu0 %v4404
      %5184 = vmatpush1.bf16.msra.mxu0 %v4403
      %5185 = vmatprep.subr.bf16.mxu0 %v4408
      %5186 = vmatpush1.bf16.msra.mxu0 %v4407
      %5187 = vmatprep.subr.bf16.mxu0 %v4412
      %5188 = vmatpush1.bf16.msra.mxu0 %v4411
      %5189 = vmatprep.subr.bf16.mxu0 0
      %5190 = vmatpush1.bf16.msra.mxu0 0
      %5191 = vmatprep.subr.bf16.mxu0 0
      %5192 = vmatpush1.bf16.msra.mxu0 0
      %5193 = vmatprep.subr.bf16.mxu0 0
      %5194 = vmatpush1.bf16.msra.mxu0 0
      %5195 = vmatprep.subr.bf16.mxu0 0
      %5196 = vmatpush1.bf16.msra.mxu0 0
      %5197 = vmatprep.subr.bf16.mxu0 0
      %5198 = vmatpush1.bf16.msra.mxu0 0
      %5199 = vmatprep.subr.bf16.mxu0 0
      %5200 = vmatpush1.bf16.msra.mxu0 0
      %5201 = vmatprep.subr.bf16.mxu0 0
      %5202 = vmatpush1.bf16.msra.mxu0 0
      %5203 = vmatprep.subr.bf16.mxu0 0
      %5204 = vmatpush1.bf16.msra.mxu0 0
      %5205 = vmatprep.subr.bf16.mxu0 0
      %5206 = vmatpush1.bf16.msra.mxu0 0
      %5207 = vmatprep.subr.bf16.mxu0 0
      %5208 = vmatpush1.bf16.msra.mxu0 0
      %5209 = vmatprep.mubr.bf16.mxu0 0
      %5210 = vmatmul.mubr.bf16.gmra.mrb[0].mxu0 %v5175
      %v5211 = vpop.f32.mrb[0].mxu0
      %v5212 = vadd.f32 0.0, %v5211
      %v5213 = vpop.f32.mrb[0].mxu0
      %v5214 = vadd.f32 0.0, %v5213
      %v5215 = vpop.f32.mrb[0].mxu0
      %v5216 = vadd.f32 0.0, %v5215
      %v5217 = vpop.f32.mrb[0].mxu0
      %v5218 = vadd.f32 0.0, %v5217
      %5219 = vdwg.mxu0
      %5220 = vmatprep.subr.bf16.mxu0 0
      %5221 = vmatpush1.bf16.msra.mxu0 %v4393
      %5222 = vmatprep.subr.bf16.mxu0 0
      %5223 = vmatpush1.bf16.msra.mxu0 %v4397
      %5224 = vmatprep.subr.bf16.mxu0 0
      %5225 = vmatpush1.bf16.msra.mxu0 %v4401
      %5226 = vmatprep.subr.bf16.mxu0 0
      %5227 = vmatpush1.bf16.msra.mxu0 %v4405
      %5228 = vmatprep.subr.bf16.mxu0 0
      %5229 = vmatpush1.bf16.msra.mxu0 %v4409
      %5230 = vmatprep.subr.bf16.mxu0 0
      %5231 = vmatpush1.bf16.msra.mxu0 %v4413
      %5232 = vmatprep.subr.bf16.mxu0 0
      %5233 = vmatpush1.bf16.msra.mxu0 0
      %5234 = vmatprep.subr.bf16.mxu0 0
      %5235 = vmatpush1.bf16.msra.mxu0 0
      %5236 = vmatprep.subr.bf16.mxu0 0
      %5237 = vmatpush1.bf16.msra.mxu0 0
      %5238 = vmatprep.subr.bf16.mxu0 0
      %5239 = vmatpush1.bf16.msra.mxu0 0
      %5240 = vmatprep.subr.bf16.mxu0 0
      %5241 = vmatpush1.bf16.msra.mxu0 0
      %5242 = vmatprep.subr.bf16.mxu0 0
      %5243 = vmatpush1.bf16.msra.mxu0 0
      %5244 = vmatprep.subr.bf16.mxu0 0
      %5245 = vmatpush1.bf16.msra.mxu0 0
      %5246 = vmatprep.subr.bf16.mxu0 0
      %5247 = vmatpush1.bf16.msra.mxu0 0
      %5248 = vmatprep.subr.bf16.mxu0 0
      %5249 = vmatpush1.bf16.msra.mxu0 0
      %5250 = vmatprep.subr.bf16.mxu0 0
      %5251 = vmatpush1.bf16.msra.mxu0 0
      %5252 = vmatprep.mubr.bf16.mxu0 0
      %5253 = vmatmul.mubr.bf16.gmra.mrb[0].mxu0 %v5175
      %v5254 = vpop.f32.mrb[0].mxu0
      %v5255 = vadd.f32 0.0, %v5254
      %v5256 = vpop.f32.mrb[0].mxu0
      %v5257 = vpop.f32.mrb[0].mxu0
      %v5258 = vadd.f32 0.0, %v5257
      %v5259 = vpop.f32.mrb[0].mxu0
      %5260 = vdwg.mxu0
      %v5261 = vadd.f32 %v5160, %v5212
      %v5262 = vadd.f32 %v5161, %v5214
      %v5263 = vadd.f32 %v5162, %v5255
      %v5264 = vadd.f32 %v5163, %v5216
      %v5265 = vadd.f32 %v5164, %v5218
      %v5266 = vadd.f32 %v5165, %v5258
      %s5267 = scalar_lea.vmem %s4, 40
      %v5268 = vld [vmem:[%s5267] sm:$0xf]
      %v5269 = vld [vmem:[%s5267 + $0x4] sm:$0xf]
      %v5272 = vunpack.c.l.b16 %v5268
      %v5273 = vunpack.c.l.b16 %v5269
      %v5274 = vpack.c.b16 %v5273, %v5272
      %5275 = vrot.lane.b32.xlu0 %v4391, 127
      %v5276 = vpop.permute.xlu0 %5275
      %5277 = vrot.lane.b32.xlu0 %v4392, 127
      %v5278 = vpop.permute.xlu0 %5277
      %5279 = vrot.lane.b32.xlu0 %v4393, 127
      %v5280 = vpop.permute.xlu0 %5279
      %5281 = vrot.lane.b32.xlu0 %v4395, 127
      %v5282 = vpop.permute.xlu0 %5281
      %5283 = vrot.lane.b32.xlu0 %v4396, 127
      %v5284 = vpop.permute.xlu0 %5283
      %5285 = vrot.lane.b32.xlu0 %v4397, 127
      %v5286 = vpop.permute.xlu0 %5285
      %5287 = vrot.lane.b32.xlu0 %v4399, 127
      %v5288 = vpop.permute.xlu0 %5287
      %5289 = vrot.lane.b32.xlu0 %v4400, 127
      %v5290 = vpop.permute.xlu0 %5289
      %5291 = vrot.lane.b32.xlu0 %v4401, 127
      %v5292 = vpop.permute.xlu0 %5291
      %5293 = vrot.lane.b32.xlu0 %v4403, 127
      %v5294 = vpop.permute.xlu0 %5293
      %5295 = vrot.lane.b32.xlu0 %v4404, 127
      %v5296 = vpop.permute.xlu0 %5295
      %5297 = vrot.lane.b32.xlu0 %v4405, 127
      %v5298 = vpop.permute.xlu0 %5297
      %5299 = vrot.lane.b32.xlu0 %v4407, 127
      %v5300 = vpop.permute.xlu0 %5299
      %5301 = vrot.lane.b32.xlu0 %v4408, 127
      %v5302 = vpop.permute.xlu0 %5301
      %5303 = vrot.lane.b32.xlu0 %v4409, 127
      %v5304 = vpop.permute.xlu0 %5303
      %5305 = vrot.lane.b32.xlu0 %v4411, 127
      %v5306 = vpop.permute.xlu0 %5305
      %5307 = vrot.lane.b32.xlu0 %v4412, 127
      %v5308 = vpop.permute.xlu0 %5307
      %5309 = vrot.lane.b32.xlu0 %v4413, 127
      %v5310 = vpop.permute.xlu0 %5309
      %v5311 = vsel %vm1941, %v5276, %v5278
      %v5312 = vsel %vm1941, %v5278, %v5280
      %v5313 = vsel %vm1941, %v5282, %v5284
      %v5314 = vsel %vm1941, %v5284, %v5286
      %v5315 = vsel %vm1941, %v5288, %v5290
      %v5316 = vsel %vm1941, %v5290, %v5292
      %v5317 = vsel %vm1941, %v5294, %v5296
      %v5318 = vsel %vm1941, %v5296, %v5298
      %v5319 = vsel %vm1941, %v5300, %v5302
      %v5320 = vsel %vm1941, %v5302, %v5304
      %v5321 = vsel %vm1941, %v5306, %v5308
      %v5322 = vsel %vm1941, %v5308, %v5310
      %v5342 = vsel %vm4532, %v5274, 0
      %5344 = vmatprep.subr.bf16.mxu0 %v5312
      %5345 = vmatpush1.bf16.msra.mxu0 %v5311
      %5346 = vmatprep.subr.bf16.mxu0 %v5314
      %5347 = vmatpush1.bf16.msra.mxu0 %v5313
      %5348 = vmatprep.subr.bf16.mxu0 %v5316
      %5349 = vmatpush1.bf16.msra.mxu0 %v5315
      %5350 = vmatprep.subr.bf16.mxu0 %v5318
      %5351 = vmatpush1.bf16.msra.mxu0 %v5317
      %5352 = vmatprep.subr.bf16.mxu0 %v5320
      %5353 = vmatpush1.bf16.msra.mxu0 %v5319
      %5354 = vmatprep.subr.bf16.mxu0 %v5322
      %5355 = vmatpush1.bf16.msra.mxu0 %v5321
      %5356 = vmatprep.subr.bf16.mxu0 0
      %5357 = vmatpush1.bf16.msra.mxu0 0
      %5358 = vmatprep.subr.bf16.mxu0 0
      %5359 = vmatpush1.bf16.msra.mxu0 0
      %5360 = vmatprep.subr.bf16.mxu0 0
      %5361 = vmatpush1.bf16.msra.mxu0 0
      %5362 = vmatprep.subr.bf16.mxu0 0
      %5363 = vmatpush1.bf16.msra.mxu0 0
      %5364 = vmatprep.subr.bf16.mxu0 0
      %5365 = vmatpush1.bf16.msra.mxu0 0
      %5366 = vmatprep.subr.bf16.mxu0 0
      %5367 = vmatpush1.bf16.msra.mxu0 0
      %5368 = vmatprep.subr.bf16.mxu0 0
      %5369 = vmatpush1.bf16.msra.mxu0 0
      %5370 = vmatprep.subr.bf16.mxu0 0
      %5371 = vmatpush1.bf16.msra.mxu0 0
      %5372 = vmatprep.subr.bf16.mxu0 0
      %5373 = vmatpush1.bf16.msra.mxu0 0
      %5374 = vmatprep.subr.bf16.mxu0 0
      %5375 = vmatpush1.bf16.msra.mxu0 0
      %5376 = vmatprep.mubr.bf16.mxu0 0
      %5377 = vmatmul.mubr.bf16.gmra.mrb[0].mxu0 %v5342
      %v5378 = vpop.f32.mrb[0].mxu0
      %v5379 = vadd.f32 0.0, %v5378
      %v5380 = vpop.f32.mrb[0].mxu0
      %v5381 = vadd.f32 0.0, %v5380
      %v5382 = vpop.f32.mrb[0].mxu0
      %v5383 = vadd.f32 0.0, %v5382
      %v5384 = vpop.f32.mrb[0].mxu0
      %v5385 = vadd.f32 0.0, %v5384
      %5386 = vdwg.mxu0
      %5387 = vmatprep.subr.bf16.mxu0 0
      %5388 = vmatpush1.bf16.msra.mxu0 %v5280
      %5389 = vmatprep.subr.bf16.mxu0 0
      %5390 = vmatpush1.bf16.msra.mxu0 %v5286
      %5391 = vmatprep.subr.bf16.mxu0 0
      %5392 = vmatpush1.bf16.msra.mxu0 %v5292
      %5393 = vmatprep.subr.bf16.mxu0 0
      %5394 = vmatpush1.bf16.msra.mxu0 %v5298
      %5395 = vmatprep.subr.bf16.mxu0 0
      %5396 = vmatpush1.bf16.msra.mxu0 %v5304
      %5397 = vmatprep.subr.bf16.mxu0 0
      %5398 = vmatpush1.bf16.msra.mxu0 %v5310
      %5399 = vmatprep.subr.bf16.mxu0 0
      %5400 = vmatpush1.bf16.msra.mxu0 0
      %5401 = vmatprep.subr.bf16.mxu0 0
      %5402 = vmatpush1.bf16.msra.mxu0 0
      %5403 = vmatprep.subr.bf16.mxu0 0
      %5404 = vmatpush1.bf16.msra.mxu0 0
      %5405 = vmatprep.subr.bf16.mxu0 0
      %5406 = vmatpush1.bf16.msra.mxu0 0
      %5407 = vmatprep.subr.bf16.mxu0 0
      %5408 = vmatpush1.bf16.msra.mxu0 0
      %5409 = vmatprep.subr.bf16.mxu0 0
      %5410 = vmatpush1.bf16.msra.mxu0 0
      %5411 = vmatprep.subr.bf16.mxu0 0
      %5412 = vmatpush1.bf16.msra.mxu0 0
      %5413 = vmatprep.subr.bf16.mxu0 0
      %5414 = vmatpush1.bf16.msra.mxu0 0
      %5415 = vmatprep.subr.bf16.mxu0 0
      %5416 = vmatpush1.bf16.msra.mxu0 0
      %5417 = vmatprep.subr.bf16.mxu0 0
      %5418 = vmatpush1.bf16.msra.mxu0 0
      %5419 = vmatprep.mubr.bf16.mxu0 0
      %5420 = vmatmul.mubr.bf16.gmra.mrb[0].mxu0 %v5342
      %v5421 = vpop.f32.mrb[0].mxu0
      %v5422 = vadd.f32 0.0, %v5421
      %v5423 = vpop.f32.mrb[0].mxu0
      %v5424 = vpop.f32.mrb[0].mxu0
      %v5425 = vadd.f32 0.0, %v5424
      %v5426 = vpop.f32.mrb[0].mxu0
      %5427 = vdwg.mxu0
      %v5428 = vadd.f32 %v5261, %v5379
      %v5429 = vadd.f32 %v5262, %v5381
      %v5430 = vadd.f32 %v5263, %v5422
      %v5431 = vadd.f32 %v5264, %v5383
      %v5432 = vadd.f32 %v5265, %v5385
      %v5433 = vadd.f32 %v5266, %v5425
      %s5434 = scalar_lea.vmem %s4, 48
      %v5435 = vld [vmem:[%s5434] sm:$0xf]
      %v5436 = vld [vmem:[%s5434 + $0x4] sm:$0xf]
      %v5439 = vunpack.c.l.b16 %v5435
      %v5440 = vunpack.c.l.b16 %v5436
      %v5441 = vpack.c.b16 %v5440, %v5439
      %5442 = vrot.lane.b32.xlu0 %v4391, 111
      %v5443 = vpop.permute.xlu0 %5442
      %5444 = vrot.lane.b32.xlu0 %v4392, 111
      %v5445 = vpop.permute.xlu0 %5444
      %5446 = vrot.lane.b32.xlu0 %v4393, 111
      %v5447 = vpop.permute.xlu0 %5446
      %5448 = vrot.lane.b32.xlu0 %v4395, 111
      %v5449 = vpop.permute.xlu0 %5448
      %5450 = vrot.lane.b32.xlu0 %v4396, 111
      %v5451 = vpop.permute.xlu0 %5450
      %5452 = vrot.lane.b32.xlu0 %v4397, 111
      %v5453 = vpop.permute.xlu0 %5452
      %5454 = vrot.lane.b32.xlu0 %v4399, 111
      %v5455 = vpop.permute.xlu0 %5454
      %5456 = vrot.lane.b32.xlu0 %v4400, 111
      %v5457 = vpop.permute.xlu0 %5456
      %5458 = vrot.lane.b32.xlu0 %v4401, 111
      %v5459 = vpop.permute.xlu0 %5458
      %5460 = vrot.lane.b32.xlu0 %v4403, 111
      %v5461 = vpop.permute.xlu0 %5460
      %5462 = vrot.lane.b32.xlu0 %v4404, 111
      %v5463 = vpop.permute.xlu0 %5462
      %5464 = vrot.lane.b32.xlu0 %v4405, 111
      %v5465 = vpop.permute.xlu0 %5464
      %5466 = vrot.lane.b32.xlu0 %v4407, 111
      %v5467 = vpop.permute.xlu0 %5466
      %5468 = vrot.lane.b32.xlu0 %v4408, 111
      %v5469 = vpop.permute.xlu0 %5468
      %5470 = vrot.lane.b32.xlu0 %v4409, 111
      %v5471 = vpop.permute.xlu0 %5470
      %5472 = vrot.lane.b32.xlu0 %v4411, 111
      %v5473 = vpop.permute.xlu0 %5472
      %5474 = vrot.lane.b32.xlu0 %v4412, 111
      %v5475 = vpop.permute.xlu0 %5474
      %5476 = vrot.lane.b32.xlu0 %v4413, 111
      %v5477 = vpop.permute.xlu0 %5476
      %v5478 = vsel %vm2087, %v5443, %v5445
      %v5479 = vsel %vm2087, %v5445, %v5447
      %v5480 = vsel %vm2087, %v5449, %v5451
      %v5481 = vsel %vm2087, %v5451, %v5453
      %v5482 = vsel %vm2087, %v5455, %v5457
      %v5483 = vsel %vm2087, %v5457, %v5459
      %v5484 = vsel %vm2087, %v5461, %v5463
      %v5485 = vsel %vm2087, %v5463, %v5465
      %v5486 = vsel %vm2087, %v5467, %v5469
      %v5487 = vsel %vm2087, %v5469, %v5471
      %v5488 = vsel %vm2087, %v5473, %v5475
      %v5489 = vsel %vm2087, %v5475, %v5477
      %v5509 = vsel %vm4532, %v5441, 0
      %5511 = vmatprep.subr.bf16.mxu0 %v5479
      %5512 = vmatpush1.bf16.msra.mxu0 %v5478
      %5513 = vmatprep.subr.bf16.mxu0 %v5481
      %5514 = vmatpush1.bf16.msra.mxu0 %v5480
      %5515 = vmatprep.subr.bf16.mxu0 %v5483
      %5516 = vmatpush1.bf16.msra.mxu0 %v5482
      %5517 = vmatprep.subr.bf16.mxu0 %v5485
      %5518 = vmatpush1.bf16.msra.mxu0 %v5484
      %5519 = vmatprep.subr.bf16.mxu0 %v5487
      %5520 = vmatpush1.bf16.msra.mxu0 %v5486
      %5521 = vmatprep.subr.bf16.mxu0 %v5489
      %5522 = vmatpush1.bf16.msra.mxu0 %v5488
      %5523 = vmatprep.subr.bf16.mxu0 0
      %5524 = vmatpush1.bf16.msra.mxu0 0
      %5525 = vmatprep.subr.bf16.mxu0 0
      %5526 = vmatpush1.bf16.msra.mxu0 0
      %5527 = vmatprep.subr.bf16.mxu0 0
      %5528 = vmatpush1.bf16.msra.mxu0 0
      %5529 = vmatprep.subr.bf16.mxu0 0
      %5530 = vmatpush1.bf16.msra.mxu0 0
      %5531 = vmatprep.subr.bf16.mxu0 0
      %5532 = vmatpush1.bf16.msra.mxu0 0
      %5533 = vmatprep.subr.bf16.mxu0 0
      %5534 = vmatpush1.bf16.msra.mxu0 0
      %5535 = vmatprep.subr.bf16.mxu0 0
      %5536 = vmatpush1.bf16.msra.mxu0 0
      %5537 = vmatprep.subr.bf16.mxu0 0
      %5538 = vmatpush1.bf16.msra.mxu0 0
      %5539 = vmatprep.subr.bf16.mxu0 0
      %5540 = vmatpush1.bf16.msra.mxu0 0
      %5541 = vmatprep.subr.bf16.mxu0 0
      %5542 = vmatpush1.bf16.msra.mxu0 0
      %5543 = vmatprep.mubr.bf16.mxu0 0
      %5544 = vmatmul.mubr.bf16.gmra.mrb[0].mxu0 %v5509
      %v5545 = vpop.f32.mrb[0].mxu0
      %v5546 = vadd.f32 0.0, %v5545
      %v5547 = vpop.f32.mrb[0].mxu0
      %v5548 = vadd.f32 0.0, %v5547
      %v5549 = vpop.f32.mrb[0].mxu0
      %v5550 = vadd.f32 0.0, %v5549
      %v5551 = vpop.f32.mrb[0].mxu0
      %v5552 = vadd.f32 0.0, %v5551
      %5553 = vdwg.mxu0
      %5554 = vmatprep.subr.bf16.mxu0 0
      %5555 = vmatpush1.bf16.msra.mxu0 %v5447
      %5556 = vmatprep.subr.bf16.mxu0 0
      %5557 = vmatpush1.bf16.msra.mxu0 %v5453
      %5558 = vmatprep.subr.bf16.mxu0 0
      %5559 = vmatpush1.bf16.msra.mxu0 %v5459
      %5560 = vmatprep.subr.bf16.mxu0 0
      %5561 = vmatpush1.bf16.msra.mxu0 %v5465
      %5562 = vmatprep.subr.bf16.mxu0 0
      %5563 = vmatpush1.bf16.msra.mxu0 %v5471
      %5564 = vmatprep.subr.bf16.mxu0 0
      %5565 = vmatpush1.bf16.msra.mxu0 %v5477
      %5566 = vmatprep.subr.bf16.mxu0 0
      %5567 = vmatpush1.bf16.msra.mxu0 0
      %5568 = vmatprep.subr.bf16.mxu0 0
      %5569 = vmatpush1.bf16.msra.mxu0 0
      %5570 = vmatprep.subr.bf16.mxu0 0
      %5571 = vmatpush1.bf16.msra.mxu0 0
      %5572 = vmatprep.subr.bf16.mxu0 0
      %5573 = vmatpush1.bf16.msra.mxu0 0
      %5574 = vmatprep.subr.bf16.mxu0 0
      %5575 = vmatpush1.bf16.msra.mxu0 0
      %5576 = vmatprep.subr.bf16.mxu0 0
      %5577 = vmatpush1.bf16.msra.mxu0 0
      %5578 = vmatprep.subr.bf16.mxu0 0
      %5579 = vmatpush1.bf16.msra.mxu0 0
      %5580 = vmatprep.subr.bf16.mxu0 0
      %5581 = vmatpush1.bf16.msra.mxu0 0
      %5582 = vmatprep.subr.bf16.mxu0 0
      %5583 = vmatpush1.bf16.msra.mxu0 0
      %5584 = vmatprep.subr.bf16.mxu0 0
      %5585 = vmatpush1.bf16.msra.mxu0 0
      %5586 = vmatprep.mubr.bf16.mxu0 0
      %5587 = vmatmul.mubr.bf16.gmra.mrb[0].mxu0 %v5509
      %v5588 = vpop.f32.mrb[0].mxu0
      %v5589 = vadd.f32 0.0, %v5588
      %v5590 = vpop.f32.mrb[0].mxu0
      %v5591 = vpop.f32.mrb[0].mxu0
      %v5592 = vadd.f32 0.0, %v5591
      %v5593 = vpop.f32.mrb[0].mxu0
      %5594 = vdwg.mxu0
      %v5595 = vadd.f32 %v5428, %v5546
      %v5596 = vadd.f32 %v5429, %v5548
      %v5597 = vadd.f32 %v5430, %v5589
      %v5598 = vadd.f32 %v5431, %v5550
      %v5599 = vadd.f32 %v5432, %v5552
      %v5600 = vadd.f32 %v5433, %v5592
      %s5601 = scalar_lea.vmem %s4, 56
      %v5602 = vld [vmem:[%s5601] sm:$0xf]
      %v5603 = vld [vmem:[%s5601 + $0x4] sm:$0xf]
      %v5606 = vunpack.c.l.b16 %v5602
      %v5607 = vunpack.c.l.b16 %v5603
      %v5608 = vpack.c.b16 %v5607, %v5606
      %5609 = vrot.lane.b32.xlu0 %v4391, 110
      %v5610 = vpop.permute.xlu0 %5609
      %5611 = vrot.lane.b32.xlu0 %v4392, 110
      %v5612 = vpop.permute.xlu0 %5611
      %5613 = vrot.lane.b32.xlu0 %v4393, 110
      %v5614 = vpop.permute.xlu0 %5613
      %5615 = vrot.lane.b32.xlu0 %v4395, 110
      %v5616 = vpop.permute.xlu0 %5615
      %5617 = vrot.lane.b32.xlu0 %v4396, 110
      %v5618 = vpop.permute.xlu0 %5617
      %5619 = vrot.lane.b32.xlu0 %v4397, 110
      %v5620 = vpop.permute.xlu0 %5619
      %5621 = vrot.lane.b32.xlu0 %v4399, 110
      %v5622 = vpop.permute.xlu0 %5621
      %5623 = vrot.lane.b32.xlu0 %v4400, 110
      %v5624 = vpop.permute.xlu0 %5623
      %5625 = vrot.lane.b32.xlu0 %v4401, 110
      %v5626 = vpop.permute.xlu0 %5625
      %5627 = vrot.lane.b32.xlu0 %v4403, 110
      %v5628 = vpop.permute.xlu0 %5627
      %5629 = vrot.lane.b32.xlu0 %v4404, 110
      %v5630 = vpop.permute.xlu0 %5629
      %5631 = vrot.lane.b32.xlu0 %v4405, 110
      %v5632 = vpop.permute.xlu0 %5631
      %5633 = vrot.lane.b32.xlu0 %v4407, 110
      %v5634 = vpop.permute.xlu0 %5633
      %5635 = vrot.lane.b32.xlu0 %v4408, 110
      %v5636 = vpop.permute.xlu0 %5635
      %5637 = vrot.lane.b32.xlu0 %v4409, 110
      %v5638 = vpop.permute.xlu0 %5637
      %5639 = vrot.lane.b32.xlu0 %v4411, 110
      %v5640 = vpop.permute.xlu0 %5639
      %5641 = vrot.lane.b32.xlu0 %v4412, 110
      %v5642 = vpop.permute.xlu0 %5641
      %5643 = vrot.lane.b32.xlu0 %v4413, 110
      %v5644 = vpop.permute.xlu0 %5643
      %v5645 = vsel %vm2233, %v5610, %v5612
      %v5646 = vsel %vm2233, %v5612, %v5614
      %v5647 = vsel %vm2233, %v5616, %v5618
      %v5648 = vsel %vm2233, %v5618, %v5620
      %v5649 = vsel %vm2233, %v5622, %v5624
      %v5650 = vsel %vm2233, %v5624, %v5626
      %v5651 = vsel %vm2233, %v5628, %v5630
      %v5652 = vsel %vm2233, %v5630, %v5632
      %v5653 = vsel %vm2233, %v5634, %v5636
      %v5654 = vsel %vm2233, %v5636, %v5638
      %v5655 = vsel %vm2233, %v5640, %v5642
      %v5656 = vsel %vm2233, %v5642, %v5644
      %v5676 = vsel %vm4532, %v5608, 0
      %5678 = vmatprep.subr.bf16.mxu0 %v5646
      %5679 = vmatpush1.bf16.msra.mxu0 %v5645
      %5680 = vmatprep.subr.bf16.mxu0 %v5648
      %5681 = vmatpush1.bf16.msra.mxu0 %v5647
      %5682 = vmatprep.subr.bf16.mxu0 %v5650
      %5683 = vmatpush1.bf16.msra.mxu0 %v5649
      %5684 = vmatprep.subr.bf16.mxu0 %v5652
      %5685 = vmatpush1.bf16.msra.mxu0 %v5651
      %5686 = vmatprep.subr.bf16.mxu0 %v5654
      %5687 = vmatpush1.bf16.msra.mxu0 %v5653
      %5688 = vmatprep.subr.bf16.mxu0 %v5656
      %5689 = vmatpush1.bf16.msra.mxu0 %v5655
      %5690 = vmatprep.subr.bf16.mxu0 0
      %5691 = vmatpush1.bf16.msra.mxu0 0
      %5692 = vmatprep.subr.bf16.mxu0 0
      %5693 = vmatpush1.bf16.msra.mxu0 0
      %5694 = vmatprep.subr.bf16.mxu0 0
      %5695 = vmatpush1.bf16.msra.mxu0 0
      %5696 = vmatprep.subr.bf16.mxu0 0
      %5697 = vmatpush1.bf16.msra.mxu0 0
      %5698 = vmatprep.subr.bf16.mxu0 0
      %5699 = vmatpush1.bf16.msra.mxu0 0
      %5700 = vmatprep.subr.bf16.mxu0 0
      %5701 = vmatpush1.bf16.msra.mxu0 0
      %5702 = vmatprep.subr.bf16.mxu0 0
      %5703 = vmatpush1.bf16.msra.mxu0 0
      %5704 = vmatprep.subr.bf16.mxu0 0
      %5705 = vmatpush1.bf16.msra.mxu0 0
      %5706 = vmatprep.subr.bf16.mxu0 0
      %5707 = vmatpush1.bf16.msra.mxu0 0
      %5708 = vmatprep.subr.bf16.mxu0 0
      %5709 = vmatpush1.bf16.msra.mxu0 0
      %5710 = vmatprep.mubr.bf16.mxu0 0
      %5711 = vmatmul.mubr.bf16.gmra.mrb[0].mxu0 %v5676
      %v5712 = vpop.f32.mrb[0].mxu0
      %v5713 = vadd.f32 0.0, %v5712
      %v5714 = vpop.f32.mrb[0].mxu0
      %v5715 = vadd.f32 0.0, %v5714
      %v5716 = vpop.f32.mrb[0].mxu0
      %v5717 = vadd.f32 0.0, %v5716
      %v5718 = vpop.f32.mrb[0].mxu0
      %v5719 = vadd.f32 0.0, %v5718
      %5720 = vdwg.mxu0
      %5721 = vmatprep.subr.bf16.mxu0 0
      %5722 = vmatpush1.bf16.msra.mxu0 %v5614
      %5723 = vmatprep.subr.bf16.mxu0 0
      %5724 = vmatpush1.bf16.msra.mxu0 %v5620
      %5725 = vmatprep.subr.bf16.mxu0 0
      %5726 = vmatpush1.bf16.msra.mxu0 %v5626
      %5727 = vmatprep.subr.bf16.mxu0 0
      %5728 = vmatpush1.bf16.msra.mxu0 %v5632
      %5729 = vmatprep.subr.bf16.mxu0 0
      %5730 = vmatpush1.bf16.msra.mxu0 %v5638
      %5731 = vmatprep.subr.bf16.mxu0 0
      %5732 = vmatpush1.bf16.msra.mxu0 %v5644
      %5733 = vmatprep.subr.bf16.mxu0 0
      %5734 = vmatpush1.bf16.msra.mxu0 0
      %5735 = vmatprep.subr.bf16.mxu0 0
      %5736 = vmatpush1.bf16.msra.mxu0 0
      %5737 = vmatprep.subr.bf16.mxu0 0
      %5738 = vmatpush1.bf16.msra.mxu0 0
      %5739 = vmatprep.subr.bf16.mxu0 0
      %5740 = vmatpush1.bf16.msra.mxu0 0
      %5741 = vmatprep.subr.bf16.mxu0 0
      %5742 = vmatpush1.bf16.msra.mxu0 0
      %5743 = vmatprep.subr.bf16.mxu0 0
      %5744 = vmatpush1.bf16.msra.mxu0 0
      %5745 = vmatprep.subr.bf16.mxu0 0
      %5746 = vmatpush1.bf16.msra.mxu0 0
      %5747 = vmatprep.subr.bf16.mxu0 0
      %5748 = vmatpush1.bf16.msra.mxu0 0
      %5749 = vmatprep.subr.bf16.mxu0 0
      %5750 = vmatpush1.bf16.msra.mxu0 0
      %5751 = vmatprep.subr.bf16.mxu0 0
      %5752 = vmatpush1.bf16.msra.mxu0 0
      %5753 = vmatprep.mubr.bf16.mxu0 0
      %5754 = vmatmul.mubr.bf16.gmra.mrb[0].mxu0 %v5676
      %v5755 = vpop.f32.mrb[0].mxu0
      %v5756 = vadd.f32 0.0, %v5755
      %v5757 = vpop.f32.mrb[0].mxu0
      %v5758 = vpop.f32.mrb[0].mxu0
      %v5759 = vadd.f32 0.0, %v5758
      %v5760 = vpop.f32.mrb[0].mxu0
      %5761 = vdwg.mxu0
      %v5762 = vadd.f32 %v5595, %v5713
      %v5763 = vadd.f32 %v5596, %v5715
      %v5764 = vadd.f32 %v5597, %v5756
      %v5765 = vadd.f32 %v5598, %v5717
      %v5766 = vadd.f32 %v5599, %v5719
      %v5767 = vadd.f32 %v5600, %v5759
      %s5768 = scalar_lea.vmem %s4, 64
      %v5769 = vld [vmem:[%s5768] sm:$0xf]
      %v5770 = vld [vmem:[%s5768 + $0x4] sm:$0xf]
      %v5773 = vunpack.c.l.b16 %v5769
      %v5774 = vunpack.c.l.b16 %v5770
      %v5775 = vpack.c.b16 %v5774, %v5773
      %5776 = vrot.lane.b32.xlu0 %v4391, 109
      %v5777 = vpop.permute.xlu0 %5776
      %5778 = vrot.lane.b32.xlu0 %v4392, 109
      %v5779 = vpop.permute.xlu0 %5778
      %5780 = vrot.lane.b32.xlu0 %v4393, 109
      %v5781 = vpop.permute.xlu0 %5780
      %5782 = vrot.lane.b32.xlu0 %v4395, 109
      %v5783 = vpop.permute.xlu0 %5782
      %5784 = vrot.lane.b32.xlu0 %v4396, 109
      %v5785 = vpop.permute.xlu0 %5784
      %5786 = vrot.lane.b32.xlu0 %v4397, 109
      %v5787 = vpop.permute.xlu0 %5786
      %5788 = vrot.lane.b32.xlu0 %v4399, 109
      %v5789 = vpop.permute.xlu0 %5788
      %5790 = vrot.lane.b32.xlu0 %v4400, 109
      %v5791 = vpop.permute.xlu0 %5790
      %5792 = vrot.lane.b32.xlu0 %v4401, 109
      %v5793 = vpop.permute.xlu0 %5792
      %5794 = vrot.lane.b32.xlu0 %v4403, 109
      %v5795 = vpop.permute.xlu0 %5794
      %5796 = vrot.lane.b32.xlu0 %v4404, 109
      %v5797 = vpop.permute.xlu0 %5796
      %5798 = vrot.lane.b32.xlu0 %v4405, 109
      %v5799 = vpop.permute.xlu0 %5798
      %5800 = vrot.lane.b32.xlu0 %v4407, 109
      %v5801 = vpop.permute.xlu0 %5800
      %5802 = vrot.lane.b32.xlu0 %v4408, 109
      %v5803 = vpop.permute.xlu0 %5802
      %5804 = vrot.lane.b32.xlu0 %v4409, 109
      %v5805 = vpop.permute.xlu0 %5804
      %5806 = vrot.lane.b32.xlu0 %v4411, 109
      %v5807 = vpop.permute.xlu0 %5806
      %5808 = vrot.lane.b32.xlu0 %v4412, 109
      %v5809 = vpop.permute.xlu0 %5808
      %5810 = vrot.lane.b32.xlu0 %v4413, 109
      %v5811 = vpop.permute.xlu0 %5810
      %v5812 = vsel %vm2379, %v5777, %v5779
      %v5813 = vsel %vm2379, %v5779, %v5781
      %v5814 = vsel %vm2379, %v5783, %v5785
      %v5815 = vsel %vm2379, %v5785, %v5787
      %v5816 = vsel %vm2379, %v5789, %v5791
      %v5817 = vsel %vm2379, %v5791, %v5793
      %v5818 = vsel %vm2379, %v5795, %v5797
      %v5819 = vsel %vm2379, %v5797, %v5799
      %v5820 = vsel %vm2379, %v5801, %v5803
      %v5821 = vsel %vm2379, %v5803, %v5805
      %v5822 = vsel %vm2379, %v5807, %v5809
      %v5823 = vsel %vm2379, %v5809, %v5811
      %v5843 = vsel %vm4532, %v5775, 0
      %5845 = vmatprep.subr.bf16.mxu0 %v5813
      %5846 = vmatpush1.bf16.msra.mxu0 %v5812
      %5847 = vmatprep.subr.bf16.mxu0 %v5815
      %5848 = vmatpush1.bf16.msra.mxu0 %v5814
      %5849 = vmatprep.subr.bf16.mxu0 %v5817
      %5850 = vmatpush1.bf16.msra.mxu0 %v5816
      %5851 = vmatprep.subr.bf16.mxu0 %v5819
      %5852 = vmatpush1.bf16.msra.mxu0 %v5818
      %5853 = vmatprep.subr.bf16.mxu0 %v5821
      %5854 = vmatpush1.bf16.msra.mxu0 %v5820
      %5855 = vmatprep.subr.bf16.mxu0 %v5823
      %5856 = vmatpush1.bf16.msra.mxu0 %v5822
      %5857 = vmatprep.subr.bf16.mxu0 0
      %5858 = vmatpush1.bf16.msra.mxu0 0
      %5859 = vmatprep.subr.bf16.mxu0 0
      %5860 = vmatpush1.bf16.msra.mxu0 0
      %5861 = vmatprep.subr.bf16.mxu0 0
      %5862 = vmatpush1.bf16.msra.mxu0 0
      %5863 = vmatprep.subr.bf16.mxu0 0
      %5864 = vmatpush1.bf16.msra.mxu0 0
      %5865 = vmatprep.subr.bf16.mxu0 0
      %5866 = vmatpush1.bf16.msra.mxu0 0
      %5867 = vmatprep.subr.bf16.mxu0 0
      %5868 = vmatpush1.bf16.msra.mxu0 0
      %5869 = vmatprep.subr.bf16.mxu0 0
      %5870 = vmatpush1.bf16.msra.mxu0 0
      %5871 = vmatprep.subr.bf16.mxu0 0
      %5872 = vmatpush1.bf16.msra.mxu0 0
      %5873 = vmatprep.subr.bf16.mxu0 0
      %5874 = vmatpush1.bf16.msra.mxu0 0
      %5875 = vmatprep.subr.bf16.mxu0 0
      %5876 = vmatpush1.bf16.msra.mxu0 0
      %5877 = vmatprep.mubr.bf16.mxu0 0
      %5878 = vmatmul.mubr.bf16.gmra.mrb[0].mxu0 %v5843
      %v5879 = vpop.f32.mrb[0].mxu0
      %v5880 = vadd.f32 0.0, %v5879
      %v5881 = vpop.f32.mrb[0].mxu0
      %v5882 = vadd.f32 0.0, %v5881
      %v5883 = vpop.f32.mrb[0].mxu0
      %v5884 = vadd.f32 0.0, %v5883
      %v5885 = vpop.f32.mrb[0].mxu0
      %v5886 = vadd.f32 0.0, %v5885
      %5887 = vdwg.mxu0
      %5888 = vmatprep.subr.bf16.mxu0 0
      %5889 = vmatpush1.bf16.msra.mxu0 %v5781
      %5890 = vmatprep.subr.bf16.mxu0 0
      %5891 = vmatpush1.bf16.msra.mxu0 %v5787
      %5892 = vmatprep.subr.bf16.mxu0 0
      %5893 = vmatpush1.bf16.msra.mxu0 %v5793
      %5894 = vmatprep.subr.bf16.mxu0 0
      %5895 = vmatpush1.bf16.msra.mxu0 %v5799
      %5896 = vmatprep.subr.bf16.mxu0 0
      %5897 = vmatpush1.bf16.msra.mxu0 %v5805
      %5898 = vmatprep.subr.bf16.mxu0 0
      %5899 = vmatpush1.bf16.msra.mxu0 %v5811
      %5900 = vmatprep.subr.bf16.mxu0 0
      %5901 = vmatpush1.bf16.msra.mxu0 0
      %5902 = vmatprep.subr.bf16.mxu0 0
      %5903 = vmatpush1.bf16.msra.mxu0 0
      %5904 = vmatprep.subr.bf16.mxu0 0
      %5905 = vmatpush1.bf16.msra.mxu0 0
      %5906 = vmatprep.subr.bf16.mxu0 0
      %5907 = vmatpush1.bf16.msra.mxu0 0
      %5908 = vmatprep.subr.bf16.mxu0 0
      %5909 = vmatpush1.bf16.msra.mxu0 0
      %5910 = vmatprep.subr.bf16.mxu0 0
      %5911 = vmatpush1.bf16.msra.mxu0 0
      %5912 = vmatprep.subr.bf16.mxu0 0
      %5913 = vmatpush1.bf16.msra.mxu0 0
      %5914 = vmatprep.subr.bf16.mxu0 0
      %5915 = vmatpush1.bf16.msra.mxu0 0
      %5916 = vmatprep.subr.bf16.mxu0 0
      %5917 = vmatpush1.bf16.msra.mxu0 0
      %5918 = vmatprep.subr.bf16.mxu0 0
      %5919 = vmatpush1.bf16.msra.mxu0 0
      %5920 = vmatprep.mubr.bf16.mxu0 0
      %5921 = vmatmul.mubr.bf16.gmra.mrb[0].mxu0 %v5843
      %v5922 = vpop.f32.mrb[0].mxu0
      %v5923 = vadd.f32 0.0, %v5922
      %v5924 = vpop.f32.mrb[0].mxu0
      %v5925 = vpop.f32.mrb[0].mxu0
      %v5926 = vadd.f32 0.0, %v5925
      %v5927 = vpop.f32.mrb[0].mxu0
      %5928 = vdwg.mxu0
      %v5929 = vadd.f32 %v5762, %v5880
      %v5930 = vadd.f32 %v5763, %v5882
      %v5931 = vadd.f32 %v5764, %v5923
      %v5932 = vadd.f32 %v5765, %v5884
      %v5933 = vadd.f32 %v5766, %v5886
      %v5934 = vadd.f32 %v5767, %v5926
      %v5935 = vmul.f32 %v5929, %v2497
      %v5936 = vmul.f32 %v5930, %v2501
      %v5937 = vmul.f32 %v5931, %v2505
      %v5938 = vmul.f32 %v5932, %v2497
      %v5939 = vmul.f32 %v5933, %v2501
      %v5940 = vmul.f32 %v5934, %v2505
      %v5941 = vadd.f32 %v5935, %v5936
      %v5942 = vsel %vm236, %v5937, 0.0
      %v5943 = vadd.f32 %v5941, %v5942
      %5944 = vadd.xlane.f32.xlu0 %v5943
      %v5945 = vpop.xlane.xlu0 %5944
      %v5946 = vadd.f32 %v5938, %v5939
      %v5947 = vsel %vm236, %v5940, 0.0
      %v5948 = vadd.f32 %v5946, %v5947
      %5949 = vadd.xlane.f32.xlu0 %v5948
      %v5950 = vpop.xlane.xlu0 %5949
      %v5951 = vmul.f32 %v5945, 0.00390625
      %v5952 = vmul.f32 %v5950, 0.00390625
      %v5953 = vmul.f32 %v5935, %v5935
      %v5954 = vmul.f32 %v5936, %v5936
      %v5955 = vmul.f32 %v5937, %v5937
      %v5956 = vmul.f32 %v5938, %v5938
      %v5957 = vmul.f32 %v5939, %v5939
      %v5958 = vmul.f32 %v5940, %v5940
      %v5959 = vadd.f32 %v5953, %v5954
      %v5960 = vsel %vm236, %v5955, 0.0
      %v5961 = vadd.f32 %v5959, %v5960
      %5962 = vadd.xlane.f32.xlu0 %v5961
      %v5963 = vpop.xlane.xlu0 %5962
      %v5964 = vadd.f32 %v5956, %v5957
      %v5965 = vsel %vm236, %v5958, 0.0
      %v5966 = vadd.f32 %v5964, %v5965
      %5967 = vadd.xlane.f32.xlu0 %v5966
      %v5968 = vpop.xlane.xlu0 %5967
      %v5969 = vmul.f32 %v5963, 0.00390625
      %v5970 = vmul.f32 %v5968, 0.00390625
      %v5971 = vmul.f32 %v5951, %v5951
      %v5972 = vmul.f32 %v5952, %v5952
      %v5973 = vsub.f32 %v5969, %v5971
      %v5974 = vsub.f32 %v5970, %v5972
      %v5975 = vmax.f32 %v5973, 0.0
      %v5976 = vmax.f32 %v5974, 0.0
      %v5977 = vsub.f32 %v5929, %v5951
      %v5978 = vsub.f32 %v5930, %v5951
      %v5979 = vsub.f32 %v5931, %v5951
      %v5980 = vsub.f32 %v5932, %v5952
      %v5981 = vsub.f32 %v5933, %v5952
      %v5982 = vsub.f32 %v5934, %v5952
      %v5983 = vadd.f32 %v5975, 1e-05
      %v5984 = vadd.f32 %v5976, 1e-05
      %v5985 = vrsqrt.pop %v5983
      %v5986 = vrsqrt.pop %v5984
      %v5987 = vmul.f32 %v5977, %v5985
      %v5988 = vmul.f32 %v5978, %v5985
      %v5989 = vmul.f32 %v5979, %v5985
      %v5990 = vmul.f32 %v5980, %v5986
      %v5991 = vmul.f32 %v5981, %v5986
      %v5992 = vmul.f32 %v5982, %v5986
      %v5993 = vmax.f32 %v5987, 0.0
      %v5994 = vmax.f32 %v5988, 0.0
      %v5995 = vmax.f32 %v5989, 0.0
      %v5996 = vmax.f32 %v5990, 0.0
      %v5997 = vmax.f32 %v5991, 0.0
      %v5998 = vmax.f32 %v5992, 0.0
      %v5999 = vmul.f32 %v5993, %v2497
      %v6000 = vmul.f32 %v5994, %v2501
      %v6001 = vmul.f32 %v5995, %v2505
      %v6002 = vmul.f32 %v5996, %v2497
      %v6003 = vmul.f32 %v5997, %v2501
      %v6004 = vmul.f32 %v5998, %v2505
      %v6005 = vpack.c.bf16 %v6002, %v5999
      %v6006 = vpack.c.bf16 %v6003, %v6000
      %v6007 = vpack.c.bf16 %v6004, %v6001
      %6008 = vst [vmem:[#allocation2 + $0xf8] sm:$0xff] %v6005
      %6009 = vst [vmem:[#allocation2 + $0x100] sm:$0xff] %v6006
      %6010 = vst.msk [vmem:[#allocation2 + $0x108] sm:$0xff] %vm236, %v6007
      %6013 = vrot.lane.b32.xlu0 %v5999, 109
      %v6014 = vpop.permute.xlu0 %6013
      %6015 = vrot.lane.b32.xlu0 %v6002, 109
      %v6016 = vpop.permute.xlu0 %6015
      %6019 = vst.msk [vmem:[%s224 + $0xc0] sm:$0xff] %vm338, %v6014
      %6020 = vst.msk [vmem:[%s224 + $0xd0] sm:$0xff] %vm338, %v6016
      %6021 = vrot.lane.b32.xlu0 %v5999, 107
      %v6022 = vpop.permute.xlu0 %6021
      %6023 = vrot.lane.b32.xlu0 %v6002, 107
      %v6024 = vpop.permute.xlu0 %6023
      %6027 = vst.msk [vmem:[%s224 + $0xc0] sm:$0xff] %vm387, %v6022
      %6028 = vst.msk [vmem:[%s224 + $0xd0] sm:$0xff] %vm387, %v6024
      %6029 = vrot.lane.b32.xlu0 %v5999, 105
      %v6030 = vpop.permute.xlu0 %6029
      %6031 = vrot.lane.b32.xlu0 %v6002, 105
      %v6032 = vpop.permute.xlu0 %6031
      %6035 = vst.msk [vmem:[%s224 + $0xc0] sm:$0xff] %vm436, %v6030
      %6036 = vst.msk [vmem:[%s224 + $0xd0] sm:$0xff] %vm436, %v6032
      %6037 = vrot.lane.b32.xlu0 %v5999, 103
      %v6038 = vpop.permute.xlu0 %6037
      %6039 = vrot.lane.b32.xlu0 %v6002, 103
      %v6040 = vpop.permute.xlu0 %6039
      %6043 = vst.msk [vmem:[%s224 + $0xc0] sm:$0xff] %vm485, %v6038
      %6044 = vst.msk [vmem:[%s224 + $0xd0] sm:$0xff] %vm485, %v6040
      %6045 = vrot.lane.b32.xlu0 %v5999, 101
      %v6046 = vpop.permute.xlu0 %6045
      %6047 = vrot.lane.b32.xlu0 %v6002, 101
      %v6048 = vpop.permute.xlu0 %6047
      %6051 = vst.msk [vmem:[%s224 + $0xc0] sm:$0xff] %vm534, %v6046
      %6052 = vst.msk [vmem:[%s224 + $0xd0] sm:$0xff] %vm534, %v6048
      %6053 = vrot.lane.b32.xlu0 %v5999, 99
      %v6054 = vpop.permute.xlu0 %6053
      %6055 = vrot.lane.b32.xlu0 %v6002, 99
      %v6056 = vpop.permute.xlu0 %6055
      %6059 = vst.msk [vmem:[%s224 + $0xc0] sm:$0xff] %vm583, %v6054
      %6060 = vst.msk [vmem:[%s224 + $0xd0] sm:$0xff] %vm583, %v6056
      %6063 = vrot.lane.b32.xlu0 %v5999, 97
      %v6064 = vpop.permute.xlu0 %6063
      %6065 = vrot.lane.b32.xlu0 %v6000, 97
      %v6066 = vpop.permute.xlu0 %6065
      %6067 = vrot.lane.b32.xlu0 %v6002, 97
      %v6068 = vpop.permute.xlu0 %6067
      %6069 = vrot.lane.b32.xlu0 %v6003, 97
      %v6070 = vpop.permute.xlu0 %6069
      %v6071 = vsel %vm656, %v6064, %v6066
      %v6072 = vsel %vm656, %v6068, %v6070
      %6075 = vst.msk [vmem:[%s224 + $0xc0] sm:$0xff] %vm673, %v6071
      %6076 = vst.msk [vmem:[%s224 + $0xd0] sm:$0xff] %vm673, %v6072
      %6077 = vrot.lane.b32.xlu0 %v6000, 95
      %v6078 = vpop.permute.xlu0 %6077
      %6079 = vrot.lane.b32.xlu0 %v6003, 95
      %v6080 = vpop.permute.xlu0 %6079
      %6083 = vst.msk [vmem:[%s224 + $0xc0] sm:$0xff] %vm722, %v6078
      %6084 = vst.msk [vmem:[%s224 + $0xd0] sm:$0xff] %vm722, %v6080
      %6085 = vrot.lane.b32.xlu0 %v6000, 93
      %v6086 = vpop.permute.xlu0 %6085
      %6087 = vrot.lane.b32.xlu0 %v6003, 93
      %v6088 = vpop.permute.xlu0 %6087
      %6091 = vst.msk [vmem:[%s224 + $0xc8] sm:$0xff] %vm338, %v6086
      %6092 = vst.msk [vmem:[%s224 + $0xd8] sm:$0xff] %vm338, %v6088
      %6093 = vrot.lane.b32.xlu0 %v6000, 91
      %v6094 = vpop.permute.xlu0 %6093
      %6095 = vrot.lane.b32.xlu0 %v6003, 91
      %v6096 = vpop.permute.xlu0 %6095
      %6099 = vst.msk [vmem:[%s224 + $0xc8] sm:$0xff] %vm387, %v6094
      %6100 = vst.msk [vmem:[%s224 + $0xd8] sm:$0xff] %vm387, %v6096
      %6101 = vrot.lane.b32.xlu0 %v6000, 89
      %v6102 = vpop.permute.xlu0 %6101
      %6103 = vrot.lane.b32.xlu0 %v6003, 89
      %v6104 = vpop.permute.xlu0 %6103
      %6107 = vst.msk [vmem:[%s224 + $0xc8] sm:$0xff] %vm436, %v6102
      %6108 = vst.msk [vmem:[%s224 + $0xd8] sm:$0xff] %vm436, %v6104
      %6109 = vrot.lane.b32.xlu0 %v6000, 87
      %v6110 = vpop.permute.xlu0 %6109
      %6111 = vrot.lane.b32.xlu0 %v6003, 87
      %v6112 = vpop.permute.xlu0 %6111
      %6115 = vst.msk [vmem:[%s224 + $0xc8] sm:$0xff] %vm485, %v6110
      %6116 = vst.msk [vmem:[%s224 + $0xd8] sm:$0xff] %vm485, %v6112
      %6117 = vrot.lane.b32.xlu0 %v6000, 85
      %v6118 = vpop.permute.xlu0 %6117
      %6119 = vrot.lane.b32.xlu0 %v6003, 85
      %v6120 = vpop.permute.xlu0 %6119
      %6123 = vst.msk [vmem:[%s224 + $0xc8] sm:$0xff] %vm534, %v6118
      %6124 = vst.msk [vmem:[%s224 + $0xd8] sm:$0xff] %vm534, %v6120
      %6127 = vrot.lane.b32.xlu0 %v6000, 83
      %v6128 = vpop.permute.xlu0 %6127
      %6129 = vrot.lane.b32.xlu0 %v6001, 83
      %v6130 = vpop.permute.xlu0 %6129
      %6131 = vrot.lane.b32.xlu0 %v6003, 83
      %v6132 = vpop.permute.xlu0 %6131
      %6133 = vrot.lane.b32.xlu0 %v6004, 83
      %v6134 = vpop.permute.xlu0 %6133
      %v6135 = vsel %vm1035, %v6128, %v6130
      %v6136 = vsel %vm1035, %v6132, %v6134
      %6139 = vst.msk [vmem:[%s224 + $0xc8] sm:$0xff] %vm583, %v6135
      %6140 = vst.msk [vmem:[%s224 + $0xd8] sm:$0xff] %vm583, %v6136
      %6141 = vrot.lane.b32.xlu0 %v6001, 81
      %v6142 = vpop.permute.xlu0 %6141
      %6143 = vrot.lane.b32.xlu0 %v6004, 81
      %v6144 = vpop.permute.xlu0 %6143
      %6147 = vst.msk [vmem:[%s224 + $0xc8] sm:$0xff] %vm673, %v6142
      %6148 = vst.msk [vmem:[%s224 + $0xd8] sm:$0xff] %vm673, %v6144
      %6149 = vrot.lane.b32.xlu0 %v6001, 79
      %v6150 = vpop.permute.xlu0 %6149
      %6151 = vrot.lane.b32.xlu0 %v6004, 79
      %v6152 = vpop.permute.xlu0 %6151
      %6155 = vst.msk [vmem:[%s224 + $0xc8] sm:$0xff] %vm722, %v6150
      %6156 = vst.msk [vmem:[%s224 + $0xd8] sm:$0xff] %vm722, %v6152
      %p6157 = scmp.lt.s32.totalorder %s16, 1
      %s6158 = scalar_select %p6157, %s16, 1
      %s6159 = smul.addr %s6158, 28
      %s6160 = smul.addr %s6159, 8
      %s6161 = scalar_lea.vmem %s5, %s6160
      // Predicated region
      $region41: #{dense_skip_block_forward.1} parent=39 // pred_check
        %p6162 = pneg %p144
      $region42: #{dense_skip_block_forward.1} parent=39 // pred_check_branch
        %6164 = sbr.rel (%p6162) target = $region44
      $region43: #{dense_skip_block_forward.1} parent=39 // pred_region
        _
      $region44: #{dense_skip_block_forward.1} parent=39 // pred_fallthru
        _
    $region40: #{dense_skip_block_forward.1} parent=5 // pred_fallthru
      _
    %p6165 = scmp.le.s32.totalorder 2, %s11
    // Predicated region
    $region45: #{dense_skip_block_forward.1} parent=5 // pred_check
      %p6166 = pneg %p6165
    $region46: #{dense_skip_block_forward.1} parent=5 // pred_check_branch
      %6168 = sbr.rel (%p6166) target = $region48
    $region47: #{dense_skip_block_forward.1} parent=5 // pred_region
      %s6169 = ssub.s32 %s11, 2
      // Predicated region
      $region49: #{dense_skip_block_forward.1} parent=47 // pred_check
        %p6170 = pneg %p150
      $region50: #{dense_skip_block_forward.1} parent=47 // pred_check_branch
        %6172 = sbr.rel (%p6170) target = $region52
      $region51: #{dense_skip_block_forward.1} parent=47 // pred_region
        %p6173 = scmp.lt.s32.totalorder %s17, 1
        %s6174 = scalar_select %p6173, %s17, 1
        %s6175 = smul.addr %s6174, 28
        %s6176 = smul.addr %s6175, 8
        %s6177 = scalar_lea.vmem %s5, %s6176
      $region52: #{dense_skip_block_forward.1} parent=47 // pred_fallthru
        _
    $region48: #{dense_skip_block_forward.1} parent=5 // pred_fallthru
      _
  $region6: #{dense_skip_block_forward.1} parent=0 // loop_footer
    %s15 = sadd.s32 1, %s11
  $region7: #{dense_skip_block_forward.1} parent=0 // loop_footer_branch
    %10 = sbr.rel target = $region3
  $region8: #{dense_skip_block_forward.1} parent=0 // loop_exit
    _

</llo_original>
